<compile_context>
chip_gen: v6e
topology: v6e:2x2x1
jax: 0.10.0
libtpu: 0.0.40
codegen_flags: <defaults>
</compile_context>

<pallas_src>
import functools

import numpy as np

import jax
import jax.numpy as jnp
from jax.experimental import pallas as pl
from jax.experimental.pallas import tpu as pltpu


# ---------------------------------------------------------------------------
# Static helper: the set of flat-index shifts a 3x3 conv touches in the
# per-image (H*W*C)-flattened NHWC layout.
# ---------------------------------------------------------------------------
def _conv_deltas(H, W, C):
    return sorted({dy * W * C + dx * C + (ci - co)
                   for dy in (-1, 0, 1) for dx in (-1, 0, 1)
                   for ci in range(C) for co in range(C)})


# ---------------------------------------------------------------------------
# Parameter packing (one-time, host side).  For each flat-index shift `d` we
# build a per-lane weight vector WD[d, f] so that
#     conv_out_flat[f] = sum_d  x_flat[(f + d) mod L] * WD[d, f]
# with "SAME" zero padding encoded as zeros in WD (lanes whose tap would cross
# an image row / image boundary get weight 0, so the roll wrap is harmless).
# The BatchNorm scale is folded into WD; the two biases are packed separately.
# ---------------------------------------------------------------------------
def _pack_conv_np(K, H, W, deltas):
    C = K.shape[-1]
    assert K.shape == (3, 3, C, C), "stride-1 block requires Cin == Cout"
    L = H * W * C
    f = np.arange(L)
    h = f // (W * C)
    w = (f // C) % W
    co = f % C
    idx = {d: i for i, d in enumerate(deltas)}
    WD = np.zeros((len(deltas), L), np.float32)
    for dy in (-1, 0, 1):
        hv = (h + dy >= 0) & (h + dy < H)
        for dx in (-1, 0, 1):
            wv = (w + dx >= 0) & (w + dx < W)
            for ci in range(C):
                for c in range(C):
                    d = dy * W * C + dx * C + (ci - c)
                    sel = (hv & wv & (co == c)).astype(np.float32)
                    WD[idx[d]] += sel * K[dy + 1, dx + 1, ci, c]
    return WD


def pack_sparse_resblock_params(w1, w2, s1, b1, s2, b2, H, W):
    """w1/w2: (3,3,C,C) HWIO conv weights; s*/b*: (C,) folded BN scale/bias."""
    w1 = np.asarray(w1, np.float32)
    w2 = np.asarray(w2, np.float32)
    s1 = np.asarray(s1, np.float32).reshape(-1)
    b1 = np.asarray(b1, np.float32).reshape(-1)
    s2 = np.asarray(s2, np.float32).reshape(-1)
    b2 = np.asarray(b2, np.float32).reshape(-1)
    C = w1.shape[-1]
    deltas = _conv_deltas(H, W, C)
    # Fold BN scales into the conv weights (exact up to f32 re-association).
    wd1 = _pack_conv_np(w1 * s1[None, None, None, :], H, W, deltas)
    wd2 = _pack_conv_np(w2 * s2[None, None, None, :], H, W, deltas)
    bias = np.stack([np.tile(b1, H * W), np.tile(b2, H * W)])   # (2, H*W*C)
    return jnp.asarray(wd1), jnp.asarray(wd2), jnp.asarray(bias)


# ---------------------------------------------------------------------------
# Kernel: works on fully lane-packed (block_n, H*W*C) rows.  One image per
# sublane row; pltpu.roll along the 1024-lane axis never mixes images.
# ---------------------------------------------------------------------------
def _sparse_resblock_kernel(x_ref, m_ref, wd1_ref, wd2_ref, b_ref, out_ref,
                            *, deltas):
    L = x_ref.shape[-1]
    x = x_ref[...]                                   # (Nb, L) f32, read once
    m = m_ref[...]                                   # (Nb, L) mask, packed over C

    # ---- conv1 (+ folded bn1 scale): 45 lane-rolls + VPU FMAs ----
    acc = jnp.zeros(x.shape, jnp.float32)
    for i, d in enumerate(deltas):
        src = x if d == 0 else pltpu.roll(x, (-d) % L, axis=1)
        acc = acc + src * wd1_ref[i:i + 1, :]

    # sparse mask, bn1 bias, relu1
    mid = jnp.maximum(acc * m + b_ref[0:1, :], 0.0)

    # ---- conv2 (+ folded bn2 scale) ----
    acc2 = jnp.zeros(x.shape, jnp.float32)
    for i, d in enumerate(deltas):
        src = mid if d == 0 else pltpu.roll(mid, (-d) % L, axis=1)
        acc2 = acc2 + src * wd2_ref[i:i + 1, :]

    # sparse mask, bn2 bias, residual (x still in VMEM), relu2 — lane-dense store
    out_ref[...] = jnp.maximum(acc2 * m + b_ref[1:2, :] + x, 0.0)


# ---------------------------------------------------------------------------
# Wrapper.  Activations stay in NHWC; only free metadata reshapes to the flat
# lane-packed layout (no transposes, no padding copies of x).
# ---------------------------------------------------------------------------
@functools.partial(jax.jit, static_argnames=("block_n",))
def sparse_residual_block(x_nhwc, mask_hw, wd1, wd2, bias_packed, *, block_n=8):
    """x_nhwc: (N, H, W, C); mask_hw: (N, H, W). Returns (out_nhwc, mask_hw)."""
    N, H, W, C = x_nhwc.shape
    L = H * W * C
    assert N % block_n == 0, "batch must be divisible by block_n"
    deltas = tuple(_conv_deltas(H, W, C))
    assert wd1.shape == (len(deltas), L) and wd2.shape == (len(deltas), L)

    x_flat = x_nhwc.reshape(N, L).astype(jnp.float32)            # free reshape
    # Mask broadcast over channels once per call (tiny; reused across a stage).
    m_flat = jnp.broadcast_to(
        mask_hw.astype(jnp.float32)[:, :, :, None], (N, H, W, C)).reshape(N, L)

    grid_spec = pltpu.PrefetchScalarGridSpec(
        num_scalar_prefetch=0,
        grid=(N // block_n,),
        in_specs=[
            pl.BlockSpec((block_n, L), lambda n: (n, 0)),        # x (read once)
            pl.BlockSpec((block_n, L), lambda n: (n, 0)),        # packed mask
            pl.BlockSpec(wd1.shape, lambda n: (0, 0)),           # conv1 weights (DMA'd once)
            pl.BlockSpec(wd2.shape, lambda n: (0, 0)),           # conv2 weights (DMA'd once)
            pl.BlockSpec(bias_packed.shape, lambda n: (0, 0)),   # bn1/bn2 biases, packed
        ],
        out_specs=pl.BlockSpec((block_n, L), lambda n: (n, 0)),  # lane-dense (L % 128 == 0)
    )

    out_flat = pl.pallas_call(
        functools.partial(_sparse_resblock_kernel, deltas=deltas),
        out_shape=jax.ShapeDtypeStruct((N, L), jnp.float32),
        grid_spec=grid_spec,
        compiler_params=pltpu.CompilerParams(
            dimension_semantics=("parallel",)),    # even grid -> both v7x cores busy
    )(x_flat, m_flat, wd1, wd2, bias_packed)

    return out_flat.reshape(N, H, W, C), mask_hw


# ---------------------------------------------------------------------------
# Pure-JAX reference (NHWC convs) for correctness checking.
# ---------------------------------------------------------------------------
def _reference(x_nhwc, mask_hw, w1, w2, s1, b1, s2, b2):
    m = mask_hw[..., None].astype(jnp.float32)

    def conv(a, w):
        return jax.lax.conv_general_dilated(
            a, w, window_strides=(1, 1), padding="SAME",
            dimension_numbers=("NHWC", "HWIO", "NHWC"))

    out = conv(x_nhwc, w1)
    out = out * m
    out = out * s1 + b1
    out = jnp.maximum(out, 0.0)
    out = conv(out, w2)
    out = out * m
    out = out * s2 + b2
    out = out + x_nhwc
    return jnp.maximum(out, 0.0)


if __name__ == "__main__":
    # Small shapes: in_channels == out_channels, stride=1, no downsample.
    N, C, H, W = 64, 4, 16, 16           # N=64 -> grid=(8,), >=4 steps / core on v7x
    key = jax.random.PRNGKey(0)
    k = jax.random.split(key, 12)

    x = jax.random.normal(k[0], (N, H, W, C), jnp.float32)              # NHWC activations
    mask = (jax.random.uniform(k[1], (N, H, W)) > 0.3).astype(jnp.float32)

    # Conv weights (HWIO), kaiming-ish scale; no bias (bias=False in the module).
    w1 = jax.random.normal(k[2], (3, 3, C, C), jnp.float32) * (2.0 / (9 * C)) ** 0.5
    w2 = jax.random.normal(k[3], (3, 3, C, C), jnp.float32) * (2.0 / (9 * C)) ** 0.5

    # BatchNorm2d params / running stats (eval mode), folded to scale/bias.
    eps = 1e-5
    gamma1 = 1.0 + 0.1 * jax.random.normal(k[4], (C,), jnp.float32)
    beta1 = 0.1 * jax.random.normal(k[5], (C,), jnp.float32)
    mean1 = 0.1 * jax.random.normal(k[6], (C,), jnp.float32)
    var1 = 1.0 + 0.1 * jax.random.uniform(k[7], (C,), jnp.float32)
    gamma2 = 1.0 + 0.1 * jax.random.normal(k[8], (C,), jnp.float32)
    beta2 = 0.1 * jax.random.normal(k[9], (C,), jnp.float32)
    mean2 = 0.1 * jax.random.normal(k[10], (C,), jnp.float32)
    var2 = 1.0 + 0.1 * jax.random.uniform(k[11], (C,), jnp.float32)

    s1 = gamma1 / jnp.sqrt(var1 + eps)
    b1 = beta1 - mean1 * s1
    s2 = gamma2 / jnp.sqrt(var2 + eps)
    b2 = beta2 - mean2 * s2

    # One-time parameter packing (lane vectors, BN scale folded into weights).
    wd1, wd2, bias_packed = pack_sparse_resblock_params(w1, w2, s1, b1, s2, b2, H, W)

    out, mask_out = sparse_residual_block(x, mask, wd1, wd2, bias_packed, block_n=8)
    out = jax.block_until_ready(out)

    ref = _reference(x, mask, w1, w2, s1, b1, s2, b2)
    assert out.shape == (N, H, W, C)
    assert mask_out.shape == (N, H, W)
    assert jnp.allclose(out, ref, atol=1e-4, rtol=1e-4), "mismatch vs reference"

    print("KERNEL_OK")
</pallas_src>

<mosaic_0001>
module attributes {stable_mosaic.version = 11 : i64} {
  func.func @_sparse_resblock_kernel(%arg0: i32, %arg1: memref<8x1024xf32, #tpu.memory_space<vmem>>, %arg2: memref<8x1024xf32, #tpu.memory_space<vmem>>, %arg3: memref<45x1024xf32, #tpu.memory_space<vmem>>, %arg4: memref<45x1024xf32, #tpu.memory_space<vmem>>, %arg5: memref<2x1024xf32, #tpu.memory_space<vmem>>, %arg6: memref<8x1024xf32, #tpu.memory_space<vmem>>) attributes {dimension_semantics = [#tpu.dimension_semantics<parallel>], iteration_bounds = array<i64: 8>, scalar_prefetch = 0 : i64, scratch_operands = 0 : i64, tpu.core_type = #tpu.core_type<tc>, window_params = [{transform_indices = @transform_0, window_bounds = array<i64: 8, 1024>}, {transform_indices = @transform_1, window_bounds = array<i64: 8, 1024>}, {pipeline_mode = #tpu.pipeline_mode<synchronous>, transform_indices = @transform_2, window_bounds = array<i64: 45, 1024>}, {pipeline_mode = #tpu.pipeline_mode<synchronous>, transform_indices = @transform_3, window_bounds = array<i64: 45, 1024>}, {pipeline_mode = #tpu.pipeline_mode<synchronous>, transform_indices = @transform_4, window_bounds = array<i64: 2, 1024>}, {transform_indices = @transform_5, window_bounds = array<i64: 8, 1024>}]} {
    %c0 = arith.constant 0 : index
    %c0_0 = arith.constant 0 : index
    %0 = vector.load %arg1[%c0, %c0_0] : memref<8x1024xf32, #tpu.memory_space<vmem>>, vector<8x1024xf32>
    %c0_1 = arith.constant 0 : index
    %c0_2 = arith.constant 0 : index
    %1 = vector.load %arg2[%c0_1, %c0_2] : memref<8x1024xf32, #tpu.memory_space<vmem>>, vector<8x1024xf32>
    %cst = arith.constant 0.000000e+00 : f32
    %2 = vector.broadcast %cst : f32 to vector<8x1024xf32>
    %c71_i32 = arith.constant 71 : i32
    %3 = tpu.dynamic_rotate %0 by %c71_i32 dim 1 : vector<8x1024xf32>, i32 -> vector<8x1024xf32>
    %c0_3 = arith.constant 0 : index
    %c0_4 = arith.constant 0 : index
    %4 = vector.load %arg3[%c0_3, %c0_4] : memref<45x1024xf32, #tpu.memory_space<vmem>>, vector<1x1024xf32>
    %5 = vector.broadcast %4 : vector<1x1024xf32> to vector<8x1024xf32>
    %6 = arith.mulf %3, %5 : vector<8x1024xf32>
    %7 = arith.addf %2, %6 : vector<8x1024xf32>
    %c70_i32 = arith.constant 70 : i32
    %8 = tpu.dynamic_rotate %0 by %c70_i32 dim 1 : vector<8x1024xf32>, i32 -> vector<8x1024xf32>
    %c1 = arith.constant 1 : index
    %c0_5 = arith.constant 0 : index
    %9 = vector.load %arg3[%c1, %c0_5] : memref<45x1024xf32, #tpu.memory_space<vmem>>, vector<1x1024xf32>
    %10 = vector.broadcast %9 : vector<1x1024xf32> to vector<8x1024xf32>
    %11 = arith.mulf %8, %10 : vector<8x1024xf32>
    %12 = arith.addf %7, %11 : vector<8x1024xf32>
    %c69_i32 = arith.constant 69 : i32
    %13 = tpu.dynamic_rotate %0 by %c69_i32 dim 1 : vector<8x1024xf32>, i32 -> vector<8x1024xf32>
    %c2 = arith.constant 2 : index
    %c0_6 = arith.constant 0 : index
    %14 = vector.load %arg3[%c2, %c0_6] : memref<45x1024xf32, #tpu.memory_space<vmem>>, vector<1x1024xf32>
    %15 = vector.broadcast %14 : vector<1x1024xf32> to vector<8x1024xf32>
    %16 = arith.mulf %13, %15 : vector<8x1024xf32>
    %17 = arith.addf %12, %16 : vector<8x1024xf32>
    %c68_i32 = arith.constant 68 : i32
    %18 = tpu.dynamic_rotate %0 by %c68_i32 dim 1 : vector<8x1024xf32>, i32 -> vector<8x1024xf32>
    %c3 = arith.constant 3 : index
    %c0_7 = arith.constant 0 : index
    %19 = vector.load %arg3[%c3, %c0_7] : memref<45x1024xf32, #tpu.memory_space<vmem>>, vector<1x1024xf32>
    %20 = vector.broadcast %19 : vector<1x1024xf32> to vector<8x1024xf32>
    %21 = arith.mulf %18, %20 : vector<8x1024xf32>
    %22 = arith.addf %17, %21 : vector<8x1024xf32>
    %c67_i32 = arith.constant 67 : i32
    %23 = tpu.dynamic_rotate %0 by %c67_i32 dim 1 : vector<8x1024xf32>, i32 -> vector<8x1024xf32>
    %c4 = arith.constant 4 : index
    %c0_8 = arith.constant 0 : index
    %24 = vector.load %arg3[%c4, %c0_8] : memref<45x1024xf32, #tpu.memory_space<vmem>>, vector<1x1024xf32>
    %25 = vector.broadcast %24 : vector<1x1024xf32> to vector<8x1024xf32>
    %26 = arith.mulf %23, %25 : vector<8x1024xf32>
    %27 = arith.addf %22, %26 : vector<8x1024xf32>
    %c66_i32 = arith.constant 66 : i32
    %28 = tpu.dynamic_rotate %0 by %c66_i32 dim 1 : vector<8x1024xf32>, i32 -> vector<8x1024xf32>
    %c5 = arith.constant 5 : index
    %c0_9 = arith.constant 0 : index
    %29 = vector.load %arg3[%c5, %c0_9] : memref<45x1024xf32, #tpu.memory_space<vmem>>, vector<1x1024xf32>
    %30 = vector.broadcast %29 : vector<1x1024xf32> to vector<8x1024xf32>
    %31 = arith.mulf %28, %30 : vector<8x1024xf32>
    %32 = arith.addf %27, %31 : vector<8x1024xf32>
    %c65_i32 = arith.constant 65 : i32
    %33 = tpu.dynamic_rotate %0 by %c65_i32 dim 1 : vector<8x1024xf32>, i32 -> vector<8x1024xf32>
    %c6 = arith.constant 6 : index
    %c0_10 = arith.constant 0 : index
    %34 = vector.load %arg3[%c6, %c0_10] : memref<45x1024xf32, #tpu.memory_space<vmem>>, vector<1x1024xf32>
    %35 = vector.broadcast %34 : vector<1x1024xf32> to vector<8x1024xf32>
    %36 = arith.mulf %33, %35 : vector<8x1024xf32>
    %37 = arith.addf %32, %36 : vector<8x1024xf32>
    %c64_i32 = arith.constant 64 : i32
    %38 = tpu.dynamic_rotate %0 by %c64_i32 dim 1 : vector<8x1024xf32>, i32 -> vector<8x1024xf32>
    %c7 = arith.constant 7 : index
    %c0_11 = arith.constant 0 : index
    %39 = vector.load %arg3[%c7, %c0_11] : memref<45x1024xf32, #tpu.memory_space<vmem>>, vector<1x1024xf32>
    %40 = vector.broadcast %39 : vector<1x1024xf32> to vector<8x1024xf32>
    %41 = arith.mulf %38, %40 : vector<8x1024xf32>
    %42 = arith.addf %37, %41 : vector<8x1024xf32>
    %c63_i32 = arith.constant 63 : i32
    %43 = tpu.dynamic_rotate %0 by %c63_i32 dim 1 : vector<8x1024xf32>, i32 -> vector<8x1024xf32>
    %c8 = arith.constant 8 : index
    %c0_12 = arith.constant 0 : index
    %44 = vector.load %arg3[%c8, %c0_12] : memref<45x1024xf32, #tpu.memory_space<vmem>>, vector<1x1024xf32>
    %45 = vector.broadcast %44 : vector<1x1024xf32> to vector<8x1024xf32>
    %46 = arith.mulf %43, %45 : vector<8x1024xf32>
    %47 = arith.addf %42, %46 : vector<8x1024xf32>
    %c62_i32 = arith.constant 62 : i32
    %48 = tpu.dynamic_rotate %0 by %c62_i32 dim 1 : vector<8x1024xf32>, i32 -> vector<8x1024xf32>
    %c9 = arith.constant 9 : index
    %c0_13 = arith.constant 0 : index
    %49 = vector.load %arg3[%c9, %c0_13] : memref<45x1024xf32, #tpu.memory_space<vmem>>, vector<1x1024xf32>
    %50 = vector.broadcast %49 : vector<1x1024xf32> to vector<8x1024xf32>
    %51 = arith.mulf %48, %50 : vector<8x1024xf32>
    %52 = arith.addf %47, %51 : vector<8x1024xf32>
    %c61_i32 = arith.constant 61 : i32
    %53 = tpu.dynamic_rotate %0 by %c61_i32 dim 1 : vector<8x1024xf32>, i32 -> vector<8x1024xf32>
    %c10 = arith.constant 10 : index
    %c0_14 = arith.constant 0 : index
    %54 = vector.load %arg3[%c10, %c0_14] : memref<45x1024xf32, #tpu.memory_space<vmem>>, vector<1x1024xf32>
    %55 = vector.broadcast %54 : vector<1x1024xf32> to vector<8x1024xf32>
    %56 = arith.mulf %53, %55 : vector<8x1024xf32>
    %57 = arith.addf %52, %56 : vector<8x1024xf32>
    %c60_i32 = arith.constant 60 : i32
    %58 = tpu.dynamic_rotate %0 by %c60_i32 dim 1 : vector<8x1024xf32>, i32 -> vector<8x1024xf32>
    %c11 = arith.constant 11 : index
    %c0_15 = arith.constant 0 : index
    %59 = vector.load %arg3[%c11, %c0_15] : memref<45x1024xf32, #tpu.memory_space<vmem>>, vector<1x1024xf32>
    %60 = vector.broadcast %59 : vector<1x1024xf32> to vector<8x1024xf32>
    %61 = arith.mulf %58, %60 : vector<8x1024xf32>
    %62 = arith.addf %57, %61 : vector<8x1024xf32>
    %c59_i32 = arith.constant 59 : i32
    %63 = tpu.dynamic_rotate %0 by %c59_i32 dim 1 : vector<8x1024xf32>, i32 -> vector<8x1024xf32>
    %c12 = arith.constant 12 : index
    %c0_16 = arith.constant 0 : index
    %64 = vector.load %arg3[%c12, %c0_16] : memref<45x1024xf32, #tpu.memory_space<vmem>>, vector<1x1024xf32>
    %65 = vector.broadcast %64 : vector<1x1024xf32> to vector<8x1024xf32>
    %66 = arith.mulf %63, %65 : vector<8x1024xf32>
    %67 = arith.addf %62, %66 : vector<8x1024xf32>
    %c58_i32 = arith.constant 58 : i32
    %68 = tpu.dynamic_rotate %0 by %c58_i32 dim 1 : vector<8x1024xf32>, i32 -> vector<8x1024xf32>
    %c13 = arith.constant 13 : index
    %c0_17 = arith.constant 0 : index
    %69 = vector.load %arg3[%c13, %c0_17] : memref<45x1024xf32, #tpu.memory_space<vmem>>, vector<1x1024xf32>
    %70 = vector.broadcast %69 : vector<1x1024xf32> to vector<8x1024xf32>
    %71 = arith.mulf %68, %70 : vector<8x1024xf32>
    %72 = arith.addf %67, %71 : vector<8x1024xf32>
    %c57_i32 = arith.constant 57 : i32
    %73 = tpu.dynamic_rotate %0 by %c57_i32 dim 1 : vector<8x1024xf32>, i32 -> vector<8x1024xf32>
    %c14 = arith.constant 14 : index
    %c0_18 = arith.constant 0 : index
    %74 = vector.load %arg3[%c14, %c0_18] : memref<45x1024xf32, #tpu.memory_space<vmem>>, vector<1x1024xf32>
    %75 = vector.broadcast %74 : vector<1x1024xf32> to vector<8x1024xf32>
    %76 = arith.mulf %73, %75 : vector<8x1024xf32>
    %77 = arith.addf %72, %76 : vector<8x1024xf32>
    %c7_i32 = arith.constant 7 : i32
    %78 = tpu.dynamic_rotate %0 by %c7_i32 dim 1 : vector<8x1024xf32>, i32 -> vector<8x1024xf32>
    %c15 = arith.constant 15 : index
    %c0_19 = arith.constant 0 : index
    %79 = vector.load %arg3[%c15, %c0_19] : memref<45x1024xf32, #tpu.memory_space<vmem>>, vector<1x1024xf32>
    %80 = vector.broadcast %79 : vector<1x1024xf32> to vector<8x1024xf32>
    %81 = arith.mulf %78, %80 : vector<8x1024xf32>
    %82 = arith.addf %77, %81 : vector<8x1024xf32>
    %c6_i32 = arith.constant 6 : i32
    %83 = tpu.dynamic_rotate %0 by %c6_i32 dim 1 : vector<8x1024xf32>, i32 -> vector<8x1024xf32>
    %c16 = arith.constant 16 : index
    %c0_20 = arith.constant 0 : index
    %84 = vector.load %arg3[%c16, %c0_20] : memref<45x1024xf32, #tpu.memory_space<vmem>>, vector<1x1024xf32>
    %85 = vector.broadcast %84 : vector<1x1024xf32> to vector<8x1024xf32>
    %86 = arith.mulf %83, %85 : vector<8x1024xf32>
    %87 = arith.addf %82, %86 : vector<8x1024xf32>
    %c5_i32 = arith.constant 5 : i32
    %88 = tpu.dynamic_rotate %0 by %c5_i32 dim 1 : vector<8x1024xf32>, i32 -> vector<8x1024xf32>
    %c17 = arith.constant 17 : index
    %c0_21 = arith.constant 0 : index
    %89 = vector.load %arg3[%c17, %c0_21] : memref<45x1024xf32, #tpu.memory_space<vmem>>, vector<1x1024xf32>
    %90 = vector.broadcast %89 : vector<1x1024xf32> to vector<8x1024xf32>
    %91 = arith.mulf %88, %90 : vector<8x1024xf32>
    %92 = arith.addf %87, %91 : vector<8x1024xf32>
    %c4_i32 = arith.constant 4 : i32
    %93 = tpu.dynamic_rotate %0 by %c4_i32 dim 1 : vector<8x1024xf32>, i32 -> vector<8x1024xf32>
    %c18 = arith.constant 18 : index
    %c0_22 = arith.constant 0 : index
    %94 = vector.load %arg3[%c18, %c0_22] : memref<45x1024xf32, #tpu.memory_space<vmem>>, vector<1x1024xf32>
    %95 = vector.broadcast %94 : vector<1x1024xf32> to vector<8x1024xf32>
    %96 = arith.mulf %93, %95 : vector<8x1024xf32>
    %97 = arith.addf %92, %96 : vector<8x1024xf32>
    %c3_i32 = arith.constant 3 : i32
    %98 = tpu.dynamic_rotate %0 by %c3_i32 dim 1 : vector<8x1024xf32>, i32 -> vector<8x1024xf32>
    %c19 = arith.constant 19 : index
    %c0_23 = arith.constant 0 : index
    %99 = vector.load %arg3[%c19, %c0_23] : memref<45x1024xf32, #tpu.memory_space<vmem>>, vector<1x1024xf32>
    %100 = vector.broadcast %99 : vector<1x1024xf32> to vector<8x1024xf32>
    %101 = arith.mulf %98, %100 : vector<8x1024xf32>
    %102 = arith.addf %97, %101 : vector<8x1024xf32>
    %c2_i32 = arith.constant 2 : i32
    %103 = tpu.dynamic_rotate %0 by %c2_i32 dim 1 : vector<8x1024xf32>, i32 -> vector<8x1024xf32>
    %c20 = arith.constant 20 : index
    %c0_24 = arith.constant 0 : index
    %104 = vector.load %arg3[%c20, %c0_24] : memref<45x1024xf32, #tpu.memory_space<vmem>>, vector<1x1024xf32>
    %105 = vector.broadcast %104 : vector<1x1024xf32> to vector<8x1024xf32>
    %106 = arith.mulf %103, %105 : vector<8x1024xf32>
    %107 = arith.addf %102, %106 : vector<8x1024xf32>
    %c1_i32 = arith.constant 1 : i32
    %108 = tpu.dynamic_rotate %0 by %c1_i32 dim 1 : vector<8x1024xf32>, i32 -> vector<8x1024xf32>
    %c21 = arith.constant 21 : index
    %c0_25 = arith.constant 0 : index
    %109 = vector.load %arg3[%c21, %c0_25] : memref<45x1024xf32, #tpu.memory_space<vmem>>, vector<1x1024xf32>
    %110 = vector.broadcast %109 : vector<1x1024xf32> to vector<8x1024xf32>
    %111 = arith.mulf %108, %110 : vector<8x1024xf32>
    %112 = arith.addf %107, %111 : vector<8x1024xf32>
    %c22 = arith.constant 22 : index
    %c0_26 = arith.constant 0 : index
    %113 = vector.load %arg3[%c22, %c0_26] : memref<45x1024xf32, #tpu.memory_space<vmem>>, vector<1x1024xf32>
    %114 = vector.broadcast %113 : vector<1x1024xf32> to vector<8x1024xf32>
    %115 = arith.mulf %0, %114 : vector<8x1024xf32>
    %116 = arith.addf %112, %115 : vector<8x1024xf32>
    %c1023_i32 = arith.constant 1023 : i32
    %117 = tpu.dynamic_rotate %0 by %c1023_i32 dim 1 : vector<8x1024xf32>, i32 -> vector<8x1024xf32>
    %c23 = arith.constant 23 : index
    %c0_27 = arith.constant 0 : index
    %118 = vector.load %arg3[%c23, %c0_27] : memref<45x1024xf32, #tpu.memory_space<vmem>>, vector<1x1024xf32>
    %119 = vector.broadcast %118 : vector<1x1024xf32> to vector<8x1024xf32>
    %120 = arith.mulf %117, %119 : vector<8x1024xf32>
    %121 = arith.addf %116, %120 : vector<8x1024xf32>
    %c1022_i32 = arith.constant 1022 : i32
    %122 = tpu.dynamic_rotate %0 by %c1022_i32 dim 1 : vector<8x1024xf32>, i32 -> vector<8x1024xf32>
    %c24 = arith.constant 24 : index
    %c0_28 = arith.constant 0 : index
    %123 = vector.load %arg3[%c24, %c0_28] : memref<45x1024xf32, #tpu.memory_space<vmem>>, vector<1x1024xf32>
    %124 = vector.broadcast %123 : vector<1x1024xf32> to vector<8x1024xf32>
    %125 = arith.mulf %122, %124 : vector<8x1024xf32>
    %126 = arith.addf %121, %125 : vector<8x1024xf32>
    %c1021_i32 = arith.constant 1021 : i32
    %127 = tpu.dynamic_rotate %0 by %c1021_i32 dim 1 : vector<8x1024xf32>, i32 -> vector<8x1024xf32>
    %c25 = arith.constant 25 : index
    %c0_29 = arith.constant 0 : index
    %128 = vector.load %arg3[%c25, %c0_29] : memref<45x1024xf32, #tpu.memory_space<vmem>>, vector<1x1024xf32>
    %129 = vector.broadcast %128 : vector<1x1024xf32> to vector<8x1024xf32>
    %130 = arith.mulf %127, %129 : vector<8x1024xf32>
    %131 = arith.addf %126, %130 : vector<8x1024xf32>
    %c1020_i32 = arith.constant 1020 : i32
    %132 = tpu.dynamic_rotate %0 by %c1020_i32 dim 1 : vector<8x1024xf32>, i32 -> vector<8x1024xf32>
    %c26 = arith.constant 26 : index
    %c0_30 = arith.constant 0 : index
    %133 = vector.load %arg3[%c26, %c0_30] : memref<45x1024xf32, #tpu.memory_space<vmem>>, vector<1x1024xf32>
    %134 = vector.broadcast %133 : vector<1x1024xf32> to vector<8x1024xf32>
    %135 = arith.mulf %132, %134 : vector<8x1024xf32>
    %136 = arith.addf %131, %135 : vector<8x1024xf32>
    %c1019_i32 = arith.constant 1019 : i32
    %137 = tpu.dynamic_rotate %0 by %c1019_i32 dim 1 : vector<8x1024xf32>, i32 -> vector<8x1024xf32>
    %c27 = arith.constant 27 : index
    %c0_31 = arith.constant 0 : index
    %138 = vector.load %arg3[%c27, %c0_31] : memref<45x1024xf32, #tpu.memory_space<vmem>>, vector<1x1024xf32>
    %139 = vector.broadcast %138 : vector<1x1024xf32> to vector<8x1024xf32>
    %140 = arith.mulf %137, %139 : vector<8x1024xf32>
    %141 = arith.addf %136, %140 : vector<8x1024xf32>
    %c1018_i32 = arith.constant 1018 : i32
    %142 = tpu.dynamic_rotate %0 by %c1018_i32 dim 1 : vector<8x1024xf32>, i32 -> vector<8x1024xf32>
    %c28 = arith.constant 28 : index
    %c0_32 = arith.constant 0 : index
    %143 = vector.load %arg3[%c28, %c0_32] : memref<45x1024xf32, #tpu.memory_space<vmem>>, vector<1x1024xf32>
    %144 = vector.broadcast %143 : vector<1x1024xf32> to vector<8x1024xf32>
    %145 = arith.mulf %142, %144 : vector<8x1024xf32>
    %146 = arith.addf %141, %145 : vector<8x1024xf32>
    %c1017_i32 = arith.constant 1017 : i32
    %147 = tpu.dynamic_rotate %0 by %c1017_i32 dim 1 : vector<8x1024xf32>, i32 -> vector<8x1024xf32>
    %c29 = arith.constant 29 : index
    %c0_33 = arith.constant 0 : index
    %148 = vector.load %arg3[%c29, %c0_33] : memref<45x1024xf32, #tpu.memory_space<vmem>>, vector<1x1024xf32>
    %149 = vector.broadcast %148 : vector<1x1024xf32> to vector<8x1024xf32>
    %150 = arith.mulf %147, %149 : vector<8x1024xf32>
    %151 = arith.addf %146, %150 : vector<8x1024xf32>
    %c967_i32 = arith.constant 967 : i32
    %152 = tpu.dynamic_rotate %0 by %c967_i32 dim 1 : vector<8x1024xf32>, i32 -> vector<8x1024xf32>
    %c30 = arith.constant 30 : index
    %c0_34 = arith.constant 0 : index
    %153 = vector.load %arg3[%c30, %c0_34] : memref<45x1024xf32, #tpu.memory_space<vmem>>, vector<1x1024xf32>
    %154 = vector.broadcast %153 : vector<1x1024xf32> to vector<8x1024xf32>
    %155 = arith.mulf %152, %154 : vector<8x1024xf32>
    %156 = arith.addf %151, %155 : vector<8x1024xf32>
    %c966_i32 = arith.constant 966 : i32
    %157 = tpu.dynamic_rotate %0 by %c966_i32 dim 1 : vector<8x1024xf32>, i32 -> vector<8x1024xf32>
    %c31 = arith.constant 31 : index
    %c0_35 = arith.constant 0 : index
    %158 = vector.load %arg3[%c31, %c0_35] : memref<45x1024xf32, #tpu.memory_space<vmem>>, vector<1x1024xf32>
    %159 = vector.broadcast %158 : vector<1x1024xf32> to vector<8x1024xf32>
    %160 = arith.mulf %157, %159 : vector<8x1024xf32>
    %161 = arith.addf %156, %160 : vector<8x1024xf32>
    %c965_i32 = arith.constant 965 : i32
    %162 = tpu.dynamic_rotate %0 by %c965_i32 dim 1 : vector<8x1024xf32>, i32 -> vector<8x1024xf32>
    %c32 = arith.constant 32 : index
    %c0_36 = arith.constant 0 : index
    %163 = vector.load %arg3[%c32, %c0_36] : memref<45x1024xf32, #tpu.memory_space<vmem>>, vector<1x1024xf32>
    %164 = vector.broadcast %163 : vector<1x1024xf32> to vector<8x1024xf32>
    %165 = arith.mulf %162, %164 : vector<8x1024xf32>
    %166 = arith.addf %161, %165 : vector<8x1024xf32>
    %c964_i32 = arith.constant 964 : i32
    %167 = tpu.dynamic_rotate %0 by %c964_i32 dim 1 : vector<8x1024xf32>, i32 -> vector<8x1024xf32>
    %c33 = arith.constant 33 : index
    %c0_37 = arith.constant 0 : index
    %168 = vector.load %arg3[%c33, %c0_37] : memref<45x1024xf32, #tpu.memory_space<vmem>>, vector<1x1024xf32>
    %169 = vector.broadcast %168 : vector<1x1024xf32> to vector<8x1024xf32>
    %170 = arith.mulf %167, %169 : vector<8x1024xf32>
    %171 = arith.addf %166, %170 : vector<8x1024xf32>
    %c963_i32 = arith.constant 963 : i32
    %172 = tpu.dynamic_rotate %0 by %c963_i32 dim 1 : vector<8x1024xf32>, i32 -> vector<8x1024xf32>
    %c34 = arith.constant 34 : index
    %c0_38 = arith.constant 0 : index
    %173 = vector.load %arg3[%c34, %c0_38] : memref<45x1024xf32, #tpu.memory_space<vmem>>, vector<1x1024xf32>
    %174 = vector.broadcast %173 : vector<1x1024xf32> to vector<8x1024xf32>
    %175 = arith.mulf %172, %174 : vector<8x1024xf32>
    %176 = arith.addf %171, %175 : vector<8x1024xf32>
    %c962_i32 = arith.constant 962 : i32
    %177 = tpu.dynamic_rotate %0 by %c962_i32 dim 1 : vector<8x1024xf32>, i32 -> vector<8x1024xf32>
    %c35 = arith.constant 35 : index
    %c0_39 = arith.constant 0 : index
    %178 = vector.load %arg3[%c35, %c0_39] : memref<45x1024xf32, #tpu.memory_space<vmem>>, vector<1x1024xf32>
    %179 = vector.broadcast %178 : vector<1x1024xf32> to vector<8x1024xf32>
    %180 = arith.mulf %177, %179 : vector<8x1024xf32>
    %181 = arith.addf %176, %180 : vector<8x1024xf32>
    %c961_i32 = arith.constant 961 : i32
    %182 = tpu.dynamic_rotate %0 by %c961_i32 dim 1 : vector<8x1024xf32>, i32 -> vector<8x1024xf32>
    %c36 = arith.constant 36 : index
    %c0_40 = arith.constant 0 : index
    %183 = vector.load %arg3[%c36, %c0_40] : memref<45x1024xf32, #tpu.memory_space<vmem>>, vector<1x1024xf32>
    %184 = vector.broadcast %183 : vector<1x1024xf32> to vector<8x1024xf32>
    %185 = arith.mulf %182, %184 : vector<8x1024xf32>
    %186 = arith.addf %181, %185 : vector<8x1024xf32>
    %c960_i32 = arith.constant 960 : i32
    %187 = tpu.dynamic_rotate %0 by %c960_i32 dim 1 : vector<8x1024xf32>, i32 -> vector<8x1024xf32>
    %c37 = arith.constant 37 : index
    %c0_41 = arith.constant 0 : index
    %188 = vector.load %arg3[%c37, %c0_41] : memref<45x1024xf32, #tpu.memory_space<vmem>>, vector<1x1024xf32>
    %189 = vector.broadcast %188 : vector<1x1024xf32> to vector<8x1024xf32>
    %190 = arith.mulf %187, %189 : vector<8x1024xf32>
    %191 = arith.addf %186, %190 : vector<8x1024xf32>
    %c959_i32 = arith.constant 959 : i32
    %192 = tpu.dynamic_rotate %0 by %c959_i32 dim 1 : vector<8x1024xf32>, i32 -> vector<8x1024xf32>
    %c38 = arith.constant 38 : index
    %c0_42 = arith.constant 0 : index
    %193 = vector.load %arg3[%c38, %c0_42] : memref<45x1024xf32, #tpu.memory_space<vmem>>, vector<1x1024xf32>
    %194 = vector.broadcast %193 : vector<1x1024xf32> to vector<8x1024xf32>
    %195 = arith.mulf %192, %194 : vector<8x1024xf32>
    %196 = arith.addf %191, %195 : vector<8x1024xf32>
    %c958_i32 = arith.constant 958 : i32
    %197 = tpu.dynamic_rotate %0 by %c958_i32 dim 1 : vector<8x1024xf32>, i32 -> vector<8x1024xf32>
    %c39 = arith.constant 39 : index
    %c0_43 = arith.constant 0 : index
    %198 = vector.load %arg3[%c39, %c0_43] : memref<45x1024xf32, #tpu.memory_space<vmem>>, vector<1x1024xf32>
    %199 = vector.broadcast %198 : vector<1x1024xf32> to vector<8x1024xf32>
    %200 = arith.mulf %197, %199 : vector<8x1024xf32>
    %201 = arith.addf %196, %200 : vector<8x1024xf32>
    %c957_i32 = arith.constant 957 : i32
    %202 = tpu.dynamic_rotate %0 by %c957_i32 dim 1 : vector<8x1024xf32>, i32 -> vector<8x1024xf32>
    %c40 = arith.constant 40 : index
    %c0_44 = arith.constant 0 : index
    %203 = vector.load %arg3[%c40, %c0_44] : memref<45x1024xf32, #tpu.memory_space<vmem>>, vector<1x1024xf32>
    %204 = vector.broadcast %203 : vector<1x1024xf32> to vector<8x1024xf32>
    %205 = arith.mulf %202, %204 : vector<8x1024xf32>
    %206 = arith.addf %201, %205 : vector<8x1024xf32>
    %c956_i32 = arith.constant 956 : i32
    %207 = tpu.dynamic_rotate %0 by %c956_i32 dim 1 : vector<8x1024xf32>, i32 -> vector<8x1024xf32>
    %c41 = arith.constant 41 : index
    %c0_45 = arith.constant 0 : index
    %208 = vector.load %arg3[%c41, %c0_45] : memref<45x1024xf32, #tpu.memory_space<vmem>>, vector<1x1024xf32>
    %209 = vector.broadcast %208 : vector<1x1024xf32> to vector<8x1024xf32>
    %210 = arith.mulf %207, %209 : vector<8x1024xf32>
    %211 = arith.addf %206, %210 : vector<8x1024xf32>
    %c955_i32 = arith.constant 955 : i32
    %212 = tpu.dynamic_rotate %0 by %c955_i32 dim 1 : vector<8x1024xf32>, i32 -> vector<8x1024xf32>
    %c42 = arith.constant 42 : index
    %c0_46 = arith.constant 0 : index
    %213 = vector.load %arg3[%c42, %c0_46] : memref<45x1024xf32, #tpu.memory_space<vmem>>, vector<1x1024xf32>
    %214 = vector.broadcast %213 : vector<1x1024xf32> to vector<8x1024xf32>
    %215 = arith.mulf %212, %214 : vector<8x1024xf32>
    %216 = arith.addf %211, %215 : vector<8x1024xf32>
    %c954_i32 = arith.constant 954 : i32
    %217 = tpu.dynamic_rotate %0 by %c954_i32 dim 1 : vector<8x1024xf32>, i32 -> vector<8x1024xf32>
    %c43 = arith.constant 43 : index
    %c0_47 = arith.constant 0 : index
    %218 = vector.load %arg3[%c43, %c0_47] : memref<45x1024xf32, #tpu.memory_space<vmem>>, vector<1x1024xf32>
    %219 = vector.broadcast %218 : vector<1x1024xf32> to vector<8x1024xf32>
    %220 = arith.mulf %217, %219 : vector<8x1024xf32>
    %221 = arith.addf %216, %220 : vector<8x1024xf32>
    %c953_i32 = arith.constant 953 : i32
    %222 = tpu.dynamic_rotate %0 by %c953_i32 dim 1 : vector<8x1024xf32>, i32 -> vector<8x1024xf32>
    %c44 = arith.constant 44 : index
    %c0_48 = arith.constant 0 : index
    %223 = vector.load %arg3[%c44, %c0_48] : memref<45x1024xf32, #tpu.memory_space<vmem>>, vector<1x1024xf32>
    %224 = vector.broadcast %223 : vector<1x1024xf32> to vector<8x1024xf32>
    %225 = arith.mulf %222, %224 : vector<8x1024xf32>
    %226 = arith.addf %221, %225 : vector<8x1024xf32>
    %227 = arith.mulf %226, %1 : vector<8x1024xf32>
    %c0_49 = arith.constant 0 : index
    %c0_50 = arith.constant 0 : index
    %228 = vector.load %arg5[%c0_49, %c0_50] : memref<2x1024xf32, #tpu.memory_space<vmem>>, vector<1x1024xf32>
    %229 = vector.broadcast %228 : vector<1x1024xf32> to vector<8x1024xf32>
    %230 = arith.addf %227, %229 : vector<8x1024xf32>
    %cst_51 = arith.constant 0.000000e+00 : f32
    %231 = vector.broadcast %cst_51 : f32 to vector<8x1024xf32>
    %232 = arith.maximumf %230, %231 : vector<8x1024xf32>
    %cst_52 = arith.constant 0.000000e+00 : f32
    %233 = vector.broadcast %cst_52 : f32 to vector<8x1024xf32>
    %c71_i32_53 = arith.constant 71 : i32
    %234 = tpu.dynamic_rotate %232 by %c71_i32_53 dim 1 : vector<8x1024xf32>, i32 -> vector<8x1024xf32>
    %c0_54 = arith.constant 0 : index
    %c0_55 = arith.constant 0 : index
    %235 = vector.load %arg4[%c0_54, %c0_55] : memref<45x1024xf32, #tpu.memory_space<vmem>>, vector<1x1024xf32>
    %236 = vector.broadcast %235 : vector<1x1024xf32> to vector<8x1024xf32>
    %237 = arith.mulf %234, %236 : vector<8x1024xf32>
    %238 = arith.addf %233, %237 : vector<8x1024xf32>
    %c70_i32_56 = arith.constant 70 : i32
    %239 = tpu.dynamic_rotate %232 by %c70_i32_56 dim 1 : vector<8x1024xf32>, i32 -> vector<8x1024xf32>
    %c1_57 = arith.constant 1 : index
    %c0_58 = arith.constant 0 : index
    %240 = vector.load %arg4[%c1_57, %c0_58] : memref<45x1024xf32, #tpu.memory_space<vmem>>, vector<1x1024xf32>
    %241 = vector.broadcast %240 : vector<1x1024xf32> to vector<8x1024xf32>
    %242 = arith.mulf %239, %241 : vector<8x1024xf32>
    %243 = arith.addf %238, %242 : vector<8x1024xf32>
    %c69_i32_59 = arith.constant 69 : i32
    %244 = tpu.dynamic_rotate %232 by %c69_i32_59 dim 1 : vector<8x1024xf32>, i32 -> vector<8x1024xf32>
    %c2_60 = arith.constant 2 : index
    %c0_61 = arith.constant 0 : index
    %245 = vector.load %arg4[%c2_60, %c0_61] : memref<45x1024xf32, #tpu.memory_space<vmem>>, vector<1x1024xf32>
    %246 = vector.broadcast %245 : vector<1x1024xf32> to vector<8x1024xf32>
    %247 = arith.mulf %244, %246 : vector<8x1024xf32>
    %248 = arith.addf %243, %247 : vector<8x1024xf32>
    %c68_i32_62 = arith.constant 68 : i32
    %249 = tpu.dynamic_rotate %232 by %c68_i32_62 dim 1 : vector<8x1024xf32>, i32 -> vector<8x1024xf32>
    %c3_63 = arith.constant 3 : index
    %c0_64 = arith.constant 0 : index
    %250 = vector.load %arg4[%c3_63, %c0_64] : memref<45x1024xf32, #tpu.memory_space<vmem>>, vector<1x1024xf32>
    %251 = vector.broadcast %250 : vector<1x1024xf32> to vector<8x1024xf32>
    %252 = arith.mulf %249, %251 : vector<8x1024xf32>
    %253 = arith.addf %248, %252 : vector<8x1024xf32>
    %c67_i32_65 = arith.constant 67 : i32
    %254 = tpu.dynamic_rotate %232 by %c67_i32_65 dim 1 : vector<8x1024xf32>, i32 -> vector<8x1024xf32>
    %c4_66 = arith.constant 4 : index
    %c0_67 = arith.constant 0 : index
    %255 = vector.load %arg4[%c4_66, %c0_67] : memref<45x1024xf32, #tpu.memory_space<vmem>>, vector<1x1024xf32>
    %256 = vector.broadcast %255 : vector<1x1024xf32> to vector<8x1024xf32>
    %257 = arith.mulf %254, %256 : vector<8x1024xf32>
    %258 = arith.addf %253, %257 : vector<8x1024xf32>
    %c66_i32_68 = arith.constant 66 : i32
    %259 = tpu.dynamic_rotate %232 by %c66_i32_68 dim 1 : vector<8x1024xf32>, i32 -> vector<8x1024xf32>
    %c5_69 = arith.constant 5 : index
    %c0_70 = arith.constant 0 : index
    %260 = vector.load %arg4[%c5_69, %c0_70] : memref<45x1024xf32, #tpu.memory_space<vmem>>, vector<1x1024xf32>
    %261 = vector.broadcast %260 : vector<1x1024xf32> to vector<8x1024xf32>
    %262 = arith.mulf %259, %261 : vector<8x1024xf32>
    %263 = arith.addf %258, %262 : vector<8x1024xf32>
    %c65_i32_71 = arith.constant 65 : i32
    %264 = tpu.dynamic_rotate %232 by %c65_i32_71 dim 1 : vector<8x1024xf32>, i32 -> vector<8x1024xf32>
    %c6_72 = arith.constant 6 : index
    %c0_73 = arith.constant 0 : index
    %265 = vector.load %arg4[%c6_72, %c0_73] : memref<45x1024xf32, #tpu.memory_space<vmem>>, vector<1x1024xf32>
    %266 = vector.broadcast %265 : vector<1x1024xf32> to vector<8x1024xf32>
    %267 = arith.mulf %264, %266 : vector<8x1024xf32>
    %268 = arith.addf %263, %267 : vector<8x1024xf32>
    %c64_i32_74 = arith.constant 64 : i32
    %269 = tpu.dynamic_rotate %232 by %c64_i32_74 dim 1 : vector<8x1024xf32>, i32 -> vector<8x1024xf32>
    %c7_75 = arith.constant 7 : index
    %c0_76 = arith.constant 0 : index
    %270 = vector.load %arg4[%c7_75, %c0_76] : memref<45x1024xf32, #tpu.memory_space<vmem>>, vector<1x1024xf32>
    %271 = vector.broadcast %270 : vector<1x1024xf32> to vector<8x1024xf32>
    %272 = arith.mulf %269, %271 : vector<8x1024xf32>
    %273 = arith.addf %268, %272 : vector<8x1024xf32>
    %c63_i32_77 = arith.constant 63 : i32
    %274 = tpu.dynamic_rotate %232 by %c63_i32_77 dim 1 : vector<8x1024xf32>, i32 -> vector<8x1024xf32>
    %c8_78 = arith.constant 8 : index
    %c0_79 = arith.constant 0 : index
    %275 = vector.load %arg4[%c8_78, %c0_79] : memref<45x1024xf32, #tpu.memory_space<vmem>>, vector<1x1024xf32>
    %276 = vector.broadcast %275 : vector<1x1024xf32> to vector<8x1024xf32>
    %277 = arith.mulf %274, %276 : vector<8x1024xf32>
    %278 = arith.addf %273, %277 : vector<8x1024xf32>
    %c62_i32_80 = arith.constant 62 : i32
    %279 = tpu.dynamic_rotate %232 by %c62_i32_80 dim 1 : vector<8x1024xf32>, i32 -> vector<8x1024xf32>
    %c9_81 = arith.constant 9 : index
    %c0_82 = arith.constant 0 : index
    %280 = vector.load %arg4[%c9_81, %c0_82] : memref<45x1024xf32, #tpu.memory_space<vmem>>, vector<1x1024xf32>
    %281 = vector.broadcast %280 : vector<1x1024xf32> to vector<8x1024xf32>
    %282 = arith.mulf %279, %281 : vector<8x1024xf32>
    %283 = arith.addf %278, %282 : vector<8x1024xf32>
    %c61_i32_83 = arith.constant 61 : i32
    %284 = tpu.dynamic_rotate %232 by %c61_i32_83 dim 1 : vector<8x1024xf32>, i32 -> vector<8x1024xf32>
    %c10_84 = arith.constant 10 : index
    %c0_85 = arith.constant 0 : index
    %285 = vector.load %arg4[%c10_84, %c0_85] : memref<45x1024xf32, #tpu.memory_space<vmem>>, vector<1x1024xf32>
    %286 = vector.broadcast %285 : vector<1x1024xf32> to vector<8x1024xf32>
    %287 = arith.mulf %284, %286 : vector<8x1024xf32>
    %288 = arith.addf %283, %287 : vector<8x1024xf32>
    %c60_i32_86 = arith.constant 60 : i32
    %289 = tpu.dynamic_rotate %232 by %c60_i32_86 dim 1 : vector<8x1024xf32>, i32 -> vector<8x1024xf32>
    %c11_87 = arith.constant 11 : index
    %c0_88 = arith.constant 0 : index
    %290 = vector.load %arg4[%c11_87, %c0_88] : memref<45x1024xf32, #tpu.memory_space<vmem>>, vector<1x1024xf32>
    %291 = vector.broadcast %290 : vector<1x1024xf32> to vector<8x1024xf32>
    %292 = arith.mulf %289, %291 : vector<8x1024xf32>
    %293 = arith.addf %288, %292 : vector<8x1024xf32>
    %c59_i32_89 = arith.constant 59 : i32
    %294 = tpu.dynamic_rotate %232 by %c59_i32_89 dim 1 : vector<8x1024xf32>, i32 -> vector<8x1024xf32>
    %c12_90 = arith.constant 12 : index
    %c0_91 = arith.constant 0 : index
    %295 = vector.load %arg4[%c12_90, %c0_91] : memref<45x1024xf32, #tpu.memory_space<vmem>>, vector<1x1024xf32>
    %296 = vector.broadcast %295 : vector<1x1024xf32> to vector<8x1024xf32>
    %297 = arith.mulf %294, %296 : vector<8x1024xf32>
    %298 = arith.addf %293, %297 : vector<8x1024xf32>
    %c58_i32_92 = arith.constant 58 : i32
    %299 = tpu.dynamic_rotate %232 by %c58_i32_92 dim 1 : vector<8x1024xf32>, i32 -> vector<8x1024xf32>
    %c13_93 = arith.constant 13 : index
    %c0_94 = arith.constant 0 : index
    %300 = vector.load %arg4[%c13_93, %c0_94] : memref<45x1024xf32, #tpu.memory_space<vmem>>, vector<1x1024xf32>
    %301 = vector.broadcast %300 : vector<1x1024xf32> to vector<8x1024xf32>
    %302 = arith.mulf %299, %301 : vector<8x1024xf32>
    %303 = arith.addf %298, %302 : vector<8x1024xf32>
    %c57_i32_95 = arith.constant 57 : i32
    %304 = tpu.dynamic_rotate %232 by %c57_i32_95 dim 1 : vector<8x1024xf32>, i32 -> vector<8x1024xf32>
    %c14_96 = arith.constant 14 : index
    %c0_97 = arith.constant 0 : index
    %305 = vector.load %arg4[%c14_96, %c0_97] : memref<45x1024xf32, #tpu.memory_space<vmem>>, vector<1x1024xf32>
    %306 = vector.broadcast %305 : vector<1x1024xf32> to vector<8x1024xf32>
    %307 = arith.mulf %304, %306 : vector<8x1024xf32>
    %308 = arith.addf %303, %307 : vector<8x1024xf32>
    %c7_i32_98 = arith.constant 7 : i32
    %309 = tpu.dynamic_rotate %232 by %c7_i32_98 dim 1 : vector<8x1024xf32>, i32 -> vector<8x1024xf32>
    %c15_99 = arith.constant 15 : index
    %c0_100 = arith.constant 0 : index
    %310 = vector.load %arg4[%c15_99, %c0_100] : memref<45x1024xf32, #tpu.memory_space<vmem>>, vector<1x1024xf32>
    %311 = vector.broadcast %310 : vector<1x1024xf32> to vector<8x1024xf32>
    %312 = arith.mulf %309, %311 : vector<8x1024xf32>
    %313 = arith.addf %308, %312 : vector<8x1024xf32>
    %c6_i32_101 = arith.constant 6 : i32
    %314 = tpu.dynamic_rotate %232 by %c6_i32_101 dim 1 : vector<8x1024xf32>, i32 -> vector<8x1024xf32>
    %c16_102 = arith.constant 16 : index
    %c0_103 = arith.constant 0 : index
    %315 = vector.load %arg4[%c16_102, %c0_103] : memref<45x1024xf32, #tpu.memory_space<vmem>>, vector<1x1024xf32>
    %316 = vector.broadcast %315 : vector<1x1024xf32> to vector<8x1024xf32>
    %317 = arith.mulf %314, %316 : vector<8x1024xf32>
    %318 = arith.addf %313, %317 : vector<8x1024xf32>
    %c5_i32_104 = arith.constant 5 : i32
    %319 = tpu.dynamic_rotate %232 by %c5_i32_104 dim 1 : vector<8x1024xf32>, i32 -> vector<8x1024xf32>
    %c17_105 = arith.constant 17 : index
    %c0_106 = arith.constant 0 : index
    %320 = vector.load %arg4[%c17_105, %c0_106] : memref<45x1024xf32, #tpu.memory_space<vmem>>, vector<1x1024xf32>
    %321 = vector.broadcast %320 : vector<1x1024xf32> to vector<8x1024xf32>
    %322 = arith.mulf %319, %321 : vector<8x1024xf32>
    %323 = arith.addf %318, %322 : vector<8x1024xf32>
    %c4_i32_107 = arith.constant 4 : i32
    %324 = tpu.dynamic_rotate %232 by %c4_i32_107 dim 1 : vector<8x1024xf32>, i32 -> vector<8x1024xf32>
    %c18_108 = arith.constant 18 : index
    %c0_109 = arith.constant 0 : index
    %325 = vector.load %arg4[%c18_108, %c0_109] : memref<45x1024xf32, #tpu.memory_space<vmem>>, vector<1x1024xf32>
    %326 = vector.broadcast %325 : vector<1x1024xf32> to vector<8x1024xf32>
    %327 = arith.mulf %324, %326 : vector<8x1024xf32>
    %328 = arith.addf %323, %327 : vector<8x1024xf32>
    %c3_i32_110 = arith.constant 3 : i32
    %329 = tpu.dynamic_rotate %232 by %c3_i32_110 dim 1 : vector<8x1024xf32>, i32 -> vector<8x1024xf32>
    %c19_111 = arith.constant 19 : index
    %c0_112 = arith.constant 0 : index
    %330 = vector.load %arg4[%c19_111, %c0_112] : memref<45x1024xf32, #tpu.memory_space<vmem>>, vector<1x1024xf32>
    %331 = vector.broadcast %330 : vector<1x1024xf32> to vector<8x1024xf32>
    %332 = arith.mulf %329, %331 : vector<8x1024xf32>
    %333 = arith.addf %328, %332 : vector<8x1024xf32>
    %c2_i32_113 = arith.constant 2 : i32
    %334 = tpu.dynamic_rotate %232 by %c2_i32_113 dim 1 : vector<8x1024xf32>, i32 -> vector<8x1024xf32>
    %c20_114 = arith.constant 20 : index
    %c0_115 = arith.constant 0 : index
    %335 = vector.load %arg4[%c20_114, %c0_115] : memref<45x1024xf32, #tpu.memory_space<vmem>>, vector<1x1024xf32>
    %336 = vector.broadcast %335 : vector<1x1024xf32> to vector<8x1024xf32>
    %337 = arith.mulf %334, %336 : vector<8x1024xf32>
    %338 = arith.addf %333, %337 : vector<8x1024xf32>
    %c1_i32_116 = arith.constant 1 : i32
    %339 = tpu.dynamic_rotate %232 by %c1_i32_116 dim 1 : vector<8x1024xf32>, i32 -> vector<8x1024xf32>
    %c21_117 = arith.constant 21 : index
    %c0_118 = arith.constant 0 : index
    %340 = vector.load %arg4[%c21_117, %c0_118] : memref<45x1024xf32, #tpu.memory_space<vmem>>, vector<1x1024xf32>
    %341 = vector.broadcast %340 : vector<1x1024xf32> to vector<8x1024xf32>
    %342 = arith.mulf %339, %341 : vector<8x1024xf32>
    %343 = arith.addf %338, %342 : vector<8x1024xf32>
    %c22_119 = arith.constant 22 : index
    %c0_120 = arith.constant 0 : index
    %344 = vector.load %arg4[%c22_119, %c0_120] : memref<45x1024xf32, #tpu.memory_space<vmem>>, vector<1x1024xf32>
    %345 = vector.broadcast %344 : vector<1x1024xf32> to vector<8x1024xf32>
    %346 = arith.mulf %232, %345 : vector<8x1024xf32>
    %347 = arith.addf %343, %346 : vector<8x1024xf32>
    %c1023_i32_121 = arith.constant 1023 : i32
    %348 = tpu.dynamic_rotate %232 by %c1023_i32_121 dim 1 : vector<8x1024xf32>, i32 -> vector<8x1024xf32>
    %c23_122 = arith.constant 23 : index
    %c0_123 = arith.constant 0 : index
    %349 = vector.load %arg4[%c23_122, %c0_123] : memref<45x1024xf32, #tpu.memory_space<vmem>>, vector<1x1024xf32>
    %350 = vector.broadcast %349 : vector<1x1024xf32> to vector<8x1024xf32>
    %351 = arith.mulf %348, %350 : vector<8x1024xf32>
    %352 = arith.addf %347, %351 : vector<8x1024xf32>
    %c1022_i32_124 = arith.constant 1022 : i32
    %353 = tpu.dynamic_rotate %232 by %c1022_i32_124 dim 1 : vector<8x1024xf32>, i32 -> vector<8x1024xf32>
    %c24_125 = arith.constant 24 : index
    %c0_126 = arith.constant 0 : index
    %354 = vector.load %arg4[%c24_125, %c0_126] : memref<45x1024xf32, #tpu.memory_space<vmem>>, vector<1x1024xf32>
    %355 = vector.broadcast %354 : vector<1x1024xf32> to vector<8x1024xf32>
    %356 = arith.mulf %353, %355 : vector<8x1024xf32>
    %357 = arith.addf %352, %356 : vector<8x1024xf32>
    %c1021_i32_127 = arith.constant 1021 : i32
    %358 = tpu.dynamic_rotate %232 by %c1021_i32_127 dim 1 : vector<8x1024xf32>, i32 -> vector<8x1024xf32>
    %c25_128 = arith.constant 25 : index
    %c0_129 = arith.constant 0 : index
    %359 = vector.load %arg4[%c25_128, %c0_129] : memref<45x1024xf32, #tpu.memory_space<vmem>>, vector<1x1024xf32>
    %360 = vector.broadcast %359 : vector<1x1024xf32> to vector<8x1024xf32>
    %361 = arith.mulf %358, %360 : vector<8x1024xf32>
    %362 = arith.addf %357, %361 : vector<8x1024xf32>
    %c1020_i32_130 = arith.constant 1020 : i32
    %363 = tpu.dynamic_rotate %232 by %c1020_i32_130 dim 1 : vector<8x1024xf32>, i32 -> vector<8x1024xf32>
    %c26_131 = arith.constant 26 : index
    %c0_132 = arith.constant 0 : index
    %364 = vector.load %arg4[%c26_131, %c0_132] : memref<45x1024xf32, #tpu.memory_space<vmem>>, vector<1x1024xf32>
    %365 = vector.broadcast %364 : vector<1x1024xf32> to vector<8x1024xf32>
    %366 = arith.mulf %363, %365 : vector<8x1024xf32>
    %367 = arith.addf %362, %366 : vector<8x1024xf32>
    %c1019_i32_133 = arith.constant 1019 : i32
    %368 = tpu.dynamic_rotate %232 by %c1019_i32_133 dim 1 : vector<8x1024xf32>, i32 -> vector<8x1024xf32>
    %c27_134 = arith.constant 27 : index
    %c0_135 = arith.constant 0 : index
    %369 = vector.load %arg4[%c27_134, %c0_135] : memref<45x1024xf32, #tpu.memory_space<vmem>>, vector<1x1024xf32>
    %370 = vector.broadcast %369 : vector<1x1024xf32> to vector<8x1024xf32>
    %371 = arith.mulf %368, %370 : vector<8x1024xf32>
    %372 = arith.addf %367, %371 : vector<8x1024xf32>
    %c1018_i32_136 = arith.constant 1018 : i32
    %373 = tpu.dynamic_rotate %232 by %c1018_i32_136 dim 1 : vector<8x1024xf32>, i32 -> vector<8x1024xf32>
    %c28_137 = arith.constant 28 : index
    %c0_138 = arith.constant 0 : index
    %374 = vector.load %arg4[%c28_137, %c0_138] : memref<45x1024xf32, #tpu.memory_space<vmem>>, vector<1x1024xf32>
    %375 = vector.broadcast %374 : vector<1x1024xf32> to vector<8x1024xf32>
    %376 = arith.mulf %373, %375 : vector<8x1024xf32>
    %377 = arith.addf %372, %376 : vector<8x1024xf32>
    %c1017_i32_139 = arith.constant 1017 : i32
    %378 = tpu.dynamic_rotate %232 by %c1017_i32_139 dim 1 : vector<8x1024xf32>, i32 -> vector<8x1024xf32>
    %c29_140 = arith.constant 29 : index
    %c0_141 = arith.constant 0 : index
    %379 = vector.load %arg4[%c29_140, %c0_141] : memref<45x1024xf32, #tpu.memory_space<vmem>>, vector<1x1024xf32>
    %380 = vector.broadcast %379 : vector<1x1024xf32> to vector<8x1024xf32>
    %381 = arith.mulf %378, %380 : vector<8x1024xf32>
    %382 = arith.addf %377, %381 : vector<8x1024xf32>
    %c967_i32_142 = arith.constant 967 : i32
    %383 = tpu.dynamic_rotate %232 by %c967_i32_142 dim 1 : vector<8x1024xf32>, i32 -> vector<8x1024xf32>
    %c30_143 = arith.constant 30 : index
    %c0_144 = arith.constant 0 : index
    %384 = vector.load %arg4[%c30_143, %c0_144] : memref<45x1024xf32, #tpu.memory_space<vmem>>, vector<1x1024xf32>
    %385 = vector.broadcast %384 : vector<1x1024xf32> to vector<8x1024xf32>
    %386 = arith.mulf %383, %385 : vector<8x1024xf32>
    %387 = arith.addf %382, %386 : vector<8x1024xf32>
    %c966_i32_145 = arith.constant 966 : i32
    %388 = tpu.dynamic_rotate %232 by %c966_i32_145 dim 1 : vector<8x1024xf32>, i32 -> vector<8x1024xf32>
    %c31_146 = arith.constant 31 : index
    %c0_147 = arith.constant 0 : index
    %389 = vector.load %arg4[%c31_146, %c0_147] : memref<45x1024xf32, #tpu.memory_space<vmem>>, vector<1x1024xf32>
    %390 = vector.broadcast %389 : vector<1x1024xf32> to vector<8x1024xf32>
    %391 = arith.mulf %388, %390 : vector<8x1024xf32>
    %392 = arith.addf %387, %391 : vector<8x1024xf32>
    %c965_i32_148 = arith.constant 965 : i32
    %393 = tpu.dynamic_rotate %232 by %c965_i32_148 dim 1 : vector<8x1024xf32>, i32 -> vector<8x1024xf32>
    %c32_149 = arith.constant 32 : index
    %c0_150 = arith.constant 0 : index
    %394 = vector.load %arg4[%c32_149, %c0_150] : memref<45x1024xf32, #tpu.memory_space<vmem>>, vector<1x1024xf32>
    %395 = vector.broadcast %394 : vector<1x1024xf32> to vector<8x1024xf32>
    %396 = arith.mulf %393, %395 : vector<8x1024xf32>
    %397 = arith.addf %392, %396 : vector<8x1024xf32>
    %c964_i32_151 = arith.constant 964 : i32
    %398 = tpu.dynamic_rotate %232 by %c964_i32_151 dim 1 : vector<8x1024xf32>, i32 -> vector<8x1024xf32>
    %c33_152 = arith.constant 33 : index
    %c0_153 = arith.constant 0 : index
    %399 = vector.load %arg4[%c33_152, %c0_153] : memref<45x1024xf32, #tpu.memory_space<vmem>>, vector<1x1024xf32>
    %400 = vector.broadcast %399 : vector<1x1024xf32> to vector<8x1024xf32>
    %401 = arith.mulf %398, %400 : vector<8x1024xf32>
    %402 = arith.addf %397, %401 : vector<8x1024xf32>
    %c963_i32_154 = arith.constant 963 : i32
    %403 = tpu.dynamic_rotate %232 by %c963_i32_154 dim 1 : vector<8x1024xf32>, i32 -> vector<8x1024xf32>
    %c34_155 = arith.constant 34 : index
    %c0_156 = arith.constant 0 : index
    %404 = vector.load %arg4[%c34_155, %c0_156] : memref<45x1024xf32, #tpu.memory_space<vmem>>, vector<1x1024xf32>
    %405 = vector.broadcast %404 : vector<1x1024xf32> to vector<8x1024xf32>
    %406 = arith.mulf %403, %405 : vector<8x1024xf32>
    %407 = arith.addf %402, %406 : vector<8x1024xf32>
    %c962_i32_157 = arith.constant 962 : i32
    %408 = tpu.dynamic_rotate %232 by %c962_i32_157 dim 1 : vector<8x1024xf32>, i32 -> vector<8x1024xf32>
    %c35_158 = arith.constant 35 : index
    %c0_159 = arith.constant 0 : index
    %409 = vector.load %arg4[%c35_158, %c0_159] : memref<45x1024xf32, #tpu.memory_space<vmem>>, vector<1x1024xf32>
    %410 = vector.broadcast %409 : vector<1x1024xf32> to vector<8x1024xf32>
    %411 = arith.mulf %408, %410 : vector<8x1024xf32>
    %412 = arith.addf %407, %411 : vector<8x1024xf32>
    %c961_i32_160 = arith.constant 961 : i32
    %413 = tpu.dynamic_rotate %232 by %c961_i32_160 dim 1 : vector<8x1024xf32>, i32 -> vector<8x1024xf32>
    %c36_161 = arith.constant 36 : index
    %c0_162 = arith.constant 0 : index
    %414 = vector.load %arg4[%c36_161, %c0_162] : memref<45x1024xf32, #tpu.memory_space<vmem>>, vector<1x1024xf32>
    %415 = vector.broadcast %414 : vector<1x1024xf32> to vector<8x1024xf32>
    %416 = arith.mulf %413, %415 : vector<8x1024xf32>
    %417 = arith.addf %412, %416 : vector<8x1024xf32>
    %c960_i32_163 = arith.constant 960 : i32
    %418 = tpu.dynamic_rotate %232 by %c960_i32_163 dim 1 : vector<8x1024xf32>, i32 -> vector<8x1024xf32>
    %c37_164 = arith.constant 37 : index
    %c0_165 = arith.constant 0 : index
    %419 = vector.load %arg4[%c37_164, %c0_165] : memref<45x1024xf32, #tpu.memory_space<vmem>>, vector<1x1024xf32>
    %420 = vector.broadcast %419 : vector<1x1024xf32> to vector<8x1024xf32>
    %421 = arith.mulf %418, %420 : vector<8x1024xf32>
    %422 = arith.addf %417, %421 : vector<8x1024xf32>
    %c959_i32_166 = arith.constant 959 : i32
    %423 = tpu.dynamic_rotate %232 by %c959_i32_166 dim 1 : vector<8x1024xf32>, i32 -> vector<8x1024xf32>
    %c38_167 = arith.constant 38 : index
    %c0_168 = arith.constant 0 : index
    %424 = vector.load %arg4[%c38_167, %c0_168] : memref<45x1024xf32, #tpu.memory_space<vmem>>, vector<1x1024xf32>
    %425 = vector.broadcast %424 : vector<1x1024xf32> to vector<8x1024xf32>
    %426 = arith.mulf %423, %425 : vector<8x1024xf32>
    %427 = arith.addf %422, %426 : vector<8x1024xf32>
    %c958_i32_169 = arith.constant 958 : i32
    %428 = tpu.dynamic_rotate %232 by %c958_i32_169 dim 1 : vector<8x1024xf32>, i32 -> vector<8x1024xf32>
    %c39_170 = arith.constant 39 : index
    %c0_171 = arith.constant 0 : index
    %429 = vector.load %arg4[%c39_170, %c0_171] : memref<45x1024xf32, #tpu.memory_space<vmem>>, vector<1x1024xf32>
    %430 = vector.broadcast %429 : vector<1x1024xf32> to vector<8x1024xf32>
    %431 = arith.mulf %428, %430 : vector<8x1024xf32>
    %432 = arith.addf %427, %431 : vector<8x1024xf32>
    %c957_i32_172 = arith.constant 957 : i32
    %433 = tpu.dynamic_rotate %232 by %c957_i32_172 dim 1 : vector<8x1024xf32>, i32 -> vector<8x1024xf32>
    %c40_173 = arith.constant 40 : index
    %c0_174 = arith.constant 0 : index
    %434 = vector.load %arg4[%c40_173, %c0_174] : memref<45x1024xf32, #tpu.memory_space<vmem>>, vector<1x1024xf32>
    %435 = vector.broadcast %434 : vector<1x1024xf32> to vector<8x1024xf32>
    %436 = arith.mulf %433, %435 : vector<8x1024xf32>
    %437 = arith.addf %432, %436 : vector<8x1024xf32>
    %c956_i32_175 = arith.constant 956 : i32
    %438 = tpu.dynamic_rotate %232 by %c956_i32_175 dim 1 : vector<8x1024xf32>, i32 -> vector<8x1024xf32>
    %c41_176 = arith.constant 41 : index
    %c0_177 = arith.constant 0 : index
    %439 = vector.load %arg4[%c41_176, %c0_177] : memref<45x1024xf32, #tpu.memory_space<vmem>>, vector<1x1024xf32>
    %440 = vector.broadcast %439 : vector<1x1024xf32> to vector<8x1024xf32>
    %441 = arith.mulf %438, %440 : vector<8x1024xf32>
    %442 = arith.addf %437, %441 : vector<8x1024xf32>
    %c955_i32_178 = arith.constant 955 : i32
    %443 = tpu.dynamic_rotate %232 by %c955_i32_178 dim 1 : vector<8x1024xf32>, i32 -> vector<8x1024xf32>
    %c42_179 = arith.constant 42 : index
    %c0_180 = arith.constant 0 : index
    %444 = vector.load %arg4[%c42_179, %c0_180] : memref<45x1024xf32, #tpu.memory_space<vmem>>, vector<1x1024xf32>
    %445 = vector.broadcast %444 : vector<1x1024xf32> to vector<8x1024xf32>
    %446 = arith.mulf %443, %445 : vector<8x1024xf32>
    %447 = arith.addf %442, %446 : vector<8x1024xf32>
    %c954_i32_181 = arith.constant 954 : i32
    %448 = tpu.dynamic_rotate %232 by %c954_i32_181 dim 1 : vector<8x1024xf32>, i32 -> vector<8x1024xf32>
    %c43_182 = arith.constant 43 : index
    %c0_183 = arith.constant 0 : index
    %449 = vector.load %arg4[%c43_182, %c0_183] : memref<45x1024xf32, #tpu.memory_space<vmem>>, vector<1x1024xf32>
    %450 = vector.broadcast %449 : vector<1x1024xf32> to vector<8x1024xf32>
    %451 = arith.mulf %448, %450 : vector<8x1024xf32>
    %452 = arith.addf %447, %451 : vector<8x1024xf32>
    %c953_i32_184 = arith.constant 953 : i32
    %453 = tpu.dynamic_rotate %232 by %c953_i32_184 dim 1 : vector<8x1024xf32>, i32 -> vector<8x1024xf32>
    %c44_185 = arith.constant 44 : index
    %c0_186 = arith.constant 0 : index
    %454 = vector.load %arg4[%c44_185, %c0_186] : memref<45x1024xf32, #tpu.memory_space<vmem>>, vector<1x1024xf32>
    %455 = vector.broadcast %454 : vector<1x1024xf32> to vector<8x1024xf32>
    %456 = arith.mulf %453, %455 : vector<8x1024xf32>
    %457 = arith.addf %452, %456 : vector<8x1024xf32>
    %458 = arith.mulf %457, %1 : vector<8x1024xf32>
    %c1_187 = arith.constant 1 : index
    %c0_188 = arith.constant 0 : index
    %459 = vector.load %arg5[%c1_187, %c0_188] : memref<2x1024xf32, #tpu.memory_space<vmem>>, vector<1x1024xf32>
    %460 = vector.broadcast %459 : vector<1x1024xf32> to vector<8x1024xf32>
    %461 = arith.addf %458, %460 : vector<8x1024xf32>
    %462 = arith.addf %461, %0 : vector<8x1024xf32>
    %cst_189 = arith.constant 0.000000e+00 : f32
    %463 = vector.broadcast %cst_189 : f32 to vector<8x1024xf32>
    %464 = arith.maximumf %462, %463 : vector<8x1024xf32>
    %c0_190 = arith.constant 0 : index
    %c0_191 = arith.constant 0 : index
    %465 = vector.load %arg6[%c0_190, %c0_191] : memref<8x1024xf32, #tpu.memory_space<vmem>>, vector<8x1024xf32>
    tpu.vector_store %arg6[%c0_190, %c0_191], %464 {strides = array<i32>} : memref<8x1024xf32, #tpu.memory_space<vmem>>, vector<8x1024xf32>,
    return
  }
  func.func @transform_0(%arg0: i32) -> (i32, i32) {
    %c0_i32 = arith.constant 0 : i32
    %c0_i32_0 = arith.constant 0 : i32
    return %arg0, %c0_i32 : i32, i32
  }
  func.func @transform_1(%arg0: i32) -> (i32, i32) {
    %c0_i32 = arith.constant 0 : i32
    %c0_i32_0 = arith.constant 0 : i32
    return %arg0, %c0_i32 : i32, i32
  }
  func.func @transform_2(%arg0: i32) -> (i32, i32) {
    %c0_i32 = arith.constant 0 : i32
    %c0_i32_0 = arith.constant 0 : i32
    %c0_i32_1 = arith.constant 0 : i32
    return %c0_i32, %c0_i32_0 : i32, i32
  }
  func.func @transform_3(%arg0: i32) -> (i32, i32) {
    %c0_i32 = arith.constant 0 : i32
    %c0_i32_0 = arith.constant 0 : i32
    %c0_i32_1 = arith.constant 0 : i32
    return %c0_i32, %c0_i32_0 : i32, i32
  }
  func.func @transform_4(%arg0: i32) -> (i32, i32) {
    %c0_i32 = arith.constant 0 : i32
    %c0_i32_0 = arith.constant 0 : i32
    %c0_i32_1 = arith.constant 0 : i32
    return %c0_i32, %c0_i32_0 : i32, i32
  }
  func.func @transform_5(%arg0: i32) -> (i32, i32) {
    %c0_i32 = arith.constant 0 : i32
    %c0_i32_0 = arith.constant 0 : i32
    return %arg0, %c0_i32 : i32, i32
  }
}

</mosaic_0001>

<llo_original>
// kernel: sparse_residual_block.1
$region0: #{sparse_residual_block.1}
  #allocation0 [shape = 'u32[]', space=smem, size = 0x4, offset = 0x4, fixed_abs, tag = 'smem constant byte address 0x4 - core index']
  #allocation1 [shape = 'u32[144,128]{1,0:T(1,128)}', space=vmem, size = 0x12000, scoped, tag = 'internal scratch']
  %s0 = inlined_call_operand.vmem [shape: f32[64,1024], index: 0, kind: input, shape index: {}]
  %s1 = inlined_call_operand.vmem [shape: f32[64,1024], index: 1, kind: input, shape index: {}]
  %s2 = inlined_call_operand.vmem [shape: f32[45,1024], index: 2, kind: input, shape index: {}]
  %s3 = inlined_call_operand.vmem [shape: f32[45,1024], index: 3, kind: input, shape index: {}]
  %s4 = inlined_call_operand.vmem [shape: f32[2,1024], index: 4, kind: input, shape index: {}]
  %s5 = inlined_call_operand.vmem [shape: f32[64,1024], index: 5, kind: output, shape index: {}]
  %s6 = sld [smem:[#allocation0]]
  $region53: #{sparse_residual_block.1} parent=0
    _
  %s8 = ssub.s32 1, %s6
  %s9 = scalar_select 0, %s8, %s6
  loop: start=0, step=1, limit=10
  $region2: #{sparse_residual_block.1} parent=0 // loop_pre_header
    _
  $region3: #{sparse_residual_block.1} parent=0 // loop_header
    %s11 = sphi 0, %s15
    %p12 = scmp.ge.s32.totalorder %s11, 10
    %s21 = sphi 0, %s23
    %s24 = sphi 0, %s21
    %s25 = sphi 0, %s24
    %s41 = sphi 0, %s25
    %s47 = sphi 0, %s49
    %s50 = sphi 0, %s47
    %s51 = sphi 0, %s50
    %s67 = sphi 0, %s51
    %s71 = sphi 0, %s71
    %s73 = sphi 0, %s71
    %s74 = sphi 0, %s73
    %s88 = sphi 0, %s74
    %s92 = sphi 0, %s92
    %s94 = sphi 0, %s92
    %s95 = sphi 0, %s94
    %s109 = sphi 0, %s95
    %s113 = sphi 0, %s113
    %s115 = sphi 0, %s113
    %s116 = sphi 0, %s115
    %s130 = sphi 0, %s116
    %s136 = sphi 0, %s138
    %s139 = sphi 0, %s136
    %s140 = sphi 0, %s139
    %s156 = sphi 0, %s140
  $region4: #{sparse_residual_block.1} parent=0 // loop_header_branch
    %14 = sbr.rel (%p12) target = $region8
  $region5: #{sparse_residual_block.1} parent=0 // loop_body
    %s16 = ssub.s32 %s11, 1
    %s17 = ssub.s32 %s11, 2
    %s18 = sadd.s32 %s11, 1
    %s19 = ssub.s32 %s11, %s18
    %p20 = scmp.eq.s32.totalorder %s19, 0
    %s22 = sadd.s32 %s21, 1
    %s23 = scalar_select %p20, %s21, %s22
    %p26 = pneg %p20
    %p27 = scmp.eq.s32.totalorder %s11, 7
    %p28 = por %p26, %p27
    %p29 = scmp.ne.s32.totalorder %s21, %s24
    %p30 = scmp.eq.s32.totalorder %s11, 0
    %p31 = por %p29, %p30
    %p32 = scmp.ne.s32.totalorder %s21, %s24
    %p33 = scmp.eq.s32.totalorder %s16, 7
    %p34 = por %p32, %p33
    %p35 = scmp.ne.s32.totalorder %s24, %s25
    %p36 = scmp.eq.s32.totalorder %s16, 0
    %p37 = por %p35, %p36
    %p38 = scmp.ne.s32.totalorder %s24, %s25
    %p39 = scmp.eq.s32.totalorder %s17, 7
    %p40 = por %p38, %p39
    %p42 = scmp.ne.s32.totalorder %s25, %s41
    %p43 = scmp.eq.s32.totalorder %s17, 0
    %p44 = por %p42, %p43
    %s45 = ssub.s32 %s11, %s18
    %p46 = scmp.eq.s32.totalorder %s45, 0
    %s48 = sadd.s32 %s47, 1
    %s49 = scalar_select %p46, %s47, %s48
    %p52 = pneg %p46
    %p53 = scmp.eq.s32.totalorder %s11, 7
    %p54 = por %p52, %p53
    %p55 = scmp.ne.s32.totalorder %s47, %s50
    %p56 = scmp.eq.s32.totalorder %s11, 0
    %p57 = por %p55, %p56
    %p58 = scmp.ne.s32.totalorder %s47, %s50
    %p59 = scmp.eq.s32.totalorder %s16, 7
    %p60 = por %p58, %p59
    %p61 = scmp.ne.s32.totalorder %s50, %s51
    %p62 = scmp.eq.s32.totalorder %s16, 0
    %p63 = por %p61, %p62
    %p64 = scmp.ne.s32.totalorder %s50, %s51
    %p65 = scmp.eq.s32.totalorder %s17, 7
    %p66 = por %p64, %p65
    %p68 = scmp.ne.s32.totalorder %s51, %s67
    %p69 = scmp.eq.s32.totalorder %s17, 0
    %p70 = por %p68, %p69
    %s72 = sadd.s32 %s71, 1
    %p75 = scmp.eq.s32.totalorder %s11, 7
    %p76 = scmp.ne.s32.totalorder %s71, %s73
    %p77 = scmp.eq.s32.totalorder %s11, 0
    %p78 = por %p76, %p77
    %p79 = scmp.ne.s32.totalorder %s71, %s73
    %p80 = scmp.eq.s32.totalorder %s16, 7
    %p81 = por %p79, %p80
    %p82 = scmp.ne.s32.totalorder %s73, %s74
    %p83 = scmp.eq.s32.totalorder %s16, 0
    %p84 = por %p82, %p83
    %p85 = scmp.ne.s32.totalorder %s73, %s74
    %p86 = scmp.eq.s32.totalorder %s17, 7
    %p87 = por %p85, %p86
    %p89 = scmp.ne.s32.totalorder %s74, %s88
    %p90 = scmp.eq.s32.totalorder %s17, 0
    %p91 = por %p89, %p90
    %s93 = sadd.s32 %s92, 1
    %p96 = scmp.eq.s32.totalorder %s11, 7
    %p97 = scmp.ne.s32.totalorder %s92, %s94
    %p98 = scmp.eq.s32.totalorder %s11, 0
    %p99 = por %p97, %p98
    %p100 = scmp.ne.s32.totalorder %s92, %s94
    %p101 = scmp.eq.s32.totalorder %s16, 7
    %p102 = por %p100, %p101
    %p103 = scmp.ne.s32.totalorder %s94, %s95
    %p104 = scmp.eq.s32.totalorder %s16, 0
    %p105 = por %p103, %p104
    %p106 = scmp.ne.s32.totalorder %s94, %s95
    %p107 = scmp.eq.s32.totalorder %s17, 7
    %p108 = por %p106, %p107
    %p110 = scmp.ne.s32.totalorder %s95, %s109
    %p111 = scmp.eq.s32.totalorder %s17, 0
    %p112 = por %p110, %p111
    %s114 = sadd.s32 %s113, 1
    %p117 = scmp.eq.s32.totalorder %s11, 7
    %p118 = scmp.ne.s32.totalorder %s113, %s115
    %p119 = scmp.eq.s32.totalorder %s11, 0
    %p120 = por %p118, %p119
    %p121 = scmp.ne.s32.totalorder %s113, %s115
    %p122 = scmp.eq.s32.totalorder %s16, 7
    %p123 = por %p121, %p122
    %p124 = scmp.ne.s32.totalorder %s115, %s116
    %p125 = scmp.eq.s32.totalorder %s16, 0
    %p126 = por %p124, %p125
    %p127 = scmp.ne.s32.totalorder %s115, %s116
    %p128 = scmp.eq.s32.totalorder %s17, 7
    %p129 = por %p127, %p128
    %p131 = scmp.ne.s32.totalorder %s116, %s130
    %p132 = scmp.eq.s32.totalorder %s17, 0
    %p133 = por %p131, %p132
    %s134 = ssub.s32 %s11, %s18
    %p135 = scmp.eq.s32.totalorder %s134, 0
    %s137 = sadd.s32 %s136, 1
    %s138 = scalar_select %p135, %s136, %s137
    %p141 = pneg %p135
    %p142 = scmp.eq.s32.totalorder %s11, 7
    %p143 = por %p141, %p142
    %p144 = scmp.ne.s32.totalorder %s136, %s139
    %p145 = scmp.eq.s32.totalorder %s11, 0
    %p146 = por %p144, %p145
    %p147 = scmp.ne.s32.totalorder %s136, %s139
    %p148 = scmp.eq.s32.totalorder %s16, 7
    %p149 = por %p147, %p148
    %p150 = scmp.ne.s32.totalorder %s139, %s140
    %p151 = scmp.eq.s32.totalorder %s16, 0
    %p152 = por %p150, %p151
    %p153 = scmp.ne.s32.totalorder %s139, %s140
    %p154 = scmp.eq.s32.totalorder %s17, 7
    %p155 = por %p153, %p154
    %p157 = scmp.ne.s32.totalorder %s140, %s156
    %p158 = scmp.eq.s32.totalorder %s17, 0
    %p159 = por %p157, %p158
    %p160 = scmp.le.s32.totalorder 1, %s11
    %p161 = scmp.lt.s32.totalorder %s11, 9
    %p162 = pnand %p160, %p161
    %p163 = pneg %p162
    // Predicated region
    $region9: #{sparse_residual_block.1} parent=5 // pred_check
      _
    $region10: #{sparse_residual_block.1} parent=5 // pred_check_branch
      %165 = sbr.rel (%p162) target = $region12
    $region11: #{sparse_residual_block.1} parent=5 // pred_region
      %s166 = ssub.s32 %s11, 1
      // Predicated region
      $region13: #{sparse_residual_block.1} parent=11 // pred_check
        %p167 = pneg %p84
      $region14: #{sparse_residual_block.1} parent=11 // pred_check_branch
        %169 = sbr.rel (%p167) target = $region16
      $region15: #{sparse_residual_block.1} parent=11 // pred_region
        _
      $region16: #{sparse_residual_block.1} parent=11 // pred_fallthru
        _
      // Predicated region
      $region17: #{sparse_residual_block.1} parent=11 // pred_check
        %p170 = pneg %p105
      $region18: #{sparse_residual_block.1} parent=11 // pred_check_branch
        %172 = sbr.rel (%p170) target = $region20
      $region19: #{sparse_residual_block.1} parent=11 // pred_region
        _
      $region20: #{sparse_residual_block.1} parent=11 // pred_fallthru
        _
      // Predicated region
      $region21: #{sparse_residual_block.1} parent=11 // pred_check
        %p173 = pneg %p126
      $region22: #{sparse_residual_block.1} parent=11 // pred_check_branch
        %175 = sbr.rel (%p173) target = $region24
      $region23: #{sparse_residual_block.1} parent=11 // pred_region
        _
      $region24: #{sparse_residual_block.1} parent=11 // pred_fallthru
        _
    $region12: #{sparse_residual_block.1} parent=5 // pred_fallthru
      _
    %p176 = scmp.lt.s32.totalorder %s11, 8
    // Predicated region
    $region25: #{sparse_residual_block.1} parent=5 // pred_check
      %p177 = pneg %p176
    $region26: #{sparse_residual_block.1} parent=5 // pred_check_branch
      %179 = sbr.rel (%p177) target = $region28
    $region27: #{sparse_residual_block.1} parent=5 // pred_region
      // Predicated region
      $region29: #{sparse_residual_block.1} parent=27 // pred_check
        %p180 = pneg %p31
      $region30: #{sparse_residual_block.1} parent=27 // pred_check_branch
        %182 = sbr.rel (%p180) target = $region32
      $region31: #{sparse_residual_block.1} parent=27 // pred_region
        %p183 = scmp.lt.s32.totalorder %s11, 7
        %s184 = scalar_select %p183, %s11, 7
        %s185 = smul.addr %s184, 8
        %s186 = smul.addr %s185, 8
        %s187 = scalar_lea.vmem %s0, %s186
      $region32: #{sparse_residual_block.1} parent=27 // pred_fallthru
        _
      // Predicated region
      $region33: #{sparse_residual_block.1} parent=27 // pred_check
        %p188 = pneg %p57
      $region34: #{sparse_residual_block.1} parent=27 // pred_check_branch
        %190 = sbr.rel (%p188) target = $region36
      $region35: #{sparse_residual_block.1} parent=27 // pred_region
        %p191 = scmp.lt.s32.totalorder %s11, 7
        %s192 = scalar_select %p191, %s11, 7
        %s193 = smul.addr %s192, 8
        %s194 = smul.addr %s193, 8
        %s195 = scalar_lea.vmem %s1, %s194
      $region36: #{sparse_residual_block.1} parent=27 // pred_fallthru
        _
    $region28: #{sparse_residual_block.1} parent=5 // pred_fallthru
      _
    %p196 = scmp.le.s32.totalorder 1, %s11
    %p197 = scmp.lt.s32.totalorder %s11, 9
    %p198 = pnand %p196, %p197
    %p199 = pneg %p198
    // Predicated region
    $region37: #{sparse_residual_block.1} parent=5 // pred_check
      _
    $region38: #{sparse_residual_block.1} parent=5 // pred_check_branch
      %201 = sbr.rel (%p198) target = $region40
    $region39: #{sparse_residual_block.1} parent=5 // pred_region
      %s202 = ssub.s32 %s11, 1
      %p203 = scmp.lt.s32.totalorder %s16, 7
      %s204 = scalar_select %p203, %s16, 7
      %s205 = smul.addr %s204, 8
      %s206 = smul.addr %s205, 8
      %s207 = scalar_lea.vmem %s0, %s206
      %p208 = pneg %p37
      %p209 = pneg %p34
      %p210 = scmp.lt.s32.totalorder %s16, 7
      %s211 = scalar_select %p210, %s16, 7
      %s212 = smul.addr %s211, 8
      %s213 = smul.addr %s212, 8
      %s214 = scalar_lea.vmem %s1, %s213
      %p215 = pneg %p63
      %p216 = pneg %p60
      %p217 = pneg %p84
      %p218 = pneg %p81
      %p219 = pneg %p105
      %p220 = pneg %p102
      %p221 = pneg %p126
      %p222 = pneg %p123
      %p223 = pneg %p152
      %p224 = pneg %p149
      %p225 = scmp.lt.s32.totalorder %s16, 7
      %s226 = scalar_select %p225, %s16, 7
      %s227 = smul.addr %s226, 8
      %s228 = smul.addr %s227, 8
      %s229 = scalar_lea.vmem %s5, %s228
      %p230 = scmp.lt.s32.totalorder %s16, 7
      %s231 = scalar_select %p230, %s16, 7
      %s232 = smul.addr %s231, 8
      %s233 = smul.addr %s232, 8
      %s234 = scalar_lea.vmem %s0, %s233
      %p235 = scmp.lt.s32.totalorder %s16, 7
      %s236 = scalar_select %p235, %s16, 7
      %s237 = smul.addr %s236, 8
      %s238 = smul.addr %s237, 8
      %s239 = scalar_lea.vmem %s1, %s238
      %p240 = scmp.lt.s32.totalorder %s16, 7
      %s241 = scalar_select %p240, %s16, 7
      %s242 = smul.addr %s241, 8
      %s243 = smul.addr %s242, 8
      %s244 = scalar_lea.vmem %s5, %s243
      %v245 = vld [vmem:[%s234] sm:$0xff]
      %v246 = vld [vmem:[%s234 + $0x8] sm:$0xff]
      %v247 = vld [vmem:[%s234 + $0x10] sm:$0xff]
      %v248 = vld [vmem:[%s234 + $0x18] sm:$0xff]
      %v249 = vld [vmem:[%s234 + $0x20] sm:$0xff]
      %v250 = vld [vmem:[%s234 + $0x28] sm:$0xff]
      %v251 = vld [vmem:[%s234 + $0x30] sm:$0xff]
      %v252 = vld [vmem:[%s234 + $0x38] sm:$0xff]
      %v253 = vld [vmem:[%s239] sm:$0xff]
      %v254 = vld [vmem:[%s239 + $0x8] sm:$0xff]
      %v255 = vld [vmem:[%s239 + $0x10] sm:$0xff]
      %v256 = vld [vmem:[%s239 + $0x18] sm:$0xff]
      %v257 = vld [vmem:[%s239 + $0x20] sm:$0xff]
      %v258 = vld [vmem:[%s239 + $0x28] sm:$0xff]
      %v259 = vld [vmem:[%s239 + $0x30] sm:$0xff]
      %v260 = vld [vmem:[%s239 + $0x38] sm:$0xff]
      %261 = vrot.lane.b32.xlu0 %v245, 71
      %v262 = vpop.permute.xlu0 %261
      %263 = vrot.lane.b32.xlu0 %v246, 71
      %v264 = vpop.permute.xlu0 %263
      %265 = vrot.lane.b32.xlu0 %v247, 71
      %v266 = vpop.permute.xlu0 %265
      %267 = vrot.lane.b32.xlu0 %v248, 71
      %v268 = vpop.permute.xlu0 %267
      %269 = vrot.lane.b32.xlu0 %v249, 71
      %v270 = vpop.permute.xlu0 %269
      %271 = vrot.lane.b32.xlu0 %v250, 71
      %v272 = vpop.permute.xlu0 %271
      %273 = vrot.lane.b32.xlu0 %v251, 71
      %v274 = vpop.permute.xlu0 %273
      %275 = vrot.lane.b32.xlu0 %v252, 71
      %v276 = vpop.permute.xlu0 %275
      %v277 = vlaneseq
      %v278 = vand.u32 %v277, 127
      %vm279 = vcmp.lt.s32.totalorder %v278, 71
      %v280 = vsel %vm279, %v274, %v276
      %v281 = vsel %vm279, %v272, %v274
      %v282 = vsel %vm279, %v270, %v272
      %v283 = vsel %vm279, %v268, %v270
      %v284 = vsel %vm279, %v266, %v268
      %v285 = vsel %vm279, %v264, %v266
      %v286 = vsel %vm279, %v262, %v264
      %v287 = vsel %vm279, %v276, %v262
      %v288 = vld [vmem:[%s2] ss:$8 sm:$0xf]
      %v289 = vld [vmem:[%s2] ss:$8 sm:$0xf0]
      %v290 = vor.u32 %v288, %v289
      %v292 = vlaneseq
      %v293 = vshrl.u32 %v292, 7
      %v294 = vsub.s32 0, %v293
      %v295 = vrot.slane %v290, %v294
      %v296 = vlaneseq
      %v297 = vshrl.u32 %v296, 7
      %v298 = vsub.s32 1, %v297
      %v299 = vrot.slane %v290, %v298
      %v300 = vlaneseq
      %v301 = vshrl.u32 %v300, 7
      %v302 = vsub.s32 2, %v301
      %v303 = vrot.slane %v290, %v302
      %v304 = vlaneseq
      %v305 = vshrl.u32 %v304, 7
      %v306 = vsub.s32 3, %v305
      %v307 = vrot.slane %v290, %v306
      %v308 = vlaneseq
      %v309 = vshrl.u32 %v308, 7
      %v310 = vsub.s32 4, %v309
      %v311 = vrot.slane %v290, %v310
      %v312 = vlaneseq
      %v313 = vshrl.u32 %v312, 7
      %v314 = vsub.s32 5, %v313
      %v315 = vrot.slane %v290, %v314
      %v316 = vlaneseq
      %v317 = vshrl.u32 %v316, 7
      %v318 = vsub.s32 6, %v317
      %v319 = vrot.slane %v290, %v318
      %v320 = vlaneseq
      %v321 = vshrl.u32 %v320, 7
      %v322 = vsub.s32 7, %v321
      %v323 = vrot.slane %v290, %v322
      %v332 = vmul.f32 %v287, %v295
      %v333 = vmul.f32 %v286, %v299
      %v334 = vmul.f32 %v285, %v303
      %v335 = vmul.f32 %v284, %v307
      %v336 = vmul.f32 %v283, %v311
      %v337 = vmul.f32 %v282, %v315
      %v338 = vmul.f32 %v281, %v319
      %v339 = vmul.f32 %v280, %v323
      %v340 = vadd.f32 %v332, 0.0
      %v341 = vadd.f32 %v333, 0.0
      %v342 = vadd.f32 %v334, 0.0
      %v343 = vadd.f32 %v335, 0.0
      %v344 = vadd.f32 %v336, 0.0
      %v345 = vadd.f32 %v337, 0.0
      %v346 = vadd.f32 %v338, 0.0
      %v347 = vadd.f32 %v339, 0.0
      %348 = vrot.lane.b32.xlu0 %v245, 70
      %v349 = vpop.permute.xlu0 %348
      %350 = vrot.lane.b32.xlu0 %v246, 70
      %v351 = vpop.permute.xlu0 %350
      %352 = vrot.lane.b32.xlu0 %v247, 70
      %v353 = vpop.permute.xlu0 %352
      %354 = vrot.lane.b32.xlu0 %v248, 70
      %v355 = vpop.permute.xlu0 %354
      %356 = vrot.lane.b32.xlu0 %v249, 70
      %v357 = vpop.permute.xlu0 %356
      %358 = vrot.lane.b32.xlu0 %v250, 70
      %v359 = vpop.permute.xlu0 %358
      %360 = vrot.lane.b32.xlu0 %v251, 70
      %v361 = vpop.permute.xlu0 %360
      %362 = vrot.lane.b32.xlu0 %v252, 70
      %v363 = vpop.permute.xlu0 %362
      %vm364 = vcmp.lt.s32.totalorder %v278, 70
      %v365 = vsel %vm364, %v361, %v363
      %v366 = vsel %vm364, %v359, %v361
      %v367 = vsel %vm364, %v357, %v359
      %v368 = vsel %vm364, %v355, %v357
      %v369 = vsel %vm364, %v353, %v355
      %v370 = vsel %vm364, %v351, %v353
      %v371 = vsel %vm364, %v349, %v351
      %v372 = vsel %vm364, %v363, %v349
      %s373 = scalar_lea.vmem %s2, 1
      %v374 = vld [vmem:[%s373] ss:$8 sm:$0xf]
      %v375 = vld [vmem:[%s373] ss:$8 sm:$0xf0]
      %v376 = vor.u32 %v374, %v375
      %v378 = vlaneseq
      %v379 = vshrl.u32 %v378, 7
      %v380 = vsub.s32 0, %v379
      %v381 = vrot.slane %v376, %v380
      %v382 = vlaneseq
      %v383 = vshrl.u32 %v382, 7
      %v384 = vsub.s32 1, %v383
      %v385 = vrot.slane %v376, %v384
      %v386 = vlaneseq
      %v387 = vshrl.u32 %v386, 7
      %v388 = vsub.s32 2, %v387
      %v389 = vrot.slane %v376, %v388
      %v390 = vlaneseq
      %v391 = vshrl.u32 %v390, 7
      %v392 = vsub.s32 3, %v391
      %v393 = vrot.slane %v376, %v392
      %v394 = vlaneseq
      %v395 = vshrl.u32 %v394, 7
      %v396 = vsub.s32 4, %v395
      %v397 = vrot.slane %v376, %v396
      %v398 = vlaneseq
      %v399 = vshrl.u32 %v398, 7
      %v400 = vsub.s32 5, %v399
      %v401 = vrot.slane %v376, %v400
      %v402 = vlaneseq
      %v403 = vshrl.u32 %v402, 7
      %v404 = vsub.s32 6, %v403
      %v405 = vrot.slane %v376, %v404
      %v406 = vlaneseq
      %v407 = vshrl.u32 %v406, 7
      %v408 = vsub.s32 7, %v407
      %v409 = vrot.slane %v376, %v408
      %v418 = vmul.f32 %v372, %v381
      %v419 = vmul.f32 %v371, %v385
      %v420 = vmul.f32 %v370, %v389
      %v421 = vmul.f32 %v369, %v393
      %v422 = vmul.f32 %v368, %v397
      %v423 = vmul.f32 %v367, %v401
      %v424 = vmul.f32 %v366, %v405
      %v425 = vmul.f32 %v365, %v409
      %v426 = vadd.f32 %v340, %v418
      %v427 = vadd.f32 %v341, %v419
      %v428 = vadd.f32 %v342, %v420
      %v429 = vadd.f32 %v343, %v421
      %v430 = vadd.f32 %v344, %v422
      %v431 = vadd.f32 %v345, %v423
      %v432 = vadd.f32 %v346, %v424
      %v433 = vadd.f32 %v347, %v425
      %434 = vrot.lane.b32.xlu0 %v245, 69
      %v435 = vpop.permute.xlu0 %434
      %436 = vrot.lane.b32.xlu0 %v246, 69
      %v437 = vpop.permute.xlu0 %436
      %438 = vrot.lane.b32.xlu0 %v247, 69
      %v439 = vpop.permute.xlu0 %438
      %440 = vrot.lane.b32.xlu0 %v248, 69
      %v441 = vpop.permute.xlu0 %440
      %442 = vrot.lane.b32.xlu0 %v249, 69
      %v443 = vpop.permute.xlu0 %442
      %444 = vrot.lane.b32.xlu0 %v250, 69
      %v445 = vpop.permute.xlu0 %444
      %446 = vrot.lane.b32.xlu0 %v251, 69
      %v447 = vpop.permute.xlu0 %446
      %448 = vrot.lane.b32.xlu0 %v252, 69
      %v449 = vpop.permute.xlu0 %448
      %vm450 = vcmp.lt.s32.totalorder %v278, 69
      %v451 = vsel %vm450, %v447, %v449
      %v452 = vsel %vm450, %v445, %v447
      %v453 = vsel %vm450, %v443, %v445
      %v454 = vsel %vm450, %v441, %v443
      %v455 = vsel %vm450, %v439, %v441
      %v456 = vsel %vm450, %v437, %v439
      %v457 = vsel %vm450, %v435, %v437
      %v458 = vsel %vm450, %v449, %v435
      %s459 = scalar_lea.vmem %s2, 2
      %v460 = vld [vmem:[%s459] ss:$8 sm:$0xf]
      %v461 = vld [vmem:[%s459] ss:$8 sm:$0xf0]
      %v462 = vor.u32 %v460, %v461
      %v464 = vlaneseq
      %v465 = vshrl.u32 %v464, 7
      %v466 = vsub.s32 0, %v465
      %v467 = vrot.slane %v462, %v466
      %v468 = vlaneseq
      %v469 = vshrl.u32 %v468, 7
      %v470 = vsub.s32 1, %v469
      %v471 = vrot.slane %v462, %v470
      %v472 = vlaneseq
      %v473 = vshrl.u32 %v472, 7
      %v474 = vsub.s32 2, %v473
      %v475 = vrot.slane %v462, %v474
      %v476 = vlaneseq
      %v477 = vshrl.u32 %v476, 7
      %v478 = vsub.s32 3, %v477
      %v479 = vrot.slane %v462, %v478
      %v480 = vlaneseq
      %v481 = vshrl.u32 %v480, 7
      %v482 = vsub.s32 4, %v481
      %v483 = vrot.slane %v462, %v482
      %v484 = vlaneseq
      %v485 = vshrl.u32 %v484, 7
      %v486 = vsub.s32 5, %v485
      %v487 = vrot.slane %v462, %v486
      %v488 = vlaneseq
      %v489 = vshrl.u32 %v488, 7
      %v490 = vsub.s32 6, %v489
      %v491 = vrot.slane %v462, %v490
      %v492 = vlaneseq
      %v493 = vshrl.u32 %v492, 7
      %v494 = vsub.s32 7, %v493
      %v495 = vrot.slane %v462, %v494
      %v504 = vmul.f32 %v458, %v467
      %v505 = vmul.f32 %v457, %v471
      %v506 = vmul.f32 %v456, %v475
      %v507 = vmul.f32 %v455, %v479
      %v508 = vmul.f32 %v454, %v483
      %v509 = vmul.f32 %v453, %v487
      %v510 = vmul.f32 %v452, %v491
      %v511 = vmul.f32 %v451, %v495
      %v512 = vadd.f32 %v426, %v504
      %v513 = vadd.f32 %v427, %v505
      %v514 = vadd.f32 %v428, %v506
      %v515 = vadd.f32 %v429, %v507
      %v516 = vadd.f32 %v430, %v508
      %v517 = vadd.f32 %v431, %v509
      %v518 = vadd.f32 %v432, %v510
      %v519 = vadd.f32 %v433, %v511
      %520 = vrot.lane.b32.xlu0 %v245, 68
      %v521 = vpop.permute.xlu0 %520
      %522 = vrot.lane.b32.xlu0 %v246, 68
      %v523 = vpop.permute.xlu0 %522
      %524 = vrot.lane.b32.xlu0 %v247, 68
      %v525 = vpop.permute.xlu0 %524
      %526 = vrot.lane.b32.xlu0 %v248, 68
      %v527 = vpop.permute.xlu0 %526
      %528 = vrot.lane.b32.xlu0 %v249, 68
      %v529 = vpop.permute.xlu0 %528
      %530 = vrot.lane.b32.xlu0 %v250, 68
      %v531 = vpop.permute.xlu0 %530
      %532 = vrot.lane.b32.xlu0 %v251, 68
      %v533 = vpop.permute.xlu0 %532
      %534 = vrot.lane.b32.xlu0 %v252, 68
      %v535 = vpop.permute.xlu0 %534
      %vm536 = vcmp.lt.s32.totalorder %v278, 68
      %v537 = vsel %vm536, %v533, %v535
      %v538 = vsel %vm536, %v531, %v533
      %v539 = vsel %vm536, %v529, %v531
      %v540 = vsel %vm536, %v527, %v529
      %v541 = vsel %vm536, %v525, %v527
      %v542 = vsel %vm536, %v523, %v525
      %v543 = vsel %vm536, %v521, %v523
      %v544 = vsel %vm536, %v535, %v521
      %s545 = scalar_lea.vmem %s2, 3
      %v546 = vld [vmem:[%s545] ss:$8 sm:$0xf]
      %v547 = vld [vmem:[%s545] ss:$8 sm:$0xf0]
      %v548 = vor.u32 %v546, %v547
      %v550 = vlaneseq
      %v551 = vshrl.u32 %v550, 7
      %v552 = vsub.s32 0, %v551
      %v553 = vrot.slane %v548, %v552
      %v554 = vlaneseq
      %v555 = vshrl.u32 %v554, 7
      %v556 = vsub.s32 1, %v555
      %v557 = vrot.slane %v548, %v556
      %v558 = vlaneseq
      %v559 = vshrl.u32 %v558, 7
      %v560 = vsub.s32 2, %v559
      %v561 = vrot.slane %v548, %v560
      %v562 = vlaneseq
      %v563 = vshrl.u32 %v562, 7
      %v564 = vsub.s32 3, %v563
      %v565 = vrot.slane %v548, %v564
      %v566 = vlaneseq
      %v567 = vshrl.u32 %v566, 7
      %v568 = vsub.s32 4, %v567
      %v569 = vrot.slane %v548, %v568
      %v570 = vlaneseq
      %v571 = vshrl.u32 %v570, 7
      %v572 = vsub.s32 5, %v571
      %v573 = vrot.slane %v548, %v572
      %v574 = vlaneseq
      %v575 = vshrl.u32 %v574, 7
      %v576 = vsub.s32 6, %v575
      %v577 = vrot.slane %v548, %v576
      %v578 = vlaneseq
      %v579 = vshrl.u32 %v578, 7
      %v580 = vsub.s32 7, %v579
      %v581 = vrot.slane %v548, %v580
      %v590 = vmul.f32 %v544, %v553
      %v591 = vmul.f32 %v543, %v557
      %v592 = vmul.f32 %v542, %v561
      %v593 = vmul.f32 %v541, %v565
      %v594 = vmul.f32 %v540, %v569
      %v595 = vmul.f32 %v539, %v573
      %v596 = vmul.f32 %v538, %v577
      %v597 = vmul.f32 %v537, %v581
      %v598 = vadd.f32 %v512, %v590
      %v599 = vadd.f32 %v513, %v591
      %v600 = vadd.f32 %v514, %v592
      %v601 = vadd.f32 %v515, %v593
      %v602 = vadd.f32 %v516, %v594
      %v603 = vadd.f32 %v517, %v595
      %v604 = vadd.f32 %v518, %v596
      %v605 = vadd.f32 %v519, %v597
      %606 = vrot.lane.b32.xlu0 %v245, 67
      %v607 = vpop.permute.xlu0 %606
      %608 = vrot.lane.b32.xlu0 %v246, 67
      %v609 = vpop.permute.xlu0 %608
      %610 = vrot.lane.b32.xlu0 %v247, 67
      %v611 = vpop.permute.xlu0 %610
      %612 = vrot.lane.b32.xlu0 %v248, 67
      %v613 = vpop.permute.xlu0 %612
      %614 = vrot.lane.b32.xlu0 %v249, 67
      %v615 = vpop.permute.xlu0 %614
      %616 = vrot.lane.b32.xlu0 %v250, 67
      %v617 = vpop.permute.xlu0 %616
      %618 = vrot.lane.b32.xlu0 %v251, 67
      %v619 = vpop.permute.xlu0 %618
      %620 = vrot.lane.b32.xlu0 %v252, 67
      %v621 = vpop.permute.xlu0 %620
      %vm622 = vcmp.lt.s32.totalorder %v278, 67
      %v623 = vsel %vm622, %v619, %v621
      %v624 = vsel %vm622, %v617, %v619
      %v625 = vsel %vm622, %v615, %v617
      %v626 = vsel %vm622, %v613, %v615
      %v627 = vsel %vm622, %v611, %v613
      %v628 = vsel %vm622, %v609, %v611
      %v629 = vsel %vm622, %v607, %v609
      %v630 = vsel %vm622, %v621, %v607
      %s631 = scalar_lea.vmem %s2, 4
      %v632 = vld [vmem:[%s631] ss:$8 sm:$0xf]
      %v633 = vld [vmem:[%s631] ss:$8 sm:$0xf0]
      %v634 = vor.u32 %v632, %v633
      %v636 = vlaneseq
      %v637 = vshrl.u32 %v636, 7
      %v638 = vsub.s32 0, %v637
      %v639 = vrot.slane %v634, %v638
      %v640 = vlaneseq
      %v641 = vshrl.u32 %v640, 7
      %v642 = vsub.s32 1, %v641
      %v643 = vrot.slane %v634, %v642
      %v644 = vlaneseq
      %v645 = vshrl.u32 %v644, 7
      %v646 = vsub.s32 2, %v645
      %v647 = vrot.slane %v634, %v646
      %v648 = vlaneseq
      %v649 = vshrl.u32 %v648, 7
      %v650 = vsub.s32 3, %v649
      %v651 = vrot.slane %v634, %v650
      %v652 = vlaneseq
      %v653 = vshrl.u32 %v652, 7
      %v654 = vsub.s32 4, %v653
      %v655 = vrot.slane %v634, %v654
      %v656 = vlaneseq
      %v657 = vshrl.u32 %v656, 7
      %v658 = vsub.s32 5, %v657
      %v659 = vrot.slane %v634, %v658
      %v660 = vlaneseq
      %v661 = vshrl.u32 %v660, 7
      %v662 = vsub.s32 6, %v661
      %v663 = vrot.slane %v634, %v662
      %v664 = vlaneseq
      %v665 = vshrl.u32 %v664, 7
      %v666 = vsub.s32 7, %v665
      %v667 = vrot.slane %v634, %v666
      %v676 = vmul.f32 %v630, %v639
      %v677 = vmul.f32 %v629, %v643
      %v678 = vmul.f32 %v628, %v647
      %v679 = vmul.f32 %v627, %v651
      %v680 = vmul.f32 %v626, %v655
      %v681 = vmul.f32 %v625, %v659
      %v682 = vmul.f32 %v624, %v663
      %v683 = vmul.f32 %v623, %v667
      %v684 = vadd.f32 %v598, %v676
      %v685 = vadd.f32 %v599, %v677
      %v686 = vadd.f32 %v600, %v678
      %v687 = vadd.f32 %v601, %v679
      %v688 = vadd.f32 %v602, %v680
      %v689 = vadd.f32 %v603, %v681
      %v690 = vadd.f32 %v604, %v682
      %v691 = vadd.f32 %v605, %v683
      %692 = vrot.lane.b32.xlu0 %v245, 66
      %v693 = vpop.permute.xlu0 %692
      %694 = vrot.lane.b32.xlu0 %v246, 66
      %v695 = vpop.permute.xlu0 %694
      %696 = vrot.lane.b32.xlu0 %v247, 66
      %v697 = vpop.permute.xlu0 %696
      %698 = vrot.lane.b32.xlu0 %v248, 66
      %v699 = vpop.permute.xlu0 %698
      %700 = vrot.lane.b32.xlu0 %v249, 66
      %v701 = vpop.permute.xlu0 %700
      %702 = vrot.lane.b32.xlu0 %v250, 66
      %v703 = vpop.permute.xlu0 %702
      %704 = vrot.lane.b32.xlu0 %v251, 66
      %v705 = vpop.permute.xlu0 %704
      %706 = vrot.lane.b32.xlu0 %v252, 66
      %v707 = vpop.permute.xlu0 %706
      %vm708 = vcmp.lt.s32.totalorder %v278, 66
      %v709 = vsel %vm708, %v705, %v707
      %v710 = vsel %vm708, %v703, %v705
      %v711 = vsel %vm708, %v701, %v703
      %v712 = vsel %vm708, %v699, %v701
      %v713 = vsel %vm708, %v697, %v699
      %v714 = vsel %vm708, %v695, %v697
      %v715 = vsel %vm708, %v693, %v695
      %v716 = vsel %vm708, %v707, %v693
      %s717 = scalar_lea.vmem %s2, 5
      %v718 = vld [vmem:[%s717] ss:$8 sm:$0xf]
      %v719 = vld [vmem:[%s717] ss:$8 sm:$0xf0]
      %v720 = vor.u32 %v718, %v719
      %v722 = vlaneseq
      %v723 = vshrl.u32 %v722, 7
      %v724 = vsub.s32 0, %v723
      %v725 = vrot.slane %v720, %v724
      %v726 = vlaneseq
      %v727 = vshrl.u32 %v726, 7
      %v728 = vsub.s32 1, %v727
      %v729 = vrot.slane %v720, %v728
      %v730 = vlaneseq
      %v731 = vshrl.u32 %v730, 7
      %v732 = vsub.s32 2, %v731
      %v733 = vrot.slane %v720, %v732
      %v734 = vlaneseq
      %v735 = vshrl.u32 %v734, 7
      %v736 = vsub.s32 3, %v735
      %v737 = vrot.slane %v720, %v736
      %v738 = vlaneseq
      %v739 = vshrl.u32 %v738, 7
      %v740 = vsub.s32 4, %v739
      %v741 = vrot.slane %v720, %v740
      %v742 = vlaneseq
      %v743 = vshrl.u32 %v742, 7
      %v744 = vsub.s32 5, %v743
      %v745 = vrot.slane %v720, %v744
      %v746 = vlaneseq
      %v747 = vshrl.u32 %v746, 7
      %v748 = vsub.s32 6, %v747
      %v749 = vrot.slane %v720, %v748
      %v750 = vlaneseq
      %v751 = vshrl.u32 %v750, 7
      %v752 = vsub.s32 7, %v751
      %v753 = vrot.slane %v720, %v752
      %v762 = vmul.f32 %v716, %v725
      %v763 = vmul.f32 %v715, %v729
      %v764 = vmul.f32 %v714, %v733
      %v765 = vmul.f32 %v713, %v737
      %v766 = vmul.f32 %v712, %v741
      %v767 = vmul.f32 %v711, %v745
      %v768 = vmul.f32 %v710, %v749
      %v769 = vmul.f32 %v709, %v753
      %v770 = vadd.f32 %v684, %v762
      %v771 = vadd.f32 %v685, %v763
      %v772 = vadd.f32 %v686, %v764
      %v773 = vadd.f32 %v687, %v765
      %v774 = vadd.f32 %v688, %v766
      %v775 = vadd.f32 %v689, %v767
      %v776 = vadd.f32 %v690, %v768
      %v777 = vadd.f32 %v691, %v769
      %778 = vrot.lane.b32.xlu0 %v245, 65
      %v779 = vpop.permute.xlu0 %778
      %780 = vrot.lane.b32.xlu0 %v246, 65
      %v781 = vpop.permute.xlu0 %780
      %782 = vrot.lane.b32.xlu0 %v247, 65
      %v783 = vpop.permute.xlu0 %782
      %784 = vrot.lane.b32.xlu0 %v248, 65
      %v785 = vpop.permute.xlu0 %784
      %786 = vrot.lane.b32.xlu0 %v249, 65
      %v787 = vpop.permute.xlu0 %786
      %788 = vrot.lane.b32.xlu0 %v250, 65
      %v789 = vpop.permute.xlu0 %788
      %790 = vrot.lane.b32.xlu0 %v251, 65
      %v791 = vpop.permute.xlu0 %790
      %792 = vrot.lane.b32.xlu0 %v252, 65
      %v793 = vpop.permute.xlu0 %792
      %vm794 = vcmp.lt.s32.totalorder %v278, 65
      %v795 = vsel %vm794, %v791, %v793
      %v796 = vsel %vm794, %v789, %v791
      %v797 = vsel %vm794, %v787, %v789
      %v798 = vsel %vm794, %v785, %v787
      %v799 = vsel %vm794, %v783, %v785
      %v800 = vsel %vm794, %v781, %v783
      %v801 = vsel %vm794, %v779, %v781
      %v802 = vsel %vm794, %v793, %v779
      %s803 = scalar_lea.vmem %s2, 6
      %v804 = vld [vmem:[%s803] ss:$8 sm:$0xf]
      %v805 = vld [vmem:[%s803] ss:$8 sm:$0xf0]
      %v806 = vor.u32 %v804, %v805
      %v808 = vlaneseq
      %v809 = vshrl.u32 %v808, 7
      %v810 = vsub.s32 0, %v809
      %v811 = vrot.slane %v806, %v810
      %v812 = vlaneseq
      %v813 = vshrl.u32 %v812, 7
      %v814 = vsub.s32 1, %v813
      %v815 = vrot.slane %v806, %v814
      %v816 = vlaneseq
      %v817 = vshrl.u32 %v816, 7
      %v818 = vsub.s32 2, %v817
      %v819 = vrot.slane %v806, %v818
      %v820 = vlaneseq
      %v821 = vshrl.u32 %v820, 7
      %v822 = vsub.s32 3, %v821
      %v823 = vrot.slane %v806, %v822
      %v824 = vlaneseq
      %v825 = vshrl.u32 %v824, 7
      %v826 = vsub.s32 4, %v825
      %v827 = vrot.slane %v806, %v826
      %v828 = vlaneseq
      %v829 = vshrl.u32 %v828, 7
      %v830 = vsub.s32 5, %v829
      %v831 = vrot.slane %v806, %v830
      %v832 = vlaneseq
      %v833 = vshrl.u32 %v832, 7
      %v834 = vsub.s32 6, %v833
      %v835 = vrot.slane %v806, %v834
      %v836 = vlaneseq
      %v837 = vshrl.u32 %v836, 7
      %v838 = vsub.s32 7, %v837
      %v839 = vrot.slane %v806, %v838
      %v848 = vmul.f32 %v802, %v811
      %v849 = vmul.f32 %v801, %v815
      %v850 = vmul.f32 %v800, %v819
      %v851 = vmul.f32 %v799, %v823
      %v852 = vmul.f32 %v798, %v827
      %v853 = vmul.f32 %v797, %v831
      %v854 = vmul.f32 %v796, %v835
      %v855 = vmul.f32 %v795, %v839
      %v856 = vadd.f32 %v770, %v848
      %v857 = vadd.f32 %v771, %v849
      %v858 = vadd.f32 %v772, %v850
      %v859 = vadd.f32 %v773, %v851
      %v860 = vadd.f32 %v774, %v852
      %v861 = vadd.f32 %v775, %v853
      %v862 = vadd.f32 %v776, %v854
      %v863 = vadd.f32 %v777, %v855
      %864 = vrot.lane.b32.xlu0 %v245, 64
      %v865 = vpop.permute.xlu0 %864
      %866 = vrot.lane.b32.xlu0 %v246, 64
      %v867 = vpop.permute.xlu0 %866
      %868 = vrot.lane.b32.xlu0 %v247, 64
      %v869 = vpop.permute.xlu0 %868
      %870 = vrot.lane.b32.xlu0 %v248, 64
      %v871 = vpop.permute.xlu0 %870
      %872 = vrot.lane.b32.xlu0 %v249, 64
      %v873 = vpop.permute.xlu0 %872
      %874 = vrot.lane.b32.xlu0 %v250, 64
      %v875 = vpop.permute.xlu0 %874
      %876 = vrot.lane.b32.xlu0 %v251, 64
      %v877 = vpop.permute.xlu0 %876
      %878 = vrot.lane.b32.xlu0 %v252, 64
      %v879 = vpop.permute.xlu0 %878
      %vm880 = vcmp.lt.s32.totalorder %v278, 64
      %v881 = vsel %vm880, %v877, %v879
      %v882 = vsel %vm880, %v875, %v877
      %v883 = vsel %vm880, %v873, %v875
      %v884 = vsel %vm880, %v871, %v873
      %v885 = vsel %vm880, %v869, %v871
      %v886 = vsel %vm880, %v867, %v869
      %v887 = vsel %vm880, %v865, %v867
      %v888 = vsel %vm880, %v879, %v865
      %s889 = scalar_lea.vmem %s2, 7
      %v890 = vld [vmem:[%s889] ss:$8 sm:$0xf]
      %v891 = vld [vmem:[%s889] ss:$8 sm:$0xf0]
      %v892 = vor.u32 %v890, %v891
      %v894 = vlaneseq
      %v895 = vshrl.u32 %v894, 7
      %v896 = vsub.s32 0, %v895
      %v897 = vrot.slane %v892, %v896
      %v898 = vlaneseq
      %v899 = vshrl.u32 %v898, 7
      %v900 = vsub.s32 1, %v899
      %v901 = vrot.slane %v892, %v900
      %v902 = vlaneseq
      %v903 = vshrl.u32 %v902, 7
      %v904 = vsub.s32 2, %v903
      %v905 = vrot.slane %v892, %v904
      %v906 = vlaneseq
      %v907 = vshrl.u32 %v906, 7
      %v908 = vsub.s32 3, %v907
      %v909 = vrot.slane %v892, %v908
      %v910 = vlaneseq
      %v911 = vshrl.u32 %v910, 7
      %v912 = vsub.s32 4, %v911
      %v913 = vrot.slane %v892, %v912
      %v914 = vlaneseq
      %v915 = vshrl.u32 %v914, 7
      %v916 = vsub.s32 5, %v915
      %v917 = vrot.slane %v892, %v916
      %v918 = vlaneseq
      %v919 = vshrl.u32 %v918, 7
      %v920 = vsub.s32 6, %v919
      %v921 = vrot.slane %v892, %v920
      %v922 = vlaneseq
      %v923 = vshrl.u32 %v922, 7
      %v924 = vsub.s32 7, %v923
      %v925 = vrot.slane %v892, %v924
      %v934 = vmul.f32 %v888, %v897
      %v935 = vmul.f32 %v887, %v901
      %v936 = vmul.f32 %v886, %v905
      %v937 = vmul.f32 %v885, %v909
      %v938 = vmul.f32 %v884, %v913
      %v939 = vmul.f32 %v883, %v917
      %v940 = vmul.f32 %v882, %v921
      %v941 = vmul.f32 %v881, %v925
      %v942 = vadd.f32 %v856, %v934
      %v943 = vadd.f32 %v857, %v935
      %v944 = vadd.f32 %v858, %v936
      %v945 = vadd.f32 %v859, %v937
      %v946 = vadd.f32 %v860, %v938
      %v947 = vadd.f32 %v861, %v939
      %v948 = vadd.f32 %v862, %v940
      %v949 = vadd.f32 %v863, %v941
      %950 = vrot.lane.b32.xlu0 %v245, 63
      %v951 = vpop.permute.xlu0 %950
      %952 = vrot.lane.b32.xlu0 %v246, 63
      %v953 = vpop.permute.xlu0 %952
      %954 = vrot.lane.b32.xlu0 %v247, 63
      %v955 = vpop.permute.xlu0 %954
      %956 = vrot.lane.b32.xlu0 %v248, 63
      %v957 = vpop.permute.xlu0 %956
      %958 = vrot.lane.b32.xlu0 %v249, 63
      %v959 = vpop.permute.xlu0 %958
      %960 = vrot.lane.b32.xlu0 %v250, 63
      %v961 = vpop.permute.xlu0 %960
      %962 = vrot.lane.b32.xlu0 %v251, 63
      %v963 = vpop.permute.xlu0 %962
      %964 = vrot.lane.b32.xlu0 %v252, 63
      %v965 = vpop.permute.xlu0 %964
      %vm966 = vcmp.lt.s32.totalorder %v278, 63
      %v967 = vsel %vm966, %v963, %v965
      %v968 = vsel %vm966, %v961, %v963
      %v969 = vsel %vm966, %v959, %v961
      %v970 = vsel %vm966, %v957, %v959
      %v971 = vsel %vm966, %v955, %v957
      %v972 = vsel %vm966, %v953, %v955
      %v973 = vsel %vm966, %v951, %v953
      %v974 = vsel %vm966, %v965, %v951
      %s975 = scalar_lea.vmem %s2, 64
      %v976 = vld [vmem:[%s975] ss:$8 sm:$0xf]
      %v977 = vld [vmem:[%s975] ss:$8 sm:$0xf0]
      %v978 = vor.u32 %v976, %v977
      %v980 = vlaneseq
      %v981 = vshrl.u32 %v980, 7
      %v982 = vsub.s32 0, %v981
      %v983 = vrot.slane %v978, %v982
      %v984 = vlaneseq
      %v985 = vshrl.u32 %v984, 7
      %v986 = vsub.s32 1, %v985
      %v987 = vrot.slane %v978, %v986
      %v988 = vlaneseq
      %v989 = vshrl.u32 %v988, 7
      %v990 = vsub.s32 2, %v989
      %v991 = vrot.slane %v978, %v990
      %v992 = vlaneseq
      %v993 = vshrl.u32 %v992, 7
      %v994 = vsub.s32 3, %v993
      %v995 = vrot.slane %v978, %v994
      %v996 = vlaneseq
      %v997 = vshrl.u32 %v996, 7
      %v998 = vsub.s32 4, %v997
      %v999 = vrot.slane %v978, %v998
      %v1000 = vlaneseq
      %v1001 = vshrl.u32 %v1000, 7
      %v1002 = vsub.s32 5, %v1001
      %v1003 = vrot.slane %v978, %v1002
      %v1004 = vlaneseq
      %v1005 = vshrl.u32 %v1004, 7
      %v1006 = vsub.s32 6, %v1005
      %v1007 = vrot.slane %v978, %v1006
      %v1008 = vlaneseq
      %v1009 = vshrl.u32 %v1008, 7
      %v1010 = vsub.s32 7, %v1009
      %v1011 = vrot.slane %v978, %v1010
      %v1020 = vmul.f32 %v974, %v983
      %v1021 = vmul.f32 %v973, %v987
      %v1022 = vmul.f32 %v972, %v991
      %v1023 = vmul.f32 %v971, %v995
      %v1024 = vmul.f32 %v970, %v999
      %v1025 = vmul.f32 %v969, %v1003
      %v1026 = vmul.f32 %v968, %v1007
      %v1027 = vmul.f32 %v967, %v1011
      %v1028 = vadd.f32 %v942, %v1020
      %v1029 = vadd.f32 %v943, %v1021
      %v1030 = vadd.f32 %v944, %v1022
      %v1031 = vadd.f32 %v945, %v1023
      %v1032 = vadd.f32 %v946, %v1024
      %v1033 = vadd.f32 %v947, %v1025
      %v1034 = vadd.f32 %v948, %v1026
      %v1035 = vadd.f32 %v949, %v1027
      %1036 = vrot.lane.b32.xlu0 %v245, 62
      %v1037 = vpop.permute.xlu0 %1036
      %1038 = vrot.lane.b32.xlu0 %v246, 62
      %v1039 = vpop.permute.xlu0 %1038
      %1040 = vrot.lane.b32.xlu0 %v247, 62
      %v1041 = vpop.permute.xlu0 %1040
      %1042 = vrot.lane.b32.xlu0 %v248, 62
      %v1043 = vpop.permute.xlu0 %1042
      %1044 = vrot.lane.b32.xlu0 %v249, 62
      %v1045 = vpop.permute.xlu0 %1044
      %1046 = vrot.lane.b32.xlu0 %v250, 62
      %v1047 = vpop.permute.xlu0 %1046
      %1048 = vrot.lane.b32.xlu0 %v251, 62
      %v1049 = vpop.permute.xlu0 %1048
      %1050 = vrot.lane.b32.xlu0 %v252, 62
      %v1051 = vpop.permute.xlu0 %1050
      %vm1052 = vcmp.lt.s32.totalorder %v278, 62
      %v1053 = vsel %vm1052, %v1049, %v1051
      %v1054 = vsel %vm1052, %v1047, %v1049
      %v1055 = vsel %vm1052, %v1045, %v1047
      %v1056 = vsel %vm1052, %v1043, %v1045
      %v1057 = vsel %vm1052, %v1041, %v1043
      %v1058 = vsel %vm1052, %v1039, %v1041
      %v1059 = vsel %vm1052, %v1037, %v1039
      %v1060 = vsel %vm1052, %v1051, %v1037
      %s1061 = scalar_lea.vmem %s2, 65
      %v1062 = vld [vmem:[%s1061] ss:$8 sm:$0xf]
      %v1063 = vld [vmem:[%s1061] ss:$8 sm:$0xf0]
      %v1064 = vor.u32 %v1062, %v1063
      %v1066 = vlaneseq
      %v1067 = vshrl.u32 %v1066, 7
      %v1068 = vsub.s32 0, %v1067
      %v1069 = vrot.slane %v1064, %v1068
      %v1070 = vlaneseq
      %v1071 = vshrl.u32 %v1070, 7
      %v1072 = vsub.s32 1, %v1071
      %v1073 = vrot.slane %v1064, %v1072
      %v1074 = vlaneseq
      %v1075 = vshrl.u32 %v1074, 7
      %v1076 = vsub.s32 2, %v1075
      %v1077 = vrot.slane %v1064, %v1076
      %v1078 = vlaneseq
      %v1079 = vshrl.u32 %v1078, 7
      %v1080 = vsub.s32 3, %v1079
      %v1081 = vrot.slane %v1064, %v1080
      %v1082 = vlaneseq
      %v1083 = vshrl.u32 %v1082, 7
      %v1084 = vsub.s32 4, %v1083
      %v1085 = vrot.slane %v1064, %v1084
      %v1086 = vlaneseq
      %v1087 = vshrl.u32 %v1086, 7
      %v1088 = vsub.s32 5, %v1087
      %v1089 = vrot.slane %v1064, %v1088
      %v1090 = vlaneseq
      %v1091 = vshrl.u32 %v1090, 7
      %v1092 = vsub.s32 6, %v1091
      %v1093 = vrot.slane %v1064, %v1092
      %v1094 = vlaneseq
      %v1095 = vshrl.u32 %v1094, 7
      %v1096 = vsub.s32 7, %v1095
      %v1097 = vrot.slane %v1064, %v1096
      %v1106 = vmul.f32 %v1060, %v1069
      %v1107 = vmul.f32 %v1059, %v1073
      %v1108 = vmul.f32 %v1058, %v1077
      %v1109 = vmul.f32 %v1057, %v1081
      %v1110 = vmul.f32 %v1056, %v1085
      %v1111 = vmul.f32 %v1055, %v1089
      %v1112 = vmul.f32 %v1054, %v1093
      %v1113 = vmul.f32 %v1053, %v1097
      %v1114 = vadd.f32 %v1028, %v1106
      %v1115 = vadd.f32 %v1029, %v1107
      %v1116 = vadd.f32 %v1030, %v1108
      %v1117 = vadd.f32 %v1031, %v1109
      %v1118 = vadd.f32 %v1032, %v1110
      %v1119 = vadd.f32 %v1033, %v1111
      %v1120 = vadd.f32 %v1034, %v1112
      %v1121 = vadd.f32 %v1035, %v1113
      %1122 = vrot.lane.b32.xlu0 %v245, 61
      %v1123 = vpop.permute.xlu0 %1122
      %1124 = vrot.lane.b32.xlu0 %v246, 61
      %v1125 = vpop.permute.xlu0 %1124
      %1126 = vrot.lane.b32.xlu0 %v247, 61
      %v1127 = vpop.permute.xlu0 %1126
      %1128 = vrot.lane.b32.xlu0 %v248, 61
      %v1129 = vpop.permute.xlu0 %1128
      %1130 = vrot.lane.b32.xlu0 %v249, 61
      %v1131 = vpop.permute.xlu0 %1130
      %1132 = vrot.lane.b32.xlu0 %v250, 61
      %v1133 = vpop.permute.xlu0 %1132
      %1134 = vrot.lane.b32.xlu0 %v251, 61
      %v1135 = vpop.permute.xlu0 %1134
      %1136 = vrot.lane.b32.xlu0 %v252, 61
      %v1137 = vpop.permute.xlu0 %1136
      %vm1138 = vcmp.lt.s32.totalorder %v278, 61
      %v1139 = vsel %vm1138, %v1135, %v1137
      %v1140 = vsel %vm1138, %v1133, %v1135
      %v1141 = vsel %vm1138, %v1131, %v1133
      %v1142 = vsel %vm1138, %v1129, %v1131
      %v1143 = vsel %vm1138, %v1127, %v1129
      %v1144 = vsel %vm1138, %v1125, %v1127
      %v1145 = vsel %vm1138, %v1123, %v1125
      %v1146 = vsel %vm1138, %v1137, %v1123
      %s1147 = scalar_lea.vmem %s2, 66
      %v1148 = vld [vmem:[%s1147] ss:$8 sm:$0xf]
      %v1149 = vld [vmem:[%s1147] ss:$8 sm:$0xf0]
      %v1150 = vor.u32 %v1148, %v1149
      %v1152 = vlaneseq
      %v1153 = vshrl.u32 %v1152, 7
      %v1154 = vsub.s32 0, %v1153
      %v1155 = vrot.slane %v1150, %v1154
      %v1156 = vlaneseq
      %v1157 = vshrl.u32 %v1156, 7
      %v1158 = vsub.s32 1, %v1157
      %v1159 = vrot.slane %v1150, %v1158
      %v1160 = vlaneseq
      %v1161 = vshrl.u32 %v1160, 7
      %v1162 = vsub.s32 2, %v1161
      %v1163 = vrot.slane %v1150, %v1162
      %v1164 = vlaneseq
      %v1165 = vshrl.u32 %v1164, 7
      %v1166 = vsub.s32 3, %v1165
      %v1167 = vrot.slane %v1150, %v1166
      %v1168 = vlaneseq
      %v1169 = vshrl.u32 %v1168, 7
      %v1170 = vsub.s32 4, %v1169
      %v1171 = vrot.slane %v1150, %v1170
      %v1172 = vlaneseq
      %v1173 = vshrl.u32 %v1172, 7
      %v1174 = vsub.s32 5, %v1173
      %v1175 = vrot.slane %v1150, %v1174
      %v1176 = vlaneseq
      %v1177 = vshrl.u32 %v1176, 7
      %v1178 = vsub.s32 6, %v1177
      %v1179 = vrot.slane %v1150, %v1178
      %v1180 = vlaneseq
      %v1181 = vshrl.u32 %v1180, 7
      %v1182 = vsub.s32 7, %v1181
      %v1183 = vrot.slane %v1150, %v1182
      %v1192 = vmul.f32 %v1146, %v1155
      %v1193 = vmul.f32 %v1145, %v1159
      %v1194 = vmul.f32 %v1144, %v1163
      %v1195 = vmul.f32 %v1143, %v1167
      %v1196 = vmul.f32 %v1142, %v1171
      %v1197 = vmul.f32 %v1141, %v1175
      %v1198 = vmul.f32 %v1140, %v1179
      %v1199 = vmul.f32 %v1139, %v1183
      %v1200 = vadd.f32 %v1114, %v1192
      %v1201 = vadd.f32 %v1115, %v1193
      %v1202 = vadd.f32 %v1116, %v1194
      %v1203 = vadd.f32 %v1117, %v1195
      %v1204 = vadd.f32 %v1118, %v1196
      %v1205 = vadd.f32 %v1119, %v1197
      %v1206 = vadd.f32 %v1120, %v1198
      %v1207 = vadd.f32 %v1121, %v1199
      %1208 = vrot.lane.b32.xlu0 %v245, 60
      %v1209 = vpop.permute.xlu0 %1208
      %1210 = vrot.lane.b32.xlu0 %v246, 60
      %v1211 = vpop.permute.xlu0 %1210
      %1212 = vrot.lane.b32.xlu0 %v247, 60
      %v1213 = vpop.permute.xlu0 %1212
      %1214 = vrot.lane.b32.xlu0 %v248, 60
      %v1215 = vpop.permute.xlu0 %1214
      %1216 = vrot.lane.b32.xlu0 %v249, 60
      %v1217 = vpop.permute.xlu0 %1216
      %1218 = vrot.lane.b32.xlu0 %v250, 60
      %v1219 = vpop.permute.xlu0 %1218
      %1220 = vrot.lane.b32.xlu0 %v251, 60
      %v1221 = vpop.permute.xlu0 %1220
      %1222 = vrot.lane.b32.xlu0 %v252, 60
      %v1223 = vpop.permute.xlu0 %1222
      %vm1224 = vcmp.lt.s32.totalorder %v278, 60
      %v1225 = vsel %vm1224, %v1221, %v1223
      %v1226 = vsel %vm1224, %v1219, %v1221
      %v1227 = vsel %vm1224, %v1217, %v1219
      %v1228 = vsel %vm1224, %v1215, %v1217
      %v1229 = vsel %vm1224, %v1213, %v1215
      %v1230 = vsel %vm1224, %v1211, %v1213
      %v1231 = vsel %vm1224, %v1209, %v1211
      %v1232 = vsel %vm1224, %v1223, %v1209
      %s1233 = scalar_lea.vmem %s2, 67
      %v1234 = vld [vmem:[%s1233] ss:$8 sm:$0xf]
      %v1235 = vld [vmem:[%s1233] ss:$8 sm:$0xf0]
      %v1236 = vor.u32 %v1234, %v1235
      %v1238 = vlaneseq
      %v1239 = vshrl.u32 %v1238, 7
      %v1240 = vsub.s32 0, %v1239
      %v1241 = vrot.slane %v1236, %v1240
      %v1242 = vlaneseq
      %v1243 = vshrl.u32 %v1242, 7
      %v1244 = vsub.s32 1, %v1243
      %v1245 = vrot.slane %v1236, %v1244
      %v1246 = vlaneseq
      %v1247 = vshrl.u32 %v1246, 7
      %v1248 = vsub.s32 2, %v1247
      %v1249 = vrot.slane %v1236, %v1248
      %v1250 = vlaneseq
      %v1251 = vshrl.u32 %v1250, 7
      %v1252 = vsub.s32 3, %v1251
      %v1253 = vrot.slane %v1236, %v1252
      %v1254 = vlaneseq
      %v1255 = vshrl.u32 %v1254, 7
      %v1256 = vsub.s32 4, %v1255
      %v1257 = vrot.slane %v1236, %v1256
      %v1258 = vlaneseq
      %v1259 = vshrl.u32 %v1258, 7
      %v1260 = vsub.s32 5, %v1259
      %v1261 = vrot.slane %v1236, %v1260
      %v1262 = vlaneseq
      %v1263 = vshrl.u32 %v1262, 7
      %v1264 = vsub.s32 6, %v1263
      %v1265 = vrot.slane %v1236, %v1264
      %v1266 = vlaneseq
      %v1267 = vshrl.u32 %v1266, 7
      %v1268 = vsub.s32 7, %v1267
      %v1269 = vrot.slane %v1236, %v1268
      %v1278 = vmul.f32 %v1232, %v1241
      %v1279 = vmul.f32 %v1231, %v1245
      %v1280 = vmul.f32 %v1230, %v1249
      %v1281 = vmul.f32 %v1229, %v1253
      %v1282 = vmul.f32 %v1228, %v1257
      %v1283 = vmul.f32 %v1227, %v1261
      %v1284 = vmul.f32 %v1226, %v1265
      %v1285 = vmul.f32 %v1225, %v1269
      %v1286 = vadd.f32 %v1200, %v1278
      %v1287 = vadd.f32 %v1201, %v1279
      %v1288 = vadd.f32 %v1202, %v1280
      %v1289 = vadd.f32 %v1203, %v1281
      %v1290 = vadd.f32 %v1204, %v1282
      %v1291 = vadd.f32 %v1205, %v1283
      %v1292 = vadd.f32 %v1206, %v1284
      %v1293 = vadd.f32 %v1207, %v1285
      %1294 = vrot.lane.b32.xlu0 %v245, 59
      %v1295 = vpop.permute.xlu0 %1294
      %1296 = vrot.lane.b32.xlu0 %v246, 59
      %v1297 = vpop.permute.xlu0 %1296
      %1298 = vrot.lane.b32.xlu0 %v247, 59
      %v1299 = vpop.permute.xlu0 %1298
      %1300 = vrot.lane.b32.xlu0 %v248, 59
      %v1301 = vpop.permute.xlu0 %1300
      %1302 = vrot.lane.b32.xlu0 %v249, 59
      %v1303 = vpop.permute.xlu0 %1302
      %1304 = vrot.lane.b32.xlu0 %v250, 59
      %v1305 = vpop.permute.xlu0 %1304
      %1306 = vrot.lane.b32.xlu0 %v251, 59
      %v1307 = vpop.permute.xlu0 %1306
      %1308 = vrot.lane.b32.xlu0 %v252, 59
      %v1309 = vpop.permute.xlu0 %1308
      %vm1310 = vcmp.lt.s32.totalorder %v278, 59
      %v1311 = vsel %vm1310, %v1307, %v1309
      %v1312 = vsel %vm1310, %v1305, %v1307
      %v1313 = vsel %vm1310, %v1303, %v1305
      %v1314 = vsel %vm1310, %v1301, %v1303
      %v1315 = vsel %vm1310, %v1299, %v1301
      %v1316 = vsel %vm1310, %v1297, %v1299
      %v1317 = vsel %vm1310, %v1295, %v1297
      %v1318 = vsel %vm1310, %v1309, %v1295
      %s1319 = scalar_lea.vmem %s2, 68
      %v1320 = vld [vmem:[%s1319] ss:$8 sm:$0xf]
      %v1321 = vld [vmem:[%s1319] ss:$8 sm:$0xf0]
      %v1322 = vor.u32 %v1320, %v1321
      %v1324 = vlaneseq
      %v1325 = vshrl.u32 %v1324, 7
      %v1326 = vsub.s32 0, %v1325
      %v1327 = vrot.slane %v1322, %v1326
      %v1328 = vlaneseq
      %v1329 = vshrl.u32 %v1328, 7
      %v1330 = vsub.s32 1, %v1329
      %v1331 = vrot.slane %v1322, %v1330
      %v1332 = vlaneseq
      %v1333 = vshrl.u32 %v1332, 7
      %v1334 = vsub.s32 2, %v1333
      %v1335 = vrot.slane %v1322, %v1334
      %v1336 = vlaneseq
      %v1337 = vshrl.u32 %v1336, 7
      %v1338 = vsub.s32 3, %v1337
      %v1339 = vrot.slane %v1322, %v1338
      %v1340 = vlaneseq
      %v1341 = vshrl.u32 %v1340, 7
      %v1342 = vsub.s32 4, %v1341
      %v1343 = vrot.slane %v1322, %v1342
      %v1344 = vlaneseq
      %v1345 = vshrl.u32 %v1344, 7
      %v1346 = vsub.s32 5, %v1345
      %v1347 = vrot.slane %v1322, %v1346
      %v1348 = vlaneseq
      %v1349 = vshrl.u32 %v1348, 7
      %v1350 = vsub.s32 6, %v1349
      %v1351 = vrot.slane %v1322, %v1350
      %v1352 = vlaneseq
      %v1353 = vshrl.u32 %v1352, 7
      %v1354 = vsub.s32 7, %v1353
      %v1355 = vrot.slane %v1322, %v1354
      %v1364 = vmul.f32 %v1318, %v1327
      %v1365 = vmul.f32 %v1317, %v1331
      %v1366 = vmul.f32 %v1316, %v1335
      %v1367 = vmul.f32 %v1315, %v1339
      %v1368 = vmul.f32 %v1314, %v1343
      %v1369 = vmul.f32 %v1313, %v1347
      %v1370 = vmul.f32 %v1312, %v1351
      %v1371 = vmul.f32 %v1311, %v1355
      %v1372 = vadd.f32 %v1286, %v1364
      %v1373 = vadd.f32 %v1287, %v1365
      %v1374 = vadd.f32 %v1288, %v1366
      %v1375 = vadd.f32 %v1289, %v1367
      %v1376 = vadd.f32 %v1290, %v1368
      %v1377 = vadd.f32 %v1291, %v1369
      %v1378 = vadd.f32 %v1292, %v1370
      %v1379 = vadd.f32 %v1293, %v1371
      %1380 = vrot.lane.b32.xlu0 %v245, 58
      %v1381 = vpop.permute.xlu0 %1380
      %1382 = vrot.lane.b32.xlu0 %v246, 58
      %v1383 = vpop.permute.xlu0 %1382
      %1384 = vrot.lane.b32.xlu0 %v247, 58
      %v1385 = vpop.permute.xlu0 %1384
      %1386 = vrot.lane.b32.xlu0 %v248, 58
      %v1387 = vpop.permute.xlu0 %1386
      %1388 = vrot.lane.b32.xlu0 %v249, 58
      %v1389 = vpop.permute.xlu0 %1388
      %1390 = vrot.lane.b32.xlu0 %v250, 58
      %v1391 = vpop.permute.xlu0 %1390
      %1392 = vrot.lane.b32.xlu0 %v251, 58
      %v1393 = vpop.permute.xlu0 %1392
      %1394 = vrot.lane.b32.xlu0 %v252, 58
      %v1395 = vpop.permute.xlu0 %1394
      %vm1396 = vcmp.lt.s32.totalorder %v278, 58
      %v1397 = vsel %vm1396, %v1393, %v1395
      %v1398 = vsel %vm1396, %v1391, %v1393
      %v1399 = vsel %vm1396, %v1389, %v1391
      %v1400 = vsel %vm1396, %v1387, %v1389
      %v1401 = vsel %vm1396, %v1385, %v1387
      %v1402 = vsel %vm1396, %v1383, %v1385
      %v1403 = vsel %vm1396, %v1381, %v1383
      %v1404 = vsel %vm1396, %v1395, %v1381
      %s1405 = scalar_lea.vmem %s2, 69
      %v1406 = vld [vmem:[%s1405] ss:$8 sm:$0xf]
      %v1407 = vld [vmem:[%s1405] ss:$8 sm:$0xf0]
      %v1408 = vor.u32 %v1406, %v1407
      %v1410 = vlaneseq
      %v1411 = vshrl.u32 %v1410, 7
      %v1412 = vsub.s32 0, %v1411
      %v1413 = vrot.slane %v1408, %v1412
      %v1414 = vlaneseq
      %v1415 = vshrl.u32 %v1414, 7
      %v1416 = vsub.s32 1, %v1415
      %v1417 = vrot.slane %v1408, %v1416
      %v1418 = vlaneseq
      %v1419 = vshrl.u32 %v1418, 7
      %v1420 = vsub.s32 2, %v1419
      %v1421 = vrot.slane %v1408, %v1420
      %v1422 = vlaneseq
      %v1423 = vshrl.u32 %v1422, 7
      %v1424 = vsub.s32 3, %v1423
      %v1425 = vrot.slane %v1408, %v1424
      %v1426 = vlaneseq
      %v1427 = vshrl.u32 %v1426, 7
      %v1428 = vsub.s32 4, %v1427
      %v1429 = vrot.slane %v1408, %v1428
      %v1430 = vlaneseq
      %v1431 = vshrl.u32 %v1430, 7
      %v1432 = vsub.s32 5, %v1431
      %v1433 = vrot.slane %v1408, %v1432
      %v1434 = vlaneseq
      %v1435 = vshrl.u32 %v1434, 7
      %v1436 = vsub.s32 6, %v1435
      %v1437 = vrot.slane %v1408, %v1436
      %v1438 = vlaneseq
      %v1439 = vshrl.u32 %v1438, 7
      %v1440 = vsub.s32 7, %v1439
      %v1441 = vrot.slane %v1408, %v1440
      %v1450 = vmul.f32 %v1404, %v1413
      %v1451 = vmul.f32 %v1403, %v1417
      %v1452 = vmul.f32 %v1402, %v1421
      %v1453 = vmul.f32 %v1401, %v1425
      %v1454 = vmul.f32 %v1400, %v1429
      %v1455 = vmul.f32 %v1399, %v1433
      %v1456 = vmul.f32 %v1398, %v1437
      %v1457 = vmul.f32 %v1397, %v1441
      %v1458 = vadd.f32 %v1372, %v1450
      %v1459 = vadd.f32 %v1373, %v1451
      %v1460 = vadd.f32 %v1374, %v1452
      %v1461 = vadd.f32 %v1375, %v1453
      %v1462 = vadd.f32 %v1376, %v1454
      %v1463 = vadd.f32 %v1377, %v1455
      %v1464 = vadd.f32 %v1378, %v1456
      %v1465 = vadd.f32 %v1379, %v1457
      %1466 = vrot.lane.b32.xlu0 %v245, 57
      %v1467 = vpop.permute.xlu0 %1466
      %1468 = vrot.lane.b32.xlu0 %v246, 57
      %v1469 = vpop.permute.xlu0 %1468
      %1470 = vrot.lane.b32.xlu0 %v247, 57
      %v1471 = vpop.permute.xlu0 %1470
      %1472 = vrot.lane.b32.xlu0 %v248, 57
      %v1473 = vpop.permute.xlu0 %1472
      %1474 = vrot.lane.b32.xlu0 %v249, 57
      %v1475 = vpop.permute.xlu0 %1474
      %1476 = vrot.lane.b32.xlu0 %v250, 57
      %v1477 = vpop.permute.xlu0 %1476
      %1478 = vrot.lane.b32.xlu0 %v251, 57
      %v1479 = vpop.permute.xlu0 %1478
      %1480 = vrot.lane.b32.xlu0 %v252, 57
      %v1481 = vpop.permute.xlu0 %1480
      %vm1482 = vcmp.lt.s32.totalorder %v278, 57
      %v1483 = vsel %vm1482, %v1479, %v1481
      %v1484 = vsel %vm1482, %v1477, %v1479
      %v1485 = vsel %vm1482, %v1475, %v1477
      %v1486 = vsel %vm1482, %v1473, %v1475
      %v1487 = vsel %vm1482, %v1471, %v1473
      %v1488 = vsel %vm1482, %v1469, %v1471
      %v1489 = vsel %vm1482, %v1467, %v1469
      %v1490 = vsel %vm1482, %v1481, %v1467
      %s1491 = scalar_lea.vmem %s2, 70
      %v1492 = vld [vmem:[%s1491] ss:$8 sm:$0xf]
      %v1493 = vld [vmem:[%s1491] ss:$8 sm:$0xf0]
      %v1494 = vor.u32 %v1492, %v1493
      %v1496 = vlaneseq
      %v1497 = vshrl.u32 %v1496, 7
      %v1498 = vsub.s32 0, %v1497
      %v1499 = vrot.slane %v1494, %v1498
      %v1500 = vlaneseq
      %v1501 = vshrl.u32 %v1500, 7
      %v1502 = vsub.s32 1, %v1501
      %v1503 = vrot.slane %v1494, %v1502
      %v1504 = vlaneseq
      %v1505 = vshrl.u32 %v1504, 7
      %v1506 = vsub.s32 2, %v1505
      %v1507 = vrot.slane %v1494, %v1506
      %v1508 = vlaneseq
      %v1509 = vshrl.u32 %v1508, 7
      %v1510 = vsub.s32 3, %v1509
      %v1511 = vrot.slane %v1494, %v1510
      %v1512 = vlaneseq
      %v1513 = vshrl.u32 %v1512, 7
      %v1514 = vsub.s32 4, %v1513
      %v1515 = vrot.slane %v1494, %v1514
      %v1516 = vlaneseq
      %v1517 = vshrl.u32 %v1516, 7
      %v1518 = vsub.s32 5, %v1517
      %v1519 = vrot.slane %v1494, %v1518
      %v1520 = vlaneseq
      %v1521 = vshrl.u32 %v1520, 7
      %v1522 = vsub.s32 6, %v1521
      %v1523 = vrot.slane %v1494, %v1522
      %v1524 = vlaneseq
      %v1525 = vshrl.u32 %v1524, 7
      %v1526 = vsub.s32 7, %v1525
      %v1527 = vrot.slane %v1494, %v1526
      %v1536 = vmul.f32 %v1490, %v1499
      %v1537 = vmul.f32 %v1489, %v1503
      %v1538 = vmul.f32 %v1488, %v1507
      %v1539 = vmul.f32 %v1487, %v1511
      %v1540 = vmul.f32 %v1486, %v1515
      %v1541 = vmul.f32 %v1485, %v1519
      %v1542 = vmul.f32 %v1484, %v1523
      %v1543 = vmul.f32 %v1483, %v1527
      %v1544 = vadd.f32 %v1458, %v1536
      %v1545 = vadd.f32 %v1459, %v1537
      %v1546 = vadd.f32 %v1460, %v1538
      %v1547 = vadd.f32 %v1461, %v1539
      %v1548 = vadd.f32 %v1462, %v1540
      %v1549 = vadd.f32 %v1463, %v1541
      %v1550 = vadd.f32 %v1464, %v1542
      %v1551 = vadd.f32 %v1465, %v1543
      %1552 = vrot.lane.b32.xlu0 %v245, 7
      %v1553 = vpop.permute.xlu0 %1552
      %1554 = vrot.lane.b32.xlu0 %v246, 7
      %v1555 = vpop.permute.xlu0 %1554
      %1556 = vrot.lane.b32.xlu0 %v247, 7
      %v1557 = vpop.permute.xlu0 %1556
      %1558 = vrot.lane.b32.xlu0 %v248, 7
      %v1559 = vpop.permute.xlu0 %1558
      %1560 = vrot.lane.b32.xlu0 %v249, 7
      %v1561 = vpop.permute.xlu0 %1560
      %1562 = vrot.lane.b32.xlu0 %v250, 7
      %v1563 = vpop.permute.xlu0 %1562
      %1564 = vrot.lane.b32.xlu0 %v251, 7
      %v1565 = vpop.permute.xlu0 %1564
      %1566 = vrot.lane.b32.xlu0 %v252, 7
      %v1567 = vpop.permute.xlu0 %1566
      %vm1568 = vcmp.lt.s32.totalorder %v278, 7
      %v1569 = vsel %vm1568, %v1565, %v1567
      %v1570 = vsel %vm1568, %v1563, %v1565
      %v1571 = vsel %vm1568, %v1561, %v1563
      %v1572 = vsel %vm1568, %v1559, %v1561
      %v1573 = vsel %vm1568, %v1557, %v1559
      %v1574 = vsel %vm1568, %v1555, %v1557
      %v1575 = vsel %vm1568, %v1553, %v1555
      %v1576 = vsel %vm1568, %v1567, %v1553
      %s1577 = scalar_lea.vmem %s2, 71
      %v1578 = vld [vmem:[%s1577] ss:$8 sm:$0xf]
      %v1579 = vld [vmem:[%s1577] ss:$8 sm:$0xf0]
      %v1580 = vor.u32 %v1578, %v1579
      %v1582 = vlaneseq
      %v1583 = vshrl.u32 %v1582, 7
      %v1584 = vsub.s32 0, %v1583
      %v1585 = vrot.slane %v1580, %v1584
      %v1586 = vlaneseq
      %v1587 = vshrl.u32 %v1586, 7
      %v1588 = vsub.s32 1, %v1587
      %v1589 = vrot.slane %v1580, %v1588
      %v1590 = vlaneseq
      %v1591 = vshrl.u32 %v1590, 7
      %v1592 = vsub.s32 2, %v1591
      %v1593 = vrot.slane %v1580, %v1592
      %v1594 = vlaneseq
      %v1595 = vshrl.u32 %v1594, 7
      %v1596 = vsub.s32 3, %v1595
      %v1597 = vrot.slane %v1580, %v1596
      %v1598 = vlaneseq
      %v1599 = vshrl.u32 %v1598, 7
      %v1600 = vsub.s32 4, %v1599
      %v1601 = vrot.slane %v1580, %v1600
      %v1602 = vlaneseq
      %v1603 = vshrl.u32 %v1602, 7
      %v1604 = vsub.s32 5, %v1603
      %v1605 = vrot.slane %v1580, %v1604
      %v1606 = vlaneseq
      %v1607 = vshrl.u32 %v1606, 7
      %v1608 = vsub.s32 6, %v1607
      %v1609 = vrot.slane %v1580, %v1608
      %v1610 = vlaneseq
      %v1611 = vshrl.u32 %v1610, 7
      %v1612 = vsub.s32 7, %v1611
      %v1613 = vrot.slane %v1580, %v1612
      %v1622 = vmul.f32 %v1576, %v1585
      %v1623 = vmul.f32 %v1575, %v1589
      %v1624 = vmul.f32 %v1574, %v1593
      %v1625 = vmul.f32 %v1573, %v1597
      %v1626 = vmul.f32 %v1572, %v1601
      %v1627 = vmul.f32 %v1571, %v1605
      %v1628 = vmul.f32 %v1570, %v1609
      %v1629 = vmul.f32 %v1569, %v1613
      %v1630 = vadd.f32 %v1544, %v1622
      %v1631 = vadd.f32 %v1545, %v1623
      %v1632 = vadd.f32 %v1546, %v1624
      %v1633 = vadd.f32 %v1547, %v1625
      %v1634 = vadd.f32 %v1548, %v1626
      %v1635 = vadd.f32 %v1549, %v1627
      %v1636 = vadd.f32 %v1550, %v1628
      %v1637 = vadd.f32 %v1551, %v1629
      %1638 = vrot.lane.b32.xlu0 %v245, 6
      %v1639 = vpop.permute.xlu0 %1638
      %1640 = vrot.lane.b32.xlu0 %v246, 6
      %v1641 = vpop.permute.xlu0 %1640
      %1642 = vrot.lane.b32.xlu0 %v247, 6
      %v1643 = vpop.permute.xlu0 %1642
      %1644 = vrot.lane.b32.xlu0 %v248, 6
      %v1645 = vpop.permute.xlu0 %1644
      %1646 = vrot.lane.b32.xlu0 %v249, 6
      %v1647 = vpop.permute.xlu0 %1646
      %1648 = vrot.lane.b32.xlu0 %v250, 6
      %v1649 = vpop.permute.xlu0 %1648
      %1650 = vrot.lane.b32.xlu0 %v251, 6
      %v1651 = vpop.permute.xlu0 %1650
      %1652 = vrot.lane.b32.xlu0 %v252, 6
      %v1653 = vpop.permute.xlu0 %1652
      %vm1654 = vcmp.lt.s32.totalorder %v278, 6
      %v1655 = vsel %vm1654, %v1651, %v1653
      %v1656 = vsel %vm1654, %v1649, %v1651
      %v1657 = vsel %vm1654, %v1647, %v1649
      %v1658 = vsel %vm1654, %v1645, %v1647
      %v1659 = vsel %vm1654, %v1643, %v1645
      %v1660 = vsel %vm1654, %v1641, %v1643
      %v1661 = vsel %vm1654, %v1639, %v1641
      %v1662 = vsel %vm1654, %v1653, %v1639
      %s1663 = scalar_lea.vmem %s2, 128
      %v1664 = vld [vmem:[%s1663] ss:$8 sm:$0xf]
      %v1665 = vld [vmem:[%s1663] ss:$8 sm:$0xf0]
      %v1666 = vor.u32 %v1664, %v1665
      %v1668 = vlaneseq
      %v1669 = vshrl.u32 %v1668, 7
      %v1670 = vsub.s32 0, %v1669
      %v1671 = vrot.slane %v1666, %v1670
      %v1672 = vlaneseq
      %v1673 = vshrl.u32 %v1672, 7
      %v1674 = vsub.s32 1, %v1673
      %v1675 = vrot.slane %v1666, %v1674
      %v1676 = vlaneseq
      %v1677 = vshrl.u32 %v1676, 7
      %v1678 = vsub.s32 2, %v1677
      %v1679 = vrot.slane %v1666, %v1678
      %v1680 = vlaneseq
      %v1681 = vshrl.u32 %v1680, 7
      %v1682 = vsub.s32 3, %v1681
      %v1683 = vrot.slane %v1666, %v1682
      %v1684 = vlaneseq
      %v1685 = vshrl.u32 %v1684, 7
      %v1686 = vsub.s32 4, %v1685
      %v1687 = vrot.slane %v1666, %v1686
      %v1688 = vlaneseq
      %v1689 = vshrl.u32 %v1688, 7
      %v1690 = vsub.s32 5, %v1689
      %v1691 = vrot.slane %v1666, %v1690
      %v1692 = vlaneseq
      %v1693 = vshrl.u32 %v1692, 7
      %v1694 = vsub.s32 6, %v1693
      %v1695 = vrot.slane %v1666, %v1694
      %v1696 = vlaneseq
      %v1697 = vshrl.u32 %v1696, 7
      %v1698 = vsub.s32 7, %v1697
      %v1699 = vrot.slane %v1666, %v1698
      %v1708 = vmul.f32 %v1662, %v1671
      %v1709 = vmul.f32 %v1661, %v1675
      %v1710 = vmul.f32 %v1660, %v1679
      %v1711 = vmul.f32 %v1659, %v1683
      %v1712 = vmul.f32 %v1658, %v1687
      %v1713 = vmul.f32 %v1657, %v1691
      %v1714 = vmul.f32 %v1656, %v1695
      %v1715 = vmul.f32 %v1655, %v1699
      %v1716 = vadd.f32 %v1630, %v1708
      %v1717 = vadd.f32 %v1631, %v1709
      %v1718 = vadd.f32 %v1632, %v1710
      %v1719 = vadd.f32 %v1633, %v1711
      %v1720 = vadd.f32 %v1634, %v1712
      %v1721 = vadd.f32 %v1635, %v1713
      %v1722 = vadd.f32 %v1636, %v1714
      %v1723 = vadd.f32 %v1637, %v1715
      %1724 = vrot.lane.b32.xlu0 %v245, 5
      %v1725 = vpop.permute.xlu0 %1724
      %1726 = vrot.lane.b32.xlu0 %v246, 5
      %v1727 = vpop.permute.xlu0 %1726
      %1728 = vrot.lane.b32.xlu0 %v247, 5
      %v1729 = vpop.permute.xlu0 %1728
      %1730 = vrot.lane.b32.xlu0 %v248, 5
      %v1731 = vpop.permute.xlu0 %1730
      %1732 = vrot.lane.b32.xlu0 %v249, 5
      %v1733 = vpop.permute.xlu0 %1732
      %1734 = vrot.lane.b32.xlu0 %v250, 5
      %v1735 = vpop.permute.xlu0 %1734
      %1736 = vrot.lane.b32.xlu0 %v251, 5
      %v1737 = vpop.permute.xlu0 %1736
      %1738 = vrot.lane.b32.xlu0 %v252, 5
      %v1739 = vpop.permute.xlu0 %1738
      %vm1740 = vcmp.lt.s32.totalorder %v278, 5
      %v1741 = vsel %vm1740, %v1737, %v1739
      %v1742 = vsel %vm1740, %v1735, %v1737
      %v1743 = vsel %vm1740, %v1733, %v1735
      %v1744 = vsel %vm1740, %v1731, %v1733
      %v1745 = vsel %vm1740, %v1729, %v1731
      %v1746 = vsel %vm1740, %v1727, %v1729
      %v1747 = vsel %vm1740, %v1725, %v1727
      %v1748 = vsel %vm1740, %v1739, %v1725
      %s1749 = scalar_lea.vmem %s2, 129
      %v1750 = vld [vmem:[%s1749] ss:$8 sm:$0xf]
      %v1751 = vld [vmem:[%s1749] ss:$8 sm:$0xf0]
      %v1752 = vor.u32 %v1750, %v1751
      %v1754 = vlaneseq
      %v1755 = vshrl.u32 %v1754, 7
      %v1756 = vsub.s32 0, %v1755
      %v1757 = vrot.slane %v1752, %v1756
      %v1758 = vlaneseq
      %v1759 = vshrl.u32 %v1758, 7
      %v1760 = vsub.s32 1, %v1759
      %v1761 = vrot.slane %v1752, %v1760
      %v1762 = vlaneseq
      %v1763 = vshrl.u32 %v1762, 7
      %v1764 = vsub.s32 2, %v1763
      %v1765 = vrot.slane %v1752, %v1764
      %v1766 = vlaneseq
      %v1767 = vshrl.u32 %v1766, 7
      %v1768 = vsub.s32 3, %v1767
      %v1769 = vrot.slane %v1752, %v1768
      %v1770 = vlaneseq
      %v1771 = vshrl.u32 %v1770, 7
      %v1772 = vsub.s32 4, %v1771
      %v1773 = vrot.slane %v1752, %v1772
      %v1774 = vlaneseq
      %v1775 = vshrl.u32 %v1774, 7
      %v1776 = vsub.s32 5, %v1775
      %v1777 = vrot.slane %v1752, %v1776
      %v1778 = vlaneseq
      %v1779 = vshrl.u32 %v1778, 7
      %v1780 = vsub.s32 6, %v1779
      %v1781 = vrot.slane %v1752, %v1780
      %v1782 = vlaneseq
      %v1783 = vshrl.u32 %v1782, 7
      %v1784 = vsub.s32 7, %v1783
      %v1785 = vrot.slane %v1752, %v1784
      %v1794 = vmul.f32 %v1748, %v1757
      %v1795 = vmul.f32 %v1747, %v1761
      %v1796 = vmul.f32 %v1746, %v1765
      %v1797 = vmul.f32 %v1745, %v1769
      %v1798 = vmul.f32 %v1744, %v1773
      %v1799 = vmul.f32 %v1743, %v1777
      %v1800 = vmul.f32 %v1742, %v1781
      %v1801 = vmul.f32 %v1741, %v1785
      %v1802 = vadd.f32 %v1716, %v1794
      %v1803 = vadd.f32 %v1717, %v1795
      %v1804 = vadd.f32 %v1718, %v1796
      %v1805 = vadd.f32 %v1719, %v1797
      %v1806 = vadd.f32 %v1720, %v1798
      %v1807 = vadd.f32 %v1721, %v1799
      %v1808 = vadd.f32 %v1722, %v1800
      %v1809 = vadd.f32 %v1723, %v1801
      %1810 = vrot.lane.b32.xlu0 %v245, 4
      %v1811 = vpop.permute.xlu0 %1810
      %1812 = vrot.lane.b32.xlu0 %v246, 4
      %v1813 = vpop.permute.xlu0 %1812
      %1814 = vrot.lane.b32.xlu0 %v247, 4
      %v1815 = vpop.permute.xlu0 %1814
      %1816 = vrot.lane.b32.xlu0 %v248, 4
      %v1817 = vpop.permute.xlu0 %1816
      %1818 = vrot.lane.b32.xlu0 %v249, 4
      %v1819 = vpop.permute.xlu0 %1818
      %1820 = vrot.lane.b32.xlu0 %v250, 4
      %v1821 = vpop.permute.xlu0 %1820
      %1822 = vrot.lane.b32.xlu0 %v251, 4
      %v1823 = vpop.permute.xlu0 %1822
      %1824 = vrot.lane.b32.xlu0 %v252, 4
      %v1825 = vpop.permute.xlu0 %1824
      %vm1826 = vcmp.lt.s32.totalorder %v278, 4
      %v1827 = vsel %vm1826, %v1823, %v1825
      %v1828 = vsel %vm1826, %v1821, %v1823
      %v1829 = vsel %vm1826, %v1819, %v1821
      %v1830 = vsel %vm1826, %v1817, %v1819
      %v1831 = vsel %vm1826, %v1815, %v1817
      %v1832 = vsel %vm1826, %v1813, %v1815
      %v1833 = vsel %vm1826, %v1811, %v1813
      %v1834 = vsel %vm1826, %v1825, %v1811
      %s1835 = scalar_lea.vmem %s2, 130
      %v1836 = vld [vmem:[%s1835] ss:$8 sm:$0xf]
      %v1837 = vld [vmem:[%s1835] ss:$8 sm:$0xf0]
      %v1838 = vor.u32 %v1836, %v1837
      %v1840 = vlaneseq
      %v1841 = vshrl.u32 %v1840, 7
      %v1842 = vsub.s32 0, %v1841
      %v1843 = vrot.slane %v1838, %v1842
      %v1844 = vlaneseq
      %v1845 = vshrl.u32 %v1844, 7
      %v1846 = vsub.s32 1, %v1845
      %v1847 = vrot.slane %v1838, %v1846
      %v1848 = vlaneseq
      %v1849 = vshrl.u32 %v1848, 7
      %v1850 = vsub.s32 2, %v1849
      %v1851 = vrot.slane %v1838, %v1850
      %v1852 = vlaneseq
      %v1853 = vshrl.u32 %v1852, 7
      %v1854 = vsub.s32 3, %v1853
      %v1855 = vrot.slane %v1838, %v1854
      %v1856 = vlaneseq
      %v1857 = vshrl.u32 %v1856, 7
      %v1858 = vsub.s32 4, %v1857
      %v1859 = vrot.slane %v1838, %v1858
      %v1860 = vlaneseq
      %v1861 = vshrl.u32 %v1860, 7
      %v1862 = vsub.s32 5, %v1861
      %v1863 = vrot.slane %v1838, %v1862
      %v1864 = vlaneseq
      %v1865 = vshrl.u32 %v1864, 7
      %v1866 = vsub.s32 6, %v1865
      %v1867 = vrot.slane %v1838, %v1866
      %v1868 = vlaneseq
      %v1869 = vshrl.u32 %v1868, 7
      %v1870 = vsub.s32 7, %v1869
      %v1871 = vrot.slane %v1838, %v1870
      %v1880 = vmul.f32 %v1834, %v1843
      %v1881 = vmul.f32 %v1833, %v1847
      %v1882 = vmul.f32 %v1832, %v1851
      %v1883 = vmul.f32 %v1831, %v1855
      %v1884 = vmul.f32 %v1830, %v1859
      %v1885 = vmul.f32 %v1829, %v1863
      %v1886 = vmul.f32 %v1828, %v1867
      %v1887 = vmul.f32 %v1827, %v1871
      %v1888 = vadd.f32 %v1802, %v1880
      %v1889 = vadd.f32 %v1803, %v1881
      %v1890 = vadd.f32 %v1804, %v1882
      %v1891 = vadd.f32 %v1805, %v1883
      %v1892 = vadd.f32 %v1806, %v1884
      %v1893 = vadd.f32 %v1807, %v1885
      %v1894 = vadd.f32 %v1808, %v1886
      %v1895 = vadd.f32 %v1809, %v1887
      %1896 = vrot.lane.b32.xlu0 %v245, 3
      %v1897 = vpop.permute.xlu0 %1896
      %1898 = vrot.lane.b32.xlu0 %v246, 3
      %v1899 = vpop.permute.xlu0 %1898
      %1900 = vrot.lane.b32.xlu0 %v247, 3
      %v1901 = vpop.permute.xlu0 %1900
      %1902 = vrot.lane.b32.xlu0 %v248, 3
      %v1903 = vpop.permute.xlu0 %1902
      %1904 = vrot.lane.b32.xlu0 %v249, 3
      %v1905 = vpop.permute.xlu0 %1904
      %1906 = vrot.lane.b32.xlu0 %v250, 3
      %v1907 = vpop.permute.xlu0 %1906
      %1908 = vrot.lane.b32.xlu0 %v251, 3
      %v1909 = vpop.permute.xlu0 %1908
      %1910 = vrot.lane.b32.xlu0 %v252, 3
      %v1911 = vpop.permute.xlu0 %1910
      %vm1912 = vcmp.lt.s32.totalorder %v278, 3
      %v1913 = vsel %vm1912, %v1909, %v1911
      %v1914 = vsel %vm1912, %v1907, %v1909
      %v1915 = vsel %vm1912, %v1905, %v1907
      %v1916 = vsel %vm1912, %v1903, %v1905
      %v1917 = vsel %vm1912, %v1901, %v1903
      %v1918 = vsel %vm1912, %v1899, %v1901
      %v1919 = vsel %vm1912, %v1897, %v1899
      %v1920 = vsel %vm1912, %v1911, %v1897
      %s1921 = scalar_lea.vmem %s2, 131
      %v1922 = vld [vmem:[%s1921] ss:$8 sm:$0xf]
      %v1923 = vld [vmem:[%s1921] ss:$8 sm:$0xf0]
      %v1924 = vor.u32 %v1922, %v1923
      %v1926 = vlaneseq
      %v1927 = vshrl.u32 %v1926, 7
      %v1928 = vsub.s32 0, %v1927
      %v1929 = vrot.slane %v1924, %v1928
      %v1930 = vlaneseq
      %v1931 = vshrl.u32 %v1930, 7
      %v1932 = vsub.s32 1, %v1931
      %v1933 = vrot.slane %v1924, %v1932
      %v1934 = vlaneseq
      %v1935 = vshrl.u32 %v1934, 7
      %v1936 = vsub.s32 2, %v1935
      %v1937 = vrot.slane %v1924, %v1936
      %v1938 = vlaneseq
      %v1939 = vshrl.u32 %v1938, 7
      %v1940 = vsub.s32 3, %v1939
      %v1941 = vrot.slane %v1924, %v1940
      %v1942 = vlaneseq
      %v1943 = vshrl.u32 %v1942, 7
      %v1944 = vsub.s32 4, %v1943
      %v1945 = vrot.slane %v1924, %v1944
      %v1946 = vlaneseq
      %v1947 = vshrl.u32 %v1946, 7
      %v1948 = vsub.s32 5, %v1947
      %v1949 = vrot.slane %v1924, %v1948
      %v1950 = vlaneseq
      %v1951 = vshrl.u32 %v1950, 7
      %v1952 = vsub.s32 6, %v1951
      %v1953 = vrot.slane %v1924, %v1952
      %v1954 = vlaneseq
      %v1955 = vshrl.u32 %v1954, 7
      %v1956 = vsub.s32 7, %v1955
      %v1957 = vrot.slane %v1924, %v1956
      %v1966 = vmul.f32 %v1920, %v1929
      %v1967 = vmul.f32 %v1919, %v1933
      %v1968 = vmul.f32 %v1918, %v1937
      %v1969 = vmul.f32 %v1917, %v1941
      %v1970 = vmul.f32 %v1916, %v1945
      %v1971 = vmul.f32 %v1915, %v1949
      %v1972 = vmul.f32 %v1914, %v1953
      %v1973 = vmul.f32 %v1913, %v1957
      %v1974 = vadd.f32 %v1888, %v1966
      %v1975 = vadd.f32 %v1889, %v1967
      %v1976 = vadd.f32 %v1890, %v1968
      %v1977 = vadd.f32 %v1891, %v1969
      %v1978 = vadd.f32 %v1892, %v1970
      %v1979 = vadd.f32 %v1893, %v1971
      %v1980 = vadd.f32 %v1894, %v1972
      %v1981 = vadd.f32 %v1895, %v1973
      %1982 = vrot.lane.b32.xlu0 %v245, 2
      %v1983 = vpop.permute.xlu0 %1982
      %1984 = vrot.lane.b32.xlu0 %v246, 2
      %v1985 = vpop.permute.xlu0 %1984
      %1986 = vrot.lane.b32.xlu0 %v247, 2
      %v1987 = vpop.permute.xlu0 %1986
      %1988 = vrot.lane.b32.xlu0 %v248, 2
      %v1989 = vpop.permute.xlu0 %1988
      %1990 = vrot.lane.b32.xlu0 %v249, 2
      %v1991 = vpop.permute.xlu0 %1990
      %1992 = vrot.lane.b32.xlu0 %v250, 2
      %v1993 = vpop.permute.xlu0 %1992
      %1994 = vrot.lane.b32.xlu0 %v251, 2
      %v1995 = vpop.permute.xlu0 %1994
      %1996 = vrot.lane.b32.xlu0 %v252, 2
      %v1997 = vpop.permute.xlu0 %1996
      %vm1998 = vcmp.lt.s32.totalorder %v278, 2
      %v1999 = vsel %vm1998, %v1995, %v1997
      %v2000 = vsel %vm1998, %v1993, %v1995
      %v2001 = vsel %vm1998, %v1991, %v1993
      %v2002 = vsel %vm1998, %v1989, %v1991
      %v2003 = vsel %vm1998, %v1987, %v1989
      %v2004 = vsel %vm1998, %v1985, %v1987
      %v2005 = vsel %vm1998, %v1983, %v1985
      %v2006 = vsel %vm1998, %v1997, %v1983
      %s2007 = scalar_lea.vmem %s2, 132
      %v2008 = vld [vmem:[%s2007] ss:$8 sm:$0xf]
      %v2009 = vld [vmem:[%s2007] ss:$8 sm:$0xf0]
      %v2010 = vor.u32 %v2008, %v2009
      %v2012 = vlaneseq
      %v2013 = vshrl.u32 %v2012, 7
      %v2014 = vsub.s32 0, %v2013
      %v2015 = vrot.slane %v2010, %v2014
      %v2016 = vlaneseq
      %v2017 = vshrl.u32 %v2016, 7
      %v2018 = vsub.s32 1, %v2017
      %v2019 = vrot.slane %v2010, %v2018
      %v2020 = vlaneseq
      %v2021 = vshrl.u32 %v2020, 7
      %v2022 = vsub.s32 2, %v2021
      %v2023 = vrot.slane %v2010, %v2022
      %v2024 = vlaneseq
      %v2025 = vshrl.u32 %v2024, 7
      %v2026 = vsub.s32 3, %v2025
      %v2027 = vrot.slane %v2010, %v2026
      %v2028 = vlaneseq
      %v2029 = vshrl.u32 %v2028, 7
      %v2030 = vsub.s32 4, %v2029
      %v2031 = vrot.slane %v2010, %v2030
      %v2032 = vlaneseq
      %v2033 = vshrl.u32 %v2032, 7
      %v2034 = vsub.s32 5, %v2033
      %v2035 = vrot.slane %v2010, %v2034
      %v2036 = vlaneseq
      %v2037 = vshrl.u32 %v2036, 7
      %v2038 = vsub.s32 6, %v2037
      %v2039 = vrot.slane %v2010, %v2038
      %v2040 = vlaneseq
      %v2041 = vshrl.u32 %v2040, 7
      %v2042 = vsub.s32 7, %v2041
      %v2043 = vrot.slane %v2010, %v2042
      %v2052 = vmul.f32 %v2006, %v2015
      %v2053 = vmul.f32 %v2005, %v2019
      %v2054 = vmul.f32 %v2004, %v2023
      %v2055 = vmul.f32 %v2003, %v2027
      %v2056 = vmul.f32 %v2002, %v2031
      %v2057 = vmul.f32 %v2001, %v2035
      %v2058 = vmul.f32 %v2000, %v2039
      %v2059 = vmul.f32 %v1999, %v2043
      %v2060 = vadd.f32 %v1974, %v2052
      %v2061 = vadd.f32 %v1975, %v2053
      %v2062 = vadd.f32 %v1976, %v2054
      %v2063 = vadd.f32 %v1977, %v2055
      %v2064 = vadd.f32 %v1978, %v2056
      %v2065 = vadd.f32 %v1979, %v2057
      %v2066 = vadd.f32 %v1980, %v2058
      %v2067 = vadd.f32 %v1981, %v2059
      %2068 = vrot.lane.b32.xlu0 %v245, 1
      %v2069 = vpop.permute.xlu0 %2068
      %2070 = vrot.lane.b32.xlu0 %v246, 1
      %v2071 = vpop.permute.xlu0 %2070
      %2072 = vrot.lane.b32.xlu0 %v247, 1
      %v2073 = vpop.permute.xlu0 %2072
      %2074 = vrot.lane.b32.xlu0 %v248, 1
      %v2075 = vpop.permute.xlu0 %2074
      %2076 = vrot.lane.b32.xlu0 %v249, 1
      %v2077 = vpop.permute.xlu0 %2076
      %2078 = vrot.lane.b32.xlu0 %v250, 1
      %v2079 = vpop.permute.xlu0 %2078
      %2080 = vrot.lane.b32.xlu0 %v251, 1
      %v2081 = vpop.permute.xlu0 %2080
      %2082 = vrot.lane.b32.xlu0 %v252, 1
      %v2083 = vpop.permute.xlu0 %2082
      %vm2084 = vcmp.lt.s32.totalorder %v278, 1
      %v2085 = vsel %vm2084, %v2081, %v2083
      %v2086 = vsel %vm2084, %v2079, %v2081
      %v2087 = vsel %vm2084, %v2077, %v2079
      %v2088 = vsel %vm2084, %v2075, %v2077
      %v2089 = vsel %vm2084, %v2073, %v2075
      %v2090 = vsel %vm2084, %v2071, %v2073
      %v2091 = vsel %vm2084, %v2069, %v2071
      %v2092 = vsel %vm2084, %v2083, %v2069
      %s2093 = scalar_lea.vmem %s2, 133
      %v2094 = vld [vmem:[%s2093] ss:$8 sm:$0xf]
      %v2095 = vld [vmem:[%s2093] ss:$8 sm:$0xf0]
      %v2096 = vor.u32 %v2094, %v2095
      %v2098 = vlaneseq
      %v2099 = vshrl.u32 %v2098, 7
      %v2100 = vsub.s32 0, %v2099
      %v2101 = vrot.slane %v2096, %v2100
      %v2102 = vlaneseq
      %v2103 = vshrl.u32 %v2102, 7
      %v2104 = vsub.s32 1, %v2103
      %v2105 = vrot.slane %v2096, %v2104
      %v2106 = vlaneseq
      %v2107 = vshrl.u32 %v2106, 7
      %v2108 = vsub.s32 2, %v2107
      %v2109 = vrot.slane %v2096, %v2108
      %v2110 = vlaneseq
      %v2111 = vshrl.u32 %v2110, 7
      %v2112 = vsub.s32 3, %v2111
      %v2113 = vrot.slane %v2096, %v2112
      %v2114 = vlaneseq
      %v2115 = vshrl.u32 %v2114, 7
      %v2116 = vsub.s32 4, %v2115
      %v2117 = vrot.slane %v2096, %v2116
      %v2118 = vlaneseq
      %v2119 = vshrl.u32 %v2118, 7
      %v2120 = vsub.s32 5, %v2119
      %v2121 = vrot.slane %v2096, %v2120
      %v2122 = vlaneseq
      %v2123 = vshrl.u32 %v2122, 7
      %v2124 = vsub.s32 6, %v2123
      %v2125 = vrot.slane %v2096, %v2124
      %v2126 = vlaneseq
      %v2127 = vshrl.u32 %v2126, 7
      %v2128 = vsub.s32 7, %v2127
      %v2129 = vrot.slane %v2096, %v2128
      %v2138 = vmul.f32 %v2092, %v2101
      %v2139 = vmul.f32 %v2091, %v2105
      %v2140 = vmul.f32 %v2090, %v2109
      %v2141 = vmul.f32 %v2089, %v2113
      %v2142 = vmul.f32 %v2088, %v2117
      %v2143 = vmul.f32 %v2087, %v2121
      %v2144 = vmul.f32 %v2086, %v2125
      %v2145 = vmul.f32 %v2085, %v2129
      %v2146 = vadd.f32 %v2060, %v2138
      %v2147 = vadd.f32 %v2061, %v2139
      %v2148 = vadd.f32 %v2062, %v2140
      %v2149 = vadd.f32 %v2063, %v2141
      %v2150 = vadd.f32 %v2064, %v2142
      %v2151 = vadd.f32 %v2065, %v2143
      %v2152 = vadd.f32 %v2066, %v2144
      %v2153 = vadd.f32 %v2067, %v2145
      %s2154 = scalar_lea.vmem %s2, 134
      %v2155 = vld [vmem:[%s2154] ss:$8 sm:$0xf]
      %v2156 = vld [vmem:[%s2154] ss:$8 sm:$0xf0]
      %v2157 = vor.u32 %v2155, %v2156
      %v2159 = vlaneseq
      %v2160 = vshrl.u32 %v2159, 7
      %v2161 = vsub.s32 0, %v2160
      %v2162 = vrot.slane %v2157, %v2161
      %v2163 = vlaneseq
      %v2164 = vshrl.u32 %v2163, 7
      %v2165 = vsub.s32 1, %v2164
      %v2166 = vrot.slane %v2157, %v2165
      %v2167 = vlaneseq
      %v2168 = vshrl.u32 %v2167, 7
      %v2169 = vsub.s32 2, %v2168
      %v2170 = vrot.slane %v2157, %v2169
      %v2171 = vlaneseq
      %v2172 = vshrl.u32 %v2171, 7
      %v2173 = vsub.s32 3, %v2172
      %v2174 = vrot.slane %v2157, %v2173
      %v2175 = vlaneseq
      %v2176 = vshrl.u32 %v2175, 7
      %v2177 = vsub.s32 4, %v2176
      %v2178 = vrot.slane %v2157, %v2177
      %v2179 = vlaneseq
      %v2180 = vshrl.u32 %v2179, 7
      %v2181 = vsub.s32 5, %v2180
      %v2182 = vrot.slane %v2157, %v2181
      %v2183 = vlaneseq
      %v2184 = vshrl.u32 %v2183, 7
      %v2185 = vsub.s32 6, %v2184
      %v2186 = vrot.slane %v2157, %v2185
      %v2187 = vlaneseq
      %v2188 = vshrl.u32 %v2187, 7
      %v2189 = vsub.s32 7, %v2188
      %v2190 = vrot.slane %v2157, %v2189
      %v2199 = vmul.f32 %v245, %v2162
      %v2200 = vmul.f32 %v246, %v2166
      %v2201 = vmul.f32 %v247, %v2170
      %v2202 = vmul.f32 %v248, %v2174
      %v2203 = vmul.f32 %v249, %v2178
      %v2204 = vmul.f32 %v250, %v2182
      %v2205 = vmul.f32 %v251, %v2186
      %v2206 = vmul.f32 %v252, %v2190
      %v2207 = vadd.f32 %v2146, %v2199
      %v2208 = vadd.f32 %v2147, %v2200
      %v2209 = vadd.f32 %v2148, %v2201
      %v2210 = vadd.f32 %v2149, %v2202
      %v2211 = vadd.f32 %v2150, %v2203
      %v2212 = vadd.f32 %v2151, %v2204
      %v2213 = vadd.f32 %v2152, %v2205
      %v2214 = vadd.f32 %v2153, %v2206
      %2215 = vrot.lane.b32.xlu0 %v245, 127
      %v2216 = vpop.permute.xlu0 %2215
      %2217 = vrot.lane.b32.xlu0 %v246, 127
      %v2218 = vpop.permute.xlu0 %2217
      %2219 = vrot.lane.b32.xlu0 %v247, 127
      %v2220 = vpop.permute.xlu0 %2219
      %2221 = vrot.lane.b32.xlu0 %v248, 127
      %v2222 = vpop.permute.xlu0 %2221
      %2223 = vrot.lane.b32.xlu0 %v249, 127
      %v2224 = vpop.permute.xlu0 %2223
      %2225 = vrot.lane.b32.xlu0 %v250, 127
      %v2226 = vpop.permute.xlu0 %2225
      %2227 = vrot.lane.b32.xlu0 %v251, 127
      %v2228 = vpop.permute.xlu0 %2227
      %2229 = vrot.lane.b32.xlu0 %v252, 127
      %v2230 = vpop.permute.xlu0 %2229
      %vm2231 = vcmp.lt.s32.totalorder %v278, 127
      %v2232 = vsel %vm2231, %v2228, %v2230
      %v2233 = vsel %vm2231, %v2226, %v2228
      %v2234 = vsel %vm2231, %v2224, %v2226
      %v2235 = vsel %vm2231, %v2222, %v2224
      %v2236 = vsel %vm2231, %v2220, %v2222
      %v2237 = vsel %vm2231, %v2218, %v2220
      %v2238 = vsel %vm2231, %v2216, %v2218
      %v2239 = vsel %vm2231, %v2230, %v2216
      %s2240 = scalar_lea.vmem %s2, 135
      %v2241 = vld [vmem:[%s2240] ss:$8 sm:$0xf]
      %v2242 = vld [vmem:[%s2240] ss:$8 sm:$0xf0]
      %v2243 = vor.u32 %v2241, %v2242
      %v2245 = vlaneseq
      %v2246 = vshrl.u32 %v2245, 7
      %v2247 = vsub.s32 0, %v2246
      %v2248 = vrot.slane %v2243, %v2247
      %v2249 = vlaneseq
      %v2250 = vshrl.u32 %v2249, 7
      %v2251 = vsub.s32 1, %v2250
      %v2252 = vrot.slane %v2243, %v2251
      %v2253 = vlaneseq
      %v2254 = vshrl.u32 %v2253, 7
      %v2255 = vsub.s32 2, %v2254
      %v2256 = vrot.slane %v2243, %v2255
      %v2257 = vlaneseq
      %v2258 = vshrl.u32 %v2257, 7
      %v2259 = vsub.s32 3, %v2258
      %v2260 = vrot.slane %v2243, %v2259
      %v2261 = vlaneseq
      %v2262 = vshrl.u32 %v2261, 7
      %v2263 = vsub.s32 4, %v2262
      %v2264 = vrot.slane %v2243, %v2263
      %v2265 = vlaneseq
      %v2266 = vshrl.u32 %v2265, 7
      %v2267 = vsub.s32 5, %v2266
      %v2268 = vrot.slane %v2243, %v2267
      %v2269 = vlaneseq
      %v2270 = vshrl.u32 %v2269, 7
      %v2271 = vsub.s32 6, %v2270
      %v2272 = vrot.slane %v2243, %v2271
      %v2273 = vlaneseq
      %v2274 = vshrl.u32 %v2273, 7
      %v2275 = vsub.s32 7, %v2274
      %v2276 = vrot.slane %v2243, %v2275
      %v2285 = vmul.f32 %v2238, %v2248
      %v2286 = vmul.f32 %v2237, %v2252
      %v2287 = vmul.f32 %v2236, %v2256
      %v2288 = vmul.f32 %v2235, %v2260
      %v2289 = vmul.f32 %v2234, %v2264
      %v2290 = vmul.f32 %v2233, %v2268
      %v2291 = vmul.f32 %v2232, %v2272
      %v2292 = vmul.f32 %v2239, %v2276
      %v2293 = vadd.f32 %v2207, %v2285
      %v2294 = vadd.f32 %v2208, %v2286
      %v2295 = vadd.f32 %v2209, %v2287
      %v2296 = vadd.f32 %v2210, %v2288
      %v2297 = vadd.f32 %v2211, %v2289
      %v2298 = vadd.f32 %v2212, %v2290
      %v2299 = vadd.f32 %v2213, %v2291
      %v2300 = vadd.f32 %v2214, %v2292
      %2301 = vrot.lane.b32.xlu0 %v245, 126
      %v2302 = vpop.permute.xlu0 %2301
      %2303 = vrot.lane.b32.xlu0 %v246, 126
      %v2304 = vpop.permute.xlu0 %2303
      %2305 = vrot.lane.b32.xlu0 %v247, 126
      %v2306 = vpop.permute.xlu0 %2305
      %2307 = vrot.lane.b32.xlu0 %v248, 126
      %v2308 = vpop.permute.xlu0 %2307
      %2309 = vrot.lane.b32.xlu0 %v249, 126
      %v2310 = vpop.permute.xlu0 %2309
      %2311 = vrot.lane.b32.xlu0 %v250, 126
      %v2312 = vpop.permute.xlu0 %2311
      %2313 = vrot.lane.b32.xlu0 %v251, 126
      %v2314 = vpop.permute.xlu0 %2313
      %2315 = vrot.lane.b32.xlu0 %v252, 126
      %v2316 = vpop.permute.xlu0 %2315
      %vm2317 = vcmp.lt.s32.totalorder %v278, 126
      %v2318 = vsel %vm2317, %v2314, %v2316
      %v2319 = vsel %vm2317, %v2312, %v2314
      %v2320 = vsel %vm2317, %v2310, %v2312
      %v2321 = vsel %vm2317, %v2308, %v2310
      %v2322 = vsel %vm2317, %v2306, %v2308
      %v2323 = vsel %vm2317, %v2304, %v2306
      %v2324 = vsel %vm2317, %v2302, %v2304
      %v2325 = vsel %vm2317, %v2316, %v2302
      %s2326 = scalar_lea.vmem %s2, 192
      %v2327 = vld [vmem:[%s2326] ss:$8 sm:$0xf]
      %v2328 = vld [vmem:[%s2326] ss:$8 sm:$0xf0]
      %v2329 = vor.u32 %v2327, %v2328
      %v2331 = vlaneseq
      %v2332 = vshrl.u32 %v2331, 7
      %v2333 = vsub.s32 0, %v2332
      %v2334 = vrot.slane %v2329, %v2333
      %v2335 = vlaneseq
      %v2336 = vshrl.u32 %v2335, 7
      %v2337 = vsub.s32 1, %v2336
      %v2338 = vrot.slane %v2329, %v2337
      %v2339 = vlaneseq
      %v2340 = vshrl.u32 %v2339, 7
      %v2341 = vsub.s32 2, %v2340
      %v2342 = vrot.slane %v2329, %v2341
      %v2343 = vlaneseq
      %v2344 = vshrl.u32 %v2343, 7
      %v2345 = vsub.s32 3, %v2344
      %v2346 = vrot.slane %v2329, %v2345
      %v2347 = vlaneseq
      %v2348 = vshrl.u32 %v2347, 7
      %v2349 = vsub.s32 4, %v2348
      %v2350 = vrot.slane %v2329, %v2349
      %v2351 = vlaneseq
      %v2352 = vshrl.u32 %v2351, 7
      %v2353 = vsub.s32 5, %v2352
      %v2354 = vrot.slane %v2329, %v2353
      %v2355 = vlaneseq
      %v2356 = vshrl.u32 %v2355, 7
      %v2357 = vsub.s32 6, %v2356
      %v2358 = vrot.slane %v2329, %v2357
      %v2359 = vlaneseq
      %v2360 = vshrl.u32 %v2359, 7
      %v2361 = vsub.s32 7, %v2360
      %v2362 = vrot.slane %v2329, %v2361
      %v2371 = vmul.f32 %v2324, %v2334
      %v2372 = vmul.f32 %v2323, %v2338
      %v2373 = vmul.f32 %v2322, %v2342
      %v2374 = vmul.f32 %v2321, %v2346
      %v2375 = vmul.f32 %v2320, %v2350
      %v2376 = vmul.f32 %v2319, %v2354
      %v2377 = vmul.f32 %v2318, %v2358
      %v2378 = vmul.f32 %v2325, %v2362
      %v2379 = vadd.f32 %v2293, %v2371
      %v2380 = vadd.f32 %v2294, %v2372
      %v2381 = vadd.f32 %v2295, %v2373
      %v2382 = vadd.f32 %v2296, %v2374
      %v2383 = vadd.f32 %v2297, %v2375
      %v2384 = vadd.f32 %v2298, %v2376
      %v2385 = vadd.f32 %v2299, %v2377
      %v2386 = vadd.f32 %v2300, %v2378
      %2387 = vrot.lane.b32.xlu0 %v245, 125
      %v2388 = vpop.permute.xlu0 %2387
      %2389 = vrot.lane.b32.xlu0 %v246, 125
      %v2390 = vpop.permute.xlu0 %2389
      %2391 = vrot.lane.b32.xlu0 %v247, 125
      %v2392 = vpop.permute.xlu0 %2391
      %2393 = vrot.lane.b32.xlu0 %v248, 125
      %v2394 = vpop.permute.xlu0 %2393
      %2395 = vrot.lane.b32.xlu0 %v249, 125
      %v2396 = vpop.permute.xlu0 %2395
      %2397 = vrot.lane.b32.xlu0 %v250, 125
      %v2398 = vpop.permute.xlu0 %2397
      %2399 = vrot.lane.b32.xlu0 %v251, 125
      %v2400 = vpop.permute.xlu0 %2399
      %2401 = vrot.lane.b32.xlu0 %v252, 125
      %v2402 = vpop.permute.xlu0 %2401
      %vm2403 = vcmp.lt.s32.totalorder %v278, 125
      %v2404 = vsel %vm2403, %v2400, %v2402
      %v2405 = vsel %vm2403, %v2398, %v2400
      %v2406 = vsel %vm2403, %v2396, %v2398
      %v2407 = vsel %vm2403, %v2394, %v2396
      %v2408 = vsel %vm2403, %v2392, %v2394
      %v2409 = vsel %vm2403, %v2390, %v2392
      %v2410 = vsel %vm2403, %v2388, %v2390
      %v2411 = vsel %vm2403, %v2402, %v2388
      %s2412 = scalar_lea.vmem %s2, 193
      %v2413 = vld [vmem:[%s2412] ss:$8 sm:$0xf]
      %v2414 = vld [vmem:[%s2412] ss:$8 sm:$0xf0]
      %v2415 = vor.u32 %v2413, %v2414
      %v2417 = vlaneseq
      %v2418 = vshrl.u32 %v2417, 7
      %v2419 = vsub.s32 0, %v2418
      %v2420 = vrot.slane %v2415, %v2419
      %v2421 = vlaneseq
      %v2422 = vshrl.u32 %v2421, 7
      %v2423 = vsub.s32 1, %v2422
      %v2424 = vrot.slane %v2415, %v2423
      %v2425 = vlaneseq
      %v2426 = vshrl.u32 %v2425, 7
      %v2427 = vsub.s32 2, %v2426
      %v2428 = vrot.slane %v2415, %v2427
      %v2429 = vlaneseq
      %v2430 = vshrl.u32 %v2429, 7
      %v2431 = vsub.s32 3, %v2430
      %v2432 = vrot.slane %v2415, %v2431
      %v2433 = vlaneseq
      %v2434 = vshrl.u32 %v2433, 7
      %v2435 = vsub.s32 4, %v2434
      %v2436 = vrot.slane %v2415, %v2435
      %v2437 = vlaneseq
      %v2438 = vshrl.u32 %v2437, 7
      %v2439 = vsub.s32 5, %v2438
      %v2440 = vrot.slane %v2415, %v2439
      %v2441 = vlaneseq
      %v2442 = vshrl.u32 %v2441, 7
      %v2443 = vsub.s32 6, %v2442
      %v2444 = vrot.slane %v2415, %v2443
      %v2445 = vlaneseq
      %v2446 = vshrl.u32 %v2445, 7
      %v2447 = vsub.s32 7, %v2446
      %v2448 = vrot.slane %v2415, %v2447
      %v2457 = vmul.f32 %v2410, %v2420
      %v2458 = vmul.f32 %v2409, %v2424
      %v2459 = vmul.f32 %v2408, %v2428
      %v2460 = vmul.f32 %v2407, %v2432
      %v2461 = vmul.f32 %v2406, %v2436
      %v2462 = vmul.f32 %v2405, %v2440
      %v2463 = vmul.f32 %v2404, %v2444
      %v2464 = vmul.f32 %v2411, %v2448
      %v2465 = vadd.f32 %v2379, %v2457
      %v2466 = vadd.f32 %v2380, %v2458
      %v2467 = vadd.f32 %v2381, %v2459
      %v2468 = vadd.f32 %v2382, %v2460
      %v2469 = vadd.f32 %v2383, %v2461
      %v2470 = vadd.f32 %v2384, %v2462
      %v2471 = vadd.f32 %v2385, %v2463
      %v2472 = vadd.f32 %v2386, %v2464
      %2473 = vrot.lane.b32.xlu0 %v245, 124
      %v2474 = vpop.permute.xlu0 %2473
      %2475 = vrot.lane.b32.xlu0 %v246, 124
      %v2476 = vpop.permute.xlu0 %2475
      %2477 = vrot.lane.b32.xlu0 %v247, 124
      %v2478 = vpop.permute.xlu0 %2477
      %2479 = vrot.lane.b32.xlu0 %v248, 124
      %v2480 = vpop.permute.xlu0 %2479
      %2481 = vrot.lane.b32.xlu0 %v249, 124
      %v2482 = vpop.permute.xlu0 %2481
      %2483 = vrot.lane.b32.xlu0 %v250, 124
      %v2484 = vpop.permute.xlu0 %2483
      %2485 = vrot.lane.b32.xlu0 %v251, 124
      %v2486 = vpop.permute.xlu0 %2485
      %2487 = vrot.lane.b32.xlu0 %v252, 124
      %v2488 = vpop.permute.xlu0 %2487
      %vm2489 = vcmp.lt.s32.totalorder %v278, 124
      %v2490 = vsel %vm2489, %v2486, %v2488
      %v2491 = vsel %vm2489, %v2484, %v2486
      %v2492 = vsel %vm2489, %v2482, %v2484
      %v2493 = vsel %vm2489, %v2480, %v2482
      %v2494 = vsel %vm2489, %v2478, %v2480
      %v2495 = vsel %vm2489, %v2476, %v2478
      %v2496 = vsel %vm2489, %v2474, %v2476
      %v2497 = vsel %vm2489, %v2488, %v2474
      %s2498 = scalar_lea.vmem %s2, 194
      %v2499 = vld [vmem:[%s2498] ss:$8 sm:$0xf]
      %v2500 = vld [vmem:[%s2498] ss:$8 sm:$0xf0]
      %v2501 = vor.u32 %v2499, %v2500
      %v2503 = vlaneseq
      %v2504 = vshrl.u32 %v2503, 7
      %v2505 = vsub.s32 0, %v2504
      %v2506 = vrot.slane %v2501, %v2505
      %v2507 = vlaneseq
      %v2508 = vshrl.u32 %v2507, 7
      %v2509 = vsub.s32 1, %v2508
      %v2510 = vrot.slane %v2501, %v2509
      %v2511 = vlaneseq
      %v2512 = vshrl.u32 %v2511, 7
      %v2513 = vsub.s32 2, %v2512
      %v2514 = vrot.slane %v2501, %v2513
      %v2515 = vlaneseq
      %v2516 = vshrl.u32 %v2515, 7
      %v2517 = vsub.s32 3, %v2516
      %v2518 = vrot.slane %v2501, %v2517
      %v2519 = vlaneseq
      %v2520 = vshrl.u32 %v2519, 7
      %v2521 = vsub.s32 4, %v2520
      %v2522 = vrot.slane %v2501, %v2521
      %v2523 = vlaneseq
      %v2524 = vshrl.u32 %v2523, 7
      %v2525 = vsub.s32 5, %v2524
      %v2526 = vrot.slane %v2501, %v2525
      %v2527 = vlaneseq
      %v2528 = vshrl.u32 %v2527, 7
      %v2529 = vsub.s32 6, %v2528
      %v2530 = vrot.slane %v2501, %v2529
      %v2531 = vlaneseq
      %v2532 = vshrl.u32 %v2531, 7
      %v2533 = vsub.s32 7, %v2532
      %v2534 = vrot.slane %v2501, %v2533
      %v2543 = vmul.f32 %v2496, %v2506
      %v2544 = vmul.f32 %v2495, %v2510
      %v2545 = vmul.f32 %v2494, %v2514
      %v2546 = vmul.f32 %v2493, %v2518
      %v2547 = vmul.f32 %v2492, %v2522
      %v2548 = vmul.f32 %v2491, %v2526
      %v2549 = vmul.f32 %v2490, %v2530
      %v2550 = vmul.f32 %v2497, %v2534
      %v2551 = vadd.f32 %v2465, %v2543
      %v2552 = vadd.f32 %v2466, %v2544
      %v2553 = vadd.f32 %v2467, %v2545
      %v2554 = vadd.f32 %v2468, %v2546
      %v2555 = vadd.f32 %v2469, %v2547
      %v2556 = vadd.f32 %v2470, %v2548
      %v2557 = vadd.f32 %v2471, %v2549
      %v2558 = vadd.f32 %v2472, %v2550
      %2559 = vrot.lane.b32.xlu0 %v245, 123
      %v2560 = vpop.permute.xlu0 %2559
      %2561 = vrot.lane.b32.xlu0 %v246, 123
      %v2562 = vpop.permute.xlu0 %2561
      %2563 = vrot.lane.b32.xlu0 %v247, 123
      %v2564 = vpop.permute.xlu0 %2563
      %2565 = vrot.lane.b32.xlu0 %v248, 123
      %v2566 = vpop.permute.xlu0 %2565
      %2567 = vrot.lane.b32.xlu0 %v249, 123
      %v2568 = vpop.permute.xlu0 %2567
      %2569 = vrot.lane.b32.xlu0 %v250, 123
      %v2570 = vpop.permute.xlu0 %2569
      %2571 = vrot.lane.b32.xlu0 %v251, 123
      %v2572 = vpop.permute.xlu0 %2571
      %2573 = vrot.lane.b32.xlu0 %v252, 123
      %v2574 = vpop.permute.xlu0 %2573
      %vm2575 = vcmp.lt.s32.totalorder %v278, 123
      %v2576 = vsel %vm2575, %v2572, %v2574
      %v2577 = vsel %vm2575, %v2570, %v2572
      %v2578 = vsel %vm2575, %v2568, %v2570
      %v2579 = vsel %vm2575, %v2566, %v2568
      %v2580 = vsel %vm2575, %v2564, %v2566
      %v2581 = vsel %vm2575, %v2562, %v2564
      %v2582 = vsel %vm2575, %v2560, %v2562
      %v2583 = vsel %vm2575, %v2574, %v2560
      %s2584 = scalar_lea.vmem %s2, 195
      %v2585 = vld [vmem:[%s2584] ss:$8 sm:$0xf]
      %v2586 = vld [vmem:[%s2584] ss:$8 sm:$0xf0]
      %v2587 = vor.u32 %v2585, %v2586
      %v2589 = vlaneseq
      %v2590 = vshrl.u32 %v2589, 7
      %v2591 = vsub.s32 0, %v2590
      %v2592 = vrot.slane %v2587, %v2591
      %v2593 = vlaneseq
      %v2594 = vshrl.u32 %v2593, 7
      %v2595 = vsub.s32 1, %v2594
      %v2596 = vrot.slane %v2587, %v2595
      %v2597 = vlaneseq
      %v2598 = vshrl.u32 %v2597, 7
      %v2599 = vsub.s32 2, %v2598
      %v2600 = vrot.slane %v2587, %v2599
      %v2601 = vlaneseq
      %v2602 = vshrl.u32 %v2601, 7
      %v2603 = vsub.s32 3, %v2602
      %v2604 = vrot.slane %v2587, %v2603
      %v2605 = vlaneseq
      %v2606 = vshrl.u32 %v2605, 7
      %v2607 = vsub.s32 4, %v2606
      %v2608 = vrot.slane %v2587, %v2607
      %v2609 = vlaneseq
      %v2610 = vshrl.u32 %v2609, 7
      %v2611 = vsub.s32 5, %v2610
      %v2612 = vrot.slane %v2587, %v2611
      %v2613 = vlaneseq
      %v2614 = vshrl.u32 %v2613, 7
      %v2615 = vsub.s32 6, %v2614
      %v2616 = vrot.slane %v2587, %v2615
      %v2617 = vlaneseq
      %v2618 = vshrl.u32 %v2617, 7
      %v2619 = vsub.s32 7, %v2618
      %v2620 = vrot.slane %v2587, %v2619
      %v2629 = vmul.f32 %v2582, %v2592
      %v2630 = vmul.f32 %v2581, %v2596
      %v2631 = vmul.f32 %v2580, %v2600
      %v2632 = vmul.f32 %v2579, %v2604
      %v2633 = vmul.f32 %v2578, %v2608
      %v2634 = vmul.f32 %v2577, %v2612
      %v2635 = vmul.f32 %v2576, %v2616
      %v2636 = vmul.f32 %v2583, %v2620
      %v2637 = vadd.f32 %v2551, %v2629
      %v2638 = vadd.f32 %v2552, %v2630
      %v2639 = vadd.f32 %v2553, %v2631
      %v2640 = vadd.f32 %v2554, %v2632
      %v2641 = vadd.f32 %v2555, %v2633
      %v2642 = vadd.f32 %v2556, %v2634
      %v2643 = vadd.f32 %v2557, %v2635
      %v2644 = vadd.f32 %v2558, %v2636
      %2645 = vrot.lane.b32.xlu0 %v245, 122
      %v2646 = vpop.permute.xlu0 %2645
      %2647 = vrot.lane.b32.xlu0 %v246, 122
      %v2648 = vpop.permute.xlu0 %2647
      %2649 = vrot.lane.b32.xlu0 %v247, 122
      %v2650 = vpop.permute.xlu0 %2649
      %2651 = vrot.lane.b32.xlu0 %v248, 122
      %v2652 = vpop.permute.xlu0 %2651
      %2653 = vrot.lane.b32.xlu0 %v249, 122
      %v2654 = vpop.permute.xlu0 %2653
      %2655 = vrot.lane.b32.xlu0 %v250, 122
      %v2656 = vpop.permute.xlu0 %2655
      %2657 = vrot.lane.b32.xlu0 %v251, 122
      %v2658 = vpop.permute.xlu0 %2657
      %2659 = vrot.lane.b32.xlu0 %v252, 122
      %v2660 = vpop.permute.xlu0 %2659
      %vm2661 = vcmp.lt.s32.totalorder %v278, 122
      %v2662 = vsel %vm2661, %v2658, %v2660
      %v2663 = vsel %vm2661, %v2656, %v2658
      %v2664 = vsel %vm2661, %v2654, %v2656
      %v2665 = vsel %vm2661, %v2652, %v2654
      %v2666 = vsel %vm2661, %v2650, %v2652
      %v2667 = vsel %vm2661, %v2648, %v2650
      %v2668 = vsel %vm2661, %v2646, %v2648
      %v2669 = vsel %vm2661, %v2660, %v2646
      %s2670 = scalar_lea.vmem %s2, 196
      %v2671 = vld [vmem:[%s2670] ss:$8 sm:$0xf]
      %v2672 = vld [vmem:[%s2670] ss:$8 sm:$0xf0]
      %v2673 = vor.u32 %v2671, %v2672
      %v2675 = vlaneseq
      %v2676 = vshrl.u32 %v2675, 7
      %v2677 = vsub.s32 0, %v2676
      %v2678 = vrot.slane %v2673, %v2677
      %v2679 = vlaneseq
      %v2680 = vshrl.u32 %v2679, 7
      %v2681 = vsub.s32 1, %v2680
      %v2682 = vrot.slane %v2673, %v2681
      %v2683 = vlaneseq
      %v2684 = vshrl.u32 %v2683, 7
      %v2685 = vsub.s32 2, %v2684
      %v2686 = vrot.slane %v2673, %v2685
      %v2687 = vlaneseq
      %v2688 = vshrl.u32 %v2687, 7
      %v2689 = vsub.s32 3, %v2688
      %v2690 = vrot.slane %v2673, %v2689
      %v2691 = vlaneseq
      %v2692 = vshrl.u32 %v2691, 7
      %v2693 = vsub.s32 4, %v2692
      %v2694 = vrot.slane %v2673, %v2693
      %v2695 = vlaneseq
      %v2696 = vshrl.u32 %v2695, 7
      %v2697 = vsub.s32 5, %v2696
      %v2698 = vrot.slane %v2673, %v2697
      %v2699 = vlaneseq
      %v2700 = vshrl.u32 %v2699, 7
      %v2701 = vsub.s32 6, %v2700
      %v2702 = vrot.slane %v2673, %v2701
      %v2703 = vlaneseq
      %v2704 = vshrl.u32 %v2703, 7
      %v2705 = vsub.s32 7, %v2704
      %v2706 = vrot.slane %v2673, %v2705
      %v2715 = vmul.f32 %v2668, %v2678
      %v2716 = vmul.f32 %v2667, %v2682
      %v2717 = vmul.f32 %v2666, %v2686
      %v2718 = vmul.f32 %v2665, %v2690
      %v2719 = vmul.f32 %v2664, %v2694
      %v2720 = vmul.f32 %v2663, %v2698
      %v2721 = vmul.f32 %v2662, %v2702
      %v2722 = vmul.f32 %v2669, %v2706
      %v2723 = vadd.f32 %v2637, %v2715
      %v2724 = vadd.f32 %v2638, %v2716
      %v2725 = vadd.f32 %v2639, %v2717
      %v2726 = vadd.f32 %v2640, %v2718
      %v2727 = vadd.f32 %v2641, %v2719
      %v2728 = vadd.f32 %v2642, %v2720
      %v2729 = vadd.f32 %v2643, %v2721
      %v2730 = vadd.f32 %v2644, %v2722
      %2731 = vrot.lane.b32.xlu0 %v245, 121
      %v2732 = vpop.permute.xlu0 %2731
      %2733 = vrot.lane.b32.xlu0 %v246, 121
      %v2734 = vpop.permute.xlu0 %2733
      %2735 = vrot.lane.b32.xlu0 %v247, 121
      %v2736 = vpop.permute.xlu0 %2735
      %2737 = vrot.lane.b32.xlu0 %v248, 121
      %v2738 = vpop.permute.xlu0 %2737
      %2739 = vrot.lane.b32.xlu0 %v249, 121
      %v2740 = vpop.permute.xlu0 %2739
      %2741 = vrot.lane.b32.xlu0 %v250, 121
      %v2742 = vpop.permute.xlu0 %2741
      %2743 = vrot.lane.b32.xlu0 %v251, 121
      %v2744 = vpop.permute.xlu0 %2743
      %2745 = vrot.lane.b32.xlu0 %v252, 121
      %v2746 = vpop.permute.xlu0 %2745
      %vm2747 = vcmp.lt.s32.totalorder %v278, 121
      %v2748 = vsel %vm2747, %v2744, %v2746
      %v2749 = vsel %vm2747, %v2742, %v2744
      %v2750 = vsel %vm2747, %v2740, %v2742
      %v2751 = vsel %vm2747, %v2738, %v2740
      %v2752 = vsel %vm2747, %v2736, %v2738
      %v2753 = vsel %vm2747, %v2734, %v2736
      %v2754 = vsel %vm2747, %v2732, %v2734
      %v2755 = vsel %vm2747, %v2746, %v2732
      %s2756 = scalar_lea.vmem %s2, 197
      %v2757 = vld [vmem:[%s2756] ss:$8 sm:$0xf]
      %v2758 = vld [vmem:[%s2756] ss:$8 sm:$0xf0]
      %v2759 = vor.u32 %v2757, %v2758
      %v2761 = vlaneseq
      %v2762 = vshrl.u32 %v2761, 7
      %v2763 = vsub.s32 0, %v2762
      %v2764 = vrot.slane %v2759, %v2763
      %v2765 = vlaneseq
      %v2766 = vshrl.u32 %v2765, 7
      %v2767 = vsub.s32 1, %v2766
      %v2768 = vrot.slane %v2759, %v2767
      %v2769 = vlaneseq
      %v2770 = vshrl.u32 %v2769, 7
      %v2771 = vsub.s32 2, %v2770
      %v2772 = vrot.slane %v2759, %v2771
      %v2773 = vlaneseq
      %v2774 = vshrl.u32 %v2773, 7
      %v2775 = vsub.s32 3, %v2774
      %v2776 = vrot.slane %v2759, %v2775
      %v2777 = vlaneseq
      %v2778 = vshrl.u32 %v2777, 7
      %v2779 = vsub.s32 4, %v2778
      %v2780 = vrot.slane %v2759, %v2779
      %v2781 = vlaneseq
      %v2782 = vshrl.u32 %v2781, 7
      %v2783 = vsub.s32 5, %v2782
      %v2784 = vrot.slane %v2759, %v2783
      %v2785 = vlaneseq
      %v2786 = vshrl.u32 %v2785, 7
      %v2787 = vsub.s32 6, %v2786
      %v2788 = vrot.slane %v2759, %v2787
      %v2789 = vlaneseq
      %v2790 = vshrl.u32 %v2789, 7
      %v2791 = vsub.s32 7, %v2790
      %v2792 = vrot.slane %v2759, %v2791
      %v2801 = vmul.f32 %v2754, %v2764
      %v2802 = vmul.f32 %v2753, %v2768
      %v2803 = vmul.f32 %v2752, %v2772
      %v2804 = vmul.f32 %v2751, %v2776
      %v2805 = vmul.f32 %v2750, %v2780
      %v2806 = vmul.f32 %v2749, %v2784
      %v2807 = vmul.f32 %v2748, %v2788
      %v2808 = vmul.f32 %v2755, %v2792
      %v2809 = vadd.f32 %v2723, %v2801
      %v2810 = vadd.f32 %v2724, %v2802
      %v2811 = vadd.f32 %v2725, %v2803
      %v2812 = vadd.f32 %v2726, %v2804
      %v2813 = vadd.f32 %v2727, %v2805
      %v2814 = vadd.f32 %v2728, %v2806
      %v2815 = vadd.f32 %v2729, %v2807
      %v2816 = vadd.f32 %v2730, %v2808
      %s2817 = scalar_lea.vmem %s2, 198
      %v2818 = vld [vmem:[%s2817] ss:$8 sm:$0xf]
      %v2819 = vld [vmem:[%s2817] ss:$8 sm:$0xf0]
      %v2820 = vor.u32 %v2818, %v2819
      %v2822 = vlaneseq
      %v2823 = vshrl.u32 %v2822, 7
      %v2824 = vsub.s32 0, %v2823
      %v2825 = vrot.slane %v2820, %v2824
      %v2826 = vlaneseq
      %v2827 = vshrl.u32 %v2826, 7
      %v2828 = vsub.s32 1, %v2827
      %v2829 = vrot.slane %v2820, %v2828
      %v2830 = vlaneseq
      %v2831 = vshrl.u32 %v2830, 7
      %v2832 = vsub.s32 2, %v2831
      %v2833 = vrot.slane %v2820, %v2832
      %v2834 = vlaneseq
      %v2835 = vshrl.u32 %v2834, 7
      %v2836 = vsub.s32 3, %v2835
      %v2837 = vrot.slane %v2820, %v2836
      %v2838 = vlaneseq
      %v2839 = vshrl.u32 %v2838, 7
      %v2840 = vsub.s32 4, %v2839
      %v2841 = vrot.slane %v2820, %v2840
      %v2842 = vlaneseq
      %v2843 = vshrl.u32 %v2842, 7
      %v2844 = vsub.s32 5, %v2843
      %v2845 = vrot.slane %v2820, %v2844
      %v2846 = vlaneseq
      %v2847 = vshrl.u32 %v2846, 7
      %v2848 = vsub.s32 6, %v2847
      %v2849 = vrot.slane %v2820, %v2848
      %v2850 = vlaneseq
      %v2851 = vshrl.u32 %v2850, 7
      %v2852 = vsub.s32 7, %v2851
      %v2853 = vrot.slane %v2820, %v2852
      %v2862 = vmul.f32 %v286, %v2825
      %v2863 = vmul.f32 %v285, %v2829
      %v2864 = vmul.f32 %v284, %v2833
      %v2865 = vmul.f32 %v283, %v2837
      %v2866 = vmul.f32 %v282, %v2841
      %v2867 = vmul.f32 %v281, %v2845
      %v2868 = vmul.f32 %v280, %v2849
      %v2869 = vmul.f32 %v287, %v2853
      %v2870 = vadd.f32 %v2809, %v2862
      %v2871 = vadd.f32 %v2810, %v2863
      %v2872 = vadd.f32 %v2811, %v2864
      %v2873 = vadd.f32 %v2812, %v2865
      %v2874 = vadd.f32 %v2813, %v2866
      %v2875 = vadd.f32 %v2814, %v2867
      %v2876 = vadd.f32 %v2815, %v2868
      %v2877 = vadd.f32 %v2816, %v2869
      %s2878 = scalar_lea.vmem %s2, 199
      %v2879 = vld [vmem:[%s2878] ss:$8 sm:$0xf]
      %v2880 = vld [vmem:[%s2878] ss:$8 sm:$0xf0]
      %v2881 = vor.u32 %v2879, %v2880
      %v2883 = vlaneseq
      %v2884 = vshrl.u32 %v2883, 7
      %v2885 = vsub.s32 0, %v2884
      %v2886 = vrot.slane %v2881, %v2885
      %v2887 = vlaneseq
      %v2888 = vshrl.u32 %v2887, 7
      %v2889 = vsub.s32 1, %v2888
      %v2890 = vrot.slane %v2881, %v2889
      %v2891 = vlaneseq
      %v2892 = vshrl.u32 %v2891, 7
      %v2893 = vsub.s32 2, %v2892
      %v2894 = vrot.slane %v2881, %v2893
      %v2895 = vlaneseq
      %v2896 = vshrl.u32 %v2895, 7
      %v2897 = vsub.s32 3, %v2896
      %v2898 = vrot.slane %v2881, %v2897
      %v2899 = vlaneseq
      %v2900 = vshrl.u32 %v2899, 7
      %v2901 = vsub.s32 4, %v2900
      %v2902 = vrot.slane %v2881, %v2901
      %v2903 = vlaneseq
      %v2904 = vshrl.u32 %v2903, 7
      %v2905 = vsub.s32 5, %v2904
      %v2906 = vrot.slane %v2881, %v2905
      %v2907 = vlaneseq
      %v2908 = vshrl.u32 %v2907, 7
      %v2909 = vsub.s32 6, %v2908
      %v2910 = vrot.slane %v2881, %v2909
      %v2911 = vlaneseq
      %v2912 = vshrl.u32 %v2911, 7
      %v2913 = vsub.s32 7, %v2912
      %v2914 = vrot.slane %v2881, %v2913
      %v2923 = vmul.f32 %v371, %v2886
      %v2924 = vmul.f32 %v370, %v2890
      %v2925 = vmul.f32 %v369, %v2894
      %v2926 = vmul.f32 %v368, %v2898
      %v2927 = vmul.f32 %v367, %v2902
      %v2928 = vmul.f32 %v366, %v2906
      %v2929 = vmul.f32 %v365, %v2910
      %v2930 = vmul.f32 %v372, %v2914
      %v2931 = vadd.f32 %v2870, %v2923
      %v2932 = vadd.f32 %v2871, %v2924
      %v2933 = vadd.f32 %v2872, %v2925
      %v2934 = vadd.f32 %v2873, %v2926
      %v2935 = vadd.f32 %v2874, %v2927
      %v2936 = vadd.f32 %v2875, %v2928
      %v2937 = vadd.f32 %v2876, %v2929
      %v2938 = vadd.f32 %v2877, %v2930
      %s2939 = scalar_lea.vmem %s2, 256
      %v2940 = vld [vmem:[%s2939] ss:$8 sm:$0xf]
      %v2941 = vld [vmem:[%s2939] ss:$8 sm:$0xf0]
      %v2942 = vor.u32 %v2940, %v2941
      %v2944 = vlaneseq
      %v2945 = vshrl.u32 %v2944, 7
      %v2946 = vsub.s32 0, %v2945
      %v2947 = vrot.slane %v2942, %v2946
      %v2948 = vlaneseq
      %v2949 = vshrl.u32 %v2948, 7
      %v2950 = vsub.s32 1, %v2949
      %v2951 = vrot.slane %v2942, %v2950
      %v2952 = vlaneseq
      %v2953 = vshrl.u32 %v2952, 7
      %v2954 = vsub.s32 2, %v2953
      %v2955 = vrot.slane %v2942, %v2954
      %v2956 = vlaneseq
      %v2957 = vshrl.u32 %v2956, 7
      %v2958 = vsub.s32 3, %v2957
      %v2959 = vrot.slane %v2942, %v2958
      %v2960 = vlaneseq
      %v2961 = vshrl.u32 %v2960, 7
      %v2962 = vsub.s32 4, %v2961
      %v2963 = vrot.slane %v2942, %v2962
      %v2964 = vlaneseq
      %v2965 = vshrl.u32 %v2964, 7
      %v2966 = vsub.s32 5, %v2965
      %v2967 = vrot.slane %v2942, %v2966
      %v2968 = vlaneseq
      %v2969 = vshrl.u32 %v2968, 7
      %v2970 = vsub.s32 6, %v2969
      %v2971 = vrot.slane %v2942, %v2970
      %v2972 = vlaneseq
      %v2973 = vshrl.u32 %v2972, 7
      %v2974 = vsub.s32 7, %v2973
      %v2975 = vrot.slane %v2942, %v2974
      %v2984 = vmul.f32 %v457, %v2947
      %v2985 = vmul.f32 %v456, %v2951
      %v2986 = vmul.f32 %v455, %v2955
      %v2987 = vmul.f32 %v454, %v2959
      %v2988 = vmul.f32 %v453, %v2963
      %v2989 = vmul.f32 %v452, %v2967
      %v2990 = vmul.f32 %v451, %v2971
      %v2991 = vmul.f32 %v458, %v2975
      %v2992 = vadd.f32 %v2931, %v2984
      %v2993 = vadd.f32 %v2932, %v2985
      %v2994 = vadd.f32 %v2933, %v2986
      %v2995 = vadd.f32 %v2934, %v2987
      %v2996 = vadd.f32 %v2935, %v2988
      %v2997 = vadd.f32 %v2936, %v2989
      %v2998 = vadd.f32 %v2937, %v2990
      %v2999 = vadd.f32 %v2938, %v2991
      %s3000 = scalar_lea.vmem %s2, 257
      %v3001 = vld [vmem:[%s3000] ss:$8 sm:$0xf]
      %v3002 = vld [vmem:[%s3000] ss:$8 sm:$0xf0]
      %v3003 = vor.u32 %v3001, %v3002
      %v3005 = vlaneseq
      %v3006 = vshrl.u32 %v3005, 7
      %v3007 = vsub.s32 0, %v3006
      %v3008 = vrot.slane %v3003, %v3007
      %v3009 = vlaneseq
      %v3010 = vshrl.u32 %v3009, 7
      %v3011 = vsub.s32 1, %v3010
      %v3012 = vrot.slane %v3003, %v3011
      %v3013 = vlaneseq
      %v3014 = vshrl.u32 %v3013, 7
      %v3015 = vsub.s32 2, %v3014
      %v3016 = vrot.slane %v3003, %v3015
      %v3017 = vlaneseq
      %v3018 = vshrl.u32 %v3017, 7
      %v3019 = vsub.s32 3, %v3018
      %v3020 = vrot.slane %v3003, %v3019
      %v3021 = vlaneseq
      %v3022 = vshrl.u32 %v3021, 7
      %v3023 = vsub.s32 4, %v3022
      %v3024 = vrot.slane %v3003, %v3023
      %v3025 = vlaneseq
      %v3026 = vshrl.u32 %v3025, 7
      %v3027 = vsub.s32 5, %v3026
      %v3028 = vrot.slane %v3003, %v3027
      %v3029 = vlaneseq
      %v3030 = vshrl.u32 %v3029, 7
      %v3031 = vsub.s32 6, %v3030
      %v3032 = vrot.slane %v3003, %v3031
      %v3033 = vlaneseq
      %v3034 = vshrl.u32 %v3033, 7
      %v3035 = vsub.s32 7, %v3034
      %v3036 = vrot.slane %v3003, %v3035
      %v3045 = vmul.f32 %v543, %v3008
      %v3046 = vmul.f32 %v542, %v3012
      %v3047 = vmul.f32 %v541, %v3016
      %v3048 = vmul.f32 %v540, %v3020
      %v3049 = vmul.f32 %v539, %v3024
      %v3050 = vmul.f32 %v538, %v3028
      %v3051 = vmul.f32 %v537, %v3032
      %v3052 = vmul.f32 %v544, %v3036
      %v3053 = vadd.f32 %v2992, %v3045
      %v3054 = vadd.f32 %v2993, %v3046
      %v3055 = vadd.f32 %v2994, %v3047
      %v3056 = vadd.f32 %v2995, %v3048
      %v3057 = vadd.f32 %v2996, %v3049
      %v3058 = vadd.f32 %v2997, %v3050
      %v3059 = vadd.f32 %v2998, %v3051
      %v3060 = vadd.f32 %v2999, %v3052
      %s3061 = scalar_lea.vmem %s2, 258
      %v3062 = vld [vmem:[%s3061] ss:$8 sm:$0xf]
      %v3063 = vld [vmem:[%s3061] ss:$8 sm:$0xf0]
      %v3064 = vor.u32 %v3062, %v3063
      %v3066 = vlaneseq
      %v3067 = vshrl.u32 %v3066, 7
      %v3068 = vsub.s32 0, %v3067
      %v3069 = vrot.slane %v3064, %v3068
      %v3070 = vlaneseq
      %v3071 = vshrl.u32 %v3070, 7
      %v3072 = vsub.s32 1, %v3071
      %v3073 = vrot.slane %v3064, %v3072
      %v3074 = vlaneseq
      %v3075 = vshrl.u32 %v3074, 7
      %v3076 = vsub.s32 2, %v3075
      %v3077 = vrot.slane %v3064, %v3076
      %v3078 = vlaneseq
      %v3079 = vshrl.u32 %v3078, 7
      %v3080 = vsub.s32 3, %v3079
      %v3081 = vrot.slane %v3064, %v3080
      %v3082 = vlaneseq
      %v3083 = vshrl.u32 %v3082, 7
      %v3084 = vsub.s32 4, %v3083
      %v3085 = vrot.slane %v3064, %v3084
      %v3086 = vlaneseq
      %v3087 = vshrl.u32 %v3086, 7
      %v3088 = vsub.s32 5, %v3087
      %v3089 = vrot.slane %v3064, %v3088
      %v3090 = vlaneseq
      %v3091 = vshrl.u32 %v3090, 7
      %v3092 = vsub.s32 6, %v3091
      %v3093 = vrot.slane %v3064, %v3092
      %v3094 = vlaneseq
      %v3095 = vshrl.u32 %v3094, 7
      %v3096 = vsub.s32 7, %v3095
      %v3097 = vrot.slane %v3064, %v3096
      %v3106 = vmul.f32 %v629, %v3069
      %v3107 = vmul.f32 %v628, %v3073
      %v3108 = vmul.f32 %v627, %v3077
      %v3109 = vmul.f32 %v626, %v3081
      %v3110 = vmul.f32 %v625, %v3085
      %v3111 = vmul.f32 %v624, %v3089
      %v3112 = vmul.f32 %v623, %v3093
      %v3113 = vmul.f32 %v630, %v3097
      %v3114 = vadd.f32 %v3053, %v3106
      %v3115 = vadd.f32 %v3054, %v3107
      %v3116 = vadd.f32 %v3055, %v3108
      %v3117 = vadd.f32 %v3056, %v3109
      %v3118 = vadd.f32 %v3057, %v3110
      %v3119 = vadd.f32 %v3058, %v3111
      %v3120 = vadd.f32 %v3059, %v3112
      %v3121 = vadd.f32 %v3060, %v3113
      %s3122 = scalar_lea.vmem %s2, 259
      %v3123 = vld [vmem:[%s3122] ss:$8 sm:$0xf]
      %v3124 = vld [vmem:[%s3122] ss:$8 sm:$0xf0]
      %v3125 = vor.u32 %v3123, %v3124
      %v3127 = vlaneseq
      %v3128 = vshrl.u32 %v3127, 7
      %v3129 = vsub.s32 0, %v3128
      %v3130 = vrot.slane %v3125, %v3129
      %v3131 = vlaneseq
      %v3132 = vshrl.u32 %v3131, 7
      %v3133 = vsub.s32 1, %v3132
      %v3134 = vrot.slane %v3125, %v3133
      %v3135 = vlaneseq
      %v3136 = vshrl.u32 %v3135, 7
      %v3137 = vsub.s32 2, %v3136
      %v3138 = vrot.slane %v3125, %v3137
      %v3139 = vlaneseq
      %v3140 = vshrl.u32 %v3139, 7
      %v3141 = vsub.s32 3, %v3140
      %v3142 = vrot.slane %v3125, %v3141
      %v3143 = vlaneseq
      %v3144 = vshrl.u32 %v3143, 7
      %v3145 = vsub.s32 4, %v3144
      %v3146 = vrot.slane %v3125, %v3145
      %v3147 = vlaneseq
      %v3148 = vshrl.u32 %v3147, 7
      %v3149 = vsub.s32 5, %v3148
      %v3150 = vrot.slane %v3125, %v3149
      %v3151 = vlaneseq
      %v3152 = vshrl.u32 %v3151, 7
      %v3153 = vsub.s32 6, %v3152
      %v3154 = vrot.slane %v3125, %v3153
      %v3155 = vlaneseq
      %v3156 = vshrl.u32 %v3155, 7
      %v3157 = vsub.s32 7, %v3156
      %v3158 = vrot.slane %v3125, %v3157
      %v3167 = vmul.f32 %v715, %v3130
      %v3168 = vmul.f32 %v714, %v3134
      %v3169 = vmul.f32 %v713, %v3138
      %v3170 = vmul.f32 %v712, %v3142
      %v3171 = vmul.f32 %v711, %v3146
      %v3172 = vmul.f32 %v710, %v3150
      %v3173 = vmul.f32 %v709, %v3154
      %v3174 = vmul.f32 %v716, %v3158
      %v3175 = vadd.f32 %v3114, %v3167
      %v3176 = vadd.f32 %v3115, %v3168
      %v3177 = vadd.f32 %v3116, %v3169
      %v3178 = vadd.f32 %v3117, %v3170
      %v3179 = vadd.f32 %v3118, %v3171
      %v3180 = vadd.f32 %v3119, %v3172
      %v3181 = vadd.f32 %v3120, %v3173
      %v3182 = vadd.f32 %v3121, %v3174
      %s3183 = scalar_lea.vmem %s2, 260
      %v3184 = vld [vmem:[%s3183] ss:$8 sm:$0xf]
      %v3185 = vld [vmem:[%s3183] ss:$8 sm:$0xf0]
      %v3186 = vor.u32 %v3184, %v3185
      %v3188 = vlaneseq
      %v3189 = vshrl.u32 %v3188, 7
      %v3190 = vsub.s32 0, %v3189
      %v3191 = vrot.slane %v3186, %v3190
      %v3192 = vlaneseq
      %v3193 = vshrl.u32 %v3192, 7
      %v3194 = vsub.s32 1, %v3193
      %v3195 = vrot.slane %v3186, %v3194
      %v3196 = vlaneseq
      %v3197 = vshrl.u32 %v3196, 7
      %v3198 = vsub.s32 2, %v3197
      %v3199 = vrot.slane %v3186, %v3198
      %v3200 = vlaneseq
      %v3201 = vshrl.u32 %v3200, 7
      %v3202 = vsub.s32 3, %v3201
      %v3203 = vrot.slane %v3186, %v3202
      %v3204 = vlaneseq
      %v3205 = vshrl.u32 %v3204, 7
      %v3206 = vsub.s32 4, %v3205
      %v3207 = vrot.slane %v3186, %v3206
      %v3208 = vlaneseq
      %v3209 = vshrl.u32 %v3208, 7
      %v3210 = vsub.s32 5, %v3209
      %v3211 = vrot.slane %v3186, %v3210
      %v3212 = vlaneseq
      %v3213 = vshrl.u32 %v3212, 7
      %v3214 = vsub.s32 6, %v3213
      %v3215 = vrot.slane %v3186, %v3214
      %v3216 = vlaneseq
      %v3217 = vshrl.u32 %v3216, 7
      %v3218 = vsub.s32 7, %v3217
      %v3219 = vrot.slane %v3186, %v3218
      %v3228 = vmul.f32 %v801, %v3191
      %v3229 = vmul.f32 %v800, %v3195
      %v3230 = vmul.f32 %v799, %v3199
      %v3231 = vmul.f32 %v798, %v3203
      %v3232 = vmul.f32 %v797, %v3207
      %v3233 = vmul.f32 %v796, %v3211
      %v3234 = vmul.f32 %v795, %v3215
      %v3235 = vmul.f32 %v802, %v3219
      %v3236 = vadd.f32 %v3175, %v3228
      %v3237 = vadd.f32 %v3176, %v3229
      %v3238 = vadd.f32 %v3177, %v3230
      %v3239 = vadd.f32 %v3178, %v3231
      %v3240 = vadd.f32 %v3179, %v3232
      %v3241 = vadd.f32 %v3180, %v3233
      %v3242 = vadd.f32 %v3181, %v3234
      %v3243 = vadd.f32 %v3182, %v3235
      %s3244 = scalar_lea.vmem %s2, 261
      %v3245 = vld [vmem:[%s3244] ss:$8 sm:$0xf]
      %v3246 = vld [vmem:[%s3244] ss:$8 sm:$0xf0]
      %v3247 = vor.u32 %v3245, %v3246
      %v3249 = vlaneseq
      %v3250 = vshrl.u32 %v3249, 7
      %v3251 = vsub.s32 0, %v3250
      %v3252 = vrot.slane %v3247, %v3251
      %v3253 = vlaneseq
      %v3254 = vshrl.u32 %v3253, 7
      %v3255 = vsub.s32 1, %v3254
      %v3256 = vrot.slane %v3247, %v3255
      %v3257 = vlaneseq
      %v3258 = vshrl.u32 %v3257, 7
      %v3259 = vsub.s32 2, %v3258
      %v3260 = vrot.slane %v3247, %v3259
      %v3261 = vlaneseq
      %v3262 = vshrl.u32 %v3261, 7
      %v3263 = vsub.s32 3, %v3262
      %v3264 = vrot.slane %v3247, %v3263
      %v3265 = vlaneseq
      %v3266 = vshrl.u32 %v3265, 7
      %v3267 = vsub.s32 4, %v3266
      %v3268 = vrot.slane %v3247, %v3267
      %v3269 = vlaneseq
      %v3270 = vshrl.u32 %v3269, 7
      %v3271 = vsub.s32 5, %v3270
      %v3272 = vrot.slane %v3247, %v3271
      %v3273 = vlaneseq
      %v3274 = vshrl.u32 %v3273, 7
      %v3275 = vsub.s32 6, %v3274
      %v3276 = vrot.slane %v3247, %v3275
      %v3277 = vlaneseq
      %v3278 = vshrl.u32 %v3277, 7
      %v3279 = vsub.s32 7, %v3278
      %v3280 = vrot.slane %v3247, %v3279
      %v3289 = vmul.f32 %v887, %v3252
      %v3290 = vmul.f32 %v886, %v3256
      %v3291 = vmul.f32 %v885, %v3260
      %v3292 = vmul.f32 %v884, %v3264
      %v3293 = vmul.f32 %v883, %v3268
      %v3294 = vmul.f32 %v882, %v3272
      %v3295 = vmul.f32 %v881, %v3276
      %v3296 = vmul.f32 %v888, %v3280
      %v3297 = vadd.f32 %v3236, %v3289
      %v3298 = vadd.f32 %v3237, %v3290
      %v3299 = vadd.f32 %v3238, %v3291
      %v3300 = vadd.f32 %v3239, %v3292
      %v3301 = vadd.f32 %v3240, %v3293
      %v3302 = vadd.f32 %v3241, %v3294
      %v3303 = vadd.f32 %v3242, %v3295
      %v3304 = vadd.f32 %v3243, %v3296
      %s3305 = scalar_lea.vmem %s2, 262
      %v3306 = vld [vmem:[%s3305] ss:$8 sm:$0xf]
      %v3307 = vld [vmem:[%s3305] ss:$8 sm:$0xf0]
      %v3308 = vor.u32 %v3306, %v3307
      %v3310 = vlaneseq
      %v3311 = vshrl.u32 %v3310, 7
      %v3312 = vsub.s32 0, %v3311
      %v3313 = vrot.slane %v3308, %v3312
      %v3314 = vlaneseq
      %v3315 = vshrl.u32 %v3314, 7
      %v3316 = vsub.s32 1, %v3315
      %v3317 = vrot.slane %v3308, %v3316
      %v3318 = vlaneseq
      %v3319 = vshrl.u32 %v3318, 7
      %v3320 = vsub.s32 2, %v3319
      %v3321 = vrot.slane %v3308, %v3320
      %v3322 = vlaneseq
      %v3323 = vshrl.u32 %v3322, 7
      %v3324 = vsub.s32 3, %v3323
      %v3325 = vrot.slane %v3308, %v3324
      %v3326 = vlaneseq
      %v3327 = vshrl.u32 %v3326, 7
      %v3328 = vsub.s32 4, %v3327
      %v3329 = vrot.slane %v3308, %v3328
      %v3330 = vlaneseq
      %v3331 = vshrl.u32 %v3330, 7
      %v3332 = vsub.s32 5, %v3331
      %v3333 = vrot.slane %v3308, %v3332
      %v3334 = vlaneseq
      %v3335 = vshrl.u32 %v3334, 7
      %v3336 = vsub.s32 6, %v3335
      %v3337 = vrot.slane %v3308, %v3336
      %v3338 = vlaneseq
      %v3339 = vshrl.u32 %v3338, 7
      %v3340 = vsub.s32 7, %v3339
      %v3341 = vrot.slane %v3308, %v3340
      %v3350 = vmul.f32 %v973, %v3313
      %v3351 = vmul.f32 %v972, %v3317
      %v3352 = vmul.f32 %v971, %v3321
      %v3353 = vmul.f32 %v970, %v3325
      %v3354 = vmul.f32 %v969, %v3329
      %v3355 = vmul.f32 %v968, %v3333
      %v3356 = vmul.f32 %v967, %v3337
      %v3357 = vmul.f32 %v974, %v3341
      %v3358 = vadd.f32 %v3297, %v3350
      %v3359 = vadd.f32 %v3298, %v3351
      %v3360 = vadd.f32 %v3299, %v3352
      %v3361 = vadd.f32 %v3300, %v3353
      %v3362 = vadd.f32 %v3301, %v3354
      %v3363 = vadd.f32 %v3302, %v3355
      %v3364 = vadd.f32 %v3303, %v3356
      %v3365 = vadd.f32 %v3304, %v3357
      %s3366 = scalar_lea.vmem %s2, 263
      %v3367 = vld [vmem:[%s3366] ss:$8 sm:$0xf]
      %v3368 = vld [vmem:[%s3366] ss:$8 sm:$0xf0]
      %v3369 = vor.u32 %v3367, %v3368
      %v3371 = vlaneseq
      %v3372 = vshrl.u32 %v3371, 7
      %v3373 = vsub.s32 0, %v3372
      %v3374 = vrot.slane %v3369, %v3373
      %v3375 = vlaneseq
      %v3376 = vshrl.u32 %v3375, 7
      %v3377 = vsub.s32 1, %v3376
      %v3378 = vrot.slane %v3369, %v3377
      %v3379 = vlaneseq
      %v3380 = vshrl.u32 %v3379, 7
      %v3381 = vsub.s32 2, %v3380
      %v3382 = vrot.slane %v3369, %v3381
      %v3383 = vlaneseq
      %v3384 = vshrl.u32 %v3383, 7
      %v3385 = vsub.s32 3, %v3384
      %v3386 = vrot.slane %v3369, %v3385
      %v3387 = vlaneseq
      %v3388 = vshrl.u32 %v3387, 7
      %v3389 = vsub.s32 4, %v3388
      %v3390 = vrot.slane %v3369, %v3389
      %v3391 = vlaneseq
      %v3392 = vshrl.u32 %v3391, 7
      %v3393 = vsub.s32 5, %v3392
      %v3394 = vrot.slane %v3369, %v3393
      %v3395 = vlaneseq
      %v3396 = vshrl.u32 %v3395, 7
      %v3397 = vsub.s32 6, %v3396
      %v3398 = vrot.slane %v3369, %v3397
      %v3399 = vlaneseq
      %v3400 = vshrl.u32 %v3399, 7
      %v3401 = vsub.s32 7, %v3400
      %v3402 = vrot.slane %v3369, %v3401
      %v3411 = vmul.f32 %v1059, %v3374
      %v3412 = vmul.f32 %v1058, %v3378
      %v3413 = vmul.f32 %v1057, %v3382
      %v3414 = vmul.f32 %v1056, %v3386
      %v3415 = vmul.f32 %v1055, %v3390
      %v3416 = vmul.f32 %v1054, %v3394
      %v3417 = vmul.f32 %v1053, %v3398
      %v3418 = vmul.f32 %v1060, %v3402
      %v3419 = vadd.f32 %v3358, %v3411
      %v3420 = vadd.f32 %v3359, %v3412
      %v3421 = vadd.f32 %v3360, %v3413
      %v3422 = vadd.f32 %v3361, %v3414
      %v3423 = vadd.f32 %v3362, %v3415
      %v3424 = vadd.f32 %v3363, %v3416
      %v3425 = vadd.f32 %v3364, %v3417
      %v3426 = vadd.f32 %v3365, %v3418
      %s3427 = scalar_lea.vmem %s2, 320
      %v3428 = vld [vmem:[%s3427] ss:$8 sm:$0xf]
      %v3429 = vld [vmem:[%s3427] ss:$8 sm:$0xf0]
      %v3430 = vor.u32 %v3428, %v3429
      %v3432 = vlaneseq
      %v3433 = vshrl.u32 %v3432, 7
      %v3434 = vsub.s32 0, %v3433
      %v3435 = vrot.slane %v3430, %v3434
      %v3436 = vlaneseq
      %v3437 = vshrl.u32 %v3436, 7
      %v3438 = vsub.s32 1, %v3437
      %v3439 = vrot.slane %v3430, %v3438
      %v3440 = vlaneseq
      %v3441 = vshrl.u32 %v3440, 7
      %v3442 = vsub.s32 2, %v3441
      %v3443 = vrot.slane %v3430, %v3442
      %v3444 = vlaneseq
      %v3445 = vshrl.u32 %v3444, 7
      %v3446 = vsub.s32 3, %v3445
      %v3447 = vrot.slane %v3430, %v3446
      %v3448 = vlaneseq
      %v3449 = vshrl.u32 %v3448, 7
      %v3450 = vsub.s32 4, %v3449
      %v3451 = vrot.slane %v3430, %v3450
      %v3452 = vlaneseq
      %v3453 = vshrl.u32 %v3452, 7
      %v3454 = vsub.s32 5, %v3453
      %v3455 = vrot.slane %v3430, %v3454
      %v3456 = vlaneseq
      %v3457 = vshrl.u32 %v3456, 7
      %v3458 = vsub.s32 6, %v3457
      %v3459 = vrot.slane %v3430, %v3458
      %v3460 = vlaneseq
      %v3461 = vshrl.u32 %v3460, 7
      %v3462 = vsub.s32 7, %v3461
      %v3463 = vrot.slane %v3430, %v3462
      %v3472 = vmul.f32 %v1145, %v3435
      %v3473 = vmul.f32 %v1144, %v3439
      %v3474 = vmul.f32 %v1143, %v3443
      %v3475 = vmul.f32 %v1142, %v3447
      %v3476 = vmul.f32 %v1141, %v3451
      %v3477 = vmul.f32 %v1140, %v3455
      %v3478 = vmul.f32 %v1139, %v3459
      %v3479 = vmul.f32 %v1146, %v3463
      %v3480 = vadd.f32 %v3419, %v3472
      %v3481 = vadd.f32 %v3420, %v3473
      %v3482 = vadd.f32 %v3421, %v3474
      %v3483 = vadd.f32 %v3422, %v3475
      %v3484 = vadd.f32 %v3423, %v3476
      %v3485 = vadd.f32 %v3424, %v3477
      %v3486 = vadd.f32 %v3425, %v3478
      %v3487 = vadd.f32 %v3426, %v3479
      %s3488 = scalar_lea.vmem %s2, 321
      %v3489 = vld [vmem:[%s3488] ss:$8 sm:$0xf]
      %v3490 = vld [vmem:[%s3488] ss:$8 sm:$0xf0]
      %v3491 = vor.u32 %v3489, %v3490
      %v3493 = vlaneseq
      %v3494 = vshrl.u32 %v3493, 7
      %v3495 = vsub.s32 0, %v3494
      %v3496 = vrot.slane %v3491, %v3495
      %v3497 = vlaneseq
      %v3498 = vshrl.u32 %v3497, 7
      %v3499 = vsub.s32 1, %v3498
      %v3500 = vrot.slane %v3491, %v3499
      %v3501 = vlaneseq
      %v3502 = vshrl.u32 %v3501, 7
      %v3503 = vsub.s32 2, %v3502
      %v3504 = vrot.slane %v3491, %v3503
      %v3505 = vlaneseq
      %v3506 = vshrl.u32 %v3505, 7
      %v3507 = vsub.s32 3, %v3506
      %v3508 = vrot.slane %v3491, %v3507
      %v3509 = vlaneseq
      %v3510 = vshrl.u32 %v3509, 7
      %v3511 = vsub.s32 4, %v3510
      %v3512 = vrot.slane %v3491, %v3511
      %v3513 = vlaneseq
      %v3514 = vshrl.u32 %v3513, 7
      %v3515 = vsub.s32 5, %v3514
      %v3516 = vrot.slane %v3491, %v3515
      %v3517 = vlaneseq
      %v3518 = vshrl.u32 %v3517, 7
      %v3519 = vsub.s32 6, %v3518
      %v3520 = vrot.slane %v3491, %v3519
      %v3521 = vlaneseq
      %v3522 = vshrl.u32 %v3521, 7
      %v3523 = vsub.s32 7, %v3522
      %v3524 = vrot.slane %v3491, %v3523
      %v3533 = vmul.f32 %v1231, %v3496
      %v3534 = vmul.f32 %v1230, %v3500
      %v3535 = vmul.f32 %v1229, %v3504
      %v3536 = vmul.f32 %v1228, %v3508
      %v3537 = vmul.f32 %v1227, %v3512
      %v3538 = vmul.f32 %v1226, %v3516
      %v3539 = vmul.f32 %v1225, %v3520
      %v3540 = vmul.f32 %v1232, %v3524
      %v3541 = vadd.f32 %v3480, %v3533
      %v3542 = vadd.f32 %v3481, %v3534
      %v3543 = vadd.f32 %v3482, %v3535
      %v3544 = vadd.f32 %v3483, %v3536
      %v3545 = vadd.f32 %v3484, %v3537
      %v3546 = vadd.f32 %v3485, %v3538
      %v3547 = vadd.f32 %v3486, %v3539
      %v3548 = vadd.f32 %v3487, %v3540
      %s3549 = scalar_lea.vmem %s2, 322
      %v3550 = vld [vmem:[%s3549] ss:$8 sm:$0xf]
      %v3551 = vld [vmem:[%s3549] ss:$8 sm:$0xf0]
      %v3552 = vor.u32 %v3550, %v3551
      %v3554 = vlaneseq
      %v3555 = vshrl.u32 %v3554, 7
      %v3556 = vsub.s32 0, %v3555
      %v3557 = vrot.slane %v3552, %v3556
      %v3558 = vlaneseq
      %v3559 = vshrl.u32 %v3558, 7
      %v3560 = vsub.s32 1, %v3559
      %v3561 = vrot.slane %v3552, %v3560
      %v3562 = vlaneseq
      %v3563 = vshrl.u32 %v3562, 7
      %v3564 = vsub.s32 2, %v3563
      %v3565 = vrot.slane %v3552, %v3564
      %v3566 = vlaneseq
      %v3567 = vshrl.u32 %v3566, 7
      %v3568 = vsub.s32 3, %v3567
      %v3569 = vrot.slane %v3552, %v3568
      %v3570 = vlaneseq
      %v3571 = vshrl.u32 %v3570, 7
      %v3572 = vsub.s32 4, %v3571
      %v3573 = vrot.slane %v3552, %v3572
      %v3574 = vlaneseq
      %v3575 = vshrl.u32 %v3574, 7
      %v3576 = vsub.s32 5, %v3575
      %v3577 = vrot.slane %v3552, %v3576
      %v3578 = vlaneseq
      %v3579 = vshrl.u32 %v3578, 7
      %v3580 = vsub.s32 6, %v3579
      %v3581 = vrot.slane %v3552, %v3580
      %v3582 = vlaneseq
      %v3583 = vshrl.u32 %v3582, 7
      %v3584 = vsub.s32 7, %v3583
      %v3585 = vrot.slane %v3552, %v3584
      %v3594 = vmul.f32 %v1317, %v3557
      %v3595 = vmul.f32 %v1316, %v3561
      %v3596 = vmul.f32 %v1315, %v3565
      %v3597 = vmul.f32 %v1314, %v3569
      %v3598 = vmul.f32 %v1313, %v3573
      %v3599 = vmul.f32 %v1312, %v3577
      %v3600 = vmul.f32 %v1311, %v3581
      %v3601 = vmul.f32 %v1318, %v3585
      %v3602 = vadd.f32 %v3541, %v3594
      %v3603 = vadd.f32 %v3542, %v3595
      %v3604 = vadd.f32 %v3543, %v3596
      %v3605 = vadd.f32 %v3544, %v3597
      %v3606 = vadd.f32 %v3545, %v3598
      %v3607 = vadd.f32 %v3546, %v3599
      %v3608 = vadd.f32 %v3547, %v3600
      %v3609 = vadd.f32 %v3548, %v3601
      %s3610 = scalar_lea.vmem %s2, 323
      %v3611 = vld [vmem:[%s3610] ss:$8 sm:$0xf]
      %v3612 = vld [vmem:[%s3610] ss:$8 sm:$0xf0]
      %v3613 = vor.u32 %v3611, %v3612
      %v3615 = vlaneseq
      %v3616 = vshrl.u32 %v3615, 7
      %v3617 = vsub.s32 0, %v3616
      %v3618 = vrot.slane %v3613, %v3617
      %v3619 = vlaneseq
      %v3620 = vshrl.u32 %v3619, 7
      %v3621 = vsub.s32 1, %v3620
      %v3622 = vrot.slane %v3613, %v3621
      %v3623 = vlaneseq
      %v3624 = vshrl.u32 %v3623, 7
      %v3625 = vsub.s32 2, %v3624
      %v3626 = vrot.slane %v3613, %v3625
      %v3627 = vlaneseq
      %v3628 = vshrl.u32 %v3627, 7
      %v3629 = vsub.s32 3, %v3628
      %v3630 = vrot.slane %v3613, %v3629
      %v3631 = vlaneseq
      %v3632 = vshrl.u32 %v3631, 7
      %v3633 = vsub.s32 4, %v3632
      %v3634 = vrot.slane %v3613, %v3633
      %v3635 = vlaneseq
      %v3636 = vshrl.u32 %v3635, 7
      %v3637 = vsub.s32 5, %v3636
      %v3638 = vrot.slane %v3613, %v3637
      %v3639 = vlaneseq
      %v3640 = vshrl.u32 %v3639, 7
      %v3641 = vsub.s32 6, %v3640
      %v3642 = vrot.slane %v3613, %v3641
      %v3643 = vlaneseq
      %v3644 = vshrl.u32 %v3643, 7
      %v3645 = vsub.s32 7, %v3644
      %v3646 = vrot.slane %v3613, %v3645
      %v3655 = vmul.f32 %v1403, %v3618
      %v3656 = vmul.f32 %v1402, %v3622
      %v3657 = vmul.f32 %v1401, %v3626
      %v3658 = vmul.f32 %v1400, %v3630
      %v3659 = vmul.f32 %v1399, %v3634
      %v3660 = vmul.f32 %v1398, %v3638
      %v3661 = vmul.f32 %v1397, %v3642
      %v3662 = vmul.f32 %v1404, %v3646
      %v3663 = vadd.f32 %v3602, %v3655
      %v3664 = vadd.f32 %v3603, %v3656
      %v3665 = vadd.f32 %v3604, %v3657
      %v3666 = vadd.f32 %v3605, %v3658
      %v3667 = vadd.f32 %v3606, %v3659
      %v3668 = vadd.f32 %v3607, %v3660
      %v3669 = vadd.f32 %v3608, %v3661
      %v3670 = vadd.f32 %v3609, %v3662
      %s3671 = scalar_lea.vmem %s2, 324
      %v3672 = vld [vmem:[%s3671] ss:$8 sm:$0xf]
      %v3673 = vld [vmem:[%s3671] ss:$8 sm:$0xf0]
      %v3674 = vor.u32 %v3672, %v3673
      %v3676 = vlaneseq
      %v3677 = vshrl.u32 %v3676, 7
      %v3678 = vsub.s32 0, %v3677
      %v3679 = vrot.slane %v3674, %v3678
      %v3680 = vlaneseq
      %v3681 = vshrl.u32 %v3680, 7
      %v3682 = vsub.s32 1, %v3681
      %v3683 = vrot.slane %v3674, %v3682
      %v3684 = vlaneseq
      %v3685 = vshrl.u32 %v3684, 7
      %v3686 = vsub.s32 2, %v3685
      %v3687 = vrot.slane %v3674, %v3686
      %v3688 = vlaneseq
      %v3689 = vshrl.u32 %v3688, 7
      %v3690 = vsub.s32 3, %v3689
      %v3691 = vrot.slane %v3674, %v3690
      %v3692 = vlaneseq
      %v3693 = vshrl.u32 %v3692, 7
      %v3694 = vsub.s32 4, %v3693
      %v3695 = vrot.slane %v3674, %v3694
      %v3696 = vlaneseq
      %v3697 = vshrl.u32 %v3696, 7
      %v3698 = vsub.s32 5, %v3697
      %v3699 = vrot.slane %v3674, %v3698
      %v3700 = vlaneseq
      %v3701 = vshrl.u32 %v3700, 7
      %v3702 = vsub.s32 6, %v3701
      %v3703 = vrot.slane %v3674, %v3702
      %v3704 = vlaneseq
      %v3705 = vshrl.u32 %v3704, 7
      %v3706 = vsub.s32 7, %v3705
      %v3707 = vrot.slane %v3674, %v3706
      %v3716 = vmul.f32 %v1489, %v3679
      %v3717 = vmul.f32 %v1488, %v3683
      %v3718 = vmul.f32 %v1487, %v3687
      %v3719 = vmul.f32 %v1486, %v3691
      %v3720 = vmul.f32 %v1485, %v3695
      %v3721 = vmul.f32 %v1484, %v3699
      %v3722 = vmul.f32 %v1483, %v3703
      %v3723 = vmul.f32 %v1490, %v3707
      %v3724 = vadd.f32 %v3663, %v3716
      %v3725 = vadd.f32 %v3664, %v3717
      %v3726 = vadd.f32 %v3665, %v3718
      %v3727 = vadd.f32 %v3666, %v3719
      %v3728 = vadd.f32 %v3667, %v3720
      %v3729 = vadd.f32 %v3668, %v3721
      %v3730 = vadd.f32 %v3669, %v3722
      %v3731 = vadd.f32 %v3670, %v3723
      %v3732 = vmul.f32 %v3724, %v253
      %v3733 = vmul.f32 %v3725, %v254
      %v3734 = vmul.f32 %v3726, %v255
      %v3735 = vmul.f32 %v3727, %v256
      %v3736 = vmul.f32 %v3728, %v257
      %v3737 = vmul.f32 %v3729, %v258
      %v3738 = vmul.f32 %v3730, %v259
      %v3739 = vmul.f32 %v3731, %v260
      %v3740 = vld [vmem:[%s4] ss:$2 sm:$0xff]
      %v3742 = vlaneseq
      %v3743 = vshrl.u32 %v3742, 7
      %v3744 = vsub.s32 0, %v3743
      %v3745 = vrot.slane %v3740, %v3744
      %v3746 = vlaneseq
      %v3747 = vshrl.u32 %v3746, 7
      %v3748 = vsub.s32 1, %v3747
      %v3749 = vrot.slane %v3740, %v3748
      %v3750 = vlaneseq
      %v3751 = vshrl.u32 %v3750, 7
      %v3752 = vsub.s32 2, %v3751
      %v3753 = vrot.slane %v3740, %v3752
      %v3754 = vlaneseq
      %v3755 = vshrl.u32 %v3754, 7
      %v3756 = vsub.s32 3, %v3755
      %v3757 = vrot.slane %v3740, %v3756
      %v3758 = vlaneseq
      %v3759 = vshrl.u32 %v3758, 7
      %v3760 = vsub.s32 4, %v3759
      %v3761 = vrot.slane %v3740, %v3760
      %v3762 = vlaneseq
      %v3763 = vshrl.u32 %v3762, 7
      %v3764 = vsub.s32 5, %v3763
      %v3765 = vrot.slane %v3740, %v3764
      %v3766 = vlaneseq
      %v3767 = vshrl.u32 %v3766, 7
      %v3768 = vsub.s32 6, %v3767
      %v3769 = vrot.slane %v3740, %v3768
      %v3770 = vlaneseq
      %v3771 = vshrl.u32 %v3770, 7
      %v3772 = vsub.s32 7, %v3771
      %v3773 = vrot.slane %v3740, %v3772
      %v3782 = vadd.f32 %v3732, %v3745
      %v3783 = vadd.f32 %v3733, %v3749
      %v3784 = vadd.f32 %v3734, %v3753
      %v3785 = vadd.f32 %v3735, %v3757
      %v3786 = vadd.f32 %v3736, %v3761
      %v3787 = vadd.f32 %v3737, %v3765
      %v3788 = vadd.f32 %v3738, %v3769
      %v3789 = vadd.f32 %v3739, %v3773
      %v3790 = vmax.f32 %v3782, 0.0
      %v3791 = vmax.f32 %v3783, 0.0
      %v3792 = vmax.f32 %v3784, 0.0
      %v3793 = vmax.f32 %v3785, 0.0
      %v3794 = vmax.f32 %v3786, 0.0
      %v3795 = vmax.f32 %v3787, 0.0
      %v3796 = vmax.f32 %v3788, 0.0
      %v3797 = vmax.f32 %v3789, 0.0
      %3798 = vrot.lane.b32.xlu0 %v3790, 71
      %v3799 = vpop.permute.xlu0 %3798
      %3800 = vrot.lane.b32.xlu0 %v3791, 71
      %v3801 = vpop.permute.xlu0 %3800
      %3802 = vrot.lane.b32.xlu0 %v3792, 71
      %v3803 = vpop.permute.xlu0 %3802
      %3804 = vrot.lane.b32.xlu0 %v3793, 71
      %v3805 = vpop.permute.xlu0 %3804
      %3806 = vrot.lane.b32.xlu0 %v3794, 71
      %v3807 = vpop.permute.xlu0 %3806
      %3808 = vrot.lane.b32.xlu0 %v3795, 71
      %v3809 = vpop.permute.xlu0 %3808
      %3810 = vrot.lane.b32.xlu0 %v3796, 71
      %v3811 = vpop.permute.xlu0 %3810
      %3812 = vrot.lane.b32.xlu0 %v3797, 71
      %v3813 = vpop.permute.xlu0 %3812
      %v3814 = vsel %vm279, %v3811, %v3813
      %v3815 = vsel %vm279, %v3809, %v3811
      %v3816 = vsel %vm279, %v3807, %v3809
      %v3817 = vsel %vm279, %v3805, %v3807
      %v3818 = vsel %vm279, %v3803, %v3805
      %v3819 = vsel %vm279, %v3801, %v3803
      %v3820 = vsel %vm279, %v3799, %v3801
      %v3821 = vsel %vm279, %v3813, %v3799
      %v3822 = vld [vmem:[%s3] ss:$8 sm:$0xf]
      %v3823 = vld [vmem:[%s3] ss:$8 sm:$0xf0]
      %v3824 = vor.u32 %v3822, %v3823
      %v3826 = vlaneseq
      %v3827 = vshrl.u32 %v3826, 7
      %v3828 = vsub.s32 0, %v3827
      %v3829 = vrot.slane %v3824, %v3828
      %v3830 = vlaneseq
      %v3831 = vshrl.u32 %v3830, 7
      %v3832 = vsub.s32 1, %v3831
      %v3833 = vrot.slane %v3824, %v3832
      %v3834 = vlaneseq
      %v3835 = vshrl.u32 %v3834, 7
      %v3836 = vsub.s32 2, %v3835
      %v3837 = vrot.slane %v3824, %v3836
      %v3838 = vlaneseq
      %v3839 = vshrl.u32 %v3838, 7
      %v3840 = vsub.s32 3, %v3839
      %v3841 = vrot.slane %v3824, %v3840
      %v3842 = vlaneseq
      %v3843 = vshrl.u32 %v3842, 7
      %v3844 = vsub.s32 4, %v3843
      %v3845 = vrot.slane %v3824, %v3844
      %v3846 = vlaneseq
      %v3847 = vshrl.u32 %v3846, 7
      %v3848 = vsub.s32 5, %v3847
      %v3849 = vrot.slane %v3824, %v3848
      %v3850 = vlaneseq
      %v3851 = vshrl.u32 %v3850, 7
      %v3852 = vsub.s32 6, %v3851
      %v3853 = vrot.slane %v3824, %v3852
      %v3854 = vlaneseq
      %v3855 = vshrl.u32 %v3854, 7
      %v3856 = vsub.s32 7, %v3855
      %v3857 = vrot.slane %v3824, %v3856
      %v3866 = vmul.f32 %v3821, %v3829
      %v3867 = vmul.f32 %v3820, %v3833
      %v3868 = vmul.f32 %v3819, %v3837
      %v3869 = vmul.f32 %v3818, %v3841
      %v3870 = vmul.f32 %v3817, %v3845
      %v3871 = vmul.f32 %v3816, %v3849
      %v3872 = vmul.f32 %v3815, %v3853
      %v3873 = vmul.f32 %v3814, %v3857
      %v3874 = vadd.f32 %v3866, 0.0
      %v3875 = vadd.f32 %v3867, 0.0
      %v3876 = vadd.f32 %v3868, 0.0
      %v3877 = vadd.f32 %v3869, 0.0
      %v3878 = vadd.f32 %v3870, 0.0
      %v3879 = vadd.f32 %v3871, 0.0
      %v3880 = vadd.f32 %v3872, 0.0
      %v3881 = vadd.f32 %v3873, 0.0
      %3882 = vrot.lane.b32.xlu0 %v3790, 70
      %v3883 = vpop.permute.xlu0 %3882
      %3884 = vrot.lane.b32.xlu0 %v3791, 70
      %v3885 = vpop.permute.xlu0 %3884
      %3886 = vrot.lane.b32.xlu0 %v3792, 70
      %v3887 = vpop.permute.xlu0 %3886
      %3888 = vrot.lane.b32.xlu0 %v3793, 70
      %v3889 = vpop.permute.xlu0 %3888
      %3890 = vrot.lane.b32.xlu0 %v3794, 70
      %v3891 = vpop.permute.xlu0 %3890
      %3892 = vrot.lane.b32.xlu0 %v3795, 70
      %v3893 = vpop.permute.xlu0 %3892
      %3894 = vrot.lane.b32.xlu0 %v3796, 70
      %v3895 = vpop.permute.xlu0 %3894
      %3896 = vrot.lane.b32.xlu0 %v3797, 70
      %v3897 = vpop.permute.xlu0 %3896
      %v3898 = vsel %vm364, %v3895, %v3897
      %v3899 = vsel %vm364, %v3893, %v3895
      %v3900 = vsel %vm364, %v3891, %v3893
      %v3901 = vsel %vm364, %v3889, %v3891
      %v3902 = vsel %vm364, %v3887, %v3889
      %v3903 = vsel %vm364, %v3885, %v3887
      %v3904 = vsel %vm364, %v3883, %v3885
      %v3905 = vsel %vm364, %v3897, %v3883
      %s3906 = scalar_lea.vmem %s3, 1
      %v3907 = vld [vmem:[%s3906] ss:$8 sm:$0xf]
      %v3908 = vld [vmem:[%s3906] ss:$8 sm:$0xf0]
      %v3909 = vor.u32 %v3907, %v3908
      %v3911 = vlaneseq
      %v3912 = vshrl.u32 %v3911, 7
      %v3913 = vsub.s32 0, %v3912
      %v3914 = vrot.slane %v3909, %v3913
      %v3915 = vlaneseq
      %v3916 = vshrl.u32 %v3915, 7
      %v3917 = vsub.s32 1, %v3916
      %v3918 = vrot.slane %v3909, %v3917
      %v3919 = vlaneseq
      %v3920 = vshrl.u32 %v3919, 7
      %v3921 = vsub.s32 2, %v3920
      %v3922 = vrot.slane %v3909, %v3921
      %v3923 = vlaneseq
      %v3924 = vshrl.u32 %v3923, 7
      %v3925 = vsub.s32 3, %v3924
      %v3926 = vrot.slane %v3909, %v3925
      %v3927 = vlaneseq
      %v3928 = vshrl.u32 %v3927, 7
      %v3929 = vsub.s32 4, %v3928
      %v3930 = vrot.slane %v3909, %v3929
      %v3931 = vlaneseq
      %v3932 = vshrl.u32 %v3931, 7
      %v3933 = vsub.s32 5, %v3932
      %v3934 = vrot.slane %v3909, %v3933
      %v3935 = vlaneseq
      %v3936 = vshrl.u32 %v3935, 7
      %v3937 = vsub.s32 6, %v3936
      %v3938 = vrot.slane %v3909, %v3937
      %v3939 = vlaneseq
      %v3940 = vshrl.u32 %v3939, 7
      %v3941 = vsub.s32 7, %v3940
      %v3942 = vrot.slane %v3909, %v3941
      %v3951 = vmul.f32 %v3905, %v3914
      %v3952 = vmul.f32 %v3904, %v3918
      %v3953 = vmul.f32 %v3903, %v3922
      %v3954 = vmul.f32 %v3902, %v3926
      %v3955 = vmul.f32 %v3901, %v3930
      %v3956 = vmul.f32 %v3900, %v3934
      %v3957 = vmul.f32 %v3899, %v3938
      %v3958 = vmul.f32 %v3898, %v3942
      %v3959 = vadd.f32 %v3874, %v3951
      %v3960 = vadd.f32 %v3875, %v3952
      %v3961 = vadd.f32 %v3876, %v3953
      %v3962 = vadd.f32 %v3877, %v3954
      %v3963 = vadd.f32 %v3878, %v3955
      %v3964 = vadd.f32 %v3879, %v3956
      %v3965 = vadd.f32 %v3880, %v3957
      %v3966 = vadd.f32 %v3881, %v3958
      %3967 = vrot.lane.b32.xlu0 %v3790, 69
      %v3968 = vpop.permute.xlu0 %3967
      %3969 = vrot.lane.b32.xlu0 %v3791, 69
      %v3970 = vpop.permute.xlu0 %3969
      %3971 = vrot.lane.b32.xlu0 %v3792, 69
      %v3972 = vpop.permute.xlu0 %3971
      %3973 = vrot.lane.b32.xlu0 %v3793, 69
      %v3974 = vpop.permute.xlu0 %3973
      %3975 = vrot.lane.b32.xlu0 %v3794, 69
      %v3976 = vpop.permute.xlu0 %3975
      %3977 = vrot.lane.b32.xlu0 %v3795, 69
      %v3978 = vpop.permute.xlu0 %3977
      %3979 = vrot.lane.b32.xlu0 %v3796, 69
      %v3980 = vpop.permute.xlu0 %3979
      %3981 = vrot.lane.b32.xlu0 %v3797, 69
      %v3982 = vpop.permute.xlu0 %3981
      %v3983 = vsel %vm450, %v3980, %v3982
      %v3984 = vsel %vm450, %v3978, %v3980
      %v3985 = vsel %vm450, %v3976, %v3978
      %v3986 = vsel %vm450, %v3974, %v3976
      %v3987 = vsel %vm450, %v3972, %v3974
      %v3988 = vsel %vm450, %v3970, %v3972
      %v3989 = vsel %vm450, %v3968, %v3970
      %v3990 = vsel %vm450, %v3982, %v3968
      %s3991 = scalar_lea.vmem %s3, 2
      %v3992 = vld [vmem:[%s3991] ss:$8 sm:$0xf]
      %v3993 = vld [vmem:[%s3991] ss:$8 sm:$0xf0]
      %v3994 = vor.u32 %v3992, %v3993
      %v3996 = vlaneseq
      %v3997 = vshrl.u32 %v3996, 7
      %v3998 = vsub.s32 0, %v3997
      %v3999 = vrot.slane %v3994, %v3998
      %v4000 = vlaneseq
      %v4001 = vshrl.u32 %v4000, 7
      %v4002 = vsub.s32 1, %v4001
      %v4003 = vrot.slane %v3994, %v4002
      %v4004 = vlaneseq
      %v4005 = vshrl.u32 %v4004, 7
      %v4006 = vsub.s32 2, %v4005
      %v4007 = vrot.slane %v3994, %v4006
      %v4008 = vlaneseq
      %v4009 = vshrl.u32 %v4008, 7
      %v4010 = vsub.s32 3, %v4009
      %v4011 = vrot.slane %v3994, %v4010
      %v4012 = vlaneseq
      %v4013 = vshrl.u32 %v4012, 7
      %v4014 = vsub.s32 4, %v4013
      %v4015 = vrot.slane %v3994, %v4014
      %v4016 = vlaneseq
      %v4017 = vshrl.u32 %v4016, 7
      %v4018 = vsub.s32 5, %v4017
      %v4019 = vrot.slane %v3994, %v4018
      %v4020 = vlaneseq
      %v4021 = vshrl.u32 %v4020, 7
      %v4022 = vsub.s32 6, %v4021
      %v4023 = vrot.slane %v3994, %v4022
      %v4024 = vlaneseq
      %v4025 = vshrl.u32 %v4024, 7
      %v4026 = vsub.s32 7, %v4025
      %v4027 = vrot.slane %v3994, %v4026
      %v4036 = vmul.f32 %v3990, %v3999
      %v4037 = vmul.f32 %v3989, %v4003
      %v4038 = vmul.f32 %v3988, %v4007
      %v4039 = vmul.f32 %v3987, %v4011
      %v4040 = vmul.f32 %v3986, %v4015
      %v4041 = vmul.f32 %v3985, %v4019
      %v4042 = vmul.f32 %v3984, %v4023
      %v4043 = vmul.f32 %v3983, %v4027
      %v4044 = vadd.f32 %v3959, %v4036
      %v4045 = vadd.f32 %v3960, %v4037
      %v4046 = vadd.f32 %v3961, %v4038
      %v4047 = vadd.f32 %v3962, %v4039
      %v4048 = vadd.f32 %v3963, %v4040
      %v4049 = vadd.f32 %v3964, %v4041
      %v4050 = vadd.f32 %v3965, %v4042
      %v4051 = vadd.f32 %v3966, %v4043
      %4052 = vrot.lane.b32.xlu0 %v3790, 68
      %v4053 = vpop.permute.xlu0 %4052
      %4054 = vrot.lane.b32.xlu0 %v3791, 68
      %v4055 = vpop.permute.xlu0 %4054
      %4056 = vrot.lane.b32.xlu0 %v3792, 68
      %v4057 = vpop.permute.xlu0 %4056
      %4058 = vrot.lane.b32.xlu0 %v3793, 68
      %v4059 = vpop.permute.xlu0 %4058
      %4060 = vrot.lane.b32.xlu0 %v3794, 68
      %v4061 = vpop.permute.xlu0 %4060
      %4062 = vrot.lane.b32.xlu0 %v3795, 68
      %v4063 = vpop.permute.xlu0 %4062
      %4064 = vrot.lane.b32.xlu0 %v3796, 68
      %v4065 = vpop.permute.xlu0 %4064
      %4066 = vrot.lane.b32.xlu0 %v3797, 68
      %v4067 = vpop.permute.xlu0 %4066
      %v4068 = vsel %vm536, %v4065, %v4067
      %v4069 = vsel %vm536, %v4063, %v4065
      %v4070 = vsel %vm536, %v4061, %v4063
      %v4071 = vsel %vm536, %v4059, %v4061
      %v4072 = vsel %vm536, %v4057, %v4059
      %v4073 = vsel %vm536, %v4055, %v4057
      %v4074 = vsel %vm536, %v4053, %v4055
      %v4075 = vsel %vm536, %v4067, %v4053
      %s4076 = scalar_lea.vmem %s3, 3
      %v4077 = vld [vmem:[%s4076] ss:$8 sm:$0xf]
      %v4078 = vld [vmem:[%s4076] ss:$8 sm:$0xf0]
      %v4079 = vor.u32 %v4077, %v4078
      %v4081 = vlaneseq
      %v4082 = vshrl.u32 %v4081, 7
      %v4083 = vsub.s32 0, %v4082
      %v4084 = vrot.slane %v4079, %v4083
      %v4085 = vlaneseq
      %v4086 = vshrl.u32 %v4085, 7
      %v4087 = vsub.s32 1, %v4086
      %v4088 = vrot.slane %v4079, %v4087
      %v4089 = vlaneseq
      %v4090 = vshrl.u32 %v4089, 7
      %v4091 = vsub.s32 2, %v4090
      %v4092 = vrot.slane %v4079, %v4091
      %v4093 = vlaneseq
      %v4094 = vshrl.u32 %v4093, 7
      %v4095 = vsub.s32 3, %v4094
      %v4096 = vrot.slane %v4079, %v4095
      %v4097 = vlaneseq
      %v4098 = vshrl.u32 %v4097, 7
      %v4099 = vsub.s32 4, %v4098
      %v4100 = vrot.slane %v4079, %v4099
      %v4101 = vlaneseq
      %v4102 = vshrl.u32 %v4101, 7
      %v4103 = vsub.s32 5, %v4102
      %v4104 = vrot.slane %v4079, %v4103
      %v4105 = vlaneseq
      %v4106 = vshrl.u32 %v4105, 7
      %v4107 = vsub.s32 6, %v4106
      %v4108 = vrot.slane %v4079, %v4107
      %v4109 = vlaneseq
      %v4110 = vshrl.u32 %v4109, 7
      %v4111 = vsub.s32 7, %v4110
      %v4112 = vrot.slane %v4079, %v4111
      %v4121 = vmul.f32 %v4075, %v4084
      %v4122 = vmul.f32 %v4074, %v4088
      %v4123 = vmul.f32 %v4073, %v4092
      %v4124 = vmul.f32 %v4072, %v4096
      %v4125 = vmul.f32 %v4071, %v4100
      %v4126 = vmul.f32 %v4070, %v4104
      %v4127 = vmul.f32 %v4069, %v4108
      %v4128 = vmul.f32 %v4068, %v4112
      %v4129 = vadd.f32 %v4044, %v4121
      %v4130 = vadd.f32 %v4045, %v4122
      %v4131 = vadd.f32 %v4046, %v4123
      %v4132 = vadd.f32 %v4047, %v4124
      %v4133 = vadd.f32 %v4048, %v4125
      %v4134 = vadd.f32 %v4049, %v4126
      %v4135 = vadd.f32 %v4050, %v4127
      %v4136 = vadd.f32 %v4051, %v4128
      %4137 = vrot.lane.b32.xlu0 %v3790, 67
      %v4138 = vpop.permute.xlu0 %4137
      %4139 = vrot.lane.b32.xlu0 %v3791, 67
      %v4140 = vpop.permute.xlu0 %4139
      %4141 = vrot.lane.b32.xlu0 %v3792, 67
      %v4142 = vpop.permute.xlu0 %4141
      %4143 = vrot.lane.b32.xlu0 %v3793, 67
      %v4144 = vpop.permute.xlu0 %4143
      %4145 = vrot.lane.b32.xlu0 %v3794, 67
      %v4146 = vpop.permute.xlu0 %4145
      %4147 = vrot.lane.b32.xlu0 %v3795, 67
      %v4148 = vpop.permute.xlu0 %4147
      %4149 = vrot.lane.b32.xlu0 %v3796, 67
      %v4150 = vpop.permute.xlu0 %4149
      %4151 = vrot.lane.b32.xlu0 %v3797, 67
      %v4152 = vpop.permute.xlu0 %4151
      %v4153 = vsel %vm622, %v4150, %v4152
      %v4154 = vsel %vm622, %v4148, %v4150
      %v4155 = vsel %vm622, %v4146, %v4148
      %v4156 = vsel %vm622, %v4144, %v4146
      %v4157 = vsel %vm622, %v4142, %v4144
      %v4158 = vsel %vm622, %v4140, %v4142
      %v4159 = vsel %vm622, %v4138, %v4140
      %v4160 = vsel %vm622, %v4152, %v4138
      %s4161 = scalar_lea.vmem %s3, 4
      %v4162 = vld [vmem:[%s4161] ss:$8 sm:$0xf]
      %v4163 = vld [vmem:[%s4161] ss:$8 sm:$0xf0]
      %v4164 = vor.u32 %v4162, %v4163
      %v4166 = vlaneseq
      %v4167 = vshrl.u32 %v4166, 7
      %v4168 = vsub.s32 0, %v4167
      %v4169 = vrot.slane %v4164, %v4168
      %v4170 = vlaneseq
      %v4171 = vshrl.u32 %v4170, 7
      %v4172 = vsub.s32 1, %v4171
      %v4173 = vrot.slane %v4164, %v4172
      %v4174 = vlaneseq
      %v4175 = vshrl.u32 %v4174, 7
      %v4176 = vsub.s32 2, %v4175
      %v4177 = vrot.slane %v4164, %v4176
      %v4178 = vlaneseq
      %v4179 = vshrl.u32 %v4178, 7
      %v4180 = vsub.s32 3, %v4179
      %v4181 = vrot.slane %v4164, %v4180
      %v4182 = vlaneseq
      %v4183 = vshrl.u32 %v4182, 7
      %v4184 = vsub.s32 4, %v4183
      %v4185 = vrot.slane %v4164, %v4184
      %v4186 = vlaneseq
      %v4187 = vshrl.u32 %v4186, 7
      %v4188 = vsub.s32 5, %v4187
      %v4189 = vrot.slane %v4164, %v4188
      %v4190 = vlaneseq
      %v4191 = vshrl.u32 %v4190, 7
      %v4192 = vsub.s32 6, %v4191
      %v4193 = vrot.slane %v4164, %v4192
      %v4194 = vlaneseq
      %v4195 = vshrl.u32 %v4194, 7
      %v4196 = vsub.s32 7, %v4195
      %v4197 = vrot.slane %v4164, %v4196
      %v4206 = vmul.f32 %v4160, %v4169
      %v4207 = vmul.f32 %v4159, %v4173
      %v4208 = vmul.f32 %v4158, %v4177
      %v4209 = vmul.f32 %v4157, %v4181
      %v4210 = vmul.f32 %v4156, %v4185
      %v4211 = vmul.f32 %v4155, %v4189
      %v4212 = vmul.f32 %v4154, %v4193
      %v4213 = vmul.f32 %v4153, %v4197
      %v4214 = vadd.f32 %v4129, %v4206
      %v4215 = vadd.f32 %v4130, %v4207
      %v4216 = vadd.f32 %v4131, %v4208
      %v4217 = vadd.f32 %v4132, %v4209
      %v4218 = vadd.f32 %v4133, %v4210
      %v4219 = vadd.f32 %v4134, %v4211
      %v4220 = vadd.f32 %v4135, %v4212
      %v4221 = vadd.f32 %v4136, %v4213
      %4222 = vrot.lane.b32.xlu0 %v3790, 66
      %v4223 = vpop.permute.xlu0 %4222
      %4224 = vrot.lane.b32.xlu0 %v3791, 66
      %v4225 = vpop.permute.xlu0 %4224
      %4226 = vrot.lane.b32.xlu0 %v3792, 66
      %v4227 = vpop.permute.xlu0 %4226
      %4228 = vrot.lane.b32.xlu0 %v3793, 66
      %v4229 = vpop.permute.xlu0 %4228
      %4230 = vrot.lane.b32.xlu0 %v3794, 66
      %v4231 = vpop.permute.xlu0 %4230
      %4232 = vrot.lane.b32.xlu0 %v3795, 66
      %v4233 = vpop.permute.xlu0 %4232
      %4234 = vrot.lane.b32.xlu0 %v3796, 66
      %v4235 = vpop.permute.xlu0 %4234
      %4236 = vrot.lane.b32.xlu0 %v3797, 66
      %v4237 = vpop.permute.xlu0 %4236
      %v4238 = vsel %vm708, %v4235, %v4237
      %v4239 = vsel %vm708, %v4233, %v4235
      %v4240 = vsel %vm708, %v4231, %v4233
      %v4241 = vsel %vm708, %v4229, %v4231
      %v4242 = vsel %vm708, %v4227, %v4229
      %v4243 = vsel %vm708, %v4225, %v4227
      %v4244 = vsel %vm708, %v4223, %v4225
      %v4245 = vsel %vm708, %v4237, %v4223
      %s4246 = scalar_lea.vmem %s3, 5
      %v4247 = vld [vmem:[%s4246] ss:$8 sm:$0xf]
      %v4248 = vld [vmem:[%s4246] ss:$8 sm:$0xf0]
      %v4249 = vor.u32 %v4247, %v4248
      %v4251 = vlaneseq
      %v4252 = vshrl.u32 %v4251, 7
      %v4253 = vsub.s32 0, %v4252
      %v4254 = vrot.slane %v4249, %v4253
      %v4255 = vlaneseq
      %v4256 = vshrl.u32 %v4255, 7
      %v4257 = vsub.s32 1, %v4256
      %v4258 = vrot.slane %v4249, %v4257
      %v4259 = vlaneseq
      %v4260 = vshrl.u32 %v4259, 7
      %v4261 = vsub.s32 2, %v4260
      %v4262 = vrot.slane %v4249, %v4261
      %v4263 = vlaneseq
      %v4264 = vshrl.u32 %v4263, 7
      %v4265 = vsub.s32 3, %v4264
      %v4266 = vrot.slane %v4249, %v4265
      %v4267 = vlaneseq
      %v4268 = vshrl.u32 %v4267, 7
      %v4269 = vsub.s32 4, %v4268
      %v4270 = vrot.slane %v4249, %v4269
      %v4271 = vlaneseq
      %v4272 = vshrl.u32 %v4271, 7
      %v4273 = vsub.s32 5, %v4272
      %v4274 = vrot.slane %v4249, %v4273
      %v4275 = vlaneseq
      %v4276 = vshrl.u32 %v4275, 7
      %v4277 = vsub.s32 6, %v4276
      %v4278 = vrot.slane %v4249, %v4277
      %v4279 = vlaneseq
      %v4280 = vshrl.u32 %v4279, 7
      %v4281 = vsub.s32 7, %v4280
      %v4282 = vrot.slane %v4249, %v4281
      %v4291 = vmul.f32 %v4245, %v4254
      %v4292 = vmul.f32 %v4244, %v4258
      %v4293 = vmul.f32 %v4243, %v4262
      %v4294 = vmul.f32 %v4242, %v4266
      %v4295 = vmul.f32 %v4241, %v4270
      %v4296 = vmul.f32 %v4240, %v4274
      %v4297 = vmul.f32 %v4239, %v4278
      %v4298 = vmul.f32 %v4238, %v4282
      %v4299 = vadd.f32 %v4214, %v4291
      %v4300 = vadd.f32 %v4215, %v4292
      %v4301 = vadd.f32 %v4216, %v4293
      %v4302 = vadd.f32 %v4217, %v4294
      %v4303 = vadd.f32 %v4218, %v4295
      %v4304 = vadd.f32 %v4219, %v4296
      %v4305 = vadd.f32 %v4220, %v4297
      %v4306 = vadd.f32 %v4221, %v4298
      %4307 = vrot.lane.b32.xlu0 %v3790, 65
      %v4308 = vpop.permute.xlu0 %4307
      %4309 = vrot.lane.b32.xlu0 %v3791, 65
      %v4310 = vpop.permute.xlu0 %4309
      %4311 = vrot.lane.b32.xlu0 %v3792, 65
      %v4312 = vpop.permute.xlu0 %4311
      %4313 = vrot.lane.b32.xlu0 %v3793, 65
      %v4314 = vpop.permute.xlu0 %4313
      %4315 = vrot.lane.b32.xlu0 %v3794, 65
      %v4316 = vpop.permute.xlu0 %4315
      %4317 = vrot.lane.b32.xlu0 %v3795, 65
      %v4318 = vpop.permute.xlu0 %4317
      %4319 = vrot.lane.b32.xlu0 %v3796, 65
      %v4320 = vpop.permute.xlu0 %4319
      %4321 = vrot.lane.b32.xlu0 %v3797, 65
      %v4322 = vpop.permute.xlu0 %4321
      %v4323 = vsel %vm794, %v4320, %v4322
      %v4324 = vsel %vm794, %v4318, %v4320
      %v4325 = vsel %vm794, %v4316, %v4318
      %v4326 = vsel %vm794, %v4314, %v4316
      %v4327 = vsel %vm794, %v4312, %v4314
      %v4328 = vsel %vm794, %v4310, %v4312
      %v4329 = vsel %vm794, %v4308, %v4310
      %v4330 = vsel %vm794, %v4322, %v4308
      %s4331 = scalar_lea.vmem %s3, 6
      %v4332 = vld [vmem:[%s4331] ss:$8 sm:$0xf]
      %v4333 = vld [vmem:[%s4331] ss:$8 sm:$0xf0]
      %v4334 = vor.u32 %v4332, %v4333
      %v4336 = vlaneseq
      %v4337 = vshrl.u32 %v4336, 7
      %v4338 = vsub.s32 0, %v4337
      %v4339 = vrot.slane %v4334, %v4338
      %v4340 = vlaneseq
      %v4341 = vshrl.u32 %v4340, 7
      %v4342 = vsub.s32 1, %v4341
      %v4343 = vrot.slane %v4334, %v4342
      %v4344 = vlaneseq
      %v4345 = vshrl.u32 %v4344, 7
      %v4346 = vsub.s32 2, %v4345
      %v4347 = vrot.slane %v4334, %v4346
      %v4348 = vlaneseq
      %v4349 = vshrl.u32 %v4348, 7
      %v4350 = vsub.s32 3, %v4349
      %v4351 = vrot.slane %v4334, %v4350
      %v4352 = vlaneseq
      %v4353 = vshrl.u32 %v4352, 7
      %v4354 = vsub.s32 4, %v4353
      %v4355 = vrot.slane %v4334, %v4354
      %v4356 = vlaneseq
      %v4357 = vshrl.u32 %v4356, 7
      %v4358 = vsub.s32 5, %v4357
      %v4359 = vrot.slane %v4334, %v4358
      %v4360 = vlaneseq
      %v4361 = vshrl.u32 %v4360, 7
      %v4362 = vsub.s32 6, %v4361
      %v4363 = vrot.slane %v4334, %v4362
      %v4364 = vlaneseq
      %v4365 = vshrl.u32 %v4364, 7
      %v4366 = vsub.s32 7, %v4365
      %v4367 = vrot.slane %v4334, %v4366
      %v4376 = vmul.f32 %v4330, %v4339
      %v4377 = vmul.f32 %v4329, %v4343
      %v4378 = vmul.f32 %v4328, %v4347
      %v4379 = vmul.f32 %v4327, %v4351
      %v4380 = vmul.f32 %v4326, %v4355
      %v4381 = vmul.f32 %v4325, %v4359
      %v4382 = vmul.f32 %v4324, %v4363
      %v4383 = vmul.f32 %v4323, %v4367
      %v4384 = vadd.f32 %v4299, %v4376
      %v4385 = vadd.f32 %v4300, %v4377
      %v4386 = vadd.f32 %v4301, %v4378
      %v4387 = vadd.f32 %v4302, %v4379
      %v4388 = vadd.f32 %v4303, %v4380
      %v4389 = vadd.f32 %v4304, %v4381
      %v4390 = vadd.f32 %v4305, %v4382
      %v4391 = vadd.f32 %v4306, %v4383
      %4392 = vrot.lane.b32.xlu0 %v3790, 64
      %v4393 = vpop.permute.xlu0 %4392
      %4394 = vrot.lane.b32.xlu0 %v3791, 64
      %v4395 = vpop.permute.xlu0 %4394
      %4396 = vrot.lane.b32.xlu0 %v3792, 64
      %v4397 = vpop.permute.xlu0 %4396
      %4398 = vrot.lane.b32.xlu0 %v3793, 64
      %v4399 = vpop.permute.xlu0 %4398
      %4400 = vrot.lane.b32.xlu0 %v3794, 64
      %v4401 = vpop.permute.xlu0 %4400
      %4402 = vrot.lane.b32.xlu0 %v3795, 64
      %v4403 = vpop.permute.xlu0 %4402
      %4404 = vrot.lane.b32.xlu0 %v3796, 64
      %v4405 = vpop.permute.xlu0 %4404
      %4406 = vrot.lane.b32.xlu0 %v3797, 64
      %v4407 = vpop.permute.xlu0 %4406
      %v4408 = vsel %vm880, %v4405, %v4407
      %v4409 = vsel %vm880, %v4403, %v4405
      %v4410 = vsel %vm880, %v4401, %v4403
      %v4411 = vsel %vm880, %v4399, %v4401
      %v4412 = vsel %vm880, %v4397, %v4399
      %v4413 = vsel %vm880, %v4395, %v4397
      %v4414 = vsel %vm880, %v4393, %v4395
      %v4415 = vsel %vm880, %v4407, %v4393
      %s4416 = scalar_lea.vmem %s3, 7
      %v4417 = vld [vmem:[%s4416] ss:$8 sm:$0xf]
      %v4418 = vld [vmem:[%s4416] ss:$8 sm:$0xf0]
      %v4419 = vor.u32 %v4417, %v4418
      %v4421 = vlaneseq
      %v4422 = vshrl.u32 %v4421, 7
      %v4423 = vsub.s32 0, %v4422
      %v4424 = vrot.slane %v4419, %v4423
      %v4425 = vlaneseq
      %v4426 = vshrl.u32 %v4425, 7
      %v4427 = vsub.s32 1, %v4426
      %v4428 = vrot.slane %v4419, %v4427
      %v4429 = vlaneseq
      %v4430 = vshrl.u32 %v4429, 7
      %v4431 = vsub.s32 2, %v4430
      %v4432 = vrot.slane %v4419, %v4431
      %v4433 = vlaneseq
      %v4434 = vshrl.u32 %v4433, 7
      %v4435 = vsub.s32 3, %v4434
      %v4436 = vrot.slane %v4419, %v4435
      %v4437 = vlaneseq
      %v4438 = vshrl.u32 %v4437, 7
      %v4439 = vsub.s32 4, %v4438
      %v4440 = vrot.slane %v4419, %v4439
      %v4441 = vlaneseq
      %v4442 = vshrl.u32 %v4441, 7
      %v4443 = vsub.s32 5, %v4442
      %v4444 = vrot.slane %v4419, %v4443
      %v4445 = vlaneseq
      %v4446 = vshrl.u32 %v4445, 7
      %v4447 = vsub.s32 6, %v4446
      %v4448 = vrot.slane %v4419, %v4447
      %v4449 = vlaneseq
      %v4450 = vshrl.u32 %v4449, 7
      %v4451 = vsub.s32 7, %v4450
      %v4452 = vrot.slane %v4419, %v4451
      %v4461 = vmul.f32 %v4415, %v4424
      %v4462 = vmul.f32 %v4414, %v4428
      %v4463 = vmul.f32 %v4413, %v4432
      %v4464 = vmul.f32 %v4412, %v4436
      %v4465 = vmul.f32 %v4411, %v4440
      %v4466 = vmul.f32 %v4410, %v4444
      %v4467 = vmul.f32 %v4409, %v4448
      %v4468 = vmul.f32 %v4408, %v4452
      %v4469 = vadd.f32 %v4384, %v4461
      %v4470 = vadd.f32 %v4385, %v4462
      %v4471 = vadd.f32 %v4386, %v4463
      %v4472 = vadd.f32 %v4387, %v4464
      %v4473 = vadd.f32 %v4388, %v4465
      %v4474 = vadd.f32 %v4389, %v4466
      %v4475 = vadd.f32 %v4390, %v4467
      %v4476 = vadd.f32 %v4391, %v4468
      %4477 = vrot.lane.b32.xlu0 %v3790, 63
      %v4478 = vpop.permute.xlu0 %4477
      %4479 = vrot.lane.b32.xlu0 %v3791, 63
      %v4480 = vpop.permute.xlu0 %4479
      %4481 = vrot.lane.b32.xlu0 %v3792, 63
      %v4482 = vpop.permute.xlu0 %4481
      %4483 = vrot.lane.b32.xlu0 %v3793, 63
      %v4484 = vpop.permute.xlu0 %4483
      %4485 = vrot.lane.b32.xlu0 %v3794, 63
      %v4486 = vpop.permute.xlu0 %4485
      %4487 = vrot.lane.b32.xlu0 %v3795, 63
      %v4488 = vpop.permute.xlu0 %4487
      %4489 = vrot.lane.b32.xlu0 %v3796, 63
      %v4490 = vpop.permute.xlu0 %4489
      %4491 = vrot.lane.b32.xlu0 %v3797, 63
      %v4492 = vpop.permute.xlu0 %4491
      %v4493 = vsel %vm966, %v4490, %v4492
      %v4494 = vsel %vm966, %v4488, %v4490
      %v4495 = vsel %vm966, %v4486, %v4488
      %v4496 = vsel %vm966, %v4484, %v4486
      %v4497 = vsel %vm966, %v4482, %v4484
      %v4498 = vsel %vm966, %v4480, %v4482
      %v4499 = vsel %vm966, %v4478, %v4480
      %v4500 = vsel %vm966, %v4492, %v4478
      %s4501 = scalar_lea.vmem %s3, 64
      %v4502 = vld [vmem:[%s4501] ss:$8 sm:$0xf]
      %v4503 = vld [vmem:[%s4501] ss:$8 sm:$0xf0]
      %v4504 = vor.u32 %v4502, %v4503
      %v4506 = vlaneseq
      %v4507 = vshrl.u32 %v4506, 7
      %v4508 = vsub.s32 0, %v4507
      %v4509 = vrot.slane %v4504, %v4508
      %v4510 = vlaneseq
      %v4511 = vshrl.u32 %v4510, 7
      %v4512 = vsub.s32 1, %v4511
      %v4513 = vrot.slane %v4504, %v4512
      %v4514 = vlaneseq
      %v4515 = vshrl.u32 %v4514, 7
      %v4516 = vsub.s32 2, %v4515
      %v4517 = vrot.slane %v4504, %v4516
      %v4518 = vlaneseq
      %v4519 = vshrl.u32 %v4518, 7
      %v4520 = vsub.s32 3, %v4519
      %v4521 = vrot.slane %v4504, %v4520
      %v4522 = vlaneseq
      %v4523 = vshrl.u32 %v4522, 7
      %v4524 = vsub.s32 4, %v4523
      %v4525 = vrot.slane %v4504, %v4524
      %v4526 = vlaneseq
      %v4527 = vshrl.u32 %v4526, 7
      %v4528 = vsub.s32 5, %v4527
      %v4529 = vrot.slane %v4504, %v4528
      %v4530 = vlaneseq
      %v4531 = vshrl.u32 %v4530, 7
      %v4532 = vsub.s32 6, %v4531
      %v4533 = vrot.slane %v4504, %v4532
      %v4534 = vlaneseq
      %v4535 = vshrl.u32 %v4534, 7
      %v4536 = vsub.s32 7, %v4535
      %v4537 = vrot.slane %v4504, %v4536
      %v4546 = vmul.f32 %v4500, %v4509
      %v4547 = vmul.f32 %v4499, %v4513
      %v4548 = vmul.f32 %v4498, %v4517
      %v4549 = vmul.f32 %v4497, %v4521
      %v4550 = vmul.f32 %v4496, %v4525
      %v4551 = vmul.f32 %v4495, %v4529
      %v4552 = vmul.f32 %v4494, %v4533
      %v4553 = vmul.f32 %v4493, %v4537
      %v4554 = vadd.f32 %v4469, %v4546
      %v4555 = vadd.f32 %v4470, %v4547
      %v4556 = vadd.f32 %v4471, %v4548
      %v4557 = vadd.f32 %v4472, %v4549
      %v4558 = vadd.f32 %v4473, %v4550
      %v4559 = vadd.f32 %v4474, %v4551
      %v4560 = vadd.f32 %v4475, %v4552
      %v4561 = vadd.f32 %v4476, %v4553
      %4562 = vrot.lane.b32.xlu0 %v3790, 62
      %v4563 = vpop.permute.xlu0 %4562
      %4564 = vrot.lane.b32.xlu0 %v3791, 62
      %v4565 = vpop.permute.xlu0 %4564
      %4566 = vrot.lane.b32.xlu0 %v3792, 62
      %v4567 = vpop.permute.xlu0 %4566
      %4568 = vrot.lane.b32.xlu0 %v3793, 62
      %v4569 = vpop.permute.xlu0 %4568
      %4570 = vrot.lane.b32.xlu0 %v3794, 62
      %v4571 = vpop.permute.xlu0 %4570
      %4572 = vrot.lane.b32.xlu0 %v3795, 62
      %v4573 = vpop.permute.xlu0 %4572
      %4574 = vrot.lane.b32.xlu0 %v3796, 62
      %v4575 = vpop.permute.xlu0 %4574
      %4576 = vrot.lane.b32.xlu0 %v3797, 62
      %v4577 = vpop.permute.xlu0 %4576
      %v4578 = vsel %vm1052, %v4575, %v4577
      %v4579 = vsel %vm1052, %v4573, %v4575
      %v4580 = vsel %vm1052, %v4571, %v4573
      %v4581 = vsel %vm1052, %v4569, %v4571
      %v4582 = vsel %vm1052, %v4567, %v4569
      %v4583 = vsel %vm1052, %v4565, %v4567
      %v4584 = vsel %vm1052, %v4563, %v4565
      %v4585 = vsel %vm1052, %v4577, %v4563
      %s4586 = scalar_lea.vmem %s3, 65
      %v4587 = vld [vmem:[%s4586] ss:$8 sm:$0xf]
      %v4588 = vld [vmem:[%s4586] ss:$8 sm:$0xf0]
      %v4589 = vor.u32 %v4587, %v4588
      %v4591 = vlaneseq
      %v4592 = vshrl.u32 %v4591, 7
      %v4593 = vsub.s32 0, %v4592
      %v4594 = vrot.slane %v4589, %v4593
      %v4595 = vlaneseq
      %v4596 = vshrl.u32 %v4595, 7
      %v4597 = vsub.s32 1, %v4596
      %v4598 = vrot.slane %v4589, %v4597
      %v4599 = vlaneseq
      %v4600 = vshrl.u32 %v4599, 7
      %v4601 = vsub.s32 2, %v4600
      %v4602 = vrot.slane %v4589, %v4601
      %v4603 = vlaneseq
      %v4604 = vshrl.u32 %v4603, 7
      %v4605 = vsub.s32 3, %v4604
      %v4606 = vrot.slane %v4589, %v4605
      %v4607 = vlaneseq
      %v4608 = vshrl.u32 %v4607, 7
      %v4609 = vsub.s32 4, %v4608
      %v4610 = vrot.slane %v4589, %v4609
      %v4611 = vlaneseq
      %v4612 = vshrl.u32 %v4611, 7
      %v4613 = vsub.s32 5, %v4612
      %v4614 = vrot.slane %v4589, %v4613
      %v4615 = vlaneseq
      %v4616 = vshrl.u32 %v4615, 7
      %v4617 = vsub.s32 6, %v4616
      %v4618 = vrot.slane %v4589, %v4617
      %v4619 = vlaneseq
      %v4620 = vshrl.u32 %v4619, 7
      %v4621 = vsub.s32 7, %v4620
      %v4622 = vrot.slane %v4589, %v4621
      %v4631 = vmul.f32 %v4585, %v4594
      %v4632 = vmul.f32 %v4584, %v4598
      %v4633 = vmul.f32 %v4583, %v4602
      %v4634 = vmul.f32 %v4582, %v4606
      %v4635 = vmul.f32 %v4581, %v4610
      %v4636 = vmul.f32 %v4580, %v4614
      %v4637 = vmul.f32 %v4579, %v4618
      %v4638 = vmul.f32 %v4578, %v4622
      %v4639 = vadd.f32 %v4554, %v4631
      %v4640 = vadd.f32 %v4555, %v4632
      %v4641 = vadd.f32 %v4556, %v4633
      %v4642 = vadd.f32 %v4557, %v4634
      %v4643 = vadd.f32 %v4558, %v4635
      %v4644 = vadd.f32 %v4559, %v4636
      %v4645 = vadd.f32 %v4560, %v4637
      %v4646 = vadd.f32 %v4561, %v4638
      %4647 = vrot.lane.b32.xlu0 %v3790, 61
      %v4648 = vpop.permute.xlu0 %4647
      %4649 = vrot.lane.b32.xlu0 %v3791, 61
      %v4650 = vpop.permute.xlu0 %4649
      %4651 = vrot.lane.b32.xlu0 %v3792, 61
      %v4652 = vpop.permute.xlu0 %4651
      %4653 = vrot.lane.b32.xlu0 %v3793, 61
      %v4654 = vpop.permute.xlu0 %4653
      %4655 = vrot.lane.b32.xlu0 %v3794, 61
      %v4656 = vpop.permute.xlu0 %4655
      %4657 = vrot.lane.b32.xlu0 %v3795, 61
      %v4658 = vpop.permute.xlu0 %4657
      %4659 = vrot.lane.b32.xlu0 %v3796, 61
      %v4660 = vpop.permute.xlu0 %4659
      %4661 = vrot.lane.b32.xlu0 %v3797, 61
      %v4662 = vpop.permute.xlu0 %4661
      %v4663 = vsel %vm1138, %v4660, %v4662
      %v4664 = vsel %vm1138, %v4658, %v4660
      %v4665 = vsel %vm1138, %v4656, %v4658
      %v4666 = vsel %vm1138, %v4654, %v4656
      %v4667 = vsel %vm1138, %v4652, %v4654
      %v4668 = vsel %vm1138, %v4650, %v4652
      %v4669 = vsel %vm1138, %v4648, %v4650
      %v4670 = vsel %vm1138, %v4662, %v4648
      %s4671 = scalar_lea.vmem %s3, 66
      %v4672 = vld [vmem:[%s4671] ss:$8 sm:$0xf]
      %v4673 = vld [vmem:[%s4671] ss:$8 sm:$0xf0]
      %v4674 = vor.u32 %v4672, %v4673
      %v4676 = vlaneseq
      %v4677 = vshrl.u32 %v4676, 7
      %v4678 = vsub.s32 0, %v4677
      %v4679 = vrot.slane %v4674, %v4678
      %v4680 = vlaneseq
      %v4681 = vshrl.u32 %v4680, 7
      %v4682 = vsub.s32 1, %v4681
      %v4683 = vrot.slane %v4674, %v4682
      %v4684 = vlaneseq
      %v4685 = vshrl.u32 %v4684, 7
      %v4686 = vsub.s32 2, %v4685
      %v4687 = vrot.slane %v4674, %v4686
      %v4688 = vlaneseq
      %v4689 = vshrl.u32 %v4688, 7
      %v4690 = vsub.s32 3, %v4689
      %v4691 = vrot.slane %v4674, %v4690
      %v4692 = vlaneseq
      %v4693 = vshrl.u32 %v4692, 7
      %v4694 = vsub.s32 4, %v4693
      %v4695 = vrot.slane %v4674, %v4694
      %v4696 = vlaneseq
      %v4697 = vshrl.u32 %v4696, 7
      %v4698 = vsub.s32 5, %v4697
      %v4699 = vrot.slane %v4674, %v4698
      %v4700 = vlaneseq
      %v4701 = vshrl.u32 %v4700, 7
      %v4702 = vsub.s32 6, %v4701
      %v4703 = vrot.slane %v4674, %v4702
      %v4704 = vlaneseq
      %v4705 = vshrl.u32 %v4704, 7
      %v4706 = vsub.s32 7, %v4705
      %v4707 = vrot.slane %v4674, %v4706
      %v4716 = vmul.f32 %v4670, %v4679
      %v4717 = vmul.f32 %v4669, %v4683
      %v4718 = vmul.f32 %v4668, %v4687
      %v4719 = vmul.f32 %v4667, %v4691
      %v4720 = vmul.f32 %v4666, %v4695
      %v4721 = vmul.f32 %v4665, %v4699
      %v4722 = vmul.f32 %v4664, %v4703
      %v4723 = vmul.f32 %v4663, %v4707
      %v4724 = vadd.f32 %v4639, %v4716
      %v4725 = vadd.f32 %v4640, %v4717
      %v4726 = vadd.f32 %v4641, %v4718
      %v4727 = vadd.f32 %v4642, %v4719
      %v4728 = vadd.f32 %v4643, %v4720
      %v4729 = vadd.f32 %v4644, %v4721
      %v4730 = vadd.f32 %v4645, %v4722
      %v4731 = vadd.f32 %v4646, %v4723
      %4732 = vrot.lane.b32.xlu0 %v3790, 60
      %v4733 = vpop.permute.xlu0 %4732
      %4734 = vrot.lane.b32.xlu0 %v3791, 60
      %v4735 = vpop.permute.xlu0 %4734
      %4736 = vrot.lane.b32.xlu0 %v3792, 60
      %v4737 = vpop.permute.xlu0 %4736
      %4738 = vrot.lane.b32.xlu0 %v3793, 60
      %v4739 = vpop.permute.xlu0 %4738
      %4740 = vrot.lane.b32.xlu0 %v3794, 60
      %v4741 = vpop.permute.xlu0 %4740
      %4742 = vrot.lane.b32.xlu0 %v3795, 60
      %v4743 = vpop.permute.xlu0 %4742
      %4744 = vrot.lane.b32.xlu0 %v3796, 60
      %v4745 = vpop.permute.xlu0 %4744
      %4746 = vrot.lane.b32.xlu0 %v3797, 60
      %v4747 = vpop.permute.xlu0 %4746
      %v4748 = vsel %vm1224, %v4745, %v4747
      %v4749 = vsel %vm1224, %v4743, %v4745
      %v4750 = vsel %vm1224, %v4741, %v4743
      %v4751 = vsel %vm1224, %v4739, %v4741
      %v4752 = vsel %vm1224, %v4737, %v4739
      %v4753 = vsel %vm1224, %v4735, %v4737
      %v4754 = vsel %vm1224, %v4733, %v4735
      %v4755 = vsel %vm1224, %v4747, %v4733
      %s4756 = scalar_lea.vmem %s3, 67
      %v4757 = vld [vmem:[%s4756] ss:$8 sm:$0xf]
      %v4758 = vld [vmem:[%s4756] ss:$8 sm:$0xf0]
      %v4759 = vor.u32 %v4757, %v4758
      %v4761 = vlaneseq
      %v4762 = vshrl.u32 %v4761, 7
      %v4763 = vsub.s32 0, %v4762
      %v4764 = vrot.slane %v4759, %v4763
      %v4765 = vlaneseq
      %v4766 = vshrl.u32 %v4765, 7
      %v4767 = vsub.s32 1, %v4766
      %v4768 = vrot.slane %v4759, %v4767
      %v4769 = vlaneseq
      %v4770 = vshrl.u32 %v4769, 7
      %v4771 = vsub.s32 2, %v4770
      %v4772 = vrot.slane %v4759, %v4771
      %v4773 = vlaneseq
      %v4774 = vshrl.u32 %v4773, 7
      %v4775 = vsub.s32 3, %v4774
      %v4776 = vrot.slane %v4759, %v4775
      %v4777 = vlaneseq
      %v4778 = vshrl.u32 %v4777, 7
      %v4779 = vsub.s32 4, %v4778
      %v4780 = vrot.slane %v4759, %v4779
      %v4781 = vlaneseq
      %v4782 = vshrl.u32 %v4781, 7
      %v4783 = vsub.s32 5, %v4782
      %v4784 = vrot.slane %v4759, %v4783
      %v4785 = vlaneseq
      %v4786 = vshrl.u32 %v4785, 7
      %v4787 = vsub.s32 6, %v4786
      %v4788 = vrot.slane %v4759, %v4787
      %v4789 = vlaneseq
      %v4790 = vshrl.u32 %v4789, 7
      %v4791 = vsub.s32 7, %v4790
      %v4792 = vrot.slane %v4759, %v4791
      %v4801 = vmul.f32 %v4755, %v4764
      %v4802 = vmul.f32 %v4754, %v4768
      %v4803 = vmul.f32 %v4753, %v4772
      %v4804 = vmul.f32 %v4752, %v4776
      %v4805 = vmul.f32 %v4751, %v4780
      %v4806 = vmul.f32 %v4750, %v4784
      %v4807 = vmul.f32 %v4749, %v4788
      %v4808 = vmul.f32 %v4748, %v4792
      %v4809 = vadd.f32 %v4724, %v4801
      %v4810 = vadd.f32 %v4725, %v4802
      %v4811 = vadd.f32 %v4726, %v4803
      %v4812 = vadd.f32 %v4727, %v4804
      %v4813 = vadd.f32 %v4728, %v4805
      %v4814 = vadd.f32 %v4729, %v4806
      %v4815 = vadd.f32 %v4730, %v4807
      %v4816 = vadd.f32 %v4731, %v4808
      %4817 = vrot.lane.b32.xlu0 %v3790, 59
      %v4818 = vpop.permute.xlu0 %4817
      %4819 = vrot.lane.b32.xlu0 %v3791, 59
      %v4820 = vpop.permute.xlu0 %4819
      %4821 = vrot.lane.b32.xlu0 %v3792, 59
      %v4822 = vpop.permute.xlu0 %4821
      %4823 = vrot.lane.b32.xlu0 %v3793, 59
      %v4824 = vpop.permute.xlu0 %4823
      %4825 = vrot.lane.b32.xlu0 %v3794, 59
      %v4826 = vpop.permute.xlu0 %4825
      %4827 = vrot.lane.b32.xlu0 %v3795, 59
      %v4828 = vpop.permute.xlu0 %4827
      %4829 = vrot.lane.b32.xlu0 %v3796, 59
      %v4830 = vpop.permute.xlu0 %4829
      %4831 = vrot.lane.b32.xlu0 %v3797, 59
      %v4832 = vpop.permute.xlu0 %4831
      %v4833 = vsel %vm1310, %v4830, %v4832
      %v4834 = vsel %vm1310, %v4828, %v4830
      %v4835 = vsel %vm1310, %v4826, %v4828
      %v4836 = vsel %vm1310, %v4824, %v4826
      %v4837 = vsel %vm1310, %v4822, %v4824
      %v4838 = vsel %vm1310, %v4820, %v4822
      %v4839 = vsel %vm1310, %v4818, %v4820
      %v4840 = vsel %vm1310, %v4832, %v4818
      %s4841 = scalar_lea.vmem %s3, 68
      %v4842 = vld [vmem:[%s4841] ss:$8 sm:$0xf]
      %v4843 = vld [vmem:[%s4841] ss:$8 sm:$0xf0]
      %v4844 = vor.u32 %v4842, %v4843
      %v4846 = vlaneseq
      %v4847 = vshrl.u32 %v4846, 7
      %v4848 = vsub.s32 0, %v4847
      %v4849 = vrot.slane %v4844, %v4848
      %v4850 = vlaneseq
      %v4851 = vshrl.u32 %v4850, 7
      %v4852 = vsub.s32 1, %v4851
      %v4853 = vrot.slane %v4844, %v4852
      %v4854 = vlaneseq
      %v4855 = vshrl.u32 %v4854, 7
      %v4856 = vsub.s32 2, %v4855
      %v4857 = vrot.slane %v4844, %v4856
      %v4858 = vlaneseq
      %v4859 = vshrl.u32 %v4858, 7
      %v4860 = vsub.s32 3, %v4859
      %v4861 = vrot.slane %v4844, %v4860
      %v4862 = vlaneseq
      %v4863 = vshrl.u32 %v4862, 7
      %v4864 = vsub.s32 4, %v4863
      %v4865 = vrot.slane %v4844, %v4864
      %v4866 = vlaneseq
      %v4867 = vshrl.u32 %v4866, 7
      %v4868 = vsub.s32 5, %v4867
      %v4869 = vrot.slane %v4844, %v4868
      %v4870 = vlaneseq
      %v4871 = vshrl.u32 %v4870, 7
      %v4872 = vsub.s32 6, %v4871
      %v4873 = vrot.slane %v4844, %v4872
      %v4874 = vlaneseq
      %v4875 = vshrl.u32 %v4874, 7
      %v4876 = vsub.s32 7, %v4875
      %v4877 = vrot.slane %v4844, %v4876
      %v4886 = vmul.f32 %v4840, %v4849
      %v4887 = vmul.f32 %v4839, %v4853
      %v4888 = vmul.f32 %v4838, %v4857
      %v4889 = vmul.f32 %v4837, %v4861
      %v4890 = vmul.f32 %v4836, %v4865
      %v4891 = vmul.f32 %v4835, %v4869
      %v4892 = vmul.f32 %v4834, %v4873
      %v4893 = vmul.f32 %v4833, %v4877
      %v4894 = vadd.f32 %v4809, %v4886
      %v4895 = vadd.f32 %v4810, %v4887
      %v4896 = vadd.f32 %v4811, %v4888
      %v4897 = vadd.f32 %v4812, %v4889
      %v4898 = vadd.f32 %v4813, %v4890
      %v4899 = vadd.f32 %v4814, %v4891
      %v4900 = vadd.f32 %v4815, %v4892
      %v4901 = vadd.f32 %v4816, %v4893
      %4902 = vrot.lane.b32.xlu0 %v3790, 58
      %v4903 = vpop.permute.xlu0 %4902
      %4904 = vrot.lane.b32.xlu0 %v3791, 58
      %v4905 = vpop.permute.xlu0 %4904
      %4906 = vrot.lane.b32.xlu0 %v3792, 58
      %v4907 = vpop.permute.xlu0 %4906
      %4908 = vrot.lane.b32.xlu0 %v3793, 58
      %v4909 = vpop.permute.xlu0 %4908
      %4910 = vrot.lane.b32.xlu0 %v3794, 58
      %v4911 = vpop.permute.xlu0 %4910
      %4912 = vrot.lane.b32.xlu0 %v3795, 58
      %v4913 = vpop.permute.xlu0 %4912
      %4914 = vrot.lane.b32.xlu0 %v3796, 58
      %v4915 = vpop.permute.xlu0 %4914
      %4916 = vrot.lane.b32.xlu0 %v3797, 58
      %v4917 = vpop.permute.xlu0 %4916
      %v4918 = vsel %vm1396, %v4915, %v4917
      %v4919 = vsel %vm1396, %v4913, %v4915
      %v4920 = vsel %vm1396, %v4911, %v4913
      %v4921 = vsel %vm1396, %v4909, %v4911
      %v4922 = vsel %vm1396, %v4907, %v4909
      %v4923 = vsel %vm1396, %v4905, %v4907
      %v4924 = vsel %vm1396, %v4903, %v4905
      %v4925 = vsel %vm1396, %v4917, %v4903
      %s4926 = scalar_lea.vmem %s3, 69
      %v4927 = vld [vmem:[%s4926] ss:$8 sm:$0xf]
      %v4928 = vld [vmem:[%s4926] ss:$8 sm:$0xf0]
      %v4929 = vor.u32 %v4927, %v4928
      %v4931 = vlaneseq
      %v4932 = vshrl.u32 %v4931, 7
      %v4933 = vsub.s32 0, %v4932
      %v4934 = vrot.slane %v4929, %v4933
      %v4935 = vlaneseq
      %v4936 = vshrl.u32 %v4935, 7
      %v4937 = vsub.s32 1, %v4936
      %v4938 = vrot.slane %v4929, %v4937
      %v4939 = vlaneseq
      %v4940 = vshrl.u32 %v4939, 7
      %v4941 = vsub.s32 2, %v4940
      %v4942 = vrot.slane %v4929, %v4941
      %v4943 = vlaneseq
      %v4944 = vshrl.u32 %v4943, 7
      %v4945 = vsub.s32 3, %v4944
      %v4946 = vrot.slane %v4929, %v4945
      %v4947 = vlaneseq
      %v4948 = vshrl.u32 %v4947, 7
      %v4949 = vsub.s32 4, %v4948
      %v4950 = vrot.slane %v4929, %v4949
      %v4951 = vlaneseq
      %v4952 = vshrl.u32 %v4951, 7
      %v4953 = vsub.s32 5, %v4952
      %v4954 = vrot.slane %v4929, %v4953
      %v4955 = vlaneseq
      %v4956 = vshrl.u32 %v4955, 7
      %v4957 = vsub.s32 6, %v4956
      %v4958 = vrot.slane %v4929, %v4957
      %v4959 = vlaneseq
      %v4960 = vshrl.u32 %v4959, 7
      %v4961 = vsub.s32 7, %v4960
      %v4962 = vrot.slane %v4929, %v4961
      %v4971 = vmul.f32 %v4925, %v4934
      %v4972 = vmul.f32 %v4924, %v4938
      %v4973 = vmul.f32 %v4923, %v4942
      %v4974 = vmul.f32 %v4922, %v4946
      %v4975 = vmul.f32 %v4921, %v4950
      %v4976 = vmul.f32 %v4920, %v4954
      %v4977 = vmul.f32 %v4919, %v4958
      %v4978 = vmul.f32 %v4918, %v4962
      %v4979 = vadd.f32 %v4894, %v4971
      %v4980 = vadd.f32 %v4895, %v4972
      %v4981 = vadd.f32 %v4896, %v4973
      %v4982 = vadd.f32 %v4897, %v4974
      %v4983 = vadd.f32 %v4898, %v4975
      %v4984 = vadd.f32 %v4899, %v4976
      %v4985 = vadd.f32 %v4900, %v4977
      %v4986 = vadd.f32 %v4901, %v4978
      %4987 = vrot.lane.b32.xlu0 %v3790, 57
      %v4988 = vpop.permute.xlu0 %4987
      %4989 = vrot.lane.b32.xlu0 %v3791, 57
      %v4990 = vpop.permute.xlu0 %4989
      %4991 = vrot.lane.b32.xlu0 %v3792, 57
      %v4992 = vpop.permute.xlu0 %4991
      %4993 = vrot.lane.b32.xlu0 %v3793, 57
      %v4994 = vpop.permute.xlu0 %4993
      %4995 = vrot.lane.b32.xlu0 %v3794, 57
      %v4996 = vpop.permute.xlu0 %4995
      %4997 = vrot.lane.b32.xlu0 %v3795, 57
      %v4998 = vpop.permute.xlu0 %4997
      %4999 = vrot.lane.b32.xlu0 %v3796, 57
      %v5000 = vpop.permute.xlu0 %4999
      %5001 = vrot.lane.b32.xlu0 %v3797, 57
      %v5002 = vpop.permute.xlu0 %5001
      %v5003 = vsel %vm1482, %v5000, %v5002
      %v5004 = vsel %vm1482, %v4998, %v5000
      %v5005 = vsel %vm1482, %v4996, %v4998
      %v5006 = vsel %vm1482, %v4994, %v4996
      %v5007 = vsel %vm1482, %v4992, %v4994
      %v5008 = vsel %vm1482, %v4990, %v4992
      %v5009 = vsel %vm1482, %v4988, %v4990
      %v5010 = vsel %vm1482, %v5002, %v4988
      %s5011 = scalar_lea.vmem %s3, 70
      %v5012 = vld [vmem:[%s5011] ss:$8 sm:$0xf]
      %v5013 = vld [vmem:[%s5011] ss:$8 sm:$0xf0]
      %v5014 = vor.u32 %v5012, %v5013
      %v5016 = vlaneseq
      %v5017 = vshrl.u32 %v5016, 7
      %v5018 = vsub.s32 0, %v5017
      %v5019 = vrot.slane %v5014, %v5018
      %v5020 = vlaneseq
      %v5021 = vshrl.u32 %v5020, 7
      %v5022 = vsub.s32 1, %v5021
      %v5023 = vrot.slane %v5014, %v5022
      %v5024 = vlaneseq
      %v5025 = vshrl.u32 %v5024, 7
      %v5026 = vsub.s32 2, %v5025
      %v5027 = vrot.slane %v5014, %v5026
      %v5028 = vlaneseq
      %v5029 = vshrl.u32 %v5028, 7
      %v5030 = vsub.s32 3, %v5029
      %v5031 = vrot.slane %v5014, %v5030
      %v5032 = vlaneseq
      %v5033 = vshrl.u32 %v5032, 7
      %v5034 = vsub.s32 4, %v5033
      %v5035 = vrot.slane %v5014, %v5034
      %v5036 = vlaneseq
      %v5037 = vshrl.u32 %v5036, 7
      %v5038 = vsub.s32 5, %v5037
      %v5039 = vrot.slane %v5014, %v5038
      %v5040 = vlaneseq
      %v5041 = vshrl.u32 %v5040, 7
      %v5042 = vsub.s32 6, %v5041
      %v5043 = vrot.slane %v5014, %v5042
      %v5044 = vlaneseq
      %v5045 = vshrl.u32 %v5044, 7
      %v5046 = vsub.s32 7, %v5045
      %v5047 = vrot.slane %v5014, %v5046
      %v5056 = vmul.f32 %v5010, %v5019
      %v5057 = vmul.f32 %v5009, %v5023
      %v5058 = vmul.f32 %v5008, %v5027
      %v5059 = vmul.f32 %v5007, %v5031
      %v5060 = vmul.f32 %v5006, %v5035
      %v5061 = vmul.f32 %v5005, %v5039
      %v5062 = vmul.f32 %v5004, %v5043
      %v5063 = vmul.f32 %v5003, %v5047
      %v5064 = vadd.f32 %v4979, %v5056
      %v5065 = vadd.f32 %v4980, %v5057
      %v5066 = vadd.f32 %v4981, %v5058
      %v5067 = vadd.f32 %v4982, %v5059
      %v5068 = vadd.f32 %v4983, %v5060
      %v5069 = vadd.f32 %v4984, %v5061
      %v5070 = vadd.f32 %v4985, %v5062
      %v5071 = vadd.f32 %v4986, %v5063
      %5072 = vrot.lane.b32.xlu0 %v3790, 7
      %v5073 = vpop.permute.xlu0 %5072
      %5074 = vrot.lane.b32.xlu0 %v3791, 7
      %v5075 = vpop.permute.xlu0 %5074
      %5076 = vrot.lane.b32.xlu0 %v3792, 7
      %v5077 = vpop.permute.xlu0 %5076
      %5078 = vrot.lane.b32.xlu0 %v3793, 7
      %v5079 = vpop.permute.xlu0 %5078
      %5080 = vrot.lane.b32.xlu0 %v3794, 7
      %v5081 = vpop.permute.xlu0 %5080
      %5082 = vrot.lane.b32.xlu0 %v3795, 7
      %v5083 = vpop.permute.xlu0 %5082
      %5084 = vrot.lane.b32.xlu0 %v3796, 7
      %v5085 = vpop.permute.xlu0 %5084
      %5086 = vrot.lane.b32.xlu0 %v3797, 7
      %v5087 = vpop.permute.xlu0 %5086
      %v5088 = vsel %vm1568, %v5085, %v5087
      %v5089 = vsel %vm1568, %v5083, %v5085
      %v5090 = vsel %vm1568, %v5081, %v5083
      %v5091 = vsel %vm1568, %v5079, %v5081
      %v5092 = vsel %vm1568, %v5077, %v5079
      %v5093 = vsel %vm1568, %v5075, %v5077
      %v5094 = vsel %vm1568, %v5073, %v5075
      %v5095 = vsel %vm1568, %v5087, %v5073
      %s5096 = scalar_lea.vmem %s3, 71
      %v5097 = vld [vmem:[%s5096] ss:$8 sm:$0xf]
      %v5098 = vld [vmem:[%s5096] ss:$8 sm:$0xf0]
      %v5099 = vor.u32 %v5097, %v5098
      %v5101 = vlaneseq
      %v5102 = vshrl.u32 %v5101, 7
      %v5103 = vsub.s32 0, %v5102
      %v5104 = vrot.slane %v5099, %v5103
      %v5105 = vlaneseq
      %v5106 = vshrl.u32 %v5105, 7
      %v5107 = vsub.s32 1, %v5106
      %v5108 = vrot.slane %v5099, %v5107
      %v5109 = vlaneseq
      %v5110 = vshrl.u32 %v5109, 7
      %v5111 = vsub.s32 2, %v5110
      %v5112 = vrot.slane %v5099, %v5111
      %v5113 = vlaneseq
      %v5114 = vshrl.u32 %v5113, 7
      %v5115 = vsub.s32 3, %v5114
      %v5116 = vrot.slane %v5099, %v5115
      %v5117 = vlaneseq
      %v5118 = vshrl.u32 %v5117, 7
      %v5119 = vsub.s32 4, %v5118
      %v5120 = vrot.slane %v5099, %v5119
      %v5121 = vlaneseq
      %v5122 = vshrl.u32 %v5121, 7
      %v5123 = vsub.s32 5, %v5122
      %v5124 = vrot.slane %v5099, %v5123
      %v5125 = vlaneseq
      %v5126 = vshrl.u32 %v5125, 7
      %v5127 = vsub.s32 6, %v5126
      %v5128 = vrot.slane %v5099, %v5127
      %v5129 = vlaneseq
      %v5130 = vshrl.u32 %v5129, 7
      %v5131 = vsub.s32 7, %v5130
      %v5132 = vrot.slane %v5099, %v5131
      %v5141 = vmul.f32 %v5095, %v5104
      %v5142 = vmul.f32 %v5094, %v5108
      %v5143 = vmul.f32 %v5093, %v5112
      %v5144 = vmul.f32 %v5092, %v5116
      %v5145 = vmul.f32 %v5091, %v5120
      %v5146 = vmul.f32 %v5090, %v5124
      %v5147 = vmul.f32 %v5089, %v5128
      %v5148 = vmul.f32 %v5088, %v5132
      %v5149 = vadd.f32 %v5064, %v5141
      %v5150 = vadd.f32 %v5065, %v5142
      %v5151 = vadd.f32 %v5066, %v5143
      %v5152 = vadd.f32 %v5067, %v5144
      %v5153 = vadd.f32 %v5068, %v5145
      %v5154 = vadd.f32 %v5069, %v5146
      %v5155 = vadd.f32 %v5070, %v5147
      %v5156 = vadd.f32 %v5071, %v5148
      %5157 = vrot.lane.b32.xlu0 %v3790, 6
      %v5158 = vpop.permute.xlu0 %5157
      %5159 = vrot.lane.b32.xlu0 %v3791, 6
      %v5160 = vpop.permute.xlu0 %5159
      %5161 = vrot.lane.b32.xlu0 %v3792, 6
      %v5162 = vpop.permute.xlu0 %5161
      %5163 = vrot.lane.b32.xlu0 %v3793, 6
      %v5164 = vpop.permute.xlu0 %5163
      %5165 = vrot.lane.b32.xlu0 %v3794, 6
      %v5166 = vpop.permute.xlu0 %5165
      %5167 = vrot.lane.b32.xlu0 %v3795, 6
      %v5168 = vpop.permute.xlu0 %5167
      %5169 = vrot.lane.b32.xlu0 %v3796, 6
      %v5170 = vpop.permute.xlu0 %5169
      %5171 = vrot.lane.b32.xlu0 %v3797, 6
      %v5172 = vpop.permute.xlu0 %5171
      %v5173 = vsel %vm1654, %v5170, %v5172
      %v5174 = vsel %vm1654, %v5168, %v5170
      %v5175 = vsel %vm1654, %v5166, %v5168
      %v5176 = vsel %vm1654, %v5164, %v5166
      %v5177 = vsel %vm1654, %v5162, %v5164
      %v5178 = vsel %vm1654, %v5160, %v5162
      %v5179 = vsel %vm1654, %v5158, %v5160
      %v5180 = vsel %vm1654, %v5172, %v5158
      %s5181 = scalar_lea.vmem %s3, 128
      %v5182 = vld [vmem:[%s5181] ss:$8 sm:$0xf]
      %v5183 = vld [vmem:[%s5181] ss:$8 sm:$0xf0]
      %v5184 = vor.u32 %v5182, %v5183
      %v5186 = vlaneseq
      %v5187 = vshrl.u32 %v5186, 7
      %v5188 = vsub.s32 0, %v5187
      %v5189 = vrot.slane %v5184, %v5188
      %v5190 = vlaneseq
      %v5191 = vshrl.u32 %v5190, 7
      %v5192 = vsub.s32 1, %v5191
      %v5193 = vrot.slane %v5184, %v5192
      %v5194 = vlaneseq
      %v5195 = vshrl.u32 %v5194, 7
      %v5196 = vsub.s32 2, %v5195
      %v5197 = vrot.slane %v5184, %v5196
      %v5198 = vlaneseq
      %v5199 = vshrl.u32 %v5198, 7
      %v5200 = vsub.s32 3, %v5199
      %v5201 = vrot.slane %v5184, %v5200
      %v5202 = vlaneseq
      %v5203 = vshrl.u32 %v5202, 7
      %v5204 = vsub.s32 4, %v5203
      %v5205 = vrot.slane %v5184, %v5204
      %v5206 = vlaneseq
      %v5207 = vshrl.u32 %v5206, 7
      %v5208 = vsub.s32 5, %v5207
      %v5209 = vrot.slane %v5184, %v5208
      %v5210 = vlaneseq
      %v5211 = vshrl.u32 %v5210, 7
      %v5212 = vsub.s32 6, %v5211
      %v5213 = vrot.slane %v5184, %v5212
      %v5214 = vlaneseq
      %v5215 = vshrl.u32 %v5214, 7
      %v5216 = vsub.s32 7, %v5215
      %v5217 = vrot.slane %v5184, %v5216
      %v5226 = vmul.f32 %v5180, %v5189
      %v5227 = vmul.f32 %v5179, %v5193
      %v5228 = vmul.f32 %v5178, %v5197
      %v5229 = vmul.f32 %v5177, %v5201
      %v5230 = vmul.f32 %v5176, %v5205
      %v5231 = vmul.f32 %v5175, %v5209
      %v5232 = vmul.f32 %v5174, %v5213
      %v5233 = vmul.f32 %v5173, %v5217
      %v5234 = vadd.f32 %v5149, %v5226
      %v5235 = vadd.f32 %v5150, %v5227
      %v5236 = vadd.f32 %v5151, %v5228
      %v5237 = vadd.f32 %v5152, %v5229
      %v5238 = vadd.f32 %v5153, %v5230
      %v5239 = vadd.f32 %v5154, %v5231
      %v5240 = vadd.f32 %v5155, %v5232
      %v5241 = vadd.f32 %v5156, %v5233
      %5242 = vrot.lane.b32.xlu0 %v3790, 5
      %v5243 = vpop.permute.xlu0 %5242
      %5244 = vrot.lane.b32.xlu0 %v3791, 5
      %v5245 = vpop.permute.xlu0 %5244
      %5246 = vrot.lane.b32.xlu0 %v3792, 5
      %v5247 = vpop.permute.xlu0 %5246
      %5248 = vrot.lane.b32.xlu0 %v3793, 5
      %v5249 = vpop.permute.xlu0 %5248
      %5250 = vrot.lane.b32.xlu0 %v3794, 5
      %v5251 = vpop.permute.xlu0 %5250
      %5252 = vrot.lane.b32.xlu0 %v3795, 5
      %v5253 = vpop.permute.xlu0 %5252
      %5254 = vrot.lane.b32.xlu0 %v3796, 5
      %v5255 = vpop.permute.xlu0 %5254
      %5256 = vrot.lane.b32.xlu0 %v3797, 5
      %v5257 = vpop.permute.xlu0 %5256
      %v5258 = vsel %vm1740, %v5255, %v5257
      %v5259 = vsel %vm1740, %v5253, %v5255
      %v5260 = vsel %vm1740, %v5251, %v5253
      %v5261 = vsel %vm1740, %v5249, %v5251
      %v5262 = vsel %vm1740, %v5247, %v5249
      %v5263 = vsel %vm1740, %v5245, %v5247
      %v5264 = vsel %vm1740, %v5243, %v5245
      %v5265 = vsel %vm1740, %v5257, %v5243
      %s5266 = scalar_lea.vmem %s3, 129
      %v5267 = vld [vmem:[%s5266] ss:$8 sm:$0xf]
      %v5268 = vld [vmem:[%s5266] ss:$8 sm:$0xf0]
      %v5269 = vor.u32 %v5267, %v5268
      %v5271 = vlaneseq
      %v5272 = vshrl.u32 %v5271, 7
      %v5273 = vsub.s32 0, %v5272
      %v5274 = vrot.slane %v5269, %v5273
      %v5275 = vlaneseq
      %v5276 = vshrl.u32 %v5275, 7
      %v5277 = vsub.s32 1, %v5276
      %v5278 = vrot.slane %v5269, %v5277
      %v5279 = vlaneseq
      %v5280 = vshrl.u32 %v5279, 7
      %v5281 = vsub.s32 2, %v5280
      %v5282 = vrot.slane %v5269, %v5281
      %v5283 = vlaneseq
      %v5284 = vshrl.u32 %v5283, 7
      %v5285 = vsub.s32 3, %v5284
      %v5286 = vrot.slane %v5269, %v5285
      %v5287 = vlaneseq
      %v5288 = vshrl.u32 %v5287, 7
      %v5289 = vsub.s32 4, %v5288
      %v5290 = vrot.slane %v5269, %v5289
      %v5291 = vlaneseq
      %v5292 = vshrl.u32 %v5291, 7
      %v5293 = vsub.s32 5, %v5292
      %v5294 = vrot.slane %v5269, %v5293
      %v5295 = vlaneseq
      %v5296 = vshrl.u32 %v5295, 7
      %v5297 = vsub.s32 6, %v5296
      %v5298 = vrot.slane %v5269, %v5297
      %v5299 = vlaneseq
      %v5300 = vshrl.u32 %v5299, 7
      %v5301 = vsub.s32 7, %v5300
      %v5302 = vrot.slane %v5269, %v5301
      %v5311 = vmul.f32 %v5265, %v5274
      %v5312 = vmul.f32 %v5264, %v5278
      %v5313 = vmul.f32 %v5263, %v5282
      %v5314 = vmul.f32 %v5262, %v5286
      %v5315 = vmul.f32 %v5261, %v5290
      %v5316 = vmul.f32 %v5260, %v5294
      %v5317 = vmul.f32 %v5259, %v5298
      %v5318 = vmul.f32 %v5258, %v5302
      %v5319 = vadd.f32 %v5234, %v5311
      %v5320 = vadd.f32 %v5235, %v5312
      %v5321 = vadd.f32 %v5236, %v5313
      %v5322 = vadd.f32 %v5237, %v5314
      %v5323 = vadd.f32 %v5238, %v5315
      %v5324 = vadd.f32 %v5239, %v5316
      %v5325 = vadd.f32 %v5240, %v5317
      %v5326 = vadd.f32 %v5241, %v5318
      %5327 = vrot.lane.b32.xlu0 %v3790, 4
      %v5328 = vpop.permute.xlu0 %5327
      %5329 = vrot.lane.b32.xlu0 %v3791, 4
      %v5330 = vpop.permute.xlu0 %5329
      %5331 = vrot.lane.b32.xlu0 %v3792, 4
      %v5332 = vpop.permute.xlu0 %5331
      %5333 = vrot.lane.b32.xlu0 %v3793, 4
      %v5334 = vpop.permute.xlu0 %5333
      %5335 = vrot.lane.b32.xlu0 %v3794, 4
      %v5336 = vpop.permute.xlu0 %5335
      %5337 = vrot.lane.b32.xlu0 %v3795, 4
      %v5338 = vpop.permute.xlu0 %5337
      %5339 = vrot.lane.b32.xlu0 %v3796, 4
      %v5340 = vpop.permute.xlu0 %5339
      %5341 = vrot.lane.b32.xlu0 %v3797, 4
      %v5342 = vpop.permute.xlu0 %5341
      %v5343 = vsel %vm1826, %v5340, %v5342
      %v5344 = vsel %vm1826, %v5338, %v5340
      %v5345 = vsel %vm1826, %v5336, %v5338
      %v5346 = vsel %vm1826, %v5334, %v5336
      %v5347 = vsel %vm1826, %v5332, %v5334
      %v5348 = vsel %vm1826, %v5330, %v5332
      %v5349 = vsel %vm1826, %v5328, %v5330
      %v5350 = vsel %vm1826, %v5342, %v5328
      %s5351 = scalar_lea.vmem %s3, 130
      %v5352 = vld [vmem:[%s5351] ss:$8 sm:$0xf]
      %v5353 = vld [vmem:[%s5351] ss:$8 sm:$0xf0]
      %v5354 = vor.u32 %v5352, %v5353
      %v5356 = vlaneseq
      %v5357 = vshrl.u32 %v5356, 7
      %v5358 = vsub.s32 0, %v5357
      %v5359 = vrot.slane %v5354, %v5358
      %v5360 = vlaneseq
      %v5361 = vshrl.u32 %v5360, 7
      %v5362 = vsub.s32 1, %v5361
      %v5363 = vrot.slane %v5354, %v5362
      %v5364 = vlaneseq
      %v5365 = vshrl.u32 %v5364, 7
      %v5366 = vsub.s32 2, %v5365
      %v5367 = vrot.slane %v5354, %v5366
      %v5368 = vlaneseq
      %v5369 = vshrl.u32 %v5368, 7
      %v5370 = vsub.s32 3, %v5369
      %v5371 = vrot.slane %v5354, %v5370
      %v5372 = vlaneseq
      %v5373 = vshrl.u32 %v5372, 7
      %v5374 = vsub.s32 4, %v5373
      %v5375 = vrot.slane %v5354, %v5374
      %v5376 = vlaneseq
      %v5377 = vshrl.u32 %v5376, 7
      %v5378 = vsub.s32 5, %v5377
      %v5379 = vrot.slane %v5354, %v5378
      %v5380 = vlaneseq
      %v5381 = vshrl.u32 %v5380, 7
      %v5382 = vsub.s32 6, %v5381
      %v5383 = vrot.slane %v5354, %v5382
      %v5384 = vlaneseq
      %v5385 = vshrl.u32 %v5384, 7
      %v5386 = vsub.s32 7, %v5385
      %v5387 = vrot.slane %v5354, %v5386
      %v5396 = vmul.f32 %v5350, %v5359
      %v5397 = vmul.f32 %v5349, %v5363
      %v5398 = vmul.f32 %v5348, %v5367
      %v5399 = vmul.f32 %v5347, %v5371
      %v5400 = vmul.f32 %v5346, %v5375
      %v5401 = vmul.f32 %v5345, %v5379
      %v5402 = vmul.f32 %v5344, %v5383
      %v5403 = vmul.f32 %v5343, %v5387
      %v5404 = vadd.f32 %v5319, %v5396
      %v5405 = vadd.f32 %v5320, %v5397
      %v5406 = vadd.f32 %v5321, %v5398
      %v5407 = vadd.f32 %v5322, %v5399
      %v5408 = vadd.f32 %v5323, %v5400
      %v5409 = vadd.f32 %v5324, %v5401
      %v5410 = vadd.f32 %v5325, %v5402
      %v5411 = vadd.f32 %v5326, %v5403
      %5412 = vrot.lane.b32.xlu0 %v3790, 3
      %v5413 = vpop.permute.xlu0 %5412
      %5414 = vrot.lane.b32.xlu0 %v3791, 3
      %v5415 = vpop.permute.xlu0 %5414
      %5416 = vrot.lane.b32.xlu0 %v3792, 3
      %v5417 = vpop.permute.xlu0 %5416
      %5418 = vrot.lane.b32.xlu0 %v3793, 3
      %v5419 = vpop.permute.xlu0 %5418
      %5420 = vrot.lane.b32.xlu0 %v3794, 3
      %v5421 = vpop.permute.xlu0 %5420
      %5422 = vrot.lane.b32.xlu0 %v3795, 3
      %v5423 = vpop.permute.xlu0 %5422
      %5424 = vrot.lane.b32.xlu0 %v3796, 3
      %v5425 = vpop.permute.xlu0 %5424
      %5426 = vrot.lane.b32.xlu0 %v3797, 3
      %v5427 = vpop.permute.xlu0 %5426
      %v5428 = vsel %vm1912, %v5425, %v5427
      %v5429 = vsel %vm1912, %v5423, %v5425
      %v5430 = vsel %vm1912, %v5421, %v5423
      %v5431 = vsel %vm1912, %v5419, %v5421
      %v5432 = vsel %vm1912, %v5417, %v5419
      %v5433 = vsel %vm1912, %v5415, %v5417
      %v5434 = vsel %vm1912, %v5413, %v5415
      %v5435 = vsel %vm1912, %v5427, %v5413
      %s5436 = scalar_lea.vmem %s3, 131
      %v5437 = vld [vmem:[%s5436] ss:$8 sm:$0xf]
      %v5438 = vld [vmem:[%s5436] ss:$8 sm:$0xf0]
      %v5439 = vor.u32 %v5437, %v5438
      %v5441 = vlaneseq
      %v5442 = vshrl.u32 %v5441, 7
      %v5443 = vsub.s32 0, %v5442
      %v5444 = vrot.slane %v5439, %v5443
      %v5445 = vlaneseq
      %v5446 = vshrl.u32 %v5445, 7
      %v5447 = vsub.s32 1, %v5446
      %v5448 = vrot.slane %v5439, %v5447
      %v5449 = vlaneseq
      %v5450 = vshrl.u32 %v5449, 7
      %v5451 = vsub.s32 2, %v5450
      %v5452 = vrot.slane %v5439, %v5451
      %v5453 = vlaneseq
      %v5454 = vshrl.u32 %v5453, 7
      %v5455 = vsub.s32 3, %v5454
      %v5456 = vrot.slane %v5439, %v5455
      %v5457 = vlaneseq
      %v5458 = vshrl.u32 %v5457, 7
      %v5459 = vsub.s32 4, %v5458
      %v5460 = vrot.slane %v5439, %v5459
      %v5461 = vlaneseq
      %v5462 = vshrl.u32 %v5461, 7
      %v5463 = vsub.s32 5, %v5462
      %v5464 = vrot.slane %v5439, %v5463
      %v5465 = vlaneseq
      %v5466 = vshrl.u32 %v5465, 7
      %v5467 = vsub.s32 6, %v5466
      %v5468 = vrot.slane %v5439, %v5467
      %v5469 = vlaneseq
      %v5470 = vshrl.u32 %v5469, 7
      %v5471 = vsub.s32 7, %v5470
      %v5472 = vrot.slane %v5439, %v5471
      %v5481 = vmul.f32 %v5435, %v5444
      %v5482 = vmul.f32 %v5434, %v5448
      %v5483 = vmul.f32 %v5433, %v5452
      %v5484 = vmul.f32 %v5432, %v5456
      %v5485 = vmul.f32 %v5431, %v5460
      %v5486 = vmul.f32 %v5430, %v5464
      %v5487 = vmul.f32 %v5429, %v5468
      %v5488 = vmul.f32 %v5428, %v5472
      %v5489 = vadd.f32 %v5404, %v5481
      %v5490 = vadd.f32 %v5405, %v5482
      %v5491 = vadd.f32 %v5406, %v5483
      %v5492 = vadd.f32 %v5407, %v5484
      %v5493 = vadd.f32 %v5408, %v5485
      %v5494 = vadd.f32 %v5409, %v5486
      %v5495 = vadd.f32 %v5410, %v5487
      %v5496 = vadd.f32 %v5411, %v5488
      %5497 = vrot.lane.b32.xlu0 %v3790, 2
      %v5498 = vpop.permute.xlu0 %5497
      %5499 = vrot.lane.b32.xlu0 %v3791, 2
      %v5500 = vpop.permute.xlu0 %5499
      %5501 = vrot.lane.b32.xlu0 %v3792, 2
      %v5502 = vpop.permute.xlu0 %5501
      %5503 = vrot.lane.b32.xlu0 %v3793, 2
      %v5504 = vpop.permute.xlu0 %5503
      %5505 = vrot.lane.b32.xlu0 %v3794, 2
      %v5506 = vpop.permute.xlu0 %5505
      %5507 = vrot.lane.b32.xlu0 %v3795, 2
      %v5508 = vpop.permute.xlu0 %5507
      %5509 = vrot.lane.b32.xlu0 %v3796, 2
      %v5510 = vpop.permute.xlu0 %5509
      %5511 = vrot.lane.b32.xlu0 %v3797, 2
      %v5512 = vpop.permute.xlu0 %5511
      %v5513 = vsel %vm1998, %v5510, %v5512
      %v5514 = vsel %vm1998, %v5508, %v5510
      %v5515 = vsel %vm1998, %v5506, %v5508
      %v5516 = vsel %vm1998, %v5504, %v5506
      %v5517 = vsel %vm1998, %v5502, %v5504
      %v5518 = vsel %vm1998, %v5500, %v5502
      %v5519 = vsel %vm1998, %v5498, %v5500
      %v5520 = vsel %vm1998, %v5512, %v5498
      %s5521 = scalar_lea.vmem %s3, 132
      %v5522 = vld [vmem:[%s5521] ss:$8 sm:$0xf]
      %v5523 = vld [vmem:[%s5521] ss:$8 sm:$0xf0]
      %v5524 = vor.u32 %v5522, %v5523
      %v5526 = vlaneseq
      %v5527 = vshrl.u32 %v5526, 7
      %v5528 = vsub.s32 0, %v5527
      %v5529 = vrot.slane %v5524, %v5528
      %v5530 = vlaneseq
      %v5531 = vshrl.u32 %v5530, 7
      %v5532 = vsub.s32 1, %v5531
      %v5533 = vrot.slane %v5524, %v5532
      %v5534 = vlaneseq
      %v5535 = vshrl.u32 %v5534, 7
      %v5536 = vsub.s32 2, %v5535
      %v5537 = vrot.slane %v5524, %v5536
      %v5538 = vlaneseq
      %v5539 = vshrl.u32 %v5538, 7
      %v5540 = vsub.s32 3, %v5539
      %v5541 = vrot.slane %v5524, %v5540
      %v5542 = vlaneseq
      %v5543 = vshrl.u32 %v5542, 7
      %v5544 = vsub.s32 4, %v5543
      %v5545 = vrot.slane %v5524, %v5544
      %v5546 = vlaneseq
      %v5547 = vshrl.u32 %v5546, 7
      %v5548 = vsub.s32 5, %v5547
      %v5549 = vrot.slane %v5524, %v5548
      %v5550 = vlaneseq
      %v5551 = vshrl.u32 %v5550, 7
      %v5552 = vsub.s32 6, %v5551
      %v5553 = vrot.slane %v5524, %v5552
      %v5554 = vlaneseq
      %v5555 = vshrl.u32 %v5554, 7
      %v5556 = vsub.s32 7, %v5555
      %v5557 = vrot.slane %v5524, %v5556
      %v5566 = vmul.f32 %v5520, %v5529
      %v5567 = vmul.f32 %v5519, %v5533
      %v5568 = vmul.f32 %v5518, %v5537
      %v5569 = vmul.f32 %v5517, %v5541
      %v5570 = vmul.f32 %v5516, %v5545
      %v5571 = vmul.f32 %v5515, %v5549
      %v5572 = vmul.f32 %v5514, %v5553
      %v5573 = vmul.f32 %v5513, %v5557
      %v5574 = vadd.f32 %v5489, %v5566
      %v5575 = vadd.f32 %v5490, %v5567
      %v5576 = vadd.f32 %v5491, %v5568
      %v5577 = vadd.f32 %v5492, %v5569
      %v5578 = vadd.f32 %v5493, %v5570
      %v5579 = vadd.f32 %v5494, %v5571
      %v5580 = vadd.f32 %v5495, %v5572
      %v5581 = vadd.f32 %v5496, %v5573
      %5582 = vrot.lane.b32.xlu0 %v3790, 1
      %v5583 = vpop.permute.xlu0 %5582
      %5584 = vrot.lane.b32.xlu0 %v3791, 1
      %v5585 = vpop.permute.xlu0 %5584
      %5586 = vrot.lane.b32.xlu0 %v3792, 1
      %v5587 = vpop.permute.xlu0 %5586
      %5588 = vrot.lane.b32.xlu0 %v3793, 1
      %v5589 = vpop.permute.xlu0 %5588
      %5590 = vrot.lane.b32.xlu0 %v3794, 1
      %v5591 = vpop.permute.xlu0 %5590
      %5592 = vrot.lane.b32.xlu0 %v3795, 1
      %v5593 = vpop.permute.xlu0 %5592
      %5594 = vrot.lane.b32.xlu0 %v3796, 1
      %v5595 = vpop.permute.xlu0 %5594
      %5596 = vrot.lane.b32.xlu0 %v3797, 1
      %v5597 = vpop.permute.xlu0 %5596
      %v5598 = vsel %vm2084, %v5595, %v5597
      %v5599 = vsel %vm2084, %v5593, %v5595
      %v5600 = vsel %vm2084, %v5591, %v5593
      %v5601 = vsel %vm2084, %v5589, %v5591
      %v5602 = vsel %vm2084, %v5587, %v5589
      %v5603 = vsel %vm2084, %v5585, %v5587
      %v5604 = vsel %vm2084, %v5583, %v5585
      %v5605 = vsel %vm2084, %v5597, %v5583
      %s5606 = scalar_lea.vmem %s3, 133
      %v5607 = vld [vmem:[%s5606] ss:$8 sm:$0xf]
      %v5608 = vld [vmem:[%s5606] ss:$8 sm:$0xf0]
      %v5609 = vor.u32 %v5607, %v5608
      %v5611 = vlaneseq
      %v5612 = vshrl.u32 %v5611, 7
      %v5613 = vsub.s32 0, %v5612
      %v5614 = vrot.slane %v5609, %v5613
      %v5615 = vlaneseq
      %v5616 = vshrl.u32 %v5615, 7
      %v5617 = vsub.s32 1, %v5616
      %v5618 = vrot.slane %v5609, %v5617
      %v5619 = vlaneseq
      %v5620 = vshrl.u32 %v5619, 7
      %v5621 = vsub.s32 2, %v5620
      %v5622 = vrot.slane %v5609, %v5621
      %v5623 = vlaneseq
      %v5624 = vshrl.u32 %v5623, 7
      %v5625 = vsub.s32 3, %v5624
      %v5626 = vrot.slane %v5609, %v5625
      %v5627 = vlaneseq
      %v5628 = vshrl.u32 %v5627, 7
      %v5629 = vsub.s32 4, %v5628
      %v5630 = vrot.slane %v5609, %v5629
      %v5631 = vlaneseq
      %v5632 = vshrl.u32 %v5631, 7
      %v5633 = vsub.s32 5, %v5632
      %v5634 = vrot.slane %v5609, %v5633
      %v5635 = vlaneseq
      %v5636 = vshrl.u32 %v5635, 7
      %v5637 = vsub.s32 6, %v5636
      %v5638 = vrot.slane %v5609, %v5637
      %v5639 = vlaneseq
      %v5640 = vshrl.u32 %v5639, 7
      %v5641 = vsub.s32 7, %v5640
      %v5642 = vrot.slane %v5609, %v5641
      %v5651 = vmul.f32 %v5605, %v5614
      %v5652 = vmul.f32 %v5604, %v5618
      %v5653 = vmul.f32 %v5603, %v5622
      %v5654 = vmul.f32 %v5602, %v5626
      %v5655 = vmul.f32 %v5601, %v5630
      %v5656 = vmul.f32 %v5600, %v5634
      %v5657 = vmul.f32 %v5599, %v5638
      %v5658 = vmul.f32 %v5598, %v5642
      %v5659 = vadd.f32 %v5574, %v5651
      %v5660 = vadd.f32 %v5575, %v5652
      %v5661 = vadd.f32 %v5576, %v5653
      %v5662 = vadd.f32 %v5577, %v5654
      %v5663 = vadd.f32 %v5578, %v5655
      %v5664 = vadd.f32 %v5579, %v5656
      %v5665 = vadd.f32 %v5580, %v5657
      %v5666 = vadd.f32 %v5581, %v5658
      %s5667 = scalar_lea.vmem %s3, 134
      %v5668 = vld [vmem:[%s5667] ss:$8 sm:$0xf]
      %v5669 = vld [vmem:[%s5667] ss:$8 sm:$0xf0]
      %v5670 = vor.u32 %v5668, %v5669
      %v5672 = vlaneseq
      %v5673 = vshrl.u32 %v5672, 7
      %v5674 = vsub.s32 0, %v5673
      %v5675 = vrot.slane %v5670, %v5674
      %v5676 = vlaneseq
      %v5677 = vshrl.u32 %v5676, 7
      %v5678 = vsub.s32 1, %v5677
      %v5679 = vrot.slane %v5670, %v5678
      %v5680 = vlaneseq
      %v5681 = vshrl.u32 %v5680, 7
      %v5682 = vsub.s32 2, %v5681
      %v5683 = vrot.slane %v5670, %v5682
      %v5684 = vlaneseq
      %v5685 = vshrl.u32 %v5684, 7
      %v5686 = vsub.s32 3, %v5685
      %v5687 = vrot.slane %v5670, %v5686
      %v5688 = vlaneseq
      %v5689 = vshrl.u32 %v5688, 7
      %v5690 = vsub.s32 4, %v5689
      %v5691 = vrot.slane %v5670, %v5690
      %v5692 = vlaneseq
      %v5693 = vshrl.u32 %v5692, 7
      %v5694 = vsub.s32 5, %v5693
      %v5695 = vrot.slane %v5670, %v5694
      %v5696 = vlaneseq
      %v5697 = vshrl.u32 %v5696, 7
      %v5698 = vsub.s32 6, %v5697
      %v5699 = vrot.slane %v5670, %v5698
      %v5700 = vlaneseq
      %v5701 = vshrl.u32 %v5700, 7
      %v5702 = vsub.s32 7, %v5701
      %v5703 = vrot.slane %v5670, %v5702
      %v5712 = vmul.f32 %v3790, %v5675
      %v5713 = vmul.f32 %v3791, %v5679
      %v5714 = vmul.f32 %v3792, %v5683
      %v5715 = vmul.f32 %v3793, %v5687
      %v5716 = vmul.f32 %v3794, %v5691
      %v5717 = vmul.f32 %v3795, %v5695
      %v5718 = vmul.f32 %v3796, %v5699
      %v5719 = vmul.f32 %v3797, %v5703
      %v5720 = vadd.f32 %v5659, %v5712
      %v5721 = vadd.f32 %v5660, %v5713
      %v5722 = vadd.f32 %v5661, %v5714
      %v5723 = vadd.f32 %v5662, %v5715
      %v5724 = vadd.f32 %v5663, %v5716
      %v5725 = vadd.f32 %v5664, %v5717
      %v5726 = vadd.f32 %v5665, %v5718
      %v5727 = vadd.f32 %v5666, %v5719
      %5728 = vrot.lane.b32.xlu0 %v3790, 127
      %v5729 = vpop.permute.xlu0 %5728
      %5730 = vrot.lane.b32.xlu0 %v3791, 127
      %v5731 = vpop.permute.xlu0 %5730
      %5732 = vrot.lane.b32.xlu0 %v3792, 127
      %v5733 = vpop.permute.xlu0 %5732
      %5734 = vrot.lane.b32.xlu0 %v3793, 127
      %v5735 = vpop.permute.xlu0 %5734
      %5736 = vrot.lane.b32.xlu0 %v3794, 127
      %v5737 = vpop.permute.xlu0 %5736
      %5738 = vrot.lane.b32.xlu0 %v3795, 127
      %v5739 = vpop.permute.xlu0 %5738
      %5740 = vrot.lane.b32.xlu0 %v3796, 127
      %v5741 = vpop.permute.xlu0 %5740
      %5742 = vrot.lane.b32.xlu0 %v3797, 127
      %v5743 = vpop.permute.xlu0 %5742
      %v5744 = vsel %vm2231, %v5741, %v5743
      %v5745 = vsel %vm2231, %v5739, %v5741
      %v5746 = vsel %vm2231, %v5737, %v5739
      %v5747 = vsel %vm2231, %v5735, %v5737
      %v5748 = vsel %vm2231, %v5733, %v5735
      %v5749 = vsel %vm2231, %v5731, %v5733
      %v5750 = vsel %vm2231, %v5729, %v5731
      %v5751 = vsel %vm2231, %v5743, %v5729
      %s5752 = scalar_lea.vmem %s3, 135
      %v5753 = vld [vmem:[%s5752] ss:$8 sm:$0xf]
      %v5754 = vld [vmem:[%s5752] ss:$8 sm:$0xf0]
      %v5755 = vor.u32 %v5753, %v5754
      %v5757 = vlaneseq
      %v5758 = vshrl.u32 %v5757, 7
      %v5759 = vsub.s32 0, %v5758
      %v5760 = vrot.slane %v5755, %v5759
      %v5761 = vlaneseq
      %v5762 = vshrl.u32 %v5761, 7
      %v5763 = vsub.s32 1, %v5762
      %v5764 = vrot.slane %v5755, %v5763
      %v5765 = vlaneseq
      %v5766 = vshrl.u32 %v5765, 7
      %v5767 = vsub.s32 2, %v5766
      %v5768 = vrot.slane %v5755, %v5767
      %v5769 = vlaneseq
      %v5770 = vshrl.u32 %v5769, 7
      %v5771 = vsub.s32 3, %v5770
      %v5772 = vrot.slane %v5755, %v5771
      %v5773 = vlaneseq
      %v5774 = vshrl.u32 %v5773, 7
      %v5775 = vsub.s32 4, %v5774
      %v5776 = vrot.slane %v5755, %v5775
      %v5777 = vlaneseq
      %v5778 = vshrl.u32 %v5777, 7
      %v5779 = vsub.s32 5, %v5778
      %v5780 = vrot.slane %v5755, %v5779
      %v5781 = vlaneseq
      %v5782 = vshrl.u32 %v5781, 7
      %v5783 = vsub.s32 6, %v5782
      %v5784 = vrot.slane %v5755, %v5783
      %v5785 = vlaneseq
      %v5786 = vshrl.u32 %v5785, 7
      %v5787 = vsub.s32 7, %v5786
      %v5788 = vrot.slane %v5755, %v5787
      %v5797 = vmul.f32 %v5750, %v5760
      %v5798 = vmul.f32 %v5749, %v5764
      %v5799 = vmul.f32 %v5748, %v5768
      %v5800 = vmul.f32 %v5747, %v5772
      %v5801 = vmul.f32 %v5746, %v5776
      %v5802 = vmul.f32 %v5745, %v5780
      %v5803 = vmul.f32 %v5744, %v5784
      %v5804 = vmul.f32 %v5751, %v5788
      %v5805 = vadd.f32 %v5720, %v5797
      %v5806 = vadd.f32 %v5721, %v5798
      %v5807 = vadd.f32 %v5722, %v5799
      %v5808 = vadd.f32 %v5723, %v5800
      %v5809 = vadd.f32 %v5724, %v5801
      %v5810 = vadd.f32 %v5725, %v5802
      %v5811 = vadd.f32 %v5726, %v5803
      %v5812 = vadd.f32 %v5727, %v5804
      %5813 = vrot.lane.b32.xlu0 %v3790, 126
      %v5814 = vpop.permute.xlu0 %5813
      %5815 = vrot.lane.b32.xlu0 %v3791, 126
      %v5816 = vpop.permute.xlu0 %5815
      %5817 = vrot.lane.b32.xlu0 %v3792, 126
      %v5818 = vpop.permute.xlu0 %5817
      %5819 = vrot.lane.b32.xlu0 %v3793, 126
      %v5820 = vpop.permute.xlu0 %5819
      %5821 = vrot.lane.b32.xlu0 %v3794, 126
      %v5822 = vpop.permute.xlu0 %5821
      %5823 = vrot.lane.b32.xlu0 %v3795, 126
      %v5824 = vpop.permute.xlu0 %5823
      %5825 = vrot.lane.b32.xlu0 %v3796, 126
      %v5826 = vpop.permute.xlu0 %5825
      %5827 = vrot.lane.b32.xlu0 %v3797, 126
      %v5828 = vpop.permute.xlu0 %5827
      %v5829 = vsel %vm2317, %v5826, %v5828
      %v5830 = vsel %vm2317, %v5824, %v5826
      %v5831 = vsel %vm2317, %v5822, %v5824
      %v5832 = vsel %vm2317, %v5820, %v5822
      %v5833 = vsel %vm2317, %v5818, %v5820
      %v5834 = vsel %vm2317, %v5816, %v5818
      %v5835 = vsel %vm2317, %v5814, %v5816
      %v5836 = vsel %vm2317, %v5828, %v5814
      %s5837 = scalar_lea.vmem %s3, 192
      %v5838 = vld [vmem:[%s5837] ss:$8 sm:$0xf]
      %v5839 = vld [vmem:[%s5837] ss:$8 sm:$0xf0]
      %v5840 = vor.u32 %v5838, %v5839
      %v5842 = vlaneseq
      %v5843 = vshrl.u32 %v5842, 7
      %v5844 = vsub.s32 0, %v5843
      %v5845 = vrot.slane %v5840, %v5844
      %v5846 = vlaneseq
      %v5847 = vshrl.u32 %v5846, 7
      %v5848 = vsub.s32 1, %v5847
      %v5849 = vrot.slane %v5840, %v5848
      %v5850 = vlaneseq
      %v5851 = vshrl.u32 %v5850, 7
      %v5852 = vsub.s32 2, %v5851
      %v5853 = vrot.slane %v5840, %v5852
      %v5854 = vlaneseq
      %v5855 = vshrl.u32 %v5854, 7
      %v5856 = vsub.s32 3, %v5855
      %v5857 = vrot.slane %v5840, %v5856
      %v5858 = vlaneseq
      %v5859 = vshrl.u32 %v5858, 7
      %v5860 = vsub.s32 4, %v5859
      %v5861 = vrot.slane %v5840, %v5860
      %v5862 = vlaneseq
      %v5863 = vshrl.u32 %v5862, 7
      %v5864 = vsub.s32 5, %v5863
      %v5865 = vrot.slane %v5840, %v5864
      %v5866 = vlaneseq
      %v5867 = vshrl.u32 %v5866, 7
      %v5868 = vsub.s32 6, %v5867
      %v5869 = vrot.slane %v5840, %v5868
      %v5870 = vlaneseq
      %v5871 = vshrl.u32 %v5870, 7
      %v5872 = vsub.s32 7, %v5871
      %v5873 = vrot.slane %v5840, %v5872
      %v5882 = vmul.f32 %v5835, %v5845
      %v5883 = vmul.f32 %v5834, %v5849
      %v5884 = vmul.f32 %v5833, %v5853
      %v5885 = vmul.f32 %v5832, %v5857
      %v5886 = vmul.f32 %v5831, %v5861
      %v5887 = vmul.f32 %v5830, %v5865
      %v5888 = vmul.f32 %v5829, %v5869
      %v5889 = vmul.f32 %v5836, %v5873
      %v5890 = vadd.f32 %v5805, %v5882
      %v5891 = vadd.f32 %v5806, %v5883
      %v5892 = vadd.f32 %v5807, %v5884
      %v5893 = vadd.f32 %v5808, %v5885
      %v5894 = vadd.f32 %v5809, %v5886
      %v5895 = vadd.f32 %v5810, %v5887
      %v5896 = vadd.f32 %v5811, %v5888
      %v5897 = vadd.f32 %v5812, %v5889
      %5898 = vrot.lane.b32.xlu0 %v3790, 125
      %v5899 = vpop.permute.xlu0 %5898
      %5900 = vrot.lane.b32.xlu0 %v3791, 125
      %v5901 = vpop.permute.xlu0 %5900
      %5902 = vrot.lane.b32.xlu0 %v3792, 125
      %v5903 = vpop.permute.xlu0 %5902
      %5904 = vrot.lane.b32.xlu0 %v3793, 125
      %v5905 = vpop.permute.xlu0 %5904
      %5906 = vrot.lane.b32.xlu0 %v3794, 125
      %v5907 = vpop.permute.xlu0 %5906
      %5908 = vrot.lane.b32.xlu0 %v3795, 125
      %v5909 = vpop.permute.xlu0 %5908
      %5910 = vrot.lane.b32.xlu0 %v3796, 125
      %v5911 = vpop.permute.xlu0 %5910
      %5912 = vrot.lane.b32.xlu0 %v3797, 125
      %v5913 = vpop.permute.xlu0 %5912
      %v5914 = vsel %vm2403, %v5911, %v5913
      %v5915 = vsel %vm2403, %v5909, %v5911
      %v5916 = vsel %vm2403, %v5907, %v5909
      %v5917 = vsel %vm2403, %v5905, %v5907
      %v5918 = vsel %vm2403, %v5903, %v5905
      %v5919 = vsel %vm2403, %v5901, %v5903
      %v5920 = vsel %vm2403, %v5899, %v5901
      %v5921 = vsel %vm2403, %v5913, %v5899
      %s5922 = scalar_lea.vmem %s3, 193
      %v5923 = vld [vmem:[%s5922] ss:$8 sm:$0xf]
      %v5924 = vld [vmem:[%s5922] ss:$8 sm:$0xf0]
      %v5925 = vor.u32 %v5923, %v5924
      %v5927 = vlaneseq
      %v5928 = vshrl.u32 %v5927, 7
      %v5929 = vsub.s32 0, %v5928
      %v5930 = vrot.slane %v5925, %v5929
      %v5931 = vlaneseq
      %v5932 = vshrl.u32 %v5931, 7
      %v5933 = vsub.s32 1, %v5932
      %v5934 = vrot.slane %v5925, %v5933
      %v5935 = vlaneseq
      %v5936 = vshrl.u32 %v5935, 7
      %v5937 = vsub.s32 2, %v5936
      %v5938 = vrot.slane %v5925, %v5937
      %v5939 = vlaneseq
      %v5940 = vshrl.u32 %v5939, 7
      %v5941 = vsub.s32 3, %v5940
      %v5942 = vrot.slane %v5925, %v5941
      %v5943 = vlaneseq
      %v5944 = vshrl.u32 %v5943, 7
      %v5945 = vsub.s32 4, %v5944
      %v5946 = vrot.slane %v5925, %v5945
      %v5947 = vlaneseq
      %v5948 = vshrl.u32 %v5947, 7
      %v5949 = vsub.s32 5, %v5948
      %v5950 = vrot.slane %v5925, %v5949
      %v5951 = vlaneseq
      %v5952 = vshrl.u32 %v5951, 7
      %v5953 = vsub.s32 6, %v5952
      %v5954 = vrot.slane %v5925, %v5953
      %v5955 = vlaneseq
      %v5956 = vshrl.u32 %v5955, 7
      %v5957 = vsub.s32 7, %v5956
      %v5958 = vrot.slane %v5925, %v5957
      %v5967 = vmul.f32 %v5920, %v5930
      %v5968 = vmul.f32 %v5919, %v5934
      %v5969 = vmul.f32 %v5918, %v5938
      %v5970 = vmul.f32 %v5917, %v5942
      %v5971 = vmul.f32 %v5916, %v5946
      %v5972 = vmul.f32 %v5915, %v5950
      %v5973 = vmul.f32 %v5914, %v5954
      %v5974 = vmul.f32 %v5921, %v5958
      %v5975 = vadd.f32 %v5890, %v5967
      %v5976 = vadd.f32 %v5891, %v5968
      %v5977 = vadd.f32 %v5892, %v5969
      %v5978 = vadd.f32 %v5893, %v5970
      %v5979 = vadd.f32 %v5894, %v5971
      %v5980 = vadd.f32 %v5895, %v5972
      %v5981 = vadd.f32 %v5896, %v5973
      %v5982 = vadd.f32 %v5897, %v5974
      %5983 = vrot.lane.b32.xlu0 %v3790, 124
      %v5984 = vpop.permute.xlu0 %5983
      %5985 = vrot.lane.b32.xlu0 %v3791, 124
      %v5986 = vpop.permute.xlu0 %5985
      %5987 = vrot.lane.b32.xlu0 %v3792, 124
      %v5988 = vpop.permute.xlu0 %5987
      %5989 = vrot.lane.b32.xlu0 %v3793, 124
      %v5990 = vpop.permute.xlu0 %5989
      %5991 = vrot.lane.b32.xlu0 %v3794, 124
      %v5992 = vpop.permute.xlu0 %5991
      %5993 = vrot.lane.b32.xlu0 %v3795, 124
      %v5994 = vpop.permute.xlu0 %5993
      %5995 = vrot.lane.b32.xlu0 %v3796, 124
      %v5996 = vpop.permute.xlu0 %5995
      %5997 = vrot.lane.b32.xlu0 %v3797, 124
      %v5998 = vpop.permute.xlu0 %5997
      %v5999 = vsel %vm2489, %v5996, %v5998
      %v6000 = vsel %vm2489, %v5994, %v5996
      %v6001 = vsel %vm2489, %v5992, %v5994
      %v6002 = vsel %vm2489, %v5990, %v5992
      %v6003 = vsel %vm2489, %v5988, %v5990
      %v6004 = vsel %vm2489, %v5986, %v5988
      %v6005 = vsel %vm2489, %v5984, %v5986
      %v6006 = vsel %vm2489, %v5998, %v5984
      %s6007 = scalar_lea.vmem %s3, 194
      %v6008 = vld [vmem:[%s6007] ss:$8 sm:$0xf]
      %v6009 = vld [vmem:[%s6007] ss:$8 sm:$0xf0]
      %v6010 = vor.u32 %v6008, %v6009
      %v6012 = vlaneseq
      %v6013 = vshrl.u32 %v6012, 7
      %v6014 = vsub.s32 0, %v6013
      %v6015 = vrot.slane %v6010, %v6014
      %v6016 = vlaneseq
      %v6017 = vshrl.u32 %v6016, 7
      %v6018 = vsub.s32 1, %v6017
      %v6019 = vrot.slane %v6010, %v6018
      %v6020 = vlaneseq
      %v6021 = vshrl.u32 %v6020, 7
      %v6022 = vsub.s32 2, %v6021
      %v6023 = vrot.slane %v6010, %v6022
      %v6024 = vlaneseq
      %v6025 = vshrl.u32 %v6024, 7
      %v6026 = vsub.s32 3, %v6025
      %v6027 = vrot.slane %v6010, %v6026
      %v6028 = vlaneseq
      %v6029 = vshrl.u32 %v6028, 7
      %v6030 = vsub.s32 4, %v6029
      %v6031 = vrot.slane %v6010, %v6030
      %v6032 = vlaneseq
      %v6033 = vshrl.u32 %v6032, 7
      %v6034 = vsub.s32 5, %v6033
      %v6035 = vrot.slane %v6010, %v6034
      %v6036 = vlaneseq
      %v6037 = vshrl.u32 %v6036, 7
      %v6038 = vsub.s32 6, %v6037
      %v6039 = vrot.slane %v6010, %v6038
      %v6040 = vlaneseq
      %v6041 = vshrl.u32 %v6040, 7
      %v6042 = vsub.s32 7, %v6041
      %v6043 = vrot.slane %v6010, %v6042
      %v6052 = vmul.f32 %v6005, %v6015
      %v6053 = vmul.f32 %v6004, %v6019
      %v6054 = vmul.f32 %v6003, %v6023
      %v6055 = vmul.f32 %v6002, %v6027
      %v6056 = vmul.f32 %v6001, %v6031
      %v6057 = vmul.f32 %v6000, %v6035
      %v6058 = vmul.f32 %v5999, %v6039
      %v6059 = vmul.f32 %v6006, %v6043
      %v6060 = vadd.f32 %v5975, %v6052
      %v6061 = vadd.f32 %v5976, %v6053
      %v6062 = vadd.f32 %v5977, %v6054
      %v6063 = vadd.f32 %v5978, %v6055
      %v6064 = vadd.f32 %v5979, %v6056
      %v6065 = vadd.f32 %v5980, %v6057
      %v6066 = vadd.f32 %v5981, %v6058
      %v6067 = vadd.f32 %v5982, %v6059
      %6068 = vrot.lane.b32.xlu0 %v3790, 123
      %v6069 = vpop.permute.xlu0 %6068
      %6070 = vrot.lane.b32.xlu0 %v3791, 123
      %v6071 = vpop.permute.xlu0 %6070
      %6072 = vrot.lane.b32.xlu0 %v3792, 123
      %v6073 = vpop.permute.xlu0 %6072
      %6074 = vrot.lane.b32.xlu0 %v3793, 123
      %v6075 = vpop.permute.xlu0 %6074
      %6076 = vrot.lane.b32.xlu0 %v3794, 123
      %v6077 = vpop.permute.xlu0 %6076
      %6078 = vrot.lane.b32.xlu0 %v3795, 123
      %v6079 = vpop.permute.xlu0 %6078
      %6080 = vrot.lane.b32.xlu0 %v3796, 123
      %v6081 = vpop.permute.xlu0 %6080
      %6082 = vrot.lane.b32.xlu0 %v3797, 123
      %v6083 = vpop.permute.xlu0 %6082
      %v6084 = vsel %vm2575, %v6081, %v6083
      %v6085 = vsel %vm2575, %v6079, %v6081
      %v6086 = vsel %vm2575, %v6077, %v6079
      %v6087 = vsel %vm2575, %v6075, %v6077
      %v6088 = vsel %vm2575, %v6073, %v6075
      %v6089 = vsel %vm2575, %v6071, %v6073
      %v6090 = vsel %vm2575, %v6069, %v6071
      %v6091 = vsel %vm2575, %v6083, %v6069
      %s6092 = scalar_lea.vmem %s3, 195
      %v6093 = vld [vmem:[%s6092] ss:$8 sm:$0xf]
      %v6094 = vld [vmem:[%s6092] ss:$8 sm:$0xf0]
      %v6095 = vor.u32 %v6093, %v6094
      %v6097 = vlaneseq
      %v6098 = vshrl.u32 %v6097, 7
      %v6099 = vsub.s32 0, %v6098
      %v6100 = vrot.slane %v6095, %v6099
      %v6101 = vlaneseq
      %v6102 = vshrl.u32 %v6101, 7
      %v6103 = vsub.s32 1, %v6102
      %v6104 = vrot.slane %v6095, %v6103
      %v6105 = vlaneseq
      %v6106 = vshrl.u32 %v6105, 7
      %v6107 = vsub.s32 2, %v6106
      %v6108 = vrot.slane %v6095, %v6107
      %v6109 = vlaneseq
      %v6110 = vshrl.u32 %v6109, 7
      %v6111 = vsub.s32 3, %v6110
      %v6112 = vrot.slane %v6095, %v6111
      %v6113 = vlaneseq
      %v6114 = vshrl.u32 %v6113, 7
      %v6115 = vsub.s32 4, %v6114
      %v6116 = vrot.slane %v6095, %v6115
      %v6117 = vlaneseq
      %v6118 = vshrl.u32 %v6117, 7
      %v6119 = vsub.s32 5, %v6118
      %v6120 = vrot.slane %v6095, %v6119
      %v6121 = vlaneseq
      %v6122 = vshrl.u32 %v6121, 7
      %v6123 = vsub.s32 6, %v6122
      %v6124 = vrot.slane %v6095, %v6123
      %v6125 = vlaneseq
      %v6126 = vshrl.u32 %v6125, 7
      %v6127 = vsub.s32 7, %v6126
      %v6128 = vrot.slane %v6095, %v6127
      %v6137 = vmul.f32 %v6090, %v6100
      %v6138 = vmul.f32 %v6089, %v6104
      %v6139 = vmul.f32 %v6088, %v6108
      %v6140 = vmul.f32 %v6087, %v6112
      %v6141 = vmul.f32 %v6086, %v6116
      %v6142 = vmul.f32 %v6085, %v6120
      %v6143 = vmul.f32 %v6084, %v6124
      %v6144 = vmul.f32 %v6091, %v6128
      %v6145 = vadd.f32 %v6060, %v6137
      %v6146 = vadd.f32 %v6061, %v6138
      %v6147 = vadd.f32 %v6062, %v6139
      %v6148 = vadd.f32 %v6063, %v6140
      %v6149 = vadd.f32 %v6064, %v6141
      %v6150 = vadd.f32 %v6065, %v6142
      %v6151 = vadd.f32 %v6066, %v6143
      %v6152 = vadd.f32 %v6067, %v6144
      %6153 = vrot.lane.b32.xlu0 %v3790, 122
      %v6154 = vpop.permute.xlu0 %6153
      %6155 = vrot.lane.b32.xlu0 %v3791, 122
      %v6156 = vpop.permute.xlu0 %6155
      %6157 = vrot.lane.b32.xlu0 %v3792, 122
      %v6158 = vpop.permute.xlu0 %6157
      %6159 = vrot.lane.b32.xlu0 %v3793, 122
      %v6160 = vpop.permute.xlu0 %6159
      %6161 = vrot.lane.b32.xlu0 %v3794, 122
      %v6162 = vpop.permute.xlu0 %6161
      %6163 = vrot.lane.b32.xlu0 %v3795, 122
      %v6164 = vpop.permute.xlu0 %6163
      %6165 = vrot.lane.b32.xlu0 %v3796, 122
      %v6166 = vpop.permute.xlu0 %6165
      %6167 = vrot.lane.b32.xlu0 %v3797, 122
      %v6168 = vpop.permute.xlu0 %6167
      %v6169 = vsel %vm2661, %v6166, %v6168
      %v6170 = vsel %vm2661, %v6164, %v6166
      %v6171 = vsel %vm2661, %v6162, %v6164
      %v6172 = vsel %vm2661, %v6160, %v6162
      %v6173 = vsel %vm2661, %v6158, %v6160
      %v6174 = vsel %vm2661, %v6156, %v6158
      %v6175 = vsel %vm2661, %v6154, %v6156
      %v6176 = vsel %vm2661, %v6168, %v6154
      %s6177 = scalar_lea.vmem %s3, 196
      %v6178 = vld [vmem:[%s6177] ss:$8 sm:$0xf]
      %v6179 = vld [vmem:[%s6177] ss:$8 sm:$0xf0]
      %v6180 = vor.u32 %v6178, %v6179
      %v6182 = vlaneseq
      %v6183 = vshrl.u32 %v6182, 7
      %v6184 = vsub.s32 0, %v6183
      %v6185 = vrot.slane %v6180, %v6184
      %v6186 = vlaneseq
      %v6187 = vshrl.u32 %v6186, 7
      %v6188 = vsub.s32 1, %v6187
      %v6189 = vrot.slane %v6180, %v6188
      %v6190 = vlaneseq
      %v6191 = vshrl.u32 %v6190, 7
      %v6192 = vsub.s32 2, %v6191
      %v6193 = vrot.slane %v6180, %v6192
      %v6194 = vlaneseq
      %v6195 = vshrl.u32 %v6194, 7
      %v6196 = vsub.s32 3, %v6195
      %v6197 = vrot.slane %v6180, %v6196
      %v6198 = vlaneseq
      %v6199 = vshrl.u32 %v6198, 7
      %v6200 = vsub.s32 4, %v6199
      %v6201 = vrot.slane %v6180, %v6200
      %v6202 = vlaneseq
      %v6203 = vshrl.u32 %v6202, 7
      %v6204 = vsub.s32 5, %v6203
      %v6205 = vrot.slane %v6180, %v6204
      %v6206 = vlaneseq
      %v6207 = vshrl.u32 %v6206, 7
      %v6208 = vsub.s32 6, %v6207
      %v6209 = vrot.slane %v6180, %v6208
      %v6210 = vlaneseq
      %v6211 = vshrl.u32 %v6210, 7
      %v6212 = vsub.s32 7, %v6211
      %v6213 = vrot.slane %v6180, %v6212
      %v6222 = vmul.f32 %v6175, %v6185
      %v6223 = vmul.f32 %v6174, %v6189
      %v6224 = vmul.f32 %v6173, %v6193
      %v6225 = vmul.f32 %v6172, %v6197
      %v6226 = vmul.f32 %v6171, %v6201
      %v6227 = vmul.f32 %v6170, %v6205
      %v6228 = vmul.f32 %v6169, %v6209
      %v6229 = vmul.f32 %v6176, %v6213
      %v6230 = vadd.f32 %v6145, %v6222
      %v6231 = vadd.f32 %v6146, %v6223
      %v6232 = vadd.f32 %v6147, %v6224
      %v6233 = vadd.f32 %v6148, %v6225
      %v6234 = vadd.f32 %v6149, %v6226
      %v6235 = vadd.f32 %v6150, %v6227
      %v6236 = vadd.f32 %v6151, %v6228
      %v6237 = vadd.f32 %v6152, %v6229
      %6238 = vrot.lane.b32.xlu0 %v3790, 121
      %v6239 = vpop.permute.xlu0 %6238
      %6240 = vrot.lane.b32.xlu0 %v3791, 121
      %v6241 = vpop.permute.xlu0 %6240
      %6242 = vrot.lane.b32.xlu0 %v3792, 121
      %v6243 = vpop.permute.xlu0 %6242
      %6244 = vrot.lane.b32.xlu0 %v3793, 121
      %v6245 = vpop.permute.xlu0 %6244
      %6246 = vrot.lane.b32.xlu0 %v3794, 121
      %v6247 = vpop.permute.xlu0 %6246
      %6248 = vrot.lane.b32.xlu0 %v3795, 121
      %v6249 = vpop.permute.xlu0 %6248
      %6250 = vrot.lane.b32.xlu0 %v3796, 121
      %v6251 = vpop.permute.xlu0 %6250
      %6252 = vrot.lane.b32.xlu0 %v3797, 121
      %v6253 = vpop.permute.xlu0 %6252
      %v6254 = vsel %vm2747, %v6251, %v6253
      %v6255 = vsel %vm2747, %v6249, %v6251
      %v6256 = vsel %vm2747, %v6247, %v6249
      %v6257 = vsel %vm2747, %v6245, %v6247
      %v6258 = vsel %vm2747, %v6243, %v6245
      %v6259 = vsel %vm2747, %v6241, %v6243
      %v6260 = vsel %vm2747, %v6239, %v6241
      %v6261 = vsel %vm2747, %v6253, %v6239
      %s6262 = scalar_lea.vmem %s3, 197
      %v6263 = vld [vmem:[%s6262] ss:$8 sm:$0xf]
      %v6264 = vld [vmem:[%s6262] ss:$8 sm:$0xf0]
      %v6265 = vor.u32 %v6263, %v6264
      %v6267 = vlaneseq
      %v6268 = vshrl.u32 %v6267, 7
      %v6269 = vsub.s32 0, %v6268
      %v6270 = vrot.slane %v6265, %v6269
      %v6271 = vlaneseq
      %v6272 = vshrl.u32 %v6271, 7
      %v6273 = vsub.s32 1, %v6272
      %v6274 = vrot.slane %v6265, %v6273
      %v6275 = vlaneseq
      %v6276 = vshrl.u32 %v6275, 7
      %v6277 = vsub.s32 2, %v6276
      %v6278 = vrot.slane %v6265, %v6277
      %v6279 = vlaneseq
      %v6280 = vshrl.u32 %v6279, 7
      %v6281 = vsub.s32 3, %v6280
      %v6282 = vrot.slane %v6265, %v6281
      %v6283 = vlaneseq
      %v6284 = vshrl.u32 %v6283, 7
      %v6285 = vsub.s32 4, %v6284
      %v6286 = vrot.slane %v6265, %v6285
      %v6287 = vlaneseq
      %v6288 = vshrl.u32 %v6287, 7
      %v6289 = vsub.s32 5, %v6288
      %v6290 = vrot.slane %v6265, %v6289
      %v6291 = vlaneseq
      %v6292 = vshrl.u32 %v6291, 7
      %v6293 = vsub.s32 6, %v6292
      %v6294 = vrot.slane %v6265, %v6293
      %v6295 = vlaneseq
      %v6296 = vshrl.u32 %v6295, 7
      %v6297 = vsub.s32 7, %v6296
      %v6298 = vrot.slane %v6265, %v6297
      %v6307 = vmul.f32 %v6260, %v6270
      %v6308 = vmul.f32 %v6259, %v6274
      %v6309 = vmul.f32 %v6258, %v6278
      %v6310 = vmul.f32 %v6257, %v6282
      %v6311 = vmul.f32 %v6256, %v6286
      %v6312 = vmul.f32 %v6255, %v6290
      %v6313 = vmul.f32 %v6254, %v6294
      %v6314 = vmul.f32 %v6261, %v6298
      %v6315 = vadd.f32 %v6230, %v6307
      %v6316 = vadd.f32 %v6231, %v6308
      %v6317 = vadd.f32 %v6232, %v6309
      %v6318 = vadd.f32 %v6233, %v6310
      %v6319 = vadd.f32 %v6234, %v6311
      %v6320 = vadd.f32 %v6235, %v6312
      %v6321 = vadd.f32 %v6236, %v6313
      %v6322 = vadd.f32 %v6237, %v6314
      %s6323 = scalar_lea.vmem %s3, 198
      %v6324 = vld [vmem:[%s6323] ss:$8 sm:$0xf]
      %v6325 = vld [vmem:[%s6323] ss:$8 sm:$0xf0]
      %v6326 = vor.u32 %v6324, %v6325
      %v6328 = vlaneseq
      %v6329 = vshrl.u32 %v6328, 7
      %v6330 = vsub.s32 0, %v6329
      %v6331 = vrot.slane %v6326, %v6330
      %v6332 = vlaneseq
      %v6333 = vshrl.u32 %v6332, 7
      %v6334 = vsub.s32 1, %v6333
      %v6335 = vrot.slane %v6326, %v6334
      %v6336 = vlaneseq
      %v6337 = vshrl.u32 %v6336, 7
      %v6338 = vsub.s32 2, %v6337
      %v6339 = vrot.slane %v6326, %v6338
      %v6340 = vlaneseq
      %v6341 = vshrl.u32 %v6340, 7
      %v6342 = vsub.s32 3, %v6341
      %v6343 = vrot.slane %v6326, %v6342
      %v6344 = vlaneseq
      %v6345 = vshrl.u32 %v6344, 7
      %v6346 = vsub.s32 4, %v6345
      %v6347 = vrot.slane %v6326, %v6346
      %v6348 = vlaneseq
      %v6349 = vshrl.u32 %v6348, 7
      %v6350 = vsub.s32 5, %v6349
      %v6351 = vrot.slane %v6326, %v6350
      %v6352 = vlaneseq
      %v6353 = vshrl.u32 %v6352, 7
      %v6354 = vsub.s32 6, %v6353
      %v6355 = vrot.slane %v6326, %v6354
      %v6356 = vlaneseq
      %v6357 = vshrl.u32 %v6356, 7
      %v6358 = vsub.s32 7, %v6357
      %v6359 = vrot.slane %v6326, %v6358
      %v6368 = vmul.f32 %v3820, %v6331
      %v6369 = vmul.f32 %v3819, %v6335
      %v6370 = vmul.f32 %v3818, %v6339
      %v6371 = vmul.f32 %v3817, %v6343
      %v6372 = vmul.f32 %v3816, %v6347
      %v6373 = vmul.f32 %v3815, %v6351
      %v6374 = vmul.f32 %v3814, %v6355
      %v6375 = vmul.f32 %v3821, %v6359
      %v6376 = vadd.f32 %v6315, %v6368
      %v6377 = vadd.f32 %v6316, %v6369
      %v6378 = vadd.f32 %v6317, %v6370
      %v6379 = vadd.f32 %v6318, %v6371
      %v6380 = vadd.f32 %v6319, %v6372
      %v6381 = vadd.f32 %v6320, %v6373
      %v6382 = vadd.f32 %v6321, %v6374
      %v6383 = vadd.f32 %v6322, %v6375
      %s6384 = scalar_lea.vmem %s3, 199
      %v6385 = vld [vmem:[%s6384] ss:$8 sm:$0xf]
      %v6386 = vld [vmem:[%s6384] ss:$8 sm:$0xf0]
      %v6387 = vor.u32 %v6385, %v6386
      %v6389 = vlaneseq
      %v6390 = vshrl.u32 %v6389, 7
      %v6391 = vsub.s32 0, %v6390
      %v6392 = vrot.slane %v6387, %v6391
      %v6393 = vlaneseq
      %v6394 = vshrl.u32 %v6393, 7
      %v6395 = vsub.s32 1, %v6394
      %v6396 = vrot.slane %v6387, %v6395
      %v6397 = vlaneseq
      %v6398 = vshrl.u32 %v6397, 7
      %v6399 = vsub.s32 2, %v6398
      %v6400 = vrot.slane %v6387, %v6399
      %v6401 = vlaneseq
      %v6402 = vshrl.u32 %v6401, 7
      %v6403 = vsub.s32 3, %v6402
      %v6404 = vrot.slane %v6387, %v6403
      %v6405 = vlaneseq
      %v6406 = vshrl.u32 %v6405, 7
      %v6407 = vsub.s32 4, %v6406
      %v6408 = vrot.slane %v6387, %v6407
      %v6409 = vlaneseq
      %v6410 = vshrl.u32 %v6409, 7
      %v6411 = vsub.s32 5, %v6410
      %v6412 = vrot.slane %v6387, %v6411
      %v6413 = vlaneseq
      %v6414 = vshrl.u32 %v6413, 7
      %v6415 = vsub.s32 6, %v6414
      %v6416 = vrot.slane %v6387, %v6415
      %v6417 = vlaneseq
      %v6418 = vshrl.u32 %v6417, 7
      %v6419 = vsub.s32 7, %v6418
      %v6420 = vrot.slane %v6387, %v6419
      %v6429 = vmul.f32 %v3904, %v6392
      %v6430 = vmul.f32 %v3903, %v6396
      %v6431 = vmul.f32 %v3902, %v6400
      %v6432 = vmul.f32 %v3901, %v6404
      %v6433 = vmul.f32 %v3900, %v6408
      %v6434 = vmul.f32 %v3899, %v6412
      %v6435 = vmul.f32 %v3898, %v6416
      %v6436 = vmul.f32 %v3905, %v6420
      %v6437 = vadd.f32 %v6376, %v6429
      %v6438 = vadd.f32 %v6377, %v6430
      %v6439 = vadd.f32 %v6378, %v6431
      %v6440 = vadd.f32 %v6379, %v6432
      %v6441 = vadd.f32 %v6380, %v6433
      %v6442 = vadd.f32 %v6381, %v6434
      %v6443 = vadd.f32 %v6382, %v6435
      %v6444 = vadd.f32 %v6383, %v6436
      %s6445 = scalar_lea.vmem %s3, 256
      %v6446 = vld [vmem:[%s6445] ss:$8 sm:$0xf]
      %v6447 = vld [vmem:[%s6445] ss:$8 sm:$0xf0]
      %v6448 = vor.u32 %v6446, %v6447
      %v6450 = vlaneseq
      %v6451 = vshrl.u32 %v6450, 7
      %v6452 = vsub.s32 0, %v6451
      %v6453 = vrot.slane %v6448, %v6452
      %v6454 = vlaneseq
      %v6455 = vshrl.u32 %v6454, 7
      %v6456 = vsub.s32 1, %v6455
      %v6457 = vrot.slane %v6448, %v6456
      %v6458 = vlaneseq
      %v6459 = vshrl.u32 %v6458, 7
      %v6460 = vsub.s32 2, %v6459
      %v6461 = vrot.slane %v6448, %v6460
      %v6462 = vlaneseq
      %v6463 = vshrl.u32 %v6462, 7
      %v6464 = vsub.s32 3, %v6463
      %v6465 = vrot.slane %v6448, %v6464
      %v6466 = vlaneseq
      %v6467 = vshrl.u32 %v6466, 7
      %v6468 = vsub.s32 4, %v6467
      %v6469 = vrot.slane %v6448, %v6468
      %v6470 = vlaneseq
      %v6471 = vshrl.u32 %v6470, 7
      %v6472 = vsub.s32 5, %v6471
      %v6473 = vrot.slane %v6448, %v6472
      %v6474 = vlaneseq
      %v6475 = vshrl.u32 %v6474, 7
      %v6476 = vsub.s32 6, %v6475
      %v6477 = vrot.slane %v6448, %v6476
      %v6478 = vlaneseq
      %v6479 = vshrl.u32 %v6478, 7
      %v6480 = vsub.s32 7, %v6479
      %v6481 = vrot.slane %v6448, %v6480
      %v6490 = vmul.f32 %v3989, %v6453
      %v6491 = vmul.f32 %v3988, %v6457
      %v6492 = vmul.f32 %v3987, %v6461
      %v6493 = vmul.f32 %v3986, %v6465
      %v6494 = vmul.f32 %v3985, %v6469
      %v6495 = vmul.f32 %v3984, %v6473
      %v6496 = vmul.f32 %v3983, %v6477
      %v6497 = vmul.f32 %v3990, %v6481
      %v6498 = vadd.f32 %v6437, %v6490
      %v6499 = vadd.f32 %v6438, %v6491
      %v6500 = vadd.f32 %v6439, %v6492
      %v6501 = vadd.f32 %v6440, %v6493
      %v6502 = vadd.f32 %v6441, %v6494
      %v6503 = vadd.f32 %v6442, %v6495
      %v6504 = vadd.f32 %v6443, %v6496
      %v6505 = vadd.f32 %v6444, %v6497
      %s6506 = scalar_lea.vmem %s3, 257
      %v6507 = vld [vmem:[%s6506] ss:$8 sm:$0xf]
      %v6508 = vld [vmem:[%s6506] ss:$8 sm:$0xf0]
      %v6509 = vor.u32 %v6507, %v6508
      %v6511 = vlaneseq
      %v6512 = vshrl.u32 %v6511, 7
      %v6513 = vsub.s32 0, %v6512
      %v6514 = vrot.slane %v6509, %v6513
      %v6515 = vlaneseq
      %v6516 = vshrl.u32 %v6515, 7
      %v6517 = vsub.s32 1, %v6516
      %v6518 = vrot.slane %v6509, %v6517
      %v6519 = vlaneseq
      %v6520 = vshrl.u32 %v6519, 7
      %v6521 = vsub.s32 2, %v6520
      %v6522 = vrot.slane %v6509, %v6521
      %v6523 = vlaneseq
      %v6524 = vshrl.u32 %v6523, 7
      %v6525 = vsub.s32 3, %v6524
      %v6526 = vrot.slane %v6509, %v6525
      %v6527 = vlaneseq
      %v6528 = vshrl.u32 %v6527, 7
      %v6529 = vsub.s32 4, %v6528
      %v6530 = vrot.slane %v6509, %v6529
      %v6531 = vlaneseq
      %v6532 = vshrl.u32 %v6531, 7
      %v6533 = vsub.s32 5, %v6532
      %v6534 = vrot.slane %v6509, %v6533
      %v6535 = vlaneseq
      %v6536 = vshrl.u32 %v6535, 7
      %v6537 = vsub.s32 6, %v6536
      %v6538 = vrot.slane %v6509, %v6537
      %v6539 = vlaneseq
      %v6540 = vshrl.u32 %v6539, 7
      %v6541 = vsub.s32 7, %v6540
      %v6542 = vrot.slane %v6509, %v6541
      %v6551 = vmul.f32 %v4074, %v6514
      %v6552 = vmul.f32 %v4073, %v6518
      %v6553 = vmul.f32 %v4072, %v6522
      %v6554 = vmul.f32 %v4071, %v6526
      %v6555 = vmul.f32 %v4070, %v6530
      %v6556 = vmul.f32 %v4069, %v6534
      %v6557 = vmul.f32 %v4068, %v6538
      %v6558 = vmul.f32 %v4075, %v6542
      %v6559 = vadd.f32 %v6498, %v6551
      %v6560 = vadd.f32 %v6499, %v6552
      %v6561 = vadd.f32 %v6500, %v6553
      %v6562 = vadd.f32 %v6501, %v6554
      %v6563 = vadd.f32 %v6502, %v6555
      %v6564 = vadd.f32 %v6503, %v6556
      %v6565 = vadd.f32 %v6504, %v6557
      %v6566 = vadd.f32 %v6505, %v6558
      %s6567 = scalar_lea.vmem %s3, 258
      %v6568 = vld [vmem:[%s6567] ss:$8 sm:$0xf]
      %v6569 = vld [vmem:[%s6567] ss:$8 sm:$0xf0]
      %v6570 = vor.u32 %v6568, %v6569
      %v6572 = vlaneseq
      %v6573 = vshrl.u32 %v6572, 7
      %v6574 = vsub.s32 0, %v6573
      %v6575 = vrot.slane %v6570, %v6574
      %v6576 = vlaneseq
      %v6577 = vshrl.u32 %v6576, 7
      %v6578 = vsub.s32 1, %v6577
      %v6579 = vrot.slane %v6570, %v6578
      %v6580 = vlaneseq
      %v6581 = vshrl.u32 %v6580, 7
      %v6582 = vsub.s32 2, %v6581
      %v6583 = vrot.slane %v6570, %v6582
      %v6584 = vlaneseq
      %v6585 = vshrl.u32 %v6584, 7
      %v6586 = vsub.s32 3, %v6585
      %v6587 = vrot.slane %v6570, %v6586
      %v6588 = vlaneseq
      %v6589 = vshrl.u32 %v6588, 7
      %v6590 = vsub.s32 4, %v6589
      %v6591 = vrot.slane %v6570, %v6590
      %v6592 = vlaneseq
      %v6593 = vshrl.u32 %v6592, 7
      %v6594 = vsub.s32 5, %v6593
      %v6595 = vrot.slane %v6570, %v6594
      %v6596 = vlaneseq
      %v6597 = vshrl.u32 %v6596, 7
      %v6598 = vsub.s32 6, %v6597
      %v6599 = vrot.slane %v6570, %v6598
      %v6600 = vlaneseq
      %v6601 = vshrl.u32 %v6600, 7
      %v6602 = vsub.s32 7, %v6601
      %v6603 = vrot.slane %v6570, %v6602
      %v6612 = vmul.f32 %v4159, %v6575
      %v6613 = vmul.f32 %v4158, %v6579
      %v6614 = vmul.f32 %v4157, %v6583
      %v6615 = vmul.f32 %v4156, %v6587
      %v6616 = vmul.f32 %v4155, %v6591
      %v6617 = vmul.f32 %v4154, %v6595
      %v6618 = vmul.f32 %v4153, %v6599
      %v6619 = vmul.f32 %v4160, %v6603
      %v6620 = vadd.f32 %v6559, %v6612
      %v6621 = vadd.f32 %v6560, %v6613
      %v6622 = vadd.f32 %v6561, %v6614
      %v6623 = vadd.f32 %v6562, %v6615
      %v6624 = vadd.f32 %v6563, %v6616
      %v6625 = vadd.f32 %v6564, %v6617
      %v6626 = vadd.f32 %v6565, %v6618
      %v6627 = vadd.f32 %v6566, %v6619
      %s6628 = scalar_lea.vmem %s3, 259
      %v6629 = vld [vmem:[%s6628] ss:$8 sm:$0xf]
      %v6630 = vld [vmem:[%s6628] ss:$8 sm:$0xf0]
      %v6631 = vor.u32 %v6629, %v6630
      %v6633 = vlaneseq
      %v6634 = vshrl.u32 %v6633, 7
      %v6635 = vsub.s32 0, %v6634
      %v6636 = vrot.slane %v6631, %v6635
      %v6637 = vlaneseq
      %v6638 = vshrl.u32 %v6637, 7
      %v6639 = vsub.s32 1, %v6638
      %v6640 = vrot.slane %v6631, %v6639
      %v6641 = vlaneseq
      %v6642 = vshrl.u32 %v6641, 7
      %v6643 = vsub.s32 2, %v6642
      %v6644 = vrot.slane %v6631, %v6643
      %v6645 = vlaneseq
      %v6646 = vshrl.u32 %v6645, 7
      %v6647 = vsub.s32 3, %v6646
      %v6648 = vrot.slane %v6631, %v6647
      %v6649 = vlaneseq
      %v6650 = vshrl.u32 %v6649, 7
      %v6651 = vsub.s32 4, %v6650
      %v6652 = vrot.slane %v6631, %v6651
      %v6653 = vlaneseq
      %v6654 = vshrl.u32 %v6653, 7
      %v6655 = vsub.s32 5, %v6654
      %v6656 = vrot.slane %v6631, %v6655
      %v6657 = vlaneseq
      %v6658 = vshrl.u32 %v6657, 7
      %v6659 = vsub.s32 6, %v6658
      %v6660 = vrot.slane %v6631, %v6659
      %v6661 = vlaneseq
      %v6662 = vshrl.u32 %v6661, 7
      %v6663 = vsub.s32 7, %v6662
      %v6664 = vrot.slane %v6631, %v6663
      %v6673 = vmul.f32 %v4244, %v6636
      %v6674 = vmul.f32 %v4243, %v6640
      %v6675 = vmul.f32 %v4242, %v6644
      %v6676 = vmul.f32 %v4241, %v6648
      %v6677 = vmul.f32 %v4240, %v6652
      %v6678 = vmul.f32 %v4239, %v6656
      %v6679 = vmul.f32 %v4238, %v6660
      %v6680 = vmul.f32 %v4245, %v6664
      %v6681 = vadd.f32 %v6620, %v6673
      %v6682 = vadd.f32 %v6621, %v6674
      %v6683 = vadd.f32 %v6622, %v6675
      %v6684 = vadd.f32 %v6623, %v6676
      %v6685 = vadd.f32 %v6624, %v6677
      %v6686 = vadd.f32 %v6625, %v6678
      %v6687 = vadd.f32 %v6626, %v6679
      %v6688 = vadd.f32 %v6627, %v6680
      %s6689 = scalar_lea.vmem %s3, 260
      %v6690 = vld [vmem:[%s6689] ss:$8 sm:$0xf]
      %v6691 = vld [vmem:[%s6689] ss:$8 sm:$0xf0]
      %v6692 = vor.u32 %v6690, %v6691
      %v6694 = vlaneseq
      %v6695 = vshrl.u32 %v6694, 7
      %v6696 = vsub.s32 0, %v6695
      %v6697 = vrot.slane %v6692, %v6696
      %v6698 = vlaneseq
      %v6699 = vshrl.u32 %v6698, 7
      %v6700 = vsub.s32 1, %v6699
      %v6701 = vrot.slane %v6692, %v6700
      %v6702 = vlaneseq
      %v6703 = vshrl.u32 %v6702, 7
      %v6704 = vsub.s32 2, %v6703
      %v6705 = vrot.slane %v6692, %v6704
      %v6706 = vlaneseq
      %v6707 = vshrl.u32 %v6706, 7
      %v6708 = vsub.s32 3, %v6707
      %v6709 = vrot.slane %v6692, %v6708
      %v6710 = vlaneseq
      %v6711 = vshrl.u32 %v6710, 7
      %v6712 = vsub.s32 4, %v6711
      %v6713 = vrot.slane %v6692, %v6712
      %v6714 = vlaneseq
      %v6715 = vshrl.u32 %v6714, 7
      %v6716 = vsub.s32 5, %v6715
      %v6717 = vrot.slane %v6692, %v6716
      %v6718 = vlaneseq
      %v6719 = vshrl.u32 %v6718, 7
      %v6720 = vsub.s32 6, %v6719
      %v6721 = vrot.slane %v6692, %v6720
      %v6722 = vlaneseq
      %v6723 = vshrl.u32 %v6722, 7
      %v6724 = vsub.s32 7, %v6723
      %v6725 = vrot.slane %v6692, %v6724
      %v6734 = vmul.f32 %v4329, %v6697
      %v6735 = vmul.f32 %v4328, %v6701
      %v6736 = vmul.f32 %v4327, %v6705
      %v6737 = vmul.f32 %v4326, %v6709
      %v6738 = vmul.f32 %v4325, %v6713
      %v6739 = vmul.f32 %v4324, %v6717
      %v6740 = vmul.f32 %v4323, %v6721
      %v6741 = vmul.f32 %v4330, %v6725
      %v6742 = vadd.f32 %v6681, %v6734
      %v6743 = vadd.f32 %v6682, %v6735
      %v6744 = vadd.f32 %v6683, %v6736
      %v6745 = vadd.f32 %v6684, %v6737
      %v6746 = vadd.f32 %v6685, %v6738
      %v6747 = vadd.f32 %v6686, %v6739
      %v6748 = vadd.f32 %v6687, %v6740
      %v6749 = vadd.f32 %v6688, %v6741
      %s6750 = scalar_lea.vmem %s3, 261
      %v6751 = vld [vmem:[%s6750] ss:$8 sm:$0xf]
      %v6752 = vld [vmem:[%s6750] ss:$8 sm:$0xf0]
      %v6753 = vor.u32 %v6751, %v6752
      %v6755 = vlaneseq
      %v6756 = vshrl.u32 %v6755, 7
      %v6757 = vsub.s32 0, %v6756
      %v6758 = vrot.slane %v6753, %v6757
      %v6759 = vlaneseq
      %v6760 = vshrl.u32 %v6759, 7
      %v6761 = vsub.s32 1, %v6760
      %v6762 = vrot.slane %v6753, %v6761
      %v6763 = vlaneseq
      %v6764 = vshrl.u32 %v6763, 7
      %v6765 = vsub.s32 2, %v6764
      %v6766 = vrot.slane %v6753, %v6765
      %v6767 = vlaneseq
      %v6768 = vshrl.u32 %v6767, 7
      %v6769 = vsub.s32 3, %v6768
      %v6770 = vrot.slane %v6753, %v6769
      %v6771 = vlaneseq
      %v6772 = vshrl.u32 %v6771, 7
      %v6773 = vsub.s32 4, %v6772
      %v6774 = vrot.slane %v6753, %v6773
      %v6775 = vlaneseq
      %v6776 = vshrl.u32 %v6775, 7
      %v6777 = vsub.s32 5, %v6776
      %v6778 = vrot.slane %v6753, %v6777
      %v6779 = vlaneseq
      %v6780 = vshrl.u32 %v6779, 7
      %v6781 = vsub.s32 6, %v6780
      %v6782 = vrot.slane %v6753, %v6781
      %v6783 = vlaneseq
      %v6784 = vshrl.u32 %v6783, 7
      %v6785 = vsub.s32 7, %v6784
      %v6786 = vrot.slane %v6753, %v6785
      %v6795 = vmul.f32 %v4414, %v6758
      %v6796 = vmul.f32 %v4413, %v6762
      %v6797 = vmul.f32 %v4412, %v6766
      %v6798 = vmul.f32 %v4411, %v6770
      %v6799 = vmul.f32 %v4410, %v6774
      %v6800 = vmul.f32 %v4409, %v6778
      %v6801 = vmul.f32 %v4408, %v6782
      %v6802 = vmul.f32 %v4415, %v6786
      %v6803 = vadd.f32 %v6742, %v6795
      %v6804 = vadd.f32 %v6743, %v6796
      %v6805 = vadd.f32 %v6744, %v6797
      %v6806 = vadd.f32 %v6745, %v6798
      %v6807 = vadd.f32 %v6746, %v6799
      %v6808 = vadd.f32 %v6747, %v6800
      %v6809 = vadd.f32 %v6748, %v6801
      %v6810 = vadd.f32 %v6749, %v6802
      %s6811 = scalar_lea.vmem %s3, 262
      %v6812 = vld [vmem:[%s6811] ss:$8 sm:$0xf]
      %v6813 = vld [vmem:[%s6811] ss:$8 sm:$0xf0]
      %v6814 = vor.u32 %v6812, %v6813
      %v6816 = vlaneseq
      %v6817 = vshrl.u32 %v6816, 7
      %v6818 = vsub.s32 0, %v6817
      %v6819 = vrot.slane %v6814, %v6818
      %v6820 = vlaneseq
      %v6821 = vshrl.u32 %v6820, 7
      %v6822 = vsub.s32 1, %v6821
      %v6823 = vrot.slane %v6814, %v6822
      %v6824 = vlaneseq
      %v6825 = vshrl.u32 %v6824, 7
      %v6826 = vsub.s32 2, %v6825
      %v6827 = vrot.slane %v6814, %v6826
      %v6828 = vlaneseq
      %v6829 = vshrl.u32 %v6828, 7
      %v6830 = vsub.s32 3, %v6829
      %v6831 = vrot.slane %v6814, %v6830
      %v6832 = vlaneseq
      %v6833 = vshrl.u32 %v6832, 7
      %v6834 = vsub.s32 4, %v6833
      %v6835 = vrot.slane %v6814, %v6834
      %v6836 = vlaneseq
      %v6837 = vshrl.u32 %v6836, 7
      %v6838 = vsub.s32 5, %v6837
      %v6839 = vrot.slane %v6814, %v6838
      %v6840 = vlaneseq
      %v6841 = vshrl.u32 %v6840, 7
      %v6842 = vsub.s32 6, %v6841
      %v6843 = vrot.slane %v6814, %v6842
      %v6844 = vlaneseq
      %v6845 = vshrl.u32 %v6844, 7
      %v6846 = vsub.s32 7, %v6845
      %v6847 = vrot.slane %v6814, %v6846
      %v6856 = vmul.f32 %v4499, %v6819
      %v6857 = vmul.f32 %v4498, %v6823
      %v6858 = vmul.f32 %v4497, %v6827
      %v6859 = vmul.f32 %v4496, %v6831
      %v6860 = vmul.f32 %v4495, %v6835
      %v6861 = vmul.f32 %v4494, %v6839
      %v6862 = vmul.f32 %v4493, %v6843
      %v6863 = vmul.f32 %v4500, %v6847
      %v6864 = vadd.f32 %v6803, %v6856
      %v6865 = vadd.f32 %v6804, %v6857
      %v6866 = vadd.f32 %v6805, %v6858
      %v6867 = vadd.f32 %v6806, %v6859
      %v6868 = vadd.f32 %v6807, %v6860
      %v6869 = vadd.f32 %v6808, %v6861
      %v6870 = vadd.f32 %v6809, %v6862
      %v6871 = vadd.f32 %v6810, %v6863
      %s6872 = scalar_lea.vmem %s3, 263
      %v6873 = vld [vmem:[%s6872] ss:$8 sm:$0xf]
      %v6874 = vld [vmem:[%s6872] ss:$8 sm:$0xf0]
      %v6875 = vor.u32 %v6873, %v6874
      %v6877 = vlaneseq
      %v6878 = vshrl.u32 %v6877, 7
      %v6879 = vsub.s32 0, %v6878
      %v6880 = vrot.slane %v6875, %v6879
      %v6881 = vlaneseq
      %v6882 = vshrl.u32 %v6881, 7
      %v6883 = vsub.s32 1, %v6882
      %v6884 = vrot.slane %v6875, %v6883
      %v6885 = vlaneseq
      %v6886 = vshrl.u32 %v6885, 7
      %v6887 = vsub.s32 2, %v6886
      %v6888 = vrot.slane %v6875, %v6887
      %v6889 = vlaneseq
      %v6890 = vshrl.u32 %v6889, 7
      %v6891 = vsub.s32 3, %v6890
      %v6892 = vrot.slane %v6875, %v6891
      %v6893 = vlaneseq
      %v6894 = vshrl.u32 %v6893, 7
      %v6895 = vsub.s32 4, %v6894
      %v6896 = vrot.slane %v6875, %v6895
      %v6897 = vlaneseq
      %v6898 = vshrl.u32 %v6897, 7
      %v6899 = vsub.s32 5, %v6898
      %v6900 = vrot.slane %v6875, %v6899
      %v6901 = vlaneseq
      %v6902 = vshrl.u32 %v6901, 7
      %v6903 = vsub.s32 6, %v6902
      %v6904 = vrot.slane %v6875, %v6903
      %v6905 = vlaneseq
      %v6906 = vshrl.u32 %v6905, 7
      %v6907 = vsub.s32 7, %v6906
      %v6908 = vrot.slane %v6875, %v6907
      %v6917 = vmul.f32 %v4584, %v6880
      %v6918 = vmul.f32 %v4583, %v6884
      %v6919 = vmul.f32 %v4582, %v6888
      %v6920 = vmul.f32 %v4581, %v6892
      %v6921 = vmul.f32 %v4580, %v6896
      %v6922 = vmul.f32 %v4579, %v6900
      %v6923 = vmul.f32 %v4578, %v6904
      %v6924 = vmul.f32 %v4585, %v6908
      %v6925 = vadd.f32 %v6864, %v6917
      %v6926 = vadd.f32 %v6865, %v6918
      %v6927 = vadd.f32 %v6866, %v6919
      %v6928 = vadd.f32 %v6867, %v6920
      %v6929 = vadd.f32 %v6868, %v6921
      %v6930 = vadd.f32 %v6869, %v6922
      %v6931 = vadd.f32 %v6870, %v6923
      %v6932 = vadd.f32 %v6871, %v6924
      %s6933 = scalar_lea.vmem %s3, 320
      %v6934 = vld [vmem:[%s6933] ss:$8 sm:$0xf]
      %v6935 = vld [vmem:[%s6933] ss:$8 sm:$0xf0]
      %v6936 = vor.u32 %v6934, %v6935
      %v6938 = vlaneseq
      %v6939 = vshrl.u32 %v6938, 7
      %v6940 = vsub.s32 0, %v6939
      %v6941 = vrot.slane %v6936, %v6940
      %v6942 = vlaneseq
      %v6943 = vshrl.u32 %v6942, 7
      %v6944 = vsub.s32 1, %v6943
      %v6945 = vrot.slane %v6936, %v6944
      %v6946 = vlaneseq
      %v6947 = vshrl.u32 %v6946, 7
      %v6948 = vsub.s32 2, %v6947
      %v6949 = vrot.slane %v6936, %v6948
      %v6950 = vlaneseq
      %v6951 = vshrl.u32 %v6950, 7
      %v6952 = vsub.s32 3, %v6951
      %v6953 = vrot.slane %v6936, %v6952
      %v6954 = vlaneseq
      %v6955 = vshrl.u32 %v6954, 7
      %v6956 = vsub.s32 4, %v6955
      %v6957 = vrot.slane %v6936, %v6956
      %v6958 = vlaneseq
      %v6959 = vshrl.u32 %v6958, 7
      %v6960 = vsub.s32 5, %v6959
      %v6961 = vrot.slane %v6936, %v6960
      %v6962 = vlaneseq
      %v6963 = vshrl.u32 %v6962, 7
      %v6964 = vsub.s32 6, %v6963
      %v6965 = vrot.slane %v6936, %v6964
      %v6966 = vlaneseq
      %v6967 = vshrl.u32 %v6966, 7
      %v6968 = vsub.s32 7, %v6967
      %v6969 = vrot.slane %v6936, %v6968
      %v6978 = vmul.f32 %v4669, %v6941
      %v6979 = vmul.f32 %v4668, %v6945
      %v6980 = vmul.f32 %v4667, %v6949
      %v6981 = vmul.f32 %v4666, %v6953
      %v6982 = vmul.f32 %v4665, %v6957
      %v6983 = vmul.f32 %v4664, %v6961
      %v6984 = vmul.f32 %v4663, %v6965
      %v6985 = vmul.f32 %v4670, %v6969
      %v6986 = vadd.f32 %v6925, %v6978
      %v6987 = vadd.f32 %v6926, %v6979
      %v6988 = vadd.f32 %v6927, %v6980
      %v6989 = vadd.f32 %v6928, %v6981
      %v6990 = vadd.f32 %v6929, %v6982
      %v6991 = vadd.f32 %v6930, %v6983
      %v6992 = vadd.f32 %v6931, %v6984
      %v6993 = vadd.f32 %v6932, %v6985
      %s6994 = scalar_lea.vmem %s3, 321
      %v6995 = vld [vmem:[%s6994] ss:$8 sm:$0xf]
      %v6996 = vld [vmem:[%s6994] ss:$8 sm:$0xf0]
      %v6997 = vor.u32 %v6995, %v6996
      %v6999 = vlaneseq
      %v7000 = vshrl.u32 %v6999, 7
      %v7001 = vsub.s32 0, %v7000
      %v7002 = vrot.slane %v6997, %v7001
      %v7003 = vlaneseq
      %v7004 = vshrl.u32 %v7003, 7
      %v7005 = vsub.s32 1, %v7004
      %v7006 = vrot.slane %v6997, %v7005
      %v7007 = vlaneseq
      %v7008 = vshrl.u32 %v7007, 7
      %v7009 = vsub.s32 2, %v7008
      %v7010 = vrot.slane %v6997, %v7009
      %v7011 = vlaneseq
      %v7012 = vshrl.u32 %v7011, 7
      %v7013 = vsub.s32 3, %v7012
      %v7014 = vrot.slane %v6997, %v7013
      %v7015 = vlaneseq
      %v7016 = vshrl.u32 %v7015, 7
      %v7017 = vsub.s32 4, %v7016
      %v7018 = vrot.slane %v6997, %v7017
      %v7019 = vlaneseq
      %v7020 = vshrl.u32 %v7019, 7
      %v7021 = vsub.s32 5, %v7020
      %v7022 = vrot.slane %v6997, %v7021
      %v7023 = vlaneseq
      %v7024 = vshrl.u32 %v7023, 7
      %v7025 = vsub.s32 6, %v7024
      %v7026 = vrot.slane %v6997, %v7025
      %v7027 = vlaneseq
      %v7028 = vshrl.u32 %v7027, 7
      %v7029 = vsub.s32 7, %v7028
      %v7030 = vrot.slane %v6997, %v7029
      %v7039 = vmul.f32 %v4754, %v7002
      %v7040 = vmul.f32 %v4753, %v7006
      %v7041 = vmul.f32 %v4752, %v7010
      %v7042 = vmul.f32 %v4751, %v7014
      %v7043 = vmul.f32 %v4750, %v7018
      %v7044 = vmul.f32 %v4749, %v7022
      %v7045 = vmul.f32 %v4748, %v7026
      %v7046 = vmul.f32 %v4755, %v7030
      %v7047 = vadd.f32 %v6986, %v7039
      %v7048 = vadd.f32 %v6987, %v7040
      %v7049 = vadd.f32 %v6988, %v7041
      %v7050 = vadd.f32 %v6989, %v7042
      %v7051 = vadd.f32 %v6990, %v7043
      %v7052 = vadd.f32 %v6991, %v7044
      %v7053 = vadd.f32 %v6992, %v7045
      %v7054 = vadd.f32 %v6993, %v7046
      %s7055 = scalar_lea.vmem %s3, 322
      %v7056 = vld [vmem:[%s7055] ss:$8 sm:$0xf]
      %v7057 = vld [vmem:[%s7055] ss:$8 sm:$0xf0]
      %v7058 = vor.u32 %v7056, %v7057
      %v7060 = vlaneseq
      %v7061 = vshrl.u32 %v7060, 7
      %v7062 = vsub.s32 0, %v7061
      %v7063 = vrot.slane %v7058, %v7062
      %v7064 = vlaneseq
      %v7065 = vshrl.u32 %v7064, 7
      %v7066 = vsub.s32 1, %v7065
      %v7067 = vrot.slane %v7058, %v7066
      %v7068 = vlaneseq
      %v7069 = vshrl.u32 %v7068, 7
      %v7070 = vsub.s32 2, %v7069
      %v7071 = vrot.slane %v7058, %v7070
      %v7072 = vlaneseq
      %v7073 = vshrl.u32 %v7072, 7
      %v7074 = vsub.s32 3, %v7073
      %v7075 = vrot.slane %v7058, %v7074
      %v7076 = vlaneseq
      %v7077 = vshrl.u32 %v7076, 7
      %v7078 = vsub.s32 4, %v7077
      %v7079 = vrot.slane %v7058, %v7078
      %v7080 = vlaneseq
      %v7081 = vshrl.u32 %v7080, 7
      %v7082 = vsub.s32 5, %v7081
      %v7083 = vrot.slane %v7058, %v7082
      %v7084 = vlaneseq
      %v7085 = vshrl.u32 %v7084, 7
      %v7086 = vsub.s32 6, %v7085
      %v7087 = vrot.slane %v7058, %v7086
      %v7088 = vlaneseq
      %v7089 = vshrl.u32 %v7088, 7
      %v7090 = vsub.s32 7, %v7089
      %v7091 = vrot.slane %v7058, %v7090
      %v7100 = vmul.f32 %v4839, %v7063
      %v7101 = vmul.f32 %v4838, %v7067
      %v7102 = vmul.f32 %v4837, %v7071
      %v7103 = vmul.f32 %v4836, %v7075
      %v7104 = vmul.f32 %v4835, %v7079
      %v7105 = vmul.f32 %v4834, %v7083
      %v7106 = vmul.f32 %v4833, %v7087
      %v7107 = vmul.f32 %v4840, %v7091
      %v7108 = vadd.f32 %v7047, %v7100
      %v7109 = vadd.f32 %v7048, %v7101
      %v7110 = vadd.f32 %v7049, %v7102
      %v7111 = vadd.f32 %v7050, %v7103
      %v7112 = vadd.f32 %v7051, %v7104
      %v7113 = vadd.f32 %v7052, %v7105
      %v7114 = vadd.f32 %v7053, %v7106
      %v7115 = vadd.f32 %v7054, %v7107
      %s7116 = scalar_lea.vmem %s3, 323
      %v7117 = vld [vmem:[%s7116] ss:$8 sm:$0xf]
      %v7118 = vld [vmem:[%s7116] ss:$8 sm:$0xf0]
      %v7119 = vor.u32 %v7117, %v7118
      %v7121 = vlaneseq
      %v7122 = vshrl.u32 %v7121, 7
      %v7123 = vsub.s32 0, %v7122
      %v7124 = vrot.slane %v7119, %v7123
      %v7125 = vlaneseq
      %v7126 = vshrl.u32 %v7125, 7
      %v7127 = vsub.s32 1, %v7126
      %v7128 = vrot.slane %v7119, %v7127
      %v7129 = vlaneseq
      %v7130 = vshrl.u32 %v7129, 7
      %v7131 = vsub.s32 2, %v7130
      %v7132 = vrot.slane %v7119, %v7131
      %v7133 = vlaneseq
      %v7134 = vshrl.u32 %v7133, 7
      %v7135 = vsub.s32 3, %v7134
      %v7136 = vrot.slane %v7119, %v7135
      %v7137 = vlaneseq
      %v7138 = vshrl.u32 %v7137, 7
      %v7139 = vsub.s32 4, %v7138
      %v7140 = vrot.slane %v7119, %v7139
      %v7141 = vlaneseq
      %v7142 = vshrl.u32 %v7141, 7
      %v7143 = vsub.s32 5, %v7142
      %v7144 = vrot.slane %v7119, %v7143
      %v7145 = vlaneseq
      %v7146 = vshrl.u32 %v7145, 7
      %v7147 = vsub.s32 6, %v7146
      %v7148 = vrot.slane %v7119, %v7147
      %v7149 = vlaneseq
      %v7150 = vshrl.u32 %v7149, 7
      %v7151 = vsub.s32 7, %v7150
      %v7152 = vrot.slane %v7119, %v7151
      %v7161 = vmul.f32 %v4924, %v7124
      %v7162 = vmul.f32 %v4923, %v7128
      %v7163 = vmul.f32 %v4922, %v7132
      %v7164 = vmul.f32 %v4921, %v7136
      %v7165 = vmul.f32 %v4920, %v7140
      %v7166 = vmul.f32 %v4919, %v7144
      %v7167 = vmul.f32 %v4918, %v7148
      %v7168 = vmul.f32 %v4925, %v7152
      %v7169 = vadd.f32 %v7108, %v7161
      %v7170 = vadd.f32 %v7109, %v7162
      %v7171 = vadd.f32 %v7110, %v7163
      %v7172 = vadd.f32 %v7111, %v7164
      %v7173 = vadd.f32 %v7112, %v7165
      %v7174 = vadd.f32 %v7113, %v7166
      %v7175 = vadd.f32 %v7114, %v7167
      %v7176 = vadd.f32 %v7115, %v7168
      %s7177 = scalar_lea.vmem %s3, 324
      %v7178 = vld [vmem:[%s7177] ss:$8 sm:$0xf]
      %v7179 = vld [vmem:[%s7177] ss:$8 sm:$0xf0]
      %v7180 = vor.u32 %v7178, %v7179
      %v7182 = vlaneseq
      %v7183 = vshrl.u32 %v7182, 7
      %v7184 = vsub.s32 0, %v7183
      %v7185 = vrot.slane %v7180, %v7184
      %v7186 = vlaneseq
      %v7187 = vshrl.u32 %v7186, 7
      %v7188 = vsub.s32 1, %v7187
      %v7189 = vrot.slane %v7180, %v7188
      %v7190 = vlaneseq
      %v7191 = vshrl.u32 %v7190, 7
      %v7192 = vsub.s32 2, %v7191
      %v7193 = vrot.slane %v7180, %v7192
      %v7194 = vlaneseq
      %v7195 = vshrl.u32 %v7194, 7
      %v7196 = vsub.s32 3, %v7195
      %v7197 = vrot.slane %v7180, %v7196
      %v7198 = vlaneseq
      %v7199 = vshrl.u32 %v7198, 7
      %v7200 = vsub.s32 4, %v7199
      %v7201 = vrot.slane %v7180, %v7200
      %v7202 = vlaneseq
      %v7203 = vshrl.u32 %v7202, 7
      %v7204 = vsub.s32 5, %v7203
      %v7205 = vrot.slane %v7180, %v7204
      %v7206 = vlaneseq
      %v7207 = vshrl.u32 %v7206, 7
      %v7208 = vsub.s32 6, %v7207
      %v7209 = vrot.slane %v7180, %v7208
      %v7210 = vlaneseq
      %v7211 = vshrl.u32 %v7210, 7
      %v7212 = vsub.s32 7, %v7211
      %v7213 = vrot.slane %v7180, %v7212
      %v7222 = vmul.f32 %v5009, %v7185
      %v7223 = vmul.f32 %v5008, %v7189
      %v7224 = vmul.f32 %v5007, %v7193
      %v7225 = vmul.f32 %v5006, %v7197
      %v7226 = vmul.f32 %v5005, %v7201
      %v7227 = vmul.f32 %v5004, %v7205
      %v7228 = vmul.f32 %v5003, %v7209
      %v7229 = vmul.f32 %v5010, %v7213
      %v7230 = vadd.f32 %v7169, %v7222
      %v7231 = vadd.f32 %v7170, %v7223
      %v7232 = vadd.f32 %v7171, %v7224
      %v7233 = vadd.f32 %v7172, %v7225
      %v7234 = vadd.f32 %v7173, %v7226
      %v7235 = vadd.f32 %v7174, %v7227
      %v7236 = vadd.f32 %v7175, %v7228
      %v7237 = vadd.f32 %v7176, %v7229
      %v7238 = vmul.f32 %v7230, %v253
      %v7239 = vmul.f32 %v7231, %v254
      %v7240 = vmul.f32 %v7232, %v255
      %v7241 = vmul.f32 %v7233, %v256
      %v7242 = vmul.f32 %v7234, %v257
      %v7243 = vmul.f32 %v7235, %v258
      %v7244 = vmul.f32 %v7236, %v259
      %v7245 = vmul.f32 %v7237, %v260
      %s7246 = scalar_lea.vmem %s4, 1
      %v7247 = vld [vmem:[%s7246] ss:$2 sm:$0xff]
      %v7249 = vlaneseq
      %v7250 = vshrl.u32 %v7249, 7
      %v7251 = vsub.s32 0, %v7250
      %v7252 = vrot.slane %v7247, %v7251
      %v7253 = vlaneseq
      %v7254 = vshrl.u32 %v7253, 7
      %v7255 = vsub.s32 1, %v7254
      %v7256 = vrot.slane %v7247, %v7255
      %v7257 = vlaneseq
      %v7258 = vshrl.u32 %v7257, 7
      %v7259 = vsub.s32 2, %v7258
      %v7260 = vrot.slane %v7247, %v7259
      %v7261 = vlaneseq
      %v7262 = vshrl.u32 %v7261, 7
      %v7263 = vsub.s32 3, %v7262
      %v7264 = vrot.slane %v7247, %v7263
      %v7265 = vlaneseq
      %v7266 = vshrl.u32 %v7265, 7
      %v7267 = vsub.s32 4, %v7266
      %v7268 = vrot.slane %v7247, %v7267
      %v7269 = vlaneseq
      %v7270 = vshrl.u32 %v7269, 7
      %v7271 = vsub.s32 5, %v7270
      %v7272 = vrot.slane %v7247, %v7271
      %v7273 = vlaneseq
      %v7274 = vshrl.u32 %v7273, 7
      %v7275 = vsub.s32 6, %v7274
      %v7276 = vrot.slane %v7247, %v7275
      %v7277 = vlaneseq
      %v7278 = vshrl.u32 %v7277, 7
      %v7279 = vsub.s32 7, %v7278
      %v7280 = vrot.slane %v7247, %v7279
      %v7289 = vadd.f32 %v7238, %v7252
      %v7290 = vadd.f32 %v7239, %v7256
      %v7291 = vadd.f32 %v7240, %v7260
      %v7292 = vadd.f32 %v7241, %v7264
      %v7293 = vadd.f32 %v7242, %v7268
      %v7294 = vadd.f32 %v7243, %v7272
      %v7295 = vadd.f32 %v7244, %v7276
      %v7296 = vadd.f32 %v7245, %v7280
      %v7297 = vadd.f32 %v7289, %v245
      %v7298 = vadd.f32 %v7290, %v246
      %v7299 = vadd.f32 %v7291, %v247
      %v7300 = vadd.f32 %v7292, %v248
      %v7301 = vadd.f32 %v7293, %v249
      %v7302 = vadd.f32 %v7294, %v250
      %v7303 = vadd.f32 %v7295, %v251
      %v7304 = vadd.f32 %v7296, %v252
      %v7305 = vmax.f32 %v7297, 0.0
      %v7306 = vmax.f32 %v7298, 0.0
      %v7307 = vmax.f32 %v7299, 0.0
      %v7308 = vmax.f32 %v7300, 0.0
      %v7309 = vmax.f32 %v7301, 0.0
      %v7310 = vmax.f32 %v7302, 0.0
      %v7311 = vmax.f32 %v7303, 0.0
      %v7312 = vmax.f32 %v7304, 0.0
      %7313 = vst [vmem:[%s244] sm:$0xff] %v7305
      %7314 = vst [vmem:[%s244 + $0x8] sm:$0xff] %v7306
      %7315 = vst [vmem:[%s244 + $0x10] sm:$0xff] %v7307
      %7316 = vst [vmem:[%s244 + $0x18] sm:$0xff] %v7308
      %7317 = vst [vmem:[%s244 + $0x20] sm:$0xff] %v7309
      %7318 = vst [vmem:[%s244 + $0x28] sm:$0xff] %v7310
      %7319 = vst [vmem:[%s244 + $0x30] sm:$0xff] %v7311
      %7320 = vst [vmem:[%s244 + $0x38] sm:$0xff] %v7312
      %p7321 = scmp.lt.s32.totalorder %s16, 7
      %s7322 = scalar_select %p7321, %s16, 7
      %s7323 = smul.addr %s7322, 8
      %s7324 = smul.addr %s7323, 8
      %s7325 = scalar_lea.vmem %s5, %s7324
      // Predicated region
      $region41: #{sparse_residual_block.1} parent=39 // pred_check
        %p7326 = pneg %p149
      $region42: #{sparse_residual_block.1} parent=39 // pred_check_branch
        %7328 = sbr.rel (%p7326) target = $region44
      $region43: #{sparse_residual_block.1} parent=39 // pred_region
        _
      $region44: #{sparse_residual_block.1} parent=39 // pred_fallthru
        _
    $region40: #{sparse_residual_block.1} parent=5 // pred_fallthru
      _
    %p7329 = scmp.le.s32.totalorder 2, %s11
    // Predicated region
    $region45: #{sparse_residual_block.1} parent=5 // pred_check
      %p7330 = pneg %p7329
    $region46: #{sparse_residual_block.1} parent=5 // pred_check_branch
      %7332 = sbr.rel (%p7330) target = $region48
    $region47: #{sparse_residual_block.1} parent=5 // pred_region
      %s7333 = ssub.s32 %s11, 2
      // Predicated region
      $region49: #{sparse_residual_block.1} parent=47 // pred_check
        %p7334 = pneg %p155
      $region50: #{sparse_residual_block.1} parent=47 // pred_check_branch
        %7336 = sbr.rel (%p7334) target = $region52
      $region51: #{sparse_residual_block.1} parent=47 // pred_region
        %p7337 = scmp.lt.s32.totalorder %s17, 7
        %s7338 = scalar_select %p7337, %s17, 7
        %s7339 = smul.addr %s7338, 8
        %s7340 = smul.addr %s7339, 8
        %s7341 = scalar_lea.vmem %s5, %s7340
      $region52: #{sparse_residual_block.1} parent=47 // pred_fallthru
        _
    $region48: #{sparse_residual_block.1} parent=5 // pred_fallthru
      _
  $region6: #{sparse_residual_block.1} parent=0 // loop_footer
    %s15 = sadd.s32 1, %s11
  $region7: #{sparse_residual_block.1} parent=0 // loop_footer_branch
    %10 = sbr.rel target = $region3
  $region8: #{sparse_residual_block.1} parent=0 // loop_exit
    _

</llo_original>
